<compile_context>
chip_gen: v7x
topology: tpu7x:2x2x1
jax: 0.10.0
libtpu: 0.0.40
codegen_flags: <defaults>
</compile_context>

<pallas_src>
import functools

import jax
import jax.numpy as jnp
from jax.experimental import pallas as pl
from jax.experimental.pallas import tpu as pltpu

BN_EPS = 1e-3                       # matches BatchNorm2d(..., eps=0.001)
_VMEM_LIMIT = 32 * 1024 * 1024      # > v5e 16 MiB scoped default, safe for v7x 64 MiB


def _round_up(x, m):
    return (x + m - 1) // m * m


def _pick_tile_m(m):
    # Row tile: large enough to pipeline DMA vs MXU, small enough for v7x VMEM.
    if m >= 2048:
        return 512
    if m >= 512:
        return 256
    return _round_up(max(m, 16), 16)


# ---------------------------------------------------------------------------
# Pallas kernels
# ---------------------------------------------------------------------------
def _conv_stats_kernel(p_ref, w_ref, y_ref, s1_ref, s2_ref):
    # p_ref: (tm, Kp) bf16 patches, w_ref: (Kp, Op) bf16 weights
    # y_ref: (tm, Op) fp32 conv output tile
    # s1_ref/s2_ref: (1, 1, Op) per-tile partial sum / sum-of-squares (fp32)
    y = jnp.dot(p_ref[...], w_ref[...], preferred_element_type=jnp.float32)
    y_ref[...] = y
    s1_ref[...] = jnp.sum(y, axis=0, keepdims=True)[None]
    s2_ref[...] = jnp.sum(y * y, axis=0, keepdims=True)[None]


def _bn_relu_kernel(y_ref, s_ref, gb_ref, o_ref, *, count, eps):
    # y_ref: (tm, Op) fp32 conv output; s_ref: (2, Op) [sum; sumsq] over all rows
    # gb_ref: (2, Op) [gamma; beta]; o_ref: (tm, Op)
    inv = jnp.float32(1.0 / count)
    mean = s_ref[0:1, :] * inv
    ex2 = s_ref[1:2, :] * inv
    var = jnp.maximum(ex2 - mean * mean, 0.0)          # fp32, guarded
    scale = gb_ref[0:1, :] * jax.lax.rsqrt(var + eps)   # rsqrt -> EUP slot, ~free
    shift = gb_ref[1:2, :] - mean * scale
    o_ref[...] = jnp.maximum(y_ref[...] * scale + shift, 0.0)


def _max9_kernel(*refs):
    # refs[:9]: nine shifted (tm, C) window taps; refs[9]: (tm, C) output
    o_ref = refs[-1]
    acc = refs[0][...]
    for r in refs[1:-1]:
        acc = jnp.maximum(acc, r[...])
    o_ref[...] = acc


# ---------------------------------------------------------------------------
# Glue: patch extraction (cheap slicing / reshapes only)
# TODO(synk): replace the HBM-materialized im2col with in-kernel tap-summed matmuls
# (manual make_async_copy of shifted slices) to remove the KH*KW x patch blow-up.
# ---------------------------------------------------------------------------
def _im2col_bf16(x, kh, kw, sh, sw, ph, pw):
    # x: (N, H, W, C) fp32 -> (N*OH*OW, KH*KW*C) bf16 patch matrix
    n, h, w, c = x.shape
    oh = (h + 2 * ph - kh) // sh + 1
    ow = (w + 2 * pw - kw) // sw + 1
    xb = x.astype(jnp.bfloat16)
    if ph or pw:
        xb = jnp.pad(xb, ((0, 0), (ph, ph), (pw, pw), (0, 0)))
    cols = []
    for i in range(kh):
        for j in range(kw):
            cols.append(xb[:, i:i + sh * (oh - 1) + 1:sh,
                           j:j + sw * (ow - 1) + 1:sw, :])
    if len(cols) == 1:
        patches = cols[0][..., None, :]            # 1x1 conv: no blow-up
    else:
        patches = jnp.stack(cols, axis=3)          # (N, OH, OW, KH*KW, C)
    return patches.reshape(n * oh * ow, kh * kw * c), oh, ow


def _compiler_params():
    return pltpu.CompilerParams(dimension_semantics=("parallel",),
                                vmem_limit_bytes=_VMEM_LIMIT)


def conv_bn_relu(x, w, gamma, beta, stride=(1, 1), padding=(0, 0)):
    # x: (N, H, W, Cin) NHWC fp32 ; w: (O, Cin, KH, KW) PyTorch OIHW
    n, h, wid, c = x.shape
    o, ci, kh, kw = w.shape
    assert ci == c
    sh, sw = stride
    ph, pw = padding

    p2d, oh, ow = _im2col_bf16(x, kh, kw, sh, sw, ph, pw)
    m, k = p2d.shape

    tm = _pick_tile_m(m)
    mp = _round_up(m, tm)
    kp = _round_up(k, 128)            # lane-dense patch loads
    op = _round_up(o, 128)            # lane-dense (unmasked) stores
    gm = mp // tm

    p2d = jnp.pad(p2d, ((0, mp - m), (0, kp - k)))
    w2d = jnp.transpose(w, (2, 3, 1, 0)).reshape(k, o)          # (kh,kw,cin) order
    w2d = jnp.pad(w2d, ((0, kp - k), (0, op - o))).astype(jnp.bfloat16)
    gb = jnp.stack([jnp.pad(gamma, (0, op - o)),
                    jnp.pad(beta, (0, op - o))], axis=0).astype(jnp.float32)

    cparams = _compiler_params()

    # Pass 1: tiled matmul + per-tile channel statistics (grid axis "parallel").
    y, part_sum, part_sq = pl.pallas_call(
        _conv_stats_kernel,
        grid=(gm,),
        in_specs=[
            pl.BlockSpec((tm, kp), lambda i: (i, 0)),
            pl.BlockSpec((kp, op), lambda i: (0, 0)),
        ],
        out_specs=[
            pl.BlockSpec((tm, op), lambda i: (i, 0)),
            pl.BlockSpec((1, 1, op), lambda i: (i, 0, 0)),
            pl.BlockSpec((1, 1, op), lambda i: (i, 0, 0)),
        ],
        out_shape=[
            jax.ShapeDtypeStruct((mp, op), jnp.float32),
            jax.ShapeDtypeStruct((gm, 1, op), jnp.float32),
            jax.ShapeDtypeStruct((gm, 1, op), jnp.float32),
        ],
        compiler_params=cparams,
    )(p2d, w2d)

    # Tiny cross-tile reduction over <= gm partials (O-length vectors): JAX glue.
    stats = jnp.concatenate([jnp.sum(part_sum, axis=0),
                             jnp.sum(part_sq, axis=0)], axis=0)   # (2, op) fp32

    # Pass 2: normalize + affine + ReLU, tiled over the same grid.
    out = pl.pallas_call(
        functools.partial(_bn_relu_kernel, count=float(m), eps=BN_EPS),
        grid=(gm,),
        in_specs=[
            pl.BlockSpec((tm, op), lambda i: (i, 0)),
            pl.BlockSpec((2, op), lambda i: (0, 0)),
            pl.BlockSpec((2, op), lambda i: (0, 0)),
        ],
        out_specs=pl.BlockSpec((tm, op), lambda i: (i, 0)),
        out_shape=jax.ShapeDtypeStruct((mp, op), jnp.float32),
        compiler_params=cparams,
    )(y, stats, gb)

    return out[:m, :o].reshape(n, oh, ow, o)


def max_pool_3x3_s2(x):
    # F.max_pool2d(x, kernel_size=3, stride=2), no padding, floor mode.
    n, h, w, c = x.shape
    oh = (h - 3) // 2 + 1
    ow = (w - 3) // 2 + 1
    m = n * oh * ow

    taps = []
    for i in range(3):
        for j in range(3):
            taps.append(x[:, i:i + 2 * (oh - 1) + 1:2,
                          j:j + 2 * (ow - 1) + 1:2, :].reshape(m, c))

    tm = _pick_tile_m(m)
    mp = _round_up(m, tm)
    gm = mp // tm
    taps = [jnp.pad(t, ((0, mp - m), (0, 0))) for t in taps]

    out = pl.pallas_call(
        _max9_kernel,
        grid=(gm,),
        in_specs=[pl.BlockSpec((tm, c), lambda i: (i, 0))] * 9,
        out_specs=pl.BlockSpec((tm, c), lambda i: (i, 0)),
        out_shape=jax.ShapeDtypeStruct((mp, c), x.dtype),
        compiler_params=_compiler_params(),
    )(*taps)
    return out[:m].reshape(n, oh, ow, c)


# ---------------------------------------------------------------------------
# Parameters (deterministic synthetic init; shapes from InceptionStem.__init__)
# ---------------------------------------------------------------------------
_LAYER_SPECS = {
    #  name            cin  cout  kernel  stride  pad
    "Conv2d_1":       (3,   32, (3, 3), (2, 2), (0, 0)),
    "Conv2d_2":       (32,  32, (3, 3), (1, 1), (0, 0)),
    "Conv2d_3":       (32,  64, (3, 3), (1, 1), (1, 1)),
    "Conv2d_4":       (64,  96, (3, 3), (2, 2), (0, 0)),
    "Conv2d_5a_1x1":  (160, 64, (1, 1), (1, 1), (0, 0)),
    "Conv2d_5b_3x3":  (64,  96, (3, 3), (1, 1), (0, 0)),
    "Conv2d_6a_1x1":  (160, 64, (1, 1), (1, 1), (0, 0)),
    "Conv2d_6b_7x1":  (64,  64, (7, 1), (1, 1), (3, 0)),
    "Conv2d_6c_1x7":  (64,  64, (1, 7), (1, 1), (0, 3)),
    "Conv2d_6d_3x3":  (64,  96, (3, 3), (1, 1), (0, 0)),
    "Conv2d_7":       (192, 192, (3, 3), (2, 2), (0, 0)),
}


def init_params(key):
    params = {}
    for name, (cin, cout, kk, s, p) in _LAYER_SPECS.items():
        key, kw_, kg, kb = jax.random.split(key, 4)
        fan_in = cin * kk[0] * kk[1]
        w = jax.random.normal(kw_, (cout, cin, kk[0], kk[1]), jnp.float32) / jnp.sqrt(fan_in)
        gamma = 1.0 + 0.1 * jax.random.normal(kg, (cout,), jnp.float32)
        beta = 0.1 * jax.random.normal(kb, (cout,), jnp.float32)
        params[name] = {"w": w, "gamma": gamma, "beta": beta, "stride": s, "pad": p}
    return params


# ---------------------------------------------------------------------------
# InceptionStem forward (mirrors the PyTorch forward exactly)
# ---------------------------------------------------------------------------
def inception_stem_forward(params, x_nchw):
    # NOTE: like the PyTorch module, the first conv is hard-coded to 3 input channels.
    x = jnp.transpose(x_nchw, (0, 2, 3, 1))  # NCHW -> NHWC

    def bc(name, inp):
        p = params[name]
        return conv_bn_relu(inp, p["w"], p["gamma"], p["beta"], p["stride"], p["pad"])

    x = bc("Conv2d_1", x)
    x = bc("Conv2d_2", x)
    x = bc("Conv2d_3", x)
    x1 = bc("Conv2d_4", x)
    x2 = max_pool_3x3_s2(x)
    x = jnp.concatenate([x1, x2], axis=-1)        # torch.cat(dim=1) == channel axis

    # Fuse the two 1x1 branch heads (same 160-ch input) into one 128-wide,
    # lane-dense matmul.  Exact: conv is independent per output channel and BN
    # statistics are per-channel.
    pa, pb = params["Conv2d_5a_1x1"], params["Conv2d_6a_1x1"]
    w_f = jnp.concatenate([pa["w"], pb["w"]], axis=0)
    g_f = jnp.concatenate([pa["gamma"], pb["gamma"]], axis=0)
    b_f = jnp.concatenate([pa["beta"], pb["beta"]], axis=0)
    x12 = conv_bn_relu(x, w_f, g_f, b_f, (1, 1), (0, 0))
    x1, x2 = x12[..., :64], x12[..., 64:]

    x1 = bc("Conv2d_5b_3x3", x1)
    x2 = bc("Conv2d_6b_7x1", x2)
    x2 = bc("Conv2d_6c_1x7", x2)
    x2 = bc("Conv2d_6d_3x3", x2)
    x = jnp.concatenate([x1, x2], axis=-1)

    x1 = bc("Conv2d_7", x)
    x2 = max_pool_3x3_s2(x)
    out = jnp.concatenate([x1, x2], axis=-1)
    # TODO(synk): write the two branches of each cat directly into channel-offset
    # regions of a pre-sized output via out-spec index maps to skip the concat copy.
    return jnp.transpose(out, (0, 3, 1, 2))       # back to NCHW


if __name__ == "__main__":
    key = jax.random.PRNGKey(0)
    kparam, kx = jax.random.split(key)
    params = init_params(kparam)
    # small input consistent with the stem (3 channels; 35x35 keeps all convs/pools valid)
    x = jax.random.normal(kx, (2, 3, 35, 35), jnp.float32)

    fwd = jax.jit(functools.partial(inception_stem_forward, params))
    out = jax.block_until_ready(fwd(x))

    assert out.shape == (2, 384, 2, 2), out.shape
    assert bool(jnp.all(jnp.isfinite(out)))
    print("KERNEL_OK")
</pallas_src>

<mosaic_0001>
module attributes {stable_mosaic.version = 11 : i64} {
  func.func @_bn_relu_kernel(%arg0: i32, %arg1: memref<256x128xf32, #tpu.memory_space<vmem>>, %arg2: memref<2x128xf32, #tpu.memory_space<vmem>>, %arg3: memref<2x128xf32, #tpu.memory_space<vmem>>, %arg4: memref<256x128xf32, #tpu.memory_space<vmem>>) attributes {dimension_semantics = [#tpu.dimension_semantics<parallel>], iteration_bounds = array<i64: 3>, scalar_prefetch = 0 : i64, scratch_operands = 0 : i64, tpu.core_type = #tpu.core_type<tc>, window_params = [{transform_indices = @transform_0, window_bounds = array<i64: 256, 128>}, {pipeline_mode = #tpu.pipeline_mode<synchronous>, transform_indices = @transform_1, window_bounds = array<i64: 2, 128>}, {pipeline_mode = #tpu.pipeline_mode<synchronous>, transform_indices = @transform_2, window_bounds = array<i64: 2, 128>}, {transform_indices = @transform_3, window_bounds = array<i64: 256, 128>}]} {
    %c0 = arith.constant 0 : index
    %c0_0 = arith.constant 0 : index
    %0 = vector.load %arg2[%c0, %c0_0] : memref<2x128xf32, #tpu.memory_space<vmem>>, vector<1x128xf32>
    %cst = arith.constant 0.00173010386 : f32
    %1 = vector.broadcast %cst : f32 to vector<1x128xf32>
    %2 = arith.mulf %0, %1 : vector<1x128xf32>
    %c1 = arith.constant 1 : index
    %c0_1 = arith.constant 0 : index
    %3 = vector.load %arg2[%c1, %c0_1] : memref<2x128xf32, #tpu.memory_space<vmem>>, vector<1x128xf32>
    %cst_2 = arith.constant 0.00173010386 : f32
    %4 = vector.broadcast %cst_2 : f32 to vector<1x128xf32>
    %5 = arith.mulf %3, %4 : vector<1x128xf32>
    %6 = arith.mulf %2, %2 : vector<1x128xf32>
    %7 = arith.subf %5, %6 : vector<1x128xf32>
    %cst_3 = arith.constant 0.000000e+00 : f32
    %8 = vector.broadcast %cst_3 : f32 to vector<1x128xf32>
    %9 = arith.maximumf %7, %8 : vector<1x128xf32>
    %c0_4 = arith.constant 0 : index
    %c0_5 = arith.constant 0 : index
    %10 = vector.load %arg3[%c0_4, %c0_5] : memref<2x128xf32, #tpu.memory_space<vmem>>, vector<1x128xf32>
    %cst_6 = arith.constant 1.000000e-03 : f32
    %11 = vector.broadcast %cst_6 : f32 to vector<1x128xf32>
    %12 = arith.addf %9, %11 : vector<1x128xf32>
    %13 = math.rsqrt %12 : vector<1x128xf32>
    %14 = arith.mulf %10, %13 : vector<1x128xf32>
    %c1_7 = arith.constant 1 : index
    %c0_8 = arith.constant 0 : index
    %15 = vector.load %arg3[%c1_7, %c0_8] : memref<2x128xf32, #tpu.memory_space<vmem>>, vector<1x128xf32>
    %16 = arith.mulf %2, %14 : vector<1x128xf32>
    %17 = arith.subf %15, %16 : vector<1x128xf32>
    %c0_9 = arith.constant 0 : index
    %c0_10 = arith.constant 0 : index
    %18 = vector.load %arg1[%c0_9, %c0_10] : memref<256x128xf32, #tpu.memory_space<vmem>>, vector<256x128xf32>
    %19 = vector.broadcast %14 : vector<1x128xf32> to vector<256x128xf32>
    %20 = arith.mulf %18, %19 : vector<256x128xf32>
    %21 = vector.broadcast %17 : vector<1x128xf32> to vector<256x128xf32>
    %22 = arith.addf %20, %21 : vector<256x128xf32>
    %cst_11 = arith.constant 0.000000e+00 : f32
    %23 = vector.broadcast %cst_11 : f32 to vector<256x128xf32>
    %24 = arith.maximumf %22, %23 : vector<256x128xf32>
    %c0_12 = arith.constant 0 : index
    %c0_13 = arith.constant 0 : index
    %25 = vector.load %arg4[%c0_12, %c0_13] : memref<256x128xf32, #tpu.memory_space<vmem>>, vector<256x128xf32>
    tpu.vector_store %arg4[%c0_12, %c0_13], %24 {strides = array<i32>} : memref<256x128xf32, #tpu.memory_space<vmem>>, vector<256x128xf32>,
    return
  }
  func.func @transform_0(%arg0: i32) -> (i32, i32) {
    %c0_i32 = arith.constant 0 : i32
    %c0_i32_0 = arith.constant 0 : i32
    return %arg0, %c0_i32 : i32, i32
  }
  func.func @transform_1(%arg0: i32) -> (i32, i32) {
    %c0_i32 = arith.constant 0 : i32
    %c0_i32_0 = arith.constant 0 : i32
    %c0_i32_1 = arith.constant 0 : i32
    return %c0_i32, %c0_i32_0 : i32, i32
  }
  func.func @transform_2(%arg0: i32) -> (i32, i32) {
    %c0_i32 = arith.constant 0 : i32
    %c0_i32_0 = arith.constant 0 : i32
    %c0_i32_1 = arith.constant 0 : i32
    return %c0_i32, %c0_i32_0 : i32, i32
  }
  func.func @transform_3(%arg0: i32) -> (i32, i32) {
    %c0_i32 = arith.constant 0 : i32
    %c0_i32_0 = arith.constant 0 : i32
    return %arg0, %c0_i32 : i32, i32
  }
}

module attributes {stable_mosaic.version = 11 : i64} {
  func.func @_conv_stats_kernel(%arg0: i32, %arg1: memref<256x128xbf16, #tpu.memory_space<vmem>>, %arg2: memref<128x128xbf16, #tpu.memory_space<vmem>>, %arg3: memref<256x128xf32, #tpu.memory_space<vmem>>, %arg4: memref<1x1x128xf32, #tpu.memory_space<vmem>>, %arg5: memref<1x1x128xf32, #tpu.memory_space<vmem>>) attributes {dimension_semantics = [#tpu.dimension_semantics<parallel>], iteration_bounds = array<i64: 3>, scalar_prefetch = 0 : i64, scratch_operands = 0 : i64, tpu.core_type = #tpu.core_type<tc>, window_params = [{transform_indices = @transform_0, window_bounds = array<i64: 256, 128>}, {pipeline_mode = #tpu.pipeline_mode<synchronous>, transform_indices = @transform_1, window_bounds = array<i64: 128, 128>}, {transform_indices = @transform_2, window_bounds = array<i64: 256, 128>}, {transform_indices = @transform_3, window_bounds = array<i64: 1, 1, 128>}, {transform_indices = @transform_4, window_bounds = array<i64: 1, 1, 128>}]} {
    %c0 = arith.constant 0 : index
    %c0_0 = arith.constant 0 : index
    %0 = vector.load %arg1[%c0, %c0_0] : memref<256x128xbf16, #tpu.memory_space<vmem>>, vector<256x128xbf16>
    %c0_1 = arith.constant 0 : index
    %c0_2 = arith.constant 0 : index
    %1 = vector.load %arg2[%c0_1, %c0_2] : memref<128x128xbf16, #tpu.memory_space<vmem>>, vector<128x128xbf16>
    %cst = arith.constant dense<0.000000e+00> : vector<256x128xf32>
    %2 = tpu.matmul %0, %1, %cst {dimension_numbers = #tpu.dot_dimension_numbers<[1], [0], [0], [1], [0, 0, 1, 1], [], []>} : vector<256x128xbf16>, vector<128x128xbf16>, vector<256x128xf32> -> vector<256x128xf32>
    %c0_3 = arith.constant 0 : index
    %c0_4 = arith.constant 0 : index
    %3 = vector.load %arg3[%c0_3, %c0_4] : memref<256x128xf32, #tpu.memory_space<vmem>>, vector<256x128xf32>
    tpu.vector_store %arg3[%c0_3, %c0_4], %2 {strides = array<i32>} : memref<256x128xf32, #tpu.memory_space<vmem>>, vector<256x128xf32>,
    %cst_5 = arith.constant dense<0.000000e+00> : vector<128xf32>
    %4 = vector.multi_reduction <add>, %2, %cst_5 [0] : vector<256x128xf32> to vector<128xf32>
    %5 = vector.shape_cast %4 : vector<128xf32> to vector<1x128xf32>
    %6 = vector.shape_cast %5 : vector<1x128xf32> to vector<1x1x128xf32>
    %c0_6 = arith.constant 0 : index
    %c0_7 = arith.constant 0 : index
    %c0_8 = arith.constant 0 : index
    %7 = vector.load %arg4[%c0_6, %c0_7, %c0_8] : memref<1x1x128xf32, #tpu.memory_space<vmem>>, vector<1x1x128xf32>
    tpu.vector_store %arg4[%c0_6, %c0_7, %c0_8], %6 {strides = array<i32>} : memref<1x1x128xf32, #tpu.memory_space<vmem>>, vector<1x1x128xf32>,
    %8 = arith.mulf %2, %2 : vector<256x128xf32>
    %cst_9 = arith.constant dense<0.000000e+00> : vector<128xf32>
    %9 = vector.multi_reduction <add>, %8, %cst_9 [0] : vector<256x128xf32> to vector<128xf32>
    %10 = vector.shape_cast %9 : vector<128xf32> to vector<1x128xf32>
    %11 = vector.shape_cast %10 : vector<1x128xf32> to vector<1x1x128xf32>
    %c0_10 = arith.constant 0 : index
    %c0_11 = arith.constant 0 : index
    %c0_12 = arith.constant 0 : index
    %12 = vector.load %arg5[%c0_10, %c0_11, %c0_12] : memref<1x1x128xf32, #tpu.memory_space<vmem>>, vector<1x1x128xf32>
    tpu.vector_store %arg5[%c0_10, %c0_11, %c0_12], %11 {strides = array<i32>} : memref<1x1x128xf32, #tpu.memory_space<vmem>>, vector<1x1x128xf32>,
    return
  }
  func.func @transform_0(%arg0: i32) -> (i32, i32) {
    %c0_i32 = arith.constant 0 : i32
    %c0_i32_0 = arith.constant 0 : i32
    return %arg0, %c0_i32 : i32, i32
  }
  func.func @transform_1(%arg0: i32) -> (i32, i32) {
    %c0_i32 = arith.constant 0 : i32
    %c0_i32_0 = arith.constant 0 : i32
    %c0_i32_1 = arith.constant 0 : i32
    return %c0_i32, %c0_i32_0 : i32, i32
  }
  func.func @transform_2(%arg0: i32) -> (i32, i32) {
    %c0_i32 = arith.constant 0 : i32
    %c0_i32_0 = arith.constant 0 : i32
    return %arg0, %c0_i32 : i32, i32
  }
  func.func @transform_3(%arg0: i32) -> (i32, i32, i32) {
    %c0_i32 = arith.constant 0 : i32
    %c0_i32_0 = arith.constant 0 : i32
    %c0_i32_1 = arith.constant 0 : i32
    return %arg0, %c0_i32, %c0_i32_0 : i32, i32, i32
  }
  func.func @transform_4(%arg0: i32) -> (i32, i32, i32) {
    %c0_i32 = arith.constant 0 : i32
    %c0_i32_0 = arith.constant 0 : i32
    %c0_i32_1 = arith.constant 0 : i32
    return %arg0, %c0_i32, %c0_i32_0 : i32, i32, i32
  }
}

module attributes {stable_mosaic.version = 11 : i64} {
  func.func @_conv_stats_kernel(%arg0: i32, %arg1: memref<464x384xbf16, #tpu.memory_space<vmem>>, %arg2: memref<384x128xbf16, #tpu.memory_space<vmem>>, %arg3: memref<464x128xf32, #tpu.memory_space<vmem>>, %arg4: memref<1x1x128xf32, #tpu.memory_space<vmem>>, %arg5: memref<1x1x128xf32, #tpu.memory_space<vmem>>) attributes {dimension_semantics = [#tpu.dimension_semantics<parallel>], iteration_bounds = array<i64: 1>, scalar_prefetch = 0 : i64, scratch_operands = 0 : i64, tpu.core_type = #tpu.core_type<tc>, window_params = [{transform_indices = @transform_0, window_bounds = array<i64: 464, 384>}, {pipeline_mode = #tpu.pipeline_mode<synchronous>, transform_indices = @transform_1, window_bounds = array<i64: 384, 128>}, {transform_indices = @transform_2, window_bounds = array<i64: 464, 128>}, {transform_indices = @transform_3, window_bounds = array<i64: 1, 1, 128>}, {transform_indices = @transform_4, window_bounds = array<i64: 1, 1, 128>}]} {
    %c0 = arith.constant 0 : index
    %c0_0 = arith.constant 0 : index
    %0 = vector.load %arg1[%c0, %c0_0] : memref<464x384xbf16, #tpu.memory_space<vmem>>, vector<464x384xbf16>
    %c0_1 = arith.constant 0 : index
    %c0_2 = arith.constant 0 : index
    %1 = vector.load %arg2[%c0_1, %c0_2] : memref<384x128xbf16, #tpu.memory_space<vmem>>, vector<384x128xbf16>
    %cst = arith.constant dense<0.000000e+00> : vector<464x128xf32>
    %2 = tpu.matmul %0, %1, %cst {dimension_numbers = #tpu.dot_dimension_numbers<[1], [0], [0], [1], [0, 0, 1, 1], [], []>} : vector<464x384xbf16>, vector<384x128xbf16>, vector<464x128xf32> -> vector<464x128xf32>
    %c0_3 = arith.constant 0 : index
    %c0_4 = arith.constant 0 : index
    %3 = vector.load %arg3[%c0_3, %c0_4] : memref<464x128xf32, #tpu.memory_space<vmem>>, vector<464x128xf32>
    tpu.vector_store %arg3[%c0_3, %c0_4], %2 {strides = array<i32>} : memref<464x128xf32, #tpu.memory_space<vmem>>, vector<464x128xf32>,
    %cst_5 = arith.constant dense<0.000000e+00> : vector<128xf32>
    %4 = vector.multi_reduction <add>, %2, %cst_5 [0] : vector<464x128xf32> to vector<128xf32>
    %5 = vector.shape_cast %4 : vector<128xf32> to vector<1x128xf32>
    %6 = vector.shape_cast %5 : vector<1x128xf32> to vector<1x1x128xf32>
    %c0_6 = arith.constant 0 : index
    %c0_7 = arith.constant 0 : index
    %c0_8 = arith.constant 0 : index
    %7 = vector.load %arg4[%c0_6, %c0_7, %c0_8] : memref<1x1x128xf32, #tpu.memory_space<vmem>>, vector<1x1x128xf32>
    tpu.vector_store %arg4[%c0_6, %c0_7, %c0_8], %6 {strides = array<i32>} : memref<1x1x128xf32, #tpu.memory_space<vmem>>, vector<1x1x128xf32>,
    %8 = arith.mulf %2, %2 : vector<464x128xf32>
    %cst_9 = arith.constant dense<0.000000e+00> : vector<128xf32>
    %9 = vector.multi_reduction <add>, %8, %cst_9 [0] : vector<464x128xf32> to vector<128xf32>
    %10 = vector.shape_cast %9 : vector<128xf32> to vector<1x128xf32>
    %11 = vector.shape_cast %10 : vector<1x128xf32> to vector<1x1x128xf32>
    %c0_10 = arith.constant 0 : index
    %c0_11 = arith.constant 0 : index
    %c0_12 = arith.constant 0 : index
    %12 = vector.load %arg5[%c0_10, %c0_11, %c0_12] : memref<1x1x128xf32, #tpu.memory_space<vmem>>, vector<1x1x128xf32>
    tpu.vector_store %arg5[%c0_10, %c0_11, %c0_12], %11 {strides = array<i32>} : memref<1x1x128xf32, #tpu.memory_space<vmem>>, vector<1x1x128xf32>,
    return
  }
  func.func @transform_0(%arg0: i32) -> (i32, i32) {
    %c0_i32 = arith.constant 0 : i32
    %c0_i32_0 = arith.constant 0 : i32
    return %arg0, %c0_i32 : i32, i32
  }
  func.func @transform_1(%arg0: i32) -> (i32, i32) {
    %c0_i32 = arith.constant 0 : i32
    %c0_i32_0 = arith.constant 0 : i32
    %c0_i32_1 = arith.constant 0 : i32
    return %c0_i32, %c0_i32_0 : i32, i32
  }
  func.func @transform_2(%arg0: i32) -> (i32, i32) {
    %c0_i32 = arith.constant 0 : i32
    %c0_i32_0 = arith.constant 0 : i32
    return %arg0, %c0_i32 : i32, i32
  }
  func.func @transform_3(%arg0: i32) -> (i32, i32, i32) {
    %c0_i32 = arith.constant 0 : i32
    %c0_i32_0 = arith.constant 0 : i32
    %c0_i32_1 = arith.constant 0 : i32
    return %arg0, %c0_i32, %c0_i32_0 : i32, i32, i32
  }
  func.func @transform_4(%arg0: i32) -> (i32, i32, i32) {
    %c0_i32 = arith.constant 0 : i32
    %c0_i32_0 = arith.constant 0 : i32
    %c0_i32_1 = arith.constant 0 : i32
    return %arg0, %c0_i32, %c0_i32_0 : i32, i32, i32
  }
}

module attributes {stable_mosaic.version = 11 : i64} {
  func.func @_bn_relu_kernel(%arg0: i32, %arg1: memref<464x128xf32, #tpu.memory_space<vmem>>, %arg2: memref<2x128xf32, #tpu.memory_space<vmem>>, %arg3: memref<2x128xf32, #tpu.memory_space<vmem>>, %arg4: memref<464x128xf32, #tpu.memory_space<vmem>>) attributes {dimension_semantics = [#tpu.dimension_semantics<parallel>], iteration_bounds = array<i64: 1>, scalar_prefetch = 0 : i64, scratch_operands = 0 : i64, tpu.core_type = #tpu.core_type<tc>, window_params = [{transform_indices = @transform_0, window_bounds = array<i64: 464, 128>}, {pipeline_mode = #tpu.pipeline_mode<synchronous>, transform_indices = @transform_1, window_bounds = array<i64: 2, 128>}, {pipeline_mode = #tpu.pipeline_mode<synchronous>, transform_indices = @transform_2, window_bounds = array<i64: 2, 128>}, {transform_indices = @transform_3, window_bounds = array<i64: 464, 128>}]} {
    %c0 = arith.constant 0 : index
    %c0_0 = arith.constant 0 : index
    %0 = vector.load %arg2[%c0, %c0_0] : memref<2x128xf32, #tpu.memory_space<vmem>>, vector<1x128xf32>
    %cst = arith.constant 0.00222222228 : f32
    %1 = vector.broadcast %cst : f32 to vector<1x128xf32>
    %2 = arith.mulf %0, %1 : vector<1x128xf32>
    %c1 = arith.constant 1 : index
    %c0_1 = arith.constant 0 : index
    %3 = vector.load %arg2[%c1, %c0_1] : memref<2x128xf32, #tpu.memory_space<vmem>>, vector<1x128xf32>
    %cst_2 = arith.constant 0.00222222228 : f32
    %4 = vector.broadcast %cst_2 : f32 to vector<1x128xf32>
    %5 = arith.mulf %3, %4 : vector<1x128xf32>
    %6 = arith.mulf %2, %2 : vector<1x128xf32>
    %7 = arith.subf %5, %6 : vector<1x128xf32>
    %cst_3 = arith.constant 0.000000e+00 : f32
    %8 = vector.broadcast %cst_3 : f32 to vector<1x128xf32>
    %9 = arith.maximumf %7, %8 : vector<1x128xf32>
    %c0_4 = arith.constant 0 : index
    %c0_5 = arith.constant 0 : index
    %10 = vector.load %arg3[%c0_4, %c0_5] : memref<2x128xf32, #tpu.memory_space<vmem>>, vector<1x128xf32>
    %cst_6 = arith.constant 1.000000e-03 : f32
    %11 = vector.broadcast %cst_6 : f32 to vector<1x128xf32>
    %12 = arith.addf %9, %11 : vector<1x128xf32>
    %13 = math.rsqrt %12 : vector<1x128xf32>
    %14 = arith.mulf %10, %13 : vector<1x128xf32>
    %c1_7 = arith.constant 1 : index
    %c0_8 = arith.constant 0 : index
    %15 = vector.load %arg3[%c1_7, %c0_8] : memref<2x128xf32, #tpu.memory_space<vmem>>, vector<1x128xf32>
    %16 = arith.mulf %2, %14 : vector<1x128xf32>
    %17 = arith.subf %15, %16 : vector<1x128xf32>
    %c0_9 = arith.constant 0 : index
    %c0_10 = arith.constant 0 : index
    %18 = vector.load %arg1[%c0_9, %c0_10] : memref<464x128xf32, #tpu.memory_space<vmem>>, vector<464x128xf32>
    %19 = vector.broadcast %14 : vector<1x128xf32> to vector<464x128xf32>
    %20 = arith.mulf %18, %19 : vector<464x128xf32>
    %21 = vector.broadcast %17 : vector<1x128xf32> to vector<464x128xf32>
    %22 = arith.addf %20, %21 : vector<464x128xf32>
    %cst_11 = arith.constant 0.000000e+00 : f32
    %23 = vector.broadcast %cst_11 : f32 to vector<464x128xf32>
    %24 = arith.maximumf %22, %23 : vector<464x128xf32>
    %c0_12 = arith.constant 0 : index
    %c0_13 = arith.constant 0 : index
    %25 = vector.load %arg4[%c0_12, %c0_13] : memref<464x128xf32, #tpu.memory_space<vmem>>, vector<464x128xf32>
    tpu.vector_store %arg4[%c0_12, %c0_13], %24 {strides = array<i32>} : memref<464x128xf32, #tpu.memory_space<vmem>>, vector<464x128xf32>,
    return
  }
  func.func @transform_0(%arg0: i32) -> (i32, i32) {
    %c0_i32 = arith.constant 0 : i32
    %c0_i32_0 = arith.constant 0 : i32
    return %arg0, %c0_i32 : i32, i32
  }
  func.func @transform_1(%arg0: i32) -> (i32, i32) {
    %c0_i32 = arith.constant 0 : i32
    %c0_i32_0 = arith.constant 0 : i32
    %c0_i32_1 = arith.constant 0 : i32
    return %c0_i32, %c0_i32_0 : i32, i32
  }
  func.func @transform_2(%arg0: i32) -> (i32, i32) {
    %c0_i32 = arith.constant 0 : i32
    %c0_i32_0 = arith.constant 0 : i32
    %c0_i32_1 = arith.constant 0 : i32
    return %c0_i32, %c0_i32_0 : i32, i32
  }
  func.func @transform_3(%arg0: i32) -> (i32, i32) {
    %c0_i32 = arith.constant 0 : i32
    %c0_i32_0 = arith.constant 0 : i32
    return %arg0, %c0_i32 : i32, i32
  }
}

module attributes {stable_mosaic.version = 11 : i64} {
  func.func @_conv_stats_kernel(%arg0: i32, %arg1: memref<112x640xbf16, #tpu.memory_space<vmem>>, %arg2: memref<640x128xbf16, #tpu.memory_space<vmem>>, %arg3: memref<112x128xf32, #tpu.memory_space<vmem>>, %arg4: memref<1x1x128xf32, #tpu.memory_space<vmem>>, %arg5: memref<1x1x128xf32, #tpu.memory_space<vmem>>) attributes {dimension_semantics = [#tpu.dimension_semantics<parallel>], iteration_bounds = array<i64: 1>, scalar_prefetch = 0 : i64, scratch_operands = 0 : i64, tpu.core_type = #tpu.core_type<tc>, window_params = [{transform_indices = @transform_0, window_bounds = array<i64: 112, 640>}, {pipeline_mode = #tpu.pipeline_mode<synchronous>, transform_indices = @transform_1, window_bounds = array<i64: 640, 128>}, {transform_indices = @transform_2, window_bounds = array<i64: 112, 128>}, {transform_indices = @transform_3, window_bounds = array<i64: 1, 1, 128>}, {transform_indices = @transform_4, window_bounds = array<i64: 1, 1, 128>}]} {
    %c0 = arith.constant 0 : index
    %c0_0 = arith.constant 0 : index
    %0 = vector.load %arg1[%c0, %c0_0] : memref<112x640xbf16, #tpu.memory_space<vmem>>, vector<112x640xbf16>
    %c0_1 = arith.constant 0 : index
    %c0_2 = arith.constant 0 : index
    %1 = vector.load %arg2[%c0_1, %c0_2] : memref<640x128xbf16, #tpu.memory_space<vmem>>, vector<640x128xbf16>
    %cst = arith.constant dense<0.000000e+00> : vector<112x128xf32>
    %2 = tpu.matmul %0, %1, %cst {dimension_numbers = #tpu.dot_dimension_numbers<[1], [0], [0], [1], [0, 0, 1, 1], [], []>} : vector<112x640xbf16>, vector<640x128xbf16>, vector<112x128xf32> -> vector<112x128xf32>
    %c0_3 = arith.constant 0 : index
    %c0_4 = arith.constant 0 : index
    %3 = vector.load %arg3[%c0_3, %c0_4] : memref<112x128xf32, #tpu.memory_space<vmem>>, vector<112x128xf32>
    tpu.vector_store %arg3[%c0_3, %c0_4], %2 {strides = array<i32>} : memref<112x128xf32, #tpu.memory_space<vmem>>, vector<112x128xf32>,
    %cst_5 = arith.constant dense<0.000000e+00> : vector<128xf32>
    %4 = vector.multi_reduction <add>, %2, %cst_5 [0] : vector<112x128xf32> to vector<128xf32>
    %5 = vector.shape_cast %4 : vector<128xf32> to vector<1x128xf32>
    %6 = vector.shape_cast %5 : vector<1x128xf32> to vector<1x1x128xf32>
    %c0_6 = arith.constant 0 : index
    %c0_7 = arith.constant 0 : index
    %c0_8 = arith.constant 0 : index
    %7 = vector.load %arg4[%c0_6, %c0_7, %c0_8] : memref<1x1x128xf32, #tpu.memory_space<vmem>>, vector<1x1x128xf32>
    tpu.vector_store %arg4[%c0_6, %c0_7, %c0_8], %6 {strides = array<i32>} : memref<1x1x128xf32, #tpu.memory_space<vmem>>, vector<1x1x128xf32>,
    %8 = arith.mulf %2, %2 : vector<112x128xf32>
    %cst_9 = arith.constant dense<0.000000e+00> : vector<128xf32>
    %9 = vector.multi_reduction <add>, %8, %cst_9 [0] : vector<112x128xf32> to vector<128xf32>
    %10 = vector.shape_cast %9 : vector<128xf32> to vector<1x128xf32>
    %11 = vector.shape_cast %10 : vector<1x128xf32> to vector<1x1x128xf32>
    %c0_10 = arith.constant 0 : index
    %c0_11 = arith.constant 0 : index
    %c0_12 = arith.constant 0 : index
    %12 = vector.load %arg5[%c0_10, %c0_11, %c0_12] : memref<1x1x128xf32, #tpu.memory_space<vmem>>, vector<1x1x128xf32>
    tpu.vector_store %arg5[%c0_10, %c0_11, %c0_12], %11 {strides = array<i32>} : memref<1x1x128xf32, #tpu.memory_space<vmem>>, vector<1x1x128xf32>,
    return
  }
  func.func @transform_0(%arg0: i32) -> (i32, i32) {
    %c0_i32 = arith.constant 0 : i32
    %c0_i32_0 = arith.constant 0 : i32
    return %arg0, %c0_i32 : i32, i32
  }
  func.func @transform_1(%arg0: i32) -> (i32, i32) {
    %c0_i32 = arith.constant 0 : i32
    %c0_i32_0 = arith.constant 0 : i32
    %c0_i32_1 = arith.constant 0 : i32
    return %c0_i32, %c0_i32_0 : i32, i32
  }
  func.func @transform_2(%arg0: i32) -> (i32, i32) {
    %c0_i32 = arith.constant 0 : i32
    %c0_i32_0 = arith.constant 0 : i32
    return %arg0, %c0_i32 : i32, i32
  }
  func.func @transform_3(%arg0: i32) -> (i32, i32, i32) {
    %c0_i32 = arith.constant 0 : i32
    %c0_i32_0 = arith.constant 0 : i32
    %c0_i32_1 = arith.constant 0 : i32
    return %arg0, %c0_i32, %c0_i32_0 : i32, i32, i32
  }
  func.func @transform_4(%arg0: i32) -> (i32, i32, i32) {
    %c0_i32 = arith.constant 0 : i32
    %c0_i32_0 = arith.constant 0 : i32
    %c0_i32_1 = arith.constant 0 : i32
    return %arg0, %c0_i32, %c0_i32_0 : i32, i32, i32
  }
}

module attributes {stable_mosaic.version = 11 : i64} {
  func.func @_bn_relu_kernel(%arg0: i32, %arg1: memref<112x128xf32, #tpu.memory_space<vmem>>, %arg2: memref<2x128xf32, #tpu.memory_space<vmem>>, %arg3: memref<2x128xf32, #tpu.memory_space<vmem>>, %arg4: memref<112x128xf32, #tpu.memory_space<vmem>>) attributes {dimension_semantics = [#tpu.dimension_semantics<parallel>], iteration_bounds = array<i64: 1>, scalar_prefetch = 0 : i64, scratch_operands = 0 : i64, tpu.core_type = #tpu.core_type<tc>, window_params = [{transform_indices = @transform_0, window_bounds = array<i64: 112, 128>}, {pipeline_mode = #tpu.pipeline_mode<synchronous>, transform_indices = @transform_1, window_bounds = array<i64: 2, 128>}, {pipeline_mode = #tpu.pipeline_mode<synchronous>, transform_indices = @transform_2, window_bounds = array<i64: 2, 128>}, {transform_indices = @transform_3, window_bounds = array<i64: 112, 128>}]} {
    %c0 = arith.constant 0 : index
    %c0_0 = arith.constant 0 : index
    %0 = vector.load %arg2[%c0, %c0_0] : memref<2x128xf32, #tpu.memory_space<vmem>>, vector<1x128xf32>
    %cst = arith.constant 0.0102040814 : f32
    %1 = vector.broadcast %cst : f32 to vector<1x128xf32>
    %2 = arith.mulf %0, %1 : vector<1x128xf32>
    %c1 = arith.constant 1 : index
    %c0_1 = arith.constant 0 : index
    %3 = vector.load %arg2[%c1, %c0_1] : memref<2x128xf32, #tpu.memory_space<vmem>>, vector<1x128xf32>
    %cst_2 = arith.constant 0.0102040814 : f32
    %4 = vector.broadcast %cst_2 : f32 to vector<1x128xf32>
    %5 = arith.mulf %3, %4 : vector<1x128xf32>
    %6 = arith.mulf %2, %2 : vector<1x128xf32>
    %7 = arith.subf %5, %6 : vector<1x128xf32>
    %cst_3 = arith.constant 0.000000e+00 : f32
    %8 = vector.broadcast %cst_3 : f32 to vector<1x128xf32>
    %9 = arith.maximumf %7, %8 : vector<1x128xf32>
    %c0_4 = arith.constant 0 : index
    %c0_5 = arith.constant 0 : index
    %10 = vector.load %arg3[%c0_4, %c0_5] : memref<2x128xf32, #tpu.memory_space<vmem>>, vector<1x128xf32>
    %cst_6 = arith.constant 1.000000e-03 : f32
    %11 = vector.broadcast %cst_6 : f32 to vector<1x128xf32>
    %12 = arith.addf %9, %11 : vector<1x128xf32>
    %13 = math.rsqrt %12 : vector<1x128xf32>
    %14 = arith.mulf %10, %13 : vector<1x128xf32>
    %c1_7 = arith.constant 1 : index
    %c0_8 = arith.constant 0 : index
    %15 = vector.load %arg3[%c1_7, %c0_8] : memref<2x128xf32, #tpu.memory_space<vmem>>, vector<1x128xf32>
    %16 = arith.mulf %2, %14 : vector<1x128xf32>
    %17 = arith.subf %15, %16 : vector<1x128xf32>
    %c0_9 = arith.constant 0 : index
    %c0_10 = arith.constant 0 : index
    %18 = vector.load %arg1[%c0_9, %c0_10] : memref<112x128xf32, #tpu.memory_space<vmem>>, vector<112x128xf32>
    %19 = vector.broadcast %14 : vector<1x128xf32> to vector<112x128xf32>
    %20 = arith.mulf %18, %19 : vector<112x128xf32>
    %21 = vector.broadcast %17 : vector<1x128xf32> to vector<112x128xf32>
    %22 = arith.addf %20, %21 : vector<112x128xf32>
    %cst_11 = arith.constant 0.000000e+00 : f32
    %23 = vector.broadcast %cst_11 : f32 to vector<112x128xf32>
    %24 = arith.maximumf %22, %23 : vector<112x128xf32>
    %c0_12 = arith.constant 0 : index
    %c0_13 = arith.constant 0 : index
    %25 = vector.load %arg4[%c0_12, %c0_13] : memref<112x128xf32, #tpu.memory_space<vmem>>, vector<112x128xf32>
    tpu.vector_store %arg4[%c0_12, %c0_13], %24 {strides = array<i32>} : memref<112x128xf32, #tpu.memory_space<vmem>>, vector<112x128xf32>,
    return
  }
  func.func @transform_0(%arg0: i32) -> (i32, i32) {
    %c0_i32 = arith.constant 0 : i32
    %c0_i32_0 = arith.constant 0 : i32
    return %arg0, %c0_i32 : i32, i32
  }
  func.func @transform_1(%arg0: i32) -> (i32, i32) {
    %c0_i32 = arith.constant 0 : i32
    %c0_i32_0 = arith.constant 0 : i32
    %c0_i32_1 = arith.constant 0 : i32
    return %c0_i32, %c0_i32_0 : i32, i32
  }
  func.func @transform_2(%arg0: i32) -> (i32, i32) {
    %c0_i32 = arith.constant 0 : i32
    %c0_i32_0 = arith.constant 0 : i32
    %c0_i32_1 = arith.constant 0 : i32
    return %c0_i32, %c0_i32_0 : i32, i32
  }
  func.func @transform_3(%arg0: i32) -> (i32, i32) {
    %c0_i32 = arith.constant 0 : i32
    %c0_i32_0 = arith.constant 0 : i32
    return %arg0, %c0_i32 : i32, i32
  }
}

module attributes {stable_mosaic.version = 11 : i64} {
  func.func @_max9_kernel(%arg0: i32, %arg1: memref<112x64xf32, #tpu.memory_space<vmem>>, %arg2: memref<112x64xf32, #tpu.memory_space<vmem>>, %arg3: memref<112x64xf32, #tpu.memory_space<vmem>>, %arg4: memref<112x64xf32, #tpu.memory_space<vmem>>, %arg5: memref<112x64xf32, #tpu.memory_space<vmem>>, %arg6: memref<112x64xf32, #tpu.memory_space<vmem>>, %arg7: memref<112x64xf32, #tpu.memory_space<vmem>>, %arg8: memref<112x64xf32, #tpu.memory_space<vmem>>, %arg9: memref<112x64xf32, #tpu.memory_space<vmem>>, %arg10: memref<112x64xf32, #tpu.memory_space<vmem>>) attributes {dimension_semantics = [#tpu.dimension_semantics<parallel>], iteration_bounds = array<i64: 1>, scalar_prefetch = 0 : i64, scratch_operands = 0 : i64, tpu.core_type = #tpu.core_type<tc>, window_params = [{transform_indices = @transform_0, window_bounds = array<i64: 112, 64>}, {transform_indices = @transform_1, window_bounds = array<i64: 112, 64>}, {transform_indices = @transform_2, window_bounds = array<i64: 112, 64>}, {transform_indices = @transform_3, window_bounds = array<i64: 112, 64>}, {transform_indices = @transform_4, window_bounds = array<i64: 112, 64>}, {transform_indices = @transform_5, window_bounds = array<i64: 112, 64>}, {transform_indices = @transform_6, window_bounds = array<i64: 112, 64>}, {transform_indices = @transform_7, window_bounds = array<i64: 112, 64>}, {transform_indices = @transform_8, window_bounds = array<i64: 112, 64>}, {transform_indices = @transform_9, window_bounds = array<i64: 112, 64>}]} {
    %c0 = arith.constant 0 : index
    %c0_0 = arith.constant 0 : index
    %0 = vector.load %arg1[%c0, %c0_0] : memref<112x64xf32, #tpu.memory_space<vmem>>, vector<112x64xf32>
    %c0_1 = arith.constant 0 : index
    %c0_2 = arith.constant 0 : index
    %1 = vector.load %arg2[%c0_1, %c0_2] : memref<112x64xf32, #tpu.memory_space<vmem>>, vector<112x64xf32>
    %2 = arith.maximumf %0, %1 : vector<112x64xf32>
    %c0_3 = arith.constant 0 : index
    %c0_4 = arith.constant 0 : index
    %3 = vector.load %arg3[%c0_3, %c0_4] : memref<112x64xf32, #tpu.memory_space<vmem>>, vector<112x64xf32>
    %4 = arith.maximumf %2, %3 : vector<112x64xf32>
    %c0_5 = arith.constant 0 : index
    %c0_6 = arith.constant 0 : index
    %5 = vector.load %arg4[%c0_5, %c0_6] : memref<112x64xf32, #tpu.memory_space<vmem>>, vector<112x64xf32>
    %6 = arith.maximumf %4, %5 : vector<112x64xf32>
    %c0_7 = arith.constant 0 : index
    %c0_8 = arith.constant 0 : index
    %7 = vector.load %arg5[%c0_7, %c0_8] : memref<112x64xf32, #tpu.memory_space<vmem>>, vector<112x64xf32>
    %8 = arith.maximumf %6, %7 : vector<112x64xf32>
    %c0_9 = arith.constant 0 : index
    %c0_10 = arith.constant 0 : index
    %9 = vector.load %arg6[%c0_9, %c0_10] : memref<112x64xf32, #tpu.memory_space<vmem>>, vector<112x64xf32>
    %10 = arith.maximumf %8, %9 : vector<112x64xf32>
    %c0_11 = arith.constant 0 : index
    %c0_12 = arith.constant 0 : index
    %11 = vector.load %arg7[%c0_11, %c0_12] : memref<112x64xf32, #tpu.memory_space<vmem>>, vector<112x64xf32>
    %12 = arith.maximumf %10, %11 : vector<112x64xf32>
    %c0_13 = arith.constant 0 : index
    %c0_14 = arith.constant 0 : index
    %13 = vector.load %arg8[%c0_13, %c0_14] : memref<112x64xf32, #tpu.memory_space<vmem>>, vector<112x64xf32>
    %14 = arith.maximumf %12, %13 : vector<112x64xf32>
    %c0_15 = arith.constant 0 : index
    %c0_16 = arith.constant 0 : index
    %15 = vector.load %arg9[%c0_15, %c0_16] : memref<112x64xf32, #tpu.memory_space<vmem>>, vector<112x64xf32>
    %16 = arith.maximumf %14, %15 : vector<112x64xf32>
    %c0_17 = arith.constant 0 : index
    %c0_18 = arith.constant 0 : index
    %17 = vector.load %arg10[%c0_17, %c0_18] : memref<112x64xf32, #tpu.memory_space<vmem>>, vector<112x64xf32>
    tpu.vector_store %arg10[%c0_17, %c0_18], %16 {strides = array<i32>} : memref<112x64xf32, #tpu.memory_space<vmem>>, vector<112x64xf32>,
    return
  }
  func.func @transform_0(%arg0: i32) -> (i32, i32) {
    %c0_i32 = arith.constant 0 : i32
    %c0_i32_0 = arith.constant 0 : i32
    return %arg0, %c0_i32 : i32, i32
  }
  func.func @transform_1(%arg0: i32) -> (i32, i32) {
    %c0_i32 = arith.constant 0 : i32
    %c0_i32_0 = arith.constant 0 : i32
    return %arg0, %c0_i32 : i32, i32
  }
  func.func @transform_2(%arg0: i32) -> (i32, i32) {
    %c0_i32 = arith.constant 0 : i32
    %c0_i32_0 = arith.constant 0 : i32
    return %arg0, %c0_i32 : i32, i32
  }
  func.func @transform_3(%arg0: i32) -> (i32, i32) {
    %c0_i32 = arith.constant 0 : i32
    %c0_i32_0 = arith.constant 0 : i32
    return %arg0, %c0_i32 : i32, i32
  }
  func.func @transform_4(%arg0: i32) -> (i32, i32) {
    %c0_i32 = arith.constant 0 : i32
    %c0_i32_0 = arith.constant 0 : i32
    return %arg0, %c0_i32 : i32, i32
  }
  func.func @transform_5(%arg0: i32) -> (i32, i32) {
    %c0_i32 = arith.constant 0 : i32
    %c0_i32_0 = arith.constant 0 : i32
    return %arg0, %c0_i32 : i32, i32
  }
  func.func @transform_6(%arg0: i32) -> (i32, i32) {
    %c0_i32 = arith.constant 0 : i32
    %c0_i32_0 = arith.constant 0 : i32
    return %arg0, %c0_i32 : i32, i32
  }
  func.func @transform_7(%arg0: i32) -> (i32, i32) {
    %c0_i32 = arith.constant 0 : i32
    %c0_i32_0 = arith.constant 0 : i32
    return %arg0, %c0_i32 : i32, i32
  }
  func.func @transform_8(%arg0: i32) -> (i32, i32) {
    %c0_i32 = arith.constant 0 : i32
    %c0_i32_0 = arith.constant 0 : i32
    return %arg0, %c0_i32 : i32, i32
  }
  func.func @transform_9(%arg0: i32) -> (i32, i32) {
    %c0_i32 = arith.constant 0 : i32
    %c0_i32_0 = arith.constant 0 : i32
    return %arg0, %c0_i32 : i32, i32
  }
}

module attributes {stable_mosaic.version = 11 : i64} {
  func.func @_conv_stats_kernel(%arg0: i32, %arg1: memref<112x256xbf16, #tpu.memory_space<vmem>>, %arg2: memref<256x128xbf16, #tpu.memory_space<vmem>>, %arg3: memref<112x128xf32, #tpu.memory_space<vmem>>, %arg4: memref<1x1x128xf32, #tpu.memory_space<vmem>>, %arg5: memref<1x1x128xf32, #tpu.memory_space<vmem>>) attributes {dimension_semantics = [#tpu.dimension_semantics<parallel>], iteration_bounds = array<i64: 1>, scalar_prefetch = 0 : i64, scratch_operands = 0 : i64, tpu.core_type = #tpu.core_type<tc>, window_params = [{transform_indices = @transform_0, window_bounds = array<i64: 112, 256>}, {pipeline_mode = #tpu.pipeline_mode<synchronous>, transform_indices = @transform_1, window_bounds = array<i64: 256, 128>}, {transform_indices = @transform_2, window_bounds = array<i64: 112, 128>}, {transform_indices = @transform_3, window_bounds = array<i64: 1, 1, 128>}, {transform_indices = @transform_4, window_bounds = array<i64: 1, 1, 128>}]} {
    %c0 = arith.constant 0 : index
    %c0_0 = arith.constant 0 : index
    %0 = vector.load %arg1[%c0, %c0_0] : memref<112x256xbf16, #tpu.memory_space<vmem>>, vector<112x256xbf16>
    %c0_1 = arith.constant 0 : index
    %c0_2 = arith.constant 0 : index
    %1 = vector.load %arg2[%c0_1, %c0_2] : memref<256x128xbf16, #tpu.memory_space<vmem>>, vector<256x128xbf16>
    %cst = arith.constant dense<0.000000e+00> : vector<112x128xf32>
    %2 = tpu.matmul %0, %1, %cst {dimension_numbers = #tpu.dot_dimension_numbers<[1], [0], [0], [1], [0, 0, 1, 1], [], []>} : vector<112x256xbf16>, vector<256x128xbf16>, vector<112x128xf32> -> vector<112x128xf32>
    %c0_3 = arith.constant 0 : index
    %c0_4 = arith.constant 0 : index
    %3 = vector.load %arg3[%c0_3, %c0_4] : memref<112x128xf32, #tpu.memory_space<vmem>>, vector<112x128xf32>
    tpu.vector_store %arg3[%c0_3, %c0_4], %2 {strides = array<i32>} : memref<112x128xf32, #tpu.memory_space<vmem>>, vector<112x128xf32>,
    %cst_5 = arith.constant dense<0.000000e+00> : vector<128xf32>
    %4 = vector.multi_reduction <add>, %2, %cst_5 [0] : vector<112x128xf32> to vector<128xf32>
    %5 = vector.shape_cast %4 : vector<128xf32> to vector<1x128xf32>
    %6 = vector.shape_cast %5 : vector<1x128xf32> to vector<1x1x128xf32>
    %c0_6 = arith.constant 0 : index
    %c0_7 = arith.constant 0 : index
    %c0_8 = arith.constant 0 : index
    %7 = vector.load %arg4[%c0_6, %c0_7, %c0_8] : memref<1x1x128xf32, #tpu.memory_space<vmem>>, vector<1x1x128xf32>
    tpu.vector_store %arg4[%c0_6, %c0_7, %c0_8], %6 {strides = array<i32>} : memref<1x1x128xf32, #tpu.memory_space<vmem>>, vector<1x1x128xf32>,
    %8 = arith.mulf %2, %2 : vector<112x128xf32>
    %cst_9 = arith.constant dense<0.000000e+00> : vector<128xf32>
    %9 = vector.multi_reduction <add>, %8, %cst_9 [0] : vector<112x128xf32> to vector<128xf32>
    %10 = vector.shape_cast %9 : vector<128xf32> to vector<1x128xf32>
    %11 = vector.shape_cast %10 : vector<1x128xf32> to vector<1x1x128xf32>
    %c0_10 = arith.constant 0 : index
    %c0_11 = arith.constant 0 : index
    %c0_12 = arith.constant 0 : index
    %12 = vector.load %arg5[%c0_10, %c0_11, %c0_12] : memref<1x1x128xf32, #tpu.memory_space<vmem>>, vector<1x1x128xf32>
    tpu.vector_store %arg5[%c0_10, %c0_11, %c0_12], %11 {strides = array<i32>} : memref<1x1x128xf32, #tpu.memory_space<vmem>>, vector<1x1x128xf32>,
    return
  }
  func.func @transform_0(%arg0: i32) -> (i32, i32) {
    %c0_i32 = arith.constant 0 : i32
    %c0_i32_0 = arith.constant 0 : i32
    return %arg0, %c0_i32 : i32, i32
  }
  func.func @transform_1(%arg0: i32) -> (i32, i32) {
    %c0_i32 = arith.constant 0 : i32
    %c0_i32_0 = arith.constant 0 : i32
    %c0_i32_1 = arith.constant 0 : i32
    return %c0_i32, %c0_i32_0 : i32, i32
  }
  func.func @transform_2(%arg0: i32) -> (i32, i32) {
    %c0_i32 = arith.constant 0 : i32
    %c0_i32_0 = arith.constant 0 : i32
    return %arg0, %c0_i32 : i32, i32
  }
  func.func @transform_3(%arg0: i32) -> (i32, i32, i32) {
    %c0_i32 = arith.constant 0 : i32
    %c0_i32_0 = arith.constant 0 : i32
    %c0_i32_1 = arith.constant 0 : i32
    return %arg0, %c0_i32, %c0_i32_0 : i32, i32, i32
  }
  func.func @transform_4(%arg0: i32) -> (i32, i32, i32) {
    %c0_i32 = arith.constant 0 : i32
    %c0_i32_0 = arith.constant 0 : i32
    %c0_i32_1 = arith.constant 0 : i32
    return %arg0, %c0_i32, %c0_i32_0 : i32, i32, i32
  }
}

module attributes {stable_mosaic.version = 11 : i64} {
  func.func @_conv_stats_kernel(%arg0: i32, %arg1: memref<64x640xbf16, #tpu.memory_space<vmem>>, %arg2: memref<640x128xbf16, #tpu.memory_space<vmem>>, %arg3: memref<64x128xf32, #tpu.memory_space<vmem>>, %arg4: memref<1x1x128xf32, #tpu.memory_space<vmem>>, %arg5: memref<1x1x128xf32, #tpu.memory_space<vmem>>) attributes {dimension_semantics = [#tpu.dimension_semantics<parallel>], iteration_bounds = array<i64: 1>, scalar_prefetch = 0 : i64, scratch_operands = 0 : i64, tpu.core_type = #tpu.core_type<tc>, window_params = [{transform_indices = @transform_0, window_bounds = array<i64: 64, 640>}, {pipeline_mode = #tpu.pipeline_mode<synchronous>, transform_indices = @transform_1, window_bounds = array<i64: 640, 128>}, {transform_indices = @transform_2, window_bounds = array<i64: 64, 128>}, {transform_indices = @transform_3, window_bounds = array<i64: 1, 1, 128>}, {transform_indices = @transform_4, window_bounds = array<i64: 1, 1, 128>}]} {
    %c0 = arith.constant 0 : index
    %c0_0 = arith.constant 0 : index
    %0 = vector.load %arg1[%c0, %c0_0] : memref<64x640xbf16, #tpu.memory_space<vmem>>, vector<64x640xbf16>
    %c0_1 = arith.constant 0 : index
    %c0_2 = arith.constant 0 : index
    %1 = vector.load %arg2[%c0_1, %c0_2] : memref<640x128xbf16, #tpu.memory_space<vmem>>, vector<640x128xbf16>
    %cst = arith.constant dense<0.000000e+00> : vector<64x128xf32>
    %2 = tpu.matmul %0, %1, %cst {dimension_numbers = #tpu.dot_dimension_numbers<[1], [0], [0], [1], [0, 0, 1, 1], [], []>} : vector<64x640xbf16>, vector<640x128xbf16>, vector<64x128xf32> -> vector<64x128xf32>
    %c0_3 = arith.constant 0 : index
    %c0_4 = arith.constant 0 : index
    %3 = vector.load %arg3[%c0_3, %c0_4] : memref<64x128xf32, #tpu.memory_space<vmem>>, vector<64x128xf32>
    tpu.vector_store %arg3[%c0_3, %c0_4], %2 {strides = array<i32>} : memref<64x128xf32, #tpu.memory_space<vmem>>, vector<64x128xf32>,
    %cst_5 = arith.constant dense<0.000000e+00> : vector<128xf32>
    %4 = vector.multi_reduction <add>, %2, %cst_5 [0] : vector<64x128xf32> to vector<128xf32>
    %5 = vector.shape_cast %4 : vector<128xf32> to vector<1x128xf32>
    %6 = vector.shape_cast %5 : vector<1x128xf32> to vector<1x1x128xf32>
    %c0_6 = arith.constant 0 : index
    %c0_7 = arith.constant 0 : index
    %c0_8 = arith.constant 0 : index
    %7 = vector.load %arg4[%c0_6, %c0_7, %c0_8] : memref<1x1x128xf32, #tpu.memory_space<vmem>>, vector<1x1x128xf32>
    tpu.vector_store %arg4[%c0_6, %c0_7, %c0_8], %6 {strides = array<i32>} : memref<1x1x128xf32, #tpu.memory_space<vmem>>, vector<1x1x128xf32>,
    %8 = arith.mulf %2, %2 : vector<64x128xf32>
    %cst_9 = arith.constant dense<0.000000e+00> : vector<128xf32>
    %9 = vector.multi_reduction <add>, %8, %cst_9 [0] : vector<64x128xf32> to vector<128xf32>
    %10 = vector.shape_cast %9 : vector<128xf32> to vector<1x128xf32>
    %11 = vector.shape_cast %10 : vector<1x128xf32> to vector<1x1x128xf32>
    %c0_10 = arith.constant 0 : index
    %c0_11 = arith.constant 0 : index
    %c0_12 = arith.constant 0 : index
    %12 = vector.load %arg5[%c0_10, %c0_11, %c0_12] : memref<1x1x128xf32, #tpu.memory_space<vmem>>, vector<1x1x128xf32>
    tpu.vector_store %arg5[%c0_10, %c0_11, %c0_12], %11 {strides = array<i32>} : memref<1x1x128xf32, #tpu.memory_space<vmem>>, vector<1x1x128xf32>,
    return
  }
  func.func @transform_0(%arg0: i32) -> (i32, i32) {
    %c0_i32 = arith.constant 0 : i32
    %c0_i32_0 = arith.constant 0 : i32
    return %arg0, %c0_i32 : i32, i32
  }
  func.func @transform_1(%arg0: i32) -> (i32, i32) {
    %c0_i32 = arith.constant 0 : i32
    %c0_i32_0 = arith.constant 0 : i32
    %c0_i32_1 = arith.constant 0 : i32
    return %c0_i32, %c0_i32_0 : i32, i32
  }
  func.func @transform_2(%arg0: i32) -> (i32, i32) {
    %c0_i32 = arith.constant 0 : i32
    %c0_i32_0 = arith.constant 0 : i32
    return %arg0, %c0_i32 : i32, i32
  }
  func.func @transform_3(%arg0: i32) -> (i32, i32, i32) {
    %c0_i32 = arith.constant 0 : i32
    %c0_i32_0 = arith.constant 0 : i32
    %c0_i32_1 = arith.constant 0 : i32
    return %arg0, %c0_i32, %c0_i32_0 : i32, i32, i32
  }
  func.func @transform_4(%arg0: i32) -> (i32, i32, i32) {
    %c0_i32 = arith.constant 0 : i32
    %c0_i32_0 = arith.constant 0 : i32
    %c0_i32_1 = arith.constant 0 : i32
    return %arg0, %c0_i32, %c0_i32_0 : i32, i32, i32
  }
}

module attributes {stable_mosaic.version = 11 : i64} {
  func.func @_bn_relu_kernel(%arg0: i32, %arg1: memref<64x128xf32, #tpu.memory_space<vmem>>, %arg2: memref<2x128xf32, #tpu.memory_space<vmem>>, %arg3: memref<2x128xf32, #tpu.memory_space<vmem>>, %arg4: memref<64x128xf32, #tpu.memory_space<vmem>>) attributes {dimension_semantics = [#tpu.dimension_semantics<parallel>], iteration_bounds = array<i64: 1>, scalar_prefetch = 0 : i64, scratch_operands = 0 : i64, tpu.core_type = #tpu.core_type<tc>, window_params = [{transform_indices = @transform_0, window_bounds = array<i64: 64, 128>}, {pipeline_mode = #tpu.pipeline_mode<synchronous>, transform_indices = @transform_1, window_bounds = array<i64: 2, 128>}, {pipeline_mode = #tpu.pipeline_mode<synchronous>, transform_indices = @transform_2, window_bounds = array<i64: 2, 128>}, {transform_indices = @transform_3, window_bounds = array<i64: 64, 128>}]} {
    %c0 = arith.constant 0 : index
    %c0_0 = arith.constant 0 : index
    %0 = vector.load %arg2[%c0, %c0_0] : memref<2x128xf32, #tpu.memory_space<vmem>>, vector<1x128xf32>
    %cst = arith.constant 2.000000e-02 : f32
    %1 = vector.broadcast %cst : f32 to vector<1x128xf32>
    %2 = arith.mulf %0, %1 : vector<1x128xf32>
    %c1 = arith.constant 1 : index
    %c0_1 = arith.constant 0 : index
    %3 = vector.load %arg2[%c1, %c0_1] : memref<2x128xf32, #tpu.memory_space<vmem>>, vector<1x128xf32>
    %cst_2 = arith.constant 2.000000e-02 : f32
    %4 = vector.broadcast %cst_2 : f32 to vector<1x128xf32>
    %5 = arith.mulf %3, %4 : vector<1x128xf32>
    %6 = arith.mulf %2, %2 : vector<1x128xf32>
    %7 = arith.subf %5, %6 : vector<1x128xf32>
    %cst_3 = arith.constant 0.000000e+00 : f32
    %8 = vector.broadcast %cst_3 : f32 to vector<1x128xf32>
    %9 = arith.maximumf %7, %8 : vector<1x128xf32>
    %c0_4 = arith.constant 0 : index
    %c0_5 = arith.constant 0 : index
    %10 = vector.load %arg3[%c0_4, %c0_5] : memref<2x128xf32, #tpu.memory_space<vmem>>, vector<1x128xf32>
    %cst_6 = arith.constant 1.000000e-03 : f32
    %11 = vector.broadcast %cst_6 : f32 to vector<1x128xf32>
    %12 = arith.addf %9, %11 : vector<1x128xf32>
    %13 = math.rsqrt %12 : vector<1x128xf32>
    %14 = arith.mulf %10, %13 : vector<1x128xf32>
    %c1_7 = arith.constant 1 : index
    %c0_8 = arith.constant 0 : index
    %15 = vector.load %arg3[%c1_7, %c0_8] : memref<2x128xf32, #tpu.memory_space<vmem>>, vector<1x128xf32>
    %16 = arith.mulf %2, %14 : vector<1x128xf32>
    %17 = arith.subf %15, %16 : vector<1x128xf32>
    %c0_9 = arith.constant 0 : index
    %c0_10 = arith.constant 0 : index
    %18 = vector.load %arg1[%c0_9, %c0_10] : memref<64x128xf32, #tpu.memory_space<vmem>>, vector<64x128xf32>
    %19 = vector.broadcast %14 : vector<1x128xf32> to vector<64x128xf32>
    %20 = arith.mulf %18, %19 : vector<64x128xf32>
    %21 = vector.broadcast %17 : vector<1x128xf32> to vector<64x128xf32>
    %22 = arith.addf %20, %21 : vector<64x128xf32>
    %cst_11 = arith.constant 0.000000e+00 : f32
    %23 = vector.broadcast %cst_11 : f32 to vector<64x128xf32>
    %24 = arith.maximumf %22, %23 : vector<64x128xf32>
    %c0_12 = arith.constant 0 : index
    %c0_13 = arith.constant 0 : index
    %25 = vector.load %arg4[%c0_12, %c0_13] : memref<64x128xf32, #tpu.memory_space<vmem>>, vector<64x128xf32>
    tpu.vector_store %arg4[%c0_12, %c0_13], %24 {strides = array<i32>} : memref<64x128xf32, #tpu.memory_space<vmem>>, vector<64x128xf32>,
    return
  }
  func.func @transform_0(%arg0: i32) -> (i32, i32) {
    %c0_i32 = arith.constant 0 : i32
    %c0_i32_0 = arith.constant 0 : i32
    return %arg0, %c0_i32 : i32, i32
  }
  func.func @transform_1(%arg0: i32) -> (i32, i32) {
    %c0_i32 = arith.constant 0 : i32
    %c0_i32_0 = arith.constant 0 : i32
    %c0_i32_1 = arith.constant 0 : i32
    return %c0_i32, %c0_i32_0 : i32, i32
  }
  func.func @transform_2(%arg0: i32) -> (i32, i32) {
    %c0_i32 = arith.constant 0 : i32
    %c0_i32_0 = arith.constant 0 : i32
    %c0_i32_1 = arith.constant 0 : i32
    return %c0_i32, %c0_i32_0 : i32, i32
  }
  func.func @transform_3(%arg0: i32) -> (i32, i32) {
    %c0_i32 = arith.constant 0 : i32
    %c0_i32_0 = arith.constant 0 : i32
    return %arg0, %c0_i32 : i32, i32
  }
}

module attributes {stable_mosaic.version = 11 : i64} {
  func.func @_conv_stats_kernel(%arg0: i32, %arg1: memref<112x512xbf16, #tpu.memory_space<vmem>>, %arg2: memref<512x128xbf16, #tpu.memory_space<vmem>>, %arg3: memref<112x128xf32, #tpu.memory_space<vmem>>, %arg4: memref<1x1x128xf32, #tpu.memory_space<vmem>>, %arg5: memref<1x1x128xf32, #tpu.memory_space<vmem>>) attributes {dimension_semantics = [#tpu.dimension_semantics<parallel>], iteration_bounds = array<i64: 1>, scalar_prefetch = 0 : i64, scratch_operands = 0 : i64, tpu.core_type = #tpu.core_type<tc>, window_params = [{transform_indices = @transform_0, window_bounds = array<i64: 112, 512>}, {pipeline_mode = #tpu.pipeline_mode<synchronous>, transform_indices = @transform_1, window_bounds = array<i64: 512, 128>}, {transform_indices = @transform_2, window_bounds = array<i64: 112, 128>}, {transform_indices = @transform_3, window_bounds = array<i64: 1, 1, 128>}, {transform_indices = @transform_4, window_bounds = array<i64: 1, 1, 128>}]} {
    %c0 = arith.constant 0 : index
    %c0_0 = arith.constant 0 : index
    %0 = vector.load %arg1[%c0, %c0_0] : memref<112x512xbf16, #tpu.memory_space<vmem>>, vector<112x512xbf16>
    %c0_1 = arith.constant 0 : index
    %c0_2 = arith.constant 0 : index
    %1 = vector.load %arg2[%c0_1, %c0_2] : memref<512x128xbf16, #tpu.memory_space<vmem>>, vector<512x128xbf16>
    %cst = arith.constant dense<0.000000e+00> : vector<112x128xf32>
    %2 = tpu.matmul %0, %1, %cst {dimension_numbers = #tpu.dot_dimension_numbers<[1], [0], [0], [1], [0, 0, 1, 1], [], []>} : vector<112x512xbf16>, vector<512x128xbf16>, vector<112x128xf32> -> vector<112x128xf32>
    %c0_3 = arith.constant 0 : index
    %c0_4 = arith.constant 0 : index
    %3 = vector.load %arg3[%c0_3, %c0_4] : memref<112x128xf32, #tpu.memory_space<vmem>>, vector<112x128xf32>
    tpu.vector_store %arg3[%c0_3, %c0_4], %2 {strides = array<i32>} : memref<112x128xf32, #tpu.memory_space<vmem>>, vector<112x128xf32>,
    %cst_5 = arith.constant dense<0.000000e+00> : vector<128xf32>
    %4 = vector.multi_reduction <add>, %2, %cst_5 [0] : vector<112x128xf32> to vector<128xf32>
    %5 = vector.shape_cast %4 : vector<128xf32> to vector<1x128xf32>
    %6 = vector.shape_cast %5 : vector<1x128xf32> to vector<1x1x128xf32>
    %c0_6 = arith.constant 0 : index
    %c0_7 = arith.constant 0 : index
    %c0_8 = arith.constant 0 : index
    %7 = vector.load %arg4[%c0_6, %c0_7, %c0_8] : memref<1x1x128xf32, #tpu.memory_space<vmem>>, vector<1x1x128xf32>
    tpu.vector_store %arg4[%c0_6, %c0_7, %c0_8], %6 {strides = array<i32>} : memref<1x1x128xf32, #tpu.memory_space<vmem>>, vector<1x1x128xf32>,
    %8 = arith.mulf %2, %2 : vector<112x128xf32>
    %cst_9 = arith.constant dense<0.000000e+00> : vector<128xf32>
    %9 = vector.multi_reduction <add>, %8, %cst_9 [0] : vector<112x128xf32> to vector<128xf32>
    %10 = vector.shape_cast %9 : vector<128xf32> to vector<1x128xf32>
    %11 = vector.shape_cast %10 : vector<1x128xf32> to vector<1x1x128xf32>
    %c0_10 = arith.constant 0 : index
    %c0_11 = arith.constant 0 : index
    %c0_12 = arith.constant 0 : index
    %12 = vector.load %arg5[%c0_10, %c0_11, %c0_12] : memref<1x1x128xf32, #tpu.memory_space<vmem>>, vector<1x1x128xf32>
    tpu.vector_store %arg5[%c0_10, %c0_11, %c0_12], %11 {strides = array<i32>} : memref<1x1x128xf32, #tpu.memory_space<vmem>>, vector<1x1x128xf32>,
    return
  }
  func.func @transform_0(%arg0: i32) -> (i32, i32) {
    %c0_i32 = arith.constant 0 : i32
    %c0_i32_0 = arith.constant 0 : i32
    return %arg0, %c0_i32 : i32, i32
  }
  func.func @transform_1(%arg0: i32) -> (i32, i32) {
    %c0_i32 = arith.constant 0 : i32
    %c0_i32_0 = arith.constant 0 : i32
    %c0_i32_1 = arith.constant 0 : i32
    return %c0_i32, %c0_i32_0 : i32, i32
  }
  func.func @transform_2(%arg0: i32) -> (i32, i32) {
    %c0_i32 = arith.constant 0 : i32
    %c0_i32_0 = arith.constant 0 : i32
    return %arg0, %c0_i32 : i32, i32
  }
  func.func @transform_3(%arg0: i32) -> (i32, i32, i32) {
    %c0_i32 = arith.constant 0 : i32
    %c0_i32_0 = arith.constant 0 : i32
    %c0_i32_1 = arith.constant 0 : i32
    return %arg0, %c0_i32, %c0_i32_0 : i32, i32, i32
  }
  func.func @transform_4(%arg0: i32) -> (i32, i32, i32) {
    %c0_i32 = arith.constant 0 : i32
    %c0_i32_0 = arith.constant 0 : i32
    %c0_i32_1 = arith.constant 0 : i32
    return %arg0, %c0_i32, %c0_i32_0 : i32, i32, i32
  }
}

module attributes {stable_mosaic.version = 11 : i64} {
  func.func @_conv_stats_kernel(%arg0: i32, %arg1: memref<16x1792xbf16, #tpu.memory_space<vmem>>, %arg2: memref<1792x256xbf16, #tpu.memory_space<vmem>>, %arg3: memref<16x256xf32, #tpu.memory_space<vmem>>, %arg4: memref<1x1x256xf32, #tpu.memory_space<vmem>>, %arg5: memref<1x1x256xf32, #tpu.memory_space<vmem>>) attributes {dimension_semantics = [#tpu.dimension_semantics<parallel>], iteration_bounds = array<i64: 1>, scalar_prefetch = 0 : i64, scratch_operands = 0 : i64, tpu.core_type = #tpu.core_type<tc>, window_params = [{transform_indices = @transform_0, window_bounds = array<i64: 16, 1792>}, {pipeline_mode = #tpu.pipeline_mode<synchronous>, transform_indices = @transform_1, window_bounds = array<i64: 1792, 256>}, {transform_indices = @transform_2, window_bounds = array<i64: 16, 256>}, {transform_indices = @transform_3, window_bounds = array<i64: 1, 1, 256>}, {transform_indices = @transform_4, window_bounds = array<i64: 1, 1, 256>}]} {
    %c0 = arith.constant 0 : index
    %c0_0 = arith.constant 0 : index
    %0 = vector.load %arg1[%c0, %c0_0] : memref<16x1792xbf16, #tpu.memory_space<vmem>>, vector<16x1792xbf16>
    %c0_1 = arith.constant 0 : index
    %c0_2 = arith.constant 0 : index
    %1 = vector.load %arg2[%c0_1, %c0_2] : memref<1792x256xbf16, #tpu.memory_space<vmem>>, vector<1792x256xbf16>
    %cst = arith.constant dense<0.000000e+00> : vector<16x256xf32>
    %2 = tpu.matmul %0, %1, %cst {dimension_numbers = #tpu.dot_dimension_numbers<[1], [0], [0], [1], [0, 0, 1, 1], [], []>} : vector<16x1792xbf16>, vector<1792x256xbf16>, vector<16x256xf32> -> vector<16x256xf32>
    %c0_3 = arith.constant 0 : index
    %c0_4 = arith.constant 0 : index
    %3 = vector.load %arg3[%c0_3, %c0_4] : memref<16x256xf32, #tpu.memory_space<vmem>>, vector<16x256xf32>
    tpu.vector_store %arg3[%c0_3, %c0_4], %2 {strides = array<i32>} : memref<16x256xf32, #tpu.memory_space<vmem>>, vector<16x256xf32>,
    %cst_5 = arith.constant dense<0.000000e+00> : vector<256xf32>
    %4 = vector.multi_reduction <add>, %2, %cst_5 [0] : vector<16x256xf32> to vector<256xf32>
    %5 = vector.shape_cast %4 : vector<256xf32> to vector<1x256xf32>
    %6 = vector.shape_cast %5 : vector<1x256xf32> to vector<1x1x256xf32>
    %c0_6 = arith.constant 0 : index
    %c0_7 = arith.constant 0 : index
    %c0_8 = arith.constant 0 : index
    %7 = vector.load %arg4[%c0_6, %c0_7, %c0_8] : memref<1x1x256xf32, #tpu.memory_space<vmem>>, vector<1x1x256xf32>
    tpu.vector_store %arg4[%c0_6, %c0_7, %c0_8], %6 {strides = array<i32>} : memref<1x1x256xf32, #tpu.memory_space<vmem>>, vector<1x1x256xf32>,
    %8 = arith.mulf %2, %2 : vector<16x256xf32>
    %cst_9 = arith.constant dense<0.000000e+00> : vector<256xf32>
    %9 = vector.multi_reduction <add>, %8, %cst_9 [0] : vector<16x256xf32> to vector<256xf32>
    %10 = vector.shape_cast %9 : vector<256xf32> to vector<1x256xf32>
    %11 = vector.shape_cast %10 : vector<1x256xf32> to vector<1x1x256xf32>
    %c0_10 = arith.constant 0 : index
    %c0_11 = arith.constant 0 : index
    %c0_12 = arith.constant 0 : index
    %12 = vector.load %arg5[%c0_10, %c0_11, %c0_12] : memref<1x1x256xf32, #tpu.memory_space<vmem>>, vector<1x1x256xf32>
    tpu.vector_store %arg5[%c0_10, %c0_11, %c0_12], %11 {strides = array<i32>} : memref<1x1x256xf32, #tpu.memory_space<vmem>>, vector<1x1x256xf32>,
    return
  }
  func.func @transform_0(%arg0: i32) -> (i32, i32) {
    %c0_i32 = arith.constant 0 : i32
    %c0_i32_0 = arith.constant 0 : i32
    return %arg0, %c0_i32 : i32, i32
  }
  func.func @transform_1(%arg0: i32) -> (i32, i32) {
    %c0_i32 = arith.constant 0 : i32
    %c0_i32_0 = arith.constant 0 : i32
    %c0_i32_1 = arith.constant 0 : i32
    return %c0_i32, %c0_i32_0 : i32, i32
  }
  func.func @transform_2(%arg0: i32) -> (i32, i32) {
    %c0_i32 = arith.constant 0 : i32
    %c0_i32_0 = arith.constant 0 : i32
    return %arg0, %c0_i32 : i32, i32
  }
  func.func @transform_3(%arg0: i32) -> (i32, i32, i32) {
    %c0_i32 = arith.constant 0 : i32
    %c0_i32_0 = arith.constant 0 : i32
    %c0_i32_1 = arith.constant 0 : i32
    return %arg0, %c0_i32, %c0_i32_0 : i32, i32, i32
  }
  func.func @transform_4(%arg0: i32) -> (i32, i32, i32) {
    %c0_i32 = arith.constant 0 : i32
    %c0_i32_0 = arith.constant 0 : i32
    %c0_i32_1 = arith.constant 0 : i32
    return %arg0, %c0_i32, %c0_i32_0 : i32, i32, i32
  }
}

module attributes {stable_mosaic.version = 11 : i64} {
  func.func @_bn_relu_kernel(%arg0: i32, %arg1: memref<16x256xf32, #tpu.memory_space<vmem>>, %arg2: memref<2x256xf32, #tpu.memory_space<vmem>>, %arg3: memref<2x256xf32, #tpu.memory_space<vmem>>, %arg4: memref<16x256xf32, #tpu.memory_space<vmem>>) attributes {dimension_semantics = [#tpu.dimension_semantics<parallel>], iteration_bounds = array<i64: 1>, scalar_prefetch = 0 : i64, scratch_operands = 0 : i64, tpu.core_type = #tpu.core_type<tc>, window_params = [{transform_indices = @transform_0, window_bounds = array<i64: 16, 256>}, {pipeline_mode = #tpu.pipeline_mode<synchronous>, transform_indices = @transform_1, window_bounds = array<i64: 2, 256>}, {pipeline_mode = #tpu.pipeline_mode<synchronous>, transform_indices = @transform_2, window_bounds = array<i64: 2, 256>}, {transform_indices = @transform_3, window_bounds = array<i64: 16, 256>}]} {
    %c0 = arith.constant 0 : index
    %c0_0 = arith.constant 0 : index
    %0 = vector.load %arg2[%c0, %c0_0] : memref<2x256xf32, #tpu.memory_space<vmem>>, vector<1x256xf32>
    %cst = arith.constant 1.250000e-01 : f32
    %1 = vector.broadcast %cst : f32 to vector<1x256xf32>
    %2 = arith.mulf %0, %1 : vector<1x256xf32>
    %c1 = arith.constant 1 : index
    %c0_1 = arith.constant 0 : index
    %3 = vector.load %arg2[%c1, %c0_1] : memref<2x256xf32, #tpu.memory_space<vmem>>, vector<1x256xf32>
    %cst_2 = arith.constant 1.250000e-01 : f32
    %4 = vector.broadcast %cst_2 : f32 to vector<1x256xf32>
    %5 = arith.mulf %3, %4 : vector<1x256xf32>
    %6 = arith.mulf %2, %2 : vector<1x256xf32>
    %7 = arith.subf %5, %6 : vector<1x256xf32>
    %cst_3 = arith.constant 0.000000e+00 : f32
    %8 = vector.broadcast %cst_3 : f32 to vector<1x256xf32>
    %9 = arith.maximumf %7, %8 : vector<1x256xf32>
    %c0_4 = arith.constant 0 : index
    %c0_5 = arith.constant 0 : index
    %10 = vector.load %arg3[%c0_4, %c0_5] : memref<2x256xf32, #tpu.memory_space<vmem>>, vector<1x256xf32>
    %cst_6 = arith.constant 1.000000e-03 : f32
    %11 = vector.broadcast %cst_6 : f32 to vector<1x256xf32>
    %12 = arith.addf %9, %11 : vector<1x256xf32>
    %13 = math.rsqrt %12 : vector<1x256xf32>
    %14 = arith.mulf %10, %13 : vector<1x256xf32>
    %c1_7 = arith.constant 1 : index
    %c0_8 = arith.constant 0 : index
    %15 = vector.load %arg3[%c1_7, %c0_8] : memref<2x256xf32, #tpu.memory_space<vmem>>, vector<1x256xf32>
    %16 = arith.mulf %2, %14 : vector<1x256xf32>
    %17 = arith.subf %15, %16 : vector<1x256xf32>
    %c0_9 = arith.constant 0 : index
    %c0_10 = arith.constant 0 : index
    %18 = vector.load %arg1[%c0_9, %c0_10] : memref<16x256xf32, #tpu.memory_space<vmem>>, vector<16x256xf32>
    %19 = vector.broadcast %14 : vector<1x256xf32> to vector<16x256xf32>
    %20 = arith.mulf %18, %19 : vector<16x256xf32>
    %21 = vector.broadcast %17 : vector<1x256xf32> to vector<16x256xf32>
    %22 = arith.addf %20, %21 : vector<16x256xf32>
    %cst_11 = arith.constant 0.000000e+00 : f32
    %23 = vector.broadcast %cst_11 : f32 to vector<16x256xf32>
    %24 = arith.maximumf %22, %23 : vector<16x256xf32>
    %c0_12 = arith.constant 0 : index
    %c0_13 = arith.constant 0 : index
    %25 = vector.load %arg4[%c0_12, %c0_13] : memref<16x256xf32, #tpu.memory_space<vmem>>, vector<16x256xf32>
    tpu.vector_store %arg4[%c0_12, %c0_13], %24 {strides = array<i32>} : memref<16x256xf32, #tpu.memory_space<vmem>>, vector<16x256xf32>,
    return
  }
  func.func @transform_0(%arg0: i32) -> (i32, i32) {
    %c0_i32 = arith.constant 0 : i32
    %c0_i32_0 = arith.constant 0 : i32
    return %arg0, %c0_i32 : i32, i32
  }
  func.func @transform_1(%arg0: i32) -> (i32, i32) {
    %c0_i32 = arith.constant 0 : i32
    %c0_i32_0 = arith.constant 0 : i32
    %c0_i32_1 = arith.constant 0 : i32
    return %c0_i32, %c0_i32_0 : i32, i32
  }
  func.func @transform_2(%arg0: i32) -> (i32, i32) {
    %c0_i32 = arith.constant 0 : i32
    %c0_i32_0 = arith.constant 0 : i32
    %c0_i32_1 = arith.constant 0 : i32
    return %c0_i32, %c0_i32_0 : i32, i32
  }
  func.func @transform_3(%arg0: i32) -> (i32, i32) {
    %c0_i32 = arith.constant 0 : i32
    %c0_i32_0 = arith.constant 0 : i32
    return %arg0, %c0_i32 : i32, i32
  }
}

module attributes {stable_mosaic.version = 11 : i64} {
  func.func @_max9_kernel(%arg0: i32, %arg1: memref<16x192xf32, #tpu.memory_space<vmem>>, %arg2: memref<16x192xf32, #tpu.memory_space<vmem>>, %arg3: memref<16x192xf32, #tpu.memory_space<vmem>>, %arg4: memref<16x192xf32, #tpu.memory_space<vmem>>, %arg5: memref<16x192xf32, #tpu.memory_space<vmem>>, %arg6: memref<16x192xf32, #tpu.memory_space<vmem>>, %arg7: memref<16x192xf32, #tpu.memory_space<vmem>>, %arg8: memref<16x192xf32, #tpu.memory_space<vmem>>, %arg9: memref<16x192xf32, #tpu.memory_space<vmem>>, %arg10: memref<16x192xf32, #tpu.memory_space<vmem>>) attributes {dimension_semantics = [#tpu.dimension_semantics<parallel>], iteration_bounds = array<i64: 1>, scalar_prefetch = 0 : i64, scratch_operands = 0 : i64, tpu.core_type = #tpu.core_type<tc>, window_params = [{transform_indices = @transform_0, window_bounds = array<i64: 16, 192>}, {transform_indices = @transform_1, window_bounds = array<i64: 16, 192>}, {transform_indices = @transform_2, window_bounds = array<i64: 16, 192>}, {transform_indices = @transform_3, window_bounds = array<i64: 16, 192>}, {transform_indices = @transform_4, window_bounds = array<i64: 16, 192>}, {transform_indices = @transform_5, window_bounds = array<i64: 16, 192>}, {transform_indices = @transform_6, window_bounds = array<i64: 16, 192>}, {transform_indices = @transform_7, window_bounds = array<i64: 16, 192>}, {transform_indices = @transform_8, window_bounds = array<i64: 16, 192>}, {transform_indices = @transform_9, window_bounds = array<i64: 16, 192>}]} {
    %c0 = arith.constant 0 : index
    %c0_0 = arith.constant 0 : index
    %0 = vector.load %arg1[%c0, %c0_0] : memref<16x192xf32, #tpu.memory_space<vmem>>, vector<16x192xf32>
    %c0_1 = arith.constant 0 : index
    %c0_2 = arith.constant 0 : index
    %1 = vector.load %arg2[%c0_1, %c0_2] : memref<16x192xf32, #tpu.memory_space<vmem>>, vector<16x192xf32>
    %2 = arith.maximumf %0, %1 : vector<16x192xf32>
    %c0_3 = arith.constant 0 : index
    %c0_4 = arith.constant 0 : index
    %3 = vector.load %arg3[%c0_3, %c0_4] : memref<16x192xf32, #tpu.memory_space<vmem>>, vector<16x192xf32>
    %4 = arith.maximumf %2, %3 : vector<16x192xf32>
    %c0_5 = arith.constant 0 : index
    %c0_6 = arith.constant 0 : index
    %5 = vector.load %arg4[%c0_5, %c0_6] : memref<16x192xf32, #tpu.memory_space<vmem>>, vector<16x192xf32>
    %6 = arith.maximumf %4, %5 : vector<16x192xf32>
    %c0_7 = arith.constant 0 : index
    %c0_8 = arith.constant 0 : index
    %7 = vector.load %arg5[%c0_7, %c0_8] : memref<16x192xf32, #tpu.memory_space<vmem>>, vector<16x192xf32>
    %8 = arith.maximumf %6, %7 : vector<16x192xf32>
    %c0_9 = arith.constant 0 : index
    %c0_10 = arith.constant 0 : index
    %9 = vector.load %arg6[%c0_9, %c0_10] : memref<16x192xf32, #tpu.memory_space<vmem>>, vector<16x192xf32>
    %10 = arith.maximumf %8, %9 : vector<16x192xf32>
    %c0_11 = arith.constant 0 : index
    %c0_12 = arith.constant 0 : index
    %11 = vector.load %arg7[%c0_11, %c0_12] : memref<16x192xf32, #tpu.memory_space<vmem>>, vector<16x192xf32>
    %12 = arith.maximumf %10, %11 : vector<16x192xf32>
    %c0_13 = arith.constant 0 : index
    %c0_14 = arith.constant 0 : index
    %13 = vector.load %arg8[%c0_13, %c0_14] : memref<16x192xf32, #tpu.memory_space<vmem>>, vector<16x192xf32>
    %14 = arith.maximumf %12, %13 : vector<16x192xf32>
    %c0_15 = arith.constant 0 : index
    %c0_16 = arith.constant 0 : index
    %15 = vector.load %arg9[%c0_15, %c0_16] : memref<16x192xf32, #tpu.memory_space<vmem>>, vector<16x192xf32>
    %16 = arith.maximumf %14, %15 : vector<16x192xf32>
    %c0_17 = arith.constant 0 : index
    %c0_18 = arith.constant 0 : index
    %17 = vector.load %arg10[%c0_17, %c0_18] : memref<16x192xf32, #tpu.memory_space<vmem>>, vector<16x192xf32>
    tpu.vector_store %arg10[%c0_17, %c0_18], %16 {strides = array<i32>} : memref<16x192xf32, #tpu.memory_space<vmem>>, vector<16x192xf32>,
    return
  }
  func.func @transform_0(%arg0: i32) -> (i32, i32) {
    %c0_i32 = arith.constant 0 : i32
    %c0_i32_0 = arith.constant 0 : i32
    return %arg0, %c0_i32 : i32, i32
  }
  func.func @transform_1(%arg0: i32) -> (i32, i32) {
    %c0_i32 = arith.constant 0 : i32
    %c0_i32_0 = arith.constant 0 : i32
    return %arg0, %c0_i32 : i32, i32
  }
  func.func @transform_2(%arg0: i32) -> (i32, i32) {
    %c0_i32 = arith.constant 0 : i32
    %c0_i32_0 = arith.constant 0 : i32
    return %arg0, %c0_i32 : i32, i32
  }
  func.func @transform_3(%arg0: i32) -> (i32, i32) {
    %c0_i32 = arith.constant 0 : i32
    %c0_i32_0 = arith.constant 0 : i32
    return %arg0, %c0_i32 : i32, i32
  }
  func.func @transform_4(%arg0: i32) -> (i32, i32) {
    %c0_i32 = arith.constant 0 : i32
    %c0_i32_0 = arith.constant 0 : i32
    return %arg0, %c0_i32 : i32, i32
  }
  func.func @transform_5(%arg0: i32) -> (i32, i32) {
    %c0_i32 = arith.constant 0 : i32
    %c0_i32_0 = arith.constant 0 : i32
    return %arg0, %c0_i32 : i32, i32
  }
  func.func @transform_6(%arg0: i32) -> (i32, i32) {
    %c0_i32 = arith.constant 0 : i32
    %c0_i32_0 = arith.constant 0 : i32
    return %arg0, %c0_i32 : i32, i32
  }
  func.func @transform_7(%arg0: i32) -> (i32, i32) {
    %c0_i32 = arith.constant 0 : i32
    %c0_i32_0 = arith.constant 0 : i32
    return %arg0, %c0_i32 : i32, i32
  }
  func.func @transform_8(%arg0: i32) -> (i32, i32) {
    %c0_i32 = arith.constant 0 : i32
    %c0_i32_0 = arith.constant 0 : i32
    return %arg0, %c0_i32 : i32, i32
  }
  func.func @transform_9(%arg0: i32) -> (i32, i32) {
    %c0_i32 = arith.constant 0 : i32
    %c0_i32_0 = arith.constant 0 : i32
    return %arg0, %c0_i32 : i32, i32
  }
}

</mosaic_0001>

<llo_original>
// kernel: inception_stem_forward.22
$region0: #{inception_stem_forward.22}
  #allocation0 [shape = 'u32[]', space=smem, size = 0x4, offset = 0x4, fixed_abs, tag = 'smem constant byte address 0x4 - core index']
  #allocation1 [shape = 'u32[144,128]{1,0:T(1,128)}', space=vmem, size = 0x12000, scoped, tag = 'internal scratch']
  %s0 = inlined_call_operand.vmem [shape: bf16[768,128], index: 0, kind: input, shape index: {}]
  %s1 = inlined_call_operand.vmem [shape: bf16[128,128], index: 1, kind: input, shape index: {}]
  %s2 = inlined_call_operand.vmem [shape: f32[768,128], index: 2, kind: output, shape index: {0}]
  %s3 = inlined_call_operand.vmem [shape: f32[3,1,128], index: 3, kind: output, shape index: {1}]
  %s4 = inlined_call_operand.vmem [shape: f32[3,1,128], index: 4, kind: output, shape index: {2}]
  %5 = xla_tuple %s2, %s3, %s4
  %s6 = sld [smem:[#allocation0]]
  $region57: #{inception_stem_forward.22} parent=0
    _
  %s8 = ssub.s32 1, %s6
  %s9 = scalar_select 0, %s8, %s6
  loop: start=0, step=1, limit=5
  $region2: #{inception_stem_forward.22} parent=0 // loop_pre_header
    _
  $region3: #{inception_stem_forward.22} parent=0 // loop_header
    %s11 = sphi 0, %s15
    %p12 = scmp.ge.s32.totalorder %s11, 5
    %s21 = sphi 0, %s23
    %s24 = sphi 0, %s21
    %s25 = sphi 0, %s24
    %s41 = sphi 0, %s25
    %s45 = sphi 0, %s45
    %s47 = sphi 0, %s45
    %s48 = sphi 0, %s47
    %s62 = sphi 0, %s48
    %s68 = sphi 0, %s70
    %s71 = sphi 0, %s68
    %s72 = sphi 0, %s71
    %s88 = sphi 0, %s72
    %s94 = sphi 0, %s96
    %s97 = sphi 0, %s94
    %s98 = sphi 0, %s97
    %s114 = sphi 0, %s98
    %s120 = sphi 0, %s122
    %s123 = sphi 0, %s120
    %s124 = sphi 0, %s123
    %s140 = sphi 0, %s124
  $region4: #{inception_stem_forward.22} parent=0 // loop_header_branch
    %14 = sbr.rel (%p12) target = $region8
  $region5: #{inception_stem_forward.22} parent=0 // loop_body
    %s16 = ssub.s32 %s11, 1
    %s17 = ssub.s32 %s11, 2
    %s18 = sadd.s32 %s11, 1
    %s19 = ssub.s32 %s11, %s18
    %p20 = scmp.eq.s32.totalorder %s19, 0
    %s22 = sadd.s32 %s21, 1
    %s23 = scalar_select %p20, %s21, %s22
    %p26 = pneg %p20
    %p27 = scmp.eq.s32.totalorder %s11, 2
    %p28 = por %p26, %p27
    %p29 = scmp.ne.s32.totalorder %s21, %s24
    %p30 = scmp.eq.s32.totalorder %s11, 0
    %p31 = por %p29, %p30
    %p32 = scmp.ne.s32.totalorder %s21, %s24
    %p33 = scmp.eq.s32.totalorder %s16, 2
    %p34 = por %p32, %p33
    %p35 = scmp.ne.s32.totalorder %s24, %s25
    %p36 = scmp.eq.s32.totalorder %s16, 0
    %p37 = por %p35, %p36
    %p38 = scmp.ne.s32.totalorder %s24, %s25
    %p39 = scmp.eq.s32.totalorder %s17, 2
    %p40 = por %p38, %p39
    %p42 = scmp.ne.s32.totalorder %s25, %s41
    %p43 = scmp.eq.s32.totalorder %s17, 0
    %p44 = por %p42, %p43
    %s46 = sadd.s32 %s45, 1
    %p49 = scmp.eq.s32.totalorder %s11, 2
    %p50 = scmp.ne.s32.totalorder %s45, %s47
    %p51 = scmp.eq.s32.totalorder %s11, 0
    %p52 = por %p50, %p51
    %p53 = scmp.ne.s32.totalorder %s45, %s47
    %p54 = scmp.eq.s32.totalorder %s16, 2
    %p55 = por %p53, %p54
    %p56 = scmp.ne.s32.totalorder %s47, %s48
    %p57 = scmp.eq.s32.totalorder %s16, 0
    %p58 = por %p56, %p57
    %p59 = scmp.ne.s32.totalorder %s47, %s48
    %p60 = scmp.eq.s32.totalorder %s17, 2
    %p61 = por %p59, %p60
    %p63 = scmp.ne.s32.totalorder %s48, %s62
    %p64 = scmp.eq.s32.totalorder %s17, 0
    %p65 = por %p63, %p64
    %s66 = ssub.s32 %s11, %s18
    %p67 = scmp.eq.s32.totalorder %s66, 0
    %s69 = sadd.s32 %s68, 1
    %s70 = scalar_select %p67, %s68, %s69
    %p73 = pneg %p67
    %p74 = scmp.eq.s32.totalorder %s11, 2
    %p75 = por %p73, %p74
    %p76 = scmp.ne.s32.totalorder %s68, %s71
    %p77 = scmp.eq.s32.totalorder %s11, 0
    %p78 = por %p76, %p77
    %p79 = scmp.ne.s32.totalorder %s68, %s71
    %p80 = scmp.eq.s32.totalorder %s16, 2
    %p81 = por %p79, %p80
    %p82 = scmp.ne.s32.totalorder %s71, %s72
    %p83 = scmp.eq.s32.totalorder %s16, 0
    %p84 = por %p82, %p83
    %p85 = scmp.ne.s32.totalorder %s71, %s72
    %p86 = scmp.eq.s32.totalorder %s17, 2
    %p87 = por %p85, %p86
    %p89 = scmp.ne.s32.totalorder %s72, %s88
    %p90 = scmp.eq.s32.totalorder %s17, 0
    %p91 = por %p89, %p90
    %s92 = ssub.s32 %s11, %s18
    %p93 = scmp.eq.s32.totalorder %s92, 0
    %s95 = sadd.s32 %s94, 1
    %s96 = scalar_select %p93, %s94, %s95
    %p99 = pneg %p93
    %p100 = scmp.eq.s32.totalorder %s11, 2
    %p101 = por %p99, %p100
    %p102 = scmp.ne.s32.totalorder %s94, %s97
    %p103 = scmp.eq.s32.totalorder %s11, 0
    %p104 = por %p102, %p103
    %p105 = scmp.ne.s32.totalorder %s94, %s97
    %p106 = scmp.eq.s32.totalorder %s16, 2
    %p107 = por %p105, %p106
    %p108 = scmp.ne.s32.totalorder %s97, %s98
    %p109 = scmp.eq.s32.totalorder %s16, 0
    %p110 = por %p108, %p109
    %p111 = scmp.ne.s32.totalorder %s97, %s98
    %p112 = scmp.eq.s32.totalorder %s17, 2
    %p113 = por %p111, %p112
    %p115 = scmp.ne.s32.totalorder %s98, %s114
    %p116 = scmp.eq.s32.totalorder %s17, 0
    %p117 = por %p115, %p116
    %s118 = ssub.s32 %s11, %s18
    %p119 = scmp.eq.s32.totalorder %s118, 0
    %s121 = sadd.s32 %s120, 1
    %s122 = scalar_select %p119, %s120, %s121
    %p125 = pneg %p119
    %p126 = scmp.eq.s32.totalorder %s11, 2
    %p127 = por %p125, %p126
    %p128 = scmp.ne.s32.totalorder %s120, %s123
    %p129 = scmp.eq.s32.totalorder %s11, 0
    %p130 = por %p128, %p129
    %p131 = scmp.ne.s32.totalorder %s120, %s123
    %p132 = scmp.eq.s32.totalorder %s16, 2
    %p133 = por %p131, %p132
    %p134 = scmp.ne.s32.totalorder %s123, %s124
    %p135 = scmp.eq.s32.totalorder %s16, 0
    %p136 = por %p134, %p135
    %p137 = scmp.ne.s32.totalorder %s123, %s124
    %p138 = scmp.eq.s32.totalorder %s17, 2
    %p139 = por %p137, %p138
    %p141 = scmp.ne.s32.totalorder %s124, %s140
    %p142 = scmp.eq.s32.totalorder %s17, 0
    %p143 = por %p141, %p142
    %p144 = scmp.le.s32.totalorder 1, %s11
    %p145 = scmp.lt.s32.totalorder %s11, 4
    %p146 = pnand %p144, %p145
    %p147 = pneg %p146
    // Predicated region
    $region9: #{inception_stem_forward.22} parent=5 // pred_check
      _
    $region10: #{inception_stem_forward.22} parent=5 // pred_check_branch
      %149 = sbr.rel (%p146) target = $region12
    $region11: #{inception_stem_forward.22} parent=5 // pred_region
      %s150 = ssub.s32 %s11, 1
      // Predicated region
      $region13: #{inception_stem_forward.22} parent=11 // pred_check
        %p151 = pneg %p58
      $region14: #{inception_stem_forward.22} parent=11 // pred_check_branch
        %153 = sbr.rel (%p151) target = $region16
      $region15: #{inception_stem_forward.22} parent=11 // pred_region
        _
      $region16: #{inception_stem_forward.22} parent=11 // pred_fallthru
        _
    $region12: #{inception_stem_forward.22} parent=5 // pred_fallthru
      _
    %p154 = scmp.lt.s32.totalorder %s11, 3
    // Predicated region
    $region17: #{inception_stem_forward.22} parent=5 // pred_check
      %p155 = pneg %p154
    $region18: #{inception_stem_forward.22} parent=5 // pred_check_branch
      %157 = sbr.rel (%p155) target = $region20
    $region19: #{inception_stem_forward.22} parent=5 // pred_region
      // Predicated region
      $region21: #{inception_stem_forward.22} parent=19 // pred_check
        %p158 = pneg %p31
      $region22: #{inception_stem_forward.22} parent=19 // pred_check_branch
        %160 = sbr.rel (%p158) target = $region24
      $region23: #{inception_stem_forward.22} parent=19 // pred_region
        %s161 = smul.u32 32, %s11
        %p162 = scmp.lt.s32.totalorder %s161, 95
        %s163 = scalar_select %p162, %s161, 95
        %s164 = smul.addr %s163, 4
        %s165 = scalar_lea.vmem %s0, %s164
        %s166 = smul.u32 32, %s11
      $region24: #{inception_stem_forward.22} parent=19 // pred_fallthru
        _
    $region20: #{inception_stem_forward.22} parent=5 // pred_fallthru
      _
    %p167 = scmp.le.s32.totalorder 1, %s11
    %p168 = scmp.lt.s32.totalorder %s11, 4
    %p169 = pnand %p167, %p168
    %p170 = pneg %p169
    // Predicated region
    $region25: #{inception_stem_forward.22} parent=5 // pred_check
      _
    $region26: #{inception_stem_forward.22} parent=5 // pred_check_branch
      %172 = sbr.rel (%p169) target = $region28
    $region27: #{inception_stem_forward.22} parent=5 // pred_region
      %s173 = ssub.s32 %s11, 1
      %s174 = smul.u32 32, %s16
      %p175 = scmp.lt.s32.totalorder %s174, 95
      %s176 = scalar_select %p175, %s174, 95
      %s177 = smul.addr %s176, 4
      %s178 = scalar_lea.vmem %s0, %s177
      %p179 = pneg %p37
      %p180 = pneg %p34
      %p181 = pneg %p58
      %p182 = pneg %p55
      %p183 = pneg %p84
      %p184 = pneg %p81
      %s185 = smul.u32 32, %s16
      %p186 = scmp.lt.s32.totalorder %s185, 95
      %s187 = scalar_select %p186, %s185, 95
      %s188 = smul.addr %s187, 8
      %s189 = scalar_lea.vmem %s2, %s188
      %p190 = pneg %p110
      %p191 = pneg %p107
      %p192 = scmp.lt.s32.totalorder %s16, 2
      %s193 = scalar_select %p192, %s16, 2
      %s194 = scalar_lea.vmem %s3, %s193
      %p195 = pneg %p136
      %p196 = pneg %p133
      %p197 = scmp.lt.s32.totalorder %s16, 2
      %s198 = scalar_select %p197, %s16, 2
      %s199 = scalar_lea.vmem %s4, %s198
      %s200 = smul.u32 32, %s16
      %p201 = scmp.lt.s32.totalorder %s200, 95
      %s202 = scalar_select %p201, %s200, 95
      %s203 = smul.addr %s202, 4
      %s204 = scalar_lea.vmem %s0, %s203
      %s205 = smul.u32 32, %s16
      %s206 = smul.u32 32, %s16
      %p207 = scmp.lt.s32.totalorder %s206, 95
      %s208 = scalar_select %p207, %s206, 95
      %s209 = smul.addr %s208, 8
      %s210 = scalar_lea.vmem %s2, %s209
      %s211 = smul.u32 32, %s16
      %p212 = scmp.lt.s32.totalorder %s16, 2
      %s213 = scalar_select %p212, %s16, 2
      %s214 = scalar_lea.vmem %s3, %s213
      %p215 = scmp.lt.s32.totalorder %s16, 2
      %s216 = scalar_select %p215, %s16, 2
      %s217 = scalar_lea.vmem %s4, %s216
      %v219 = vld [vmem:[%s204] sm:$0xf]
      %v220 = vld [vmem:[%s204 + $0x4] sm:$0xf]
      %v221 = vld [vmem:[%s204 + $0x8] sm:$0xf]
      %v222 = vld [vmem:[%s204 + $0xc] sm:$0xf]
      %v223 = vld [vmem:[%s204 + $0x10] sm:$0xf]
      %v224 = vld [vmem:[%s204 + $0x14] sm:$0xf]
      %v225 = vld [vmem:[%s204 + $0x18] sm:$0xf]
      %v226 = vld [vmem:[%s204 + $0x1c] sm:$0xf]
      %v227 = vld [vmem:[%s204 + $0x20] sm:$0xf]
      %v228 = vld [vmem:[%s204 + $0x24] sm:$0xf]
      %v229 = vld [vmem:[%s204 + $0x28] sm:$0xf]
      %v230 = vld [vmem:[%s204 + $0x2c] sm:$0xf]
      %v231 = vld [vmem:[%s204 + $0x30] sm:$0xf]
      %v232 = vld [vmem:[%s204 + $0x34] sm:$0xf]
      %v233 = vld [vmem:[%s204 + $0x38] sm:$0xf]
      %v234 = vld [vmem:[%s204 + $0x3c] sm:$0xf]
      %v235 = vld [vmem:[%s204 + $0x40] sm:$0xf]
      %v236 = vld [vmem:[%s204 + $0x44] sm:$0xf]
      %v237 = vld [vmem:[%s204 + $0x48] sm:$0xf]
      %v238 = vld [vmem:[%s204 + $0x4c] sm:$0xf]
      %v239 = vld [vmem:[%s204 + $0x50] sm:$0xf]
      %v240 = vld [vmem:[%s204 + $0x54] sm:$0xf]
      %v241 = vld [vmem:[%s204 + $0x58] sm:$0xf]
      %v242 = vld [vmem:[%s204 + $0x5c] sm:$0xf]
      %v243 = vld [vmem:[%s204 + $0x60] sm:$0xf]
      %v244 = vld [vmem:[%s204 + $0x64] sm:$0xf]
      %v245 = vld [vmem:[%s204 + $0x68] sm:$0xf]
      %v246 = vld [vmem:[%s204 + $0x6c] sm:$0xf]
      %v247 = vld [vmem:[%s204 + $0x70] sm:$0xf]
      %v248 = vld [vmem:[%s204 + $0x74] sm:$0xf]
      %v249 = vld [vmem:[%s204 + $0x78] sm:$0xf]
      %v250 = vld [vmem:[%s204 + $0x7c] sm:$0xf]
      %v251 = vld [vmem:[%s1] sm:$0xf]
      %v252 = vld [vmem:[%s1 + $0x4] sm:$0xf]
      %v253 = vld [vmem:[%s1 + $0x8] sm:$0xf]
      %v254 = vld [vmem:[%s1 + $0xc] sm:$0xf]
      %v255 = vld [vmem:[%s1 + $0x10] sm:$0xf]
      %v256 = vld [vmem:[%s1 + $0x14] sm:$0xf]
      %v257 = vld [vmem:[%s1 + $0x18] sm:$0xf]
      %v258 = vld [vmem:[%s1 + $0x1c] sm:$0xf]
      %v259 = vld [vmem:[%s1 + $0x20] sm:$0xf]
      %v260 = vld [vmem:[%s1 + $0x24] sm:$0xf]
      %v261 = vld [vmem:[%s1 + $0x28] sm:$0xf]
      %v262 = vld [vmem:[%s1 + $0x2c] sm:$0xf]
      %v263 = vld [vmem:[%s1 + $0x30] sm:$0xf]
      %v264 = vld [vmem:[%s1 + $0x34] sm:$0xf]
      %v265 = vld [vmem:[%s1 + $0x38] sm:$0xf]
      %v266 = vld [vmem:[%s1 + $0x3c] sm:$0xf]
      %v299 = vunpack.c.l.b16 %v219
      %v300 = vunpack.c.l.b16 %v220
      %v301 = vunpack.c.l.b16 %v221
      %v302 = vunpack.c.l.b16 %v222
      %v303 = vunpack.c.l.b16 %v223
      %v304 = vunpack.c.l.b16 %v224
      %v305 = vunpack.c.l.b16 %v225
      %v306 = vunpack.c.l.b16 %v226
      %v307 = vunpack.c.l.b16 %v227
      %v308 = vunpack.c.l.b16 %v228
      %v309 = vunpack.c.l.b16 %v229
      %v310 = vunpack.c.l.b16 %v230
      %v311 = vunpack.c.l.b16 %v231
      %v312 = vunpack.c.l.b16 %v232
      %v313 = vunpack.c.l.b16 %v233
      %v314 = vunpack.c.l.b16 %v234
      %v315 = vunpack.c.l.b16 %v235
      %v316 = vunpack.c.l.b16 %v236
      %v317 = vunpack.c.l.b16 %v237
      %v318 = vunpack.c.l.b16 %v238
      %v319 = vunpack.c.l.b16 %v239
      %v320 = vunpack.c.l.b16 %v240
      %v321 = vunpack.c.l.b16 %v241
      %v322 = vunpack.c.l.b16 %v242
      %v323 = vunpack.c.l.b16 %v243
      %v324 = vunpack.c.l.b16 %v244
      %v325 = vunpack.c.l.b16 %v245
      %v326 = vunpack.c.l.b16 %v246
      %v327 = vunpack.c.l.b16 %v247
      %v328 = vunpack.c.l.b16 %v248
      %v329 = vunpack.c.l.b16 %v249
      %v330 = vunpack.c.l.b16 %v250
      %v331 = vpack.c.b16 %v300, %v299
      %v332 = vpack.c.b16 %v302, %v301
      %v333 = vpack.c.b16 %v304, %v303
      %v334 = vpack.c.b16 %v306, %v305
      %v335 = vpack.c.b16 %v308, %v307
      %v336 = vpack.c.b16 %v310, %v309
      %v337 = vpack.c.b16 %v312, %v311
      %v338 = vpack.c.b16 %v314, %v313
      %v339 = vpack.c.b16 %v316, %v315
      %v340 = vpack.c.b16 %v318, %v317
      %v341 = vpack.c.b16 %v320, %v319
      %v342 = vpack.c.b16 %v322, %v321
      %v343 = vpack.c.b16 %v324, %v323
      %v344 = vpack.c.b16 %v326, %v325
      %v345 = vpack.c.b16 %v328, %v327
      %v346 = vpack.c.b16 %v330, %v329
      %v379 = vunpack.c.l.b16 %v251
      %v380 = vunpack.c.l.b16 %v252
      %v381 = vunpack.c.l.b16 %v253
      %v382 = vunpack.c.l.b16 %v254
      %v383 = vunpack.c.l.b16 %v255
      %v384 = vunpack.c.l.b16 %v256
      %v385 = vunpack.c.l.b16 %v257
      %v386 = vunpack.c.l.b16 %v258
      %v387 = vunpack.c.l.b16 %v259
      %v388 = vunpack.c.l.b16 %v260
      %v389 = vunpack.c.l.b16 %v261
      %v390 = vunpack.c.l.b16 %v262
      %v391 = vunpack.c.l.b16 %v263
      %v392 = vunpack.c.l.b16 %v264
      %v393 = vunpack.c.l.b16 %v265
      %v394 = vunpack.c.l.b16 %v266
      %v395 = vpack.c.b16 %v380, %v379
      %v396 = vpack.c.b16 %v382, %v381
      %v397 = vpack.c.b16 %v384, %v383
      %v398 = vpack.c.b16 %v386, %v385
      %v399 = vpack.c.b16 %v388, %v387
      %v400 = vpack.c.b16 %v390, %v389
      %v401 = vpack.c.b16 %v392, %v391
      %v402 = vpack.c.b16 %v394, %v393
      %411 = vmatprep.subr.bf16.mxu0 0
      %412 = vmatpush1.bf16.msra.mxu0 %v395
      %413 = vmatprep.subr.bf16.mxu0 0
      %414 = vmatpush1.bf16.msra.mxu0 %v396
      %415 = vmatprep.subr.bf16.mxu0 0
      %416 = vmatpush1.bf16.msra.mxu0 %v397
      %417 = vmatprep.subr.bf16.mxu0 0
      %418 = vmatpush1.bf16.msra.mxu0 %v398
      %419 = vmatprep.subr.bf16.mxu0 0
      %420 = vmatpush1.bf16.msra.mxu0 %v399
      %421 = vmatprep.subr.bf16.mxu0 0
      %422 = vmatpush1.bf16.msra.mxu0 %v400
      %423 = vmatprep.subr.bf16.mxu0 0
      %424 = vmatpush1.bf16.msra.mxu0 %v401
      %425 = vmatprep.subr.bf16.mxu0 0
      %426 = vmatpush1.bf16.msra.mxu0 %v402
      %427 = vmatprep.subr.bf16.mxu0 0
      %428 = vmatpush1.bf16.msra.mxu0 0
      %429 = vmatprep.subr.bf16.mxu0 0
      %430 = vmatpush1.bf16.msra.mxu0 0
      %431 = vmatprep.subr.bf16.mxu0 0
      %432 = vmatpush1.bf16.msra.mxu0 0
      %433 = vmatprep.subr.bf16.mxu0 0
      %434 = vmatpush1.bf16.msra.mxu0 0
      %435 = vmatprep.subr.bf16.mxu0 0
      %436 = vmatpush1.bf16.msra.mxu0 0
      %437 = vmatprep.subr.bf16.mxu0 0
      %438 = vmatpush1.bf16.msra.mxu0 0
      %439 = vmatprep.subr.bf16.mxu0 0
      %440 = vmatpush1.bf16.msra.mxu0 0
      %441 = vmatprep.subr.bf16.mxu0 0
      %442 = vmatpush1.bf16.msra.mxu0 0
      %443 = vmatprep.mubr.bf16.mxu0 0
      %444 = vmatmul.mubr.bf16.gmra.mrb[0].mxu0 %v331
      %v445 = vpop.f32.mrb[0].mxu0
      %v446 = vadd.f32 0.0, %v445
      %v447 = vpop.f32.mrb[0].mxu0
      %v448 = vpop.f32.mrb[0].mxu0
      %v449 = vadd.f32 0.0, %v448
      %v450 = vpop.f32.mrb[0].mxu0
      %451 = vmatprep.mubr.bf16.mxu0 0
      %452 = vmatmul.mubr.bf16.gmra.mrb[0].mxu0 %v332
      %v453 = vpop.f32.mrb[0].mxu0
      %v454 = vadd.f32 0.0, %v453
      %v455 = vpop.f32.mrb[0].mxu0
      %v456 = vpop.f32.mrb[0].mxu0
      %v457 = vadd.f32 0.0, %v456
      %v458 = vpop.f32.mrb[0].mxu0
      %459 = vmatprep.mubr.bf16.mxu0 0
      %460 = vmatmul.mubr.bf16.gmra.mrb[0].mxu0 %v333
      %v461 = vpop.f32.mrb[0].mxu0
      %v462 = vadd.f32 0.0, %v461
      %v463 = vpop.f32.mrb[0].mxu0
      %v464 = vpop.f32.mrb[0].mxu0
      %v465 = vadd.f32 0.0, %v464
      %v466 = vpop.f32.mrb[0].mxu0
      %467 = vmatprep.mubr.bf16.mxu0 0
      %468 = vmatmul.mubr.bf16.gmra.mrb[0].mxu0 %v334
      %v469 = vpop.f32.mrb[0].mxu0
      %v470 = vadd.f32 0.0, %v469
      %v471 = vpop.f32.mrb[0].mxu0
      %v472 = vpop.f32.mrb[0].mxu0
      %v473 = vadd.f32 0.0, %v472
      %v474 = vpop.f32.mrb[0].mxu0
      %475 = vmatprep.mubr.bf16.mxu0 0
      %476 = vmatmul.mubr.bf16.gmra.mrb[0].mxu0 %v335
      %v477 = vpop.f32.mrb[0].mxu0
      %v478 = vadd.f32 0.0, %v477
      %v479 = vpop.f32.mrb[0].mxu0
      %v480 = vpop.f32.mrb[0].mxu0
      %v481 = vadd.f32 0.0, %v480
      %v482 = vpop.f32.mrb[0].mxu0
      %483 = vmatprep.mubr.bf16.mxu0 0
      %484 = vmatmul.mubr.bf16.gmra.mrb[0].mxu0 %v336
      %v485 = vpop.f32.mrb[0].mxu0
      %v486 = vadd.f32 0.0, %v485
      %v487 = vpop.f32.mrb[0].mxu0
      %v488 = vpop.f32.mrb[0].mxu0
      %v489 = vadd.f32 0.0, %v488
      %v490 = vpop.f32.mrb[0].mxu0
      %491 = vmatprep.mubr.bf16.mxu0 0
      %492 = vmatmul.mubr.bf16.gmra.mrb[0].mxu0 %v337
      %v493 = vpop.f32.mrb[0].mxu0
      %v494 = vadd.f32 0.0, %v493
      %v495 = vpop.f32.mrb[0].mxu0
      %v496 = vpop.f32.mrb[0].mxu0
      %v497 = vadd.f32 0.0, %v496
      %v498 = vpop.f32.mrb[0].mxu0
      %499 = vmatprep.mubr.bf16.mxu0 0
      %500 = vmatmul.mubr.bf16.gmra.mrb[0].mxu0 %v338
      %v501 = vpop.f32.mrb[0].mxu0
      %v502 = vadd.f32 0.0, %v501
      %v503 = vpop.f32.mrb[0].mxu0
      %v504 = vpop.f32.mrb[0].mxu0
      %v505 = vadd.f32 0.0, %v504
      %v506 = vpop.f32.mrb[0].mxu0
      %507 = vmatprep.mubr.bf16.mxu0 0
      %508 = vmatmul.mubr.bf16.gmra.mrb[0].mxu0 %v339
      %v509 = vpop.f32.mrb[0].mxu0
      %v510 = vadd.f32 0.0, %v509
      %v511 = vpop.f32.mrb[0].mxu0
      %v512 = vpop.f32.mrb[0].mxu0
      %v513 = vadd.f32 0.0, %v512
      %v514 = vpop.f32.mrb[0].mxu0
      %515 = vmatprep.mubr.bf16.mxu0 0
      %516 = vmatmul.mubr.bf16.gmra.mrb[0].mxu0 %v340
      %v517 = vpop.f32.mrb[0].mxu0
      %v518 = vadd.f32 0.0, %v517
      %v519 = vpop.f32.mrb[0].mxu0
      %v520 = vpop.f32.mrb[0].mxu0
      %v521 = vadd.f32 0.0, %v520
      %v522 = vpop.f32.mrb[0].mxu0
      %523 = vmatprep.mubr.bf16.mxu0 0
      %524 = vmatmul.mubr.bf16.gmra.mrb[0].mxu0 %v341
      %v525 = vpop.f32.mrb[0].mxu0
      %v526 = vadd.f32 0.0, %v525
      %v527 = vpop.f32.mrb[0].mxu0
      %v528 = vpop.f32.mrb[0].mxu0
      %v529 = vadd.f32 0.0, %v528
      %v530 = vpop.f32.mrb[0].mxu0
      %531 = vmatprep.mubr.bf16.mxu0 0
      %532 = vmatmul.mubr.bf16.gmra.mrb[0].mxu0 %v342
      %v533 = vpop.f32.mrb[0].mxu0
      %v534 = vadd.f32 0.0, %v533
      %v535 = vpop.f32.mrb[0].mxu0
      %v536 = vpop.f32.mrb[0].mxu0
      %v537 = vadd.f32 0.0, %v536
      %v538 = vpop.f32.mrb[0].mxu0
      %539 = vmatprep.mubr.bf16.mxu0 0
      %540 = vmatmul.mubr.bf16.gmra.mrb[0].mxu0 %v343
      %v541 = vpop.f32.mrb[0].mxu0
      %v542 = vadd.f32 0.0, %v541
      %v543 = vpop.f32.mrb[0].mxu0
      %v544 = vpop.f32.mrb[0].mxu0
      %v545 = vadd.f32 0.0, %v544
      %v546 = vpop.f32.mrb[0].mxu0
      %547 = vmatprep.mubr.bf16.mxu0 0
      %548 = vmatmul.mubr.bf16.gmra.mrb[0].mxu0 %v344
      %v549 = vpop.f32.mrb[0].mxu0
      %v550 = vadd.f32 0.0, %v549
      %v551 = vpop.f32.mrb[0].mxu0
      %v552 = vpop.f32.mrb[0].mxu0
      %v553 = vadd.f32 0.0, %v552
      %v554 = vpop.f32.mrb[0].mxu0
      %555 = vmatprep.mubr.bf16.mxu0 0
      %556 = vmatmul.mubr.bf16.gmra.mrb[0].mxu0 %v345
      %v557 = vpop.f32.mrb[0].mxu0
      %v558 = vadd.f32 0.0, %v557
      %v559 = vpop.f32.mrb[0].mxu0
      %v560 = vpop.f32.mrb[0].mxu0
      %v561 = vadd.f32 0.0, %v560
      %v562 = vpop.f32.mrb[0].mxu0
      %563 = vmatprep.mubr.bf16.mxu0 0
      %564 = vmatmul.mubr.bf16.gmra.mrb[0].mxu0 %v346
      %v565 = vpop.f32.mrb[0].mxu0
      %v566 = vadd.f32 0.0, %v565
      %v567 = vpop.f32.mrb[0].mxu0
      %v568 = vpop.f32.mrb[0].mxu0
      %v569 = vadd.f32 0.0, %v568
      %v570 = vpop.f32.mrb[0].mxu0
      %571 = vdwg.mxu0
      %572 = vst [vmem:[%s210] sm:$0xff] %v446
      %573 = vst [vmem:[%s210 + $0x8] sm:$0xff] %v449
      %574 = vst [vmem:[%s210 + $0x10] sm:$0xff] %v454
      %575 = vst [vmem:[%s210 + $0x18] sm:$0xff] %v457
      %576 = vst [vmem:[%s210 + $0x20] sm:$0xff] %v462
      %577 = vst [vmem:[%s210 + $0x28] sm:$0xff] %v465
      %578 = vst [vmem:[%s210 + $0x30] sm:$0xff] %v470
      %579 = vst [vmem:[%s210 + $0x38] sm:$0xff] %v473
      %580 = vst [vmem:[%s210 + $0x40] sm:$0xff] %v478
      %581 = vst [vmem:[%s210 + $0x48] sm:$0xff] %v481
      %582 = vst [vmem:[%s210 + $0x50] sm:$0xff] %v486
      %583 = vst [vmem:[%s210 + $0x58] sm:$0xff] %v489
      %584 = vst [vmem:[%s210 + $0x60] sm:$0xff] %v494
      %585 = vst [vmem:[%s210 + $0x68] sm:$0xff] %v497
      %586 = vst [vmem:[%s210 + $0x70] sm:$0xff] %v502
      %587 = vst [vmem:[%s210 + $0x78] sm:$0xff] %v505
      %588 = vst [vmem:[%s210 + $0x80] sm:$0xff] %v510
      %589 = vst [vmem:[%s210 + $0x88] sm:$0xff] %v513
      %590 = vst [vmem:[%s210 + $0x90] sm:$0xff] %v518
      %591 = vst [vmem:[%s210 + $0x98] sm:$0xff] %v521
      %592 = vst [vmem:[%s210 + $0xa0] sm:$0xff] %v526
      %593 = vst [vmem:[%s210 + $0xa8] sm:$0xff] %v529
      %594 = vst [vmem:[%s210 + $0xb0] sm:$0xff] %v534
      %595 = vst [vmem:[%s210 + $0xb8] sm:$0xff] %v537
      %596 = vst [vmem:[%s210 + $0xc0] sm:$0xff] %v542
      %597 = vst [vmem:[%s210 + $0xc8] sm:$0xff] %v545
      %598 = vst [vmem:[%s210 + $0xd0] sm:$0xff] %v550
      %599 = vst [vmem:[%s210 + $0xd8] sm:$0xff] %v553
      %600 = vst [vmem:[%s210 + $0xe0] sm:$0xff] %v558
      %601 = vst [vmem:[%s210 + $0xe8] sm:$0xff] %v561
      %602 = vst [vmem:[%s210 + $0xf0] sm:$0xff] %v566
      %603 = vst [vmem:[%s210 + $0xf8] sm:$0xff] %v569
      %v604 = vadd.f32 %v446, %v449
      %v605 = vadd.f32 %v604, %v454
      %v606 = vadd.f32 %v605, %v457
      %v607 = vadd.f32 %v606, %v462
      %v608 = vadd.f32 %v607, %v465
      %v609 = vadd.f32 %v608, %v470
      %v610 = vadd.f32 %v609, %v473
      %v611 = vadd.f32 %v610, %v478
      %v612 = vadd.f32 %v611, %v481
      %v613 = vadd.f32 %v612, %v486
      %v614 = vadd.f32 %v613, %v489
      %v615 = vadd.f32 %v614, %v494
      %v616 = vadd.f32 %v615, %v497
      %v617 = vadd.f32 %v616, %v502
      %v618 = vadd.f32 %v617, %v505
      %v619 = vadd.f32 %v618, %v510
      %v620 = vadd.f32 %v619, %v513
      %v621 = vadd.f32 %v620, %v518
      %v622 = vadd.f32 %v621, %v521
      %v623 = vadd.f32 %v622, %v526
      %v624 = vadd.f32 %v623, %v529
      %v625 = vadd.f32 %v624, %v534
      %v626 = vadd.f32 %v625, %v537
      %v627 = vadd.f32 %v626, %v542
      %v628 = vadd.f32 %v627, %v545
      %v629 = vadd.f32 %v628, %v550
      %v630 = vadd.f32 %v629, %v553
      %v631 = vadd.f32 %v630, %v558
      %v632 = vadd.f32 %v631, %v561
      %v633 = vadd.f32 %v632, %v566
      %v634 = vadd.f32 %v633, %v569
      %v635 = vrot.slane %v634, 4
      %v636 = vadd.f32 %v634, %v635
      %v637 = vrot.slane %v636, 2
      %v638 = vadd.f32 %v636, %v637
      %v639 = vrot.slane %v638, 1
      %v640 = vadd.f32 %v638, %v639
      %641 = vst [vmem:[%s214] sm:$0x1] %v640
      %v642 = vmul.f32 %v446, %v446
      %v643 = vmul.f32 %v449, %v449
      %v644 = vmul.f32 %v454, %v454
      %v645 = vmul.f32 %v457, %v457
      %v646 = vmul.f32 %v462, %v462
      %v647 = vmul.f32 %v465, %v465
      %v648 = vmul.f32 %v470, %v470
      %v649 = vmul.f32 %v473, %v473
      %v650 = vmul.f32 %v478, %v478
      %v651 = vmul.f32 %v481, %v481
      %v652 = vmul.f32 %v486, %v486
      %v653 = vmul.f32 %v489, %v489
      %v654 = vmul.f32 %v494, %v494
      %v655 = vmul.f32 %v497, %v497
      %v656 = vmul.f32 %v502, %v502
      %v657 = vmul.f32 %v505, %v505
      %v658 = vmul.f32 %v510, %v510
      %v659 = vmul.f32 %v513, %v513
      %v660 = vmul.f32 %v518, %v518
      %v661 = vmul.f32 %v521, %v521
      %v662 = vmul.f32 %v526, %v526
      %v663 = vmul.f32 %v529, %v529
      %v664 = vmul.f32 %v534, %v534
      %v665 = vmul.f32 %v537, %v537
      %v666 = vmul.f32 %v542, %v542
      %v667 = vmul.f32 %v545, %v545
      %v668 = vmul.f32 %v550, %v550
      %v669 = vmul.f32 %v553, %v553
      %v670 = vmul.f32 %v558, %v558
      %v671 = vmul.f32 %v561, %v561
      %v672 = vmul.f32 %v566, %v566
      %v673 = vmul.f32 %v569, %v569
      %v674 = vadd.f32 %v642, %v643
      %v675 = vadd.f32 %v674, %v644
      %v676 = vadd.f32 %v675, %v645
      %v677 = vadd.f32 %v676, %v646
      %v678 = vadd.f32 %v677, %v647
      %v679 = vadd.f32 %v678, %v648
      %v680 = vadd.f32 %v679, %v649
      %v681 = vadd.f32 %v680, %v650
      %v682 = vadd.f32 %v681, %v651
      %v683 = vadd.f32 %v682, %v652
      %v684 = vadd.f32 %v683, %v653
      %v685 = vadd.f32 %v684, %v654
      %v686 = vadd.f32 %v685, %v655
      %v687 = vadd.f32 %v686, %v656
      %v688 = vadd.f32 %v687, %v657
      %v689 = vadd.f32 %v688, %v658
      %v690 = vadd.f32 %v689, %v659
      %v691 = vadd.f32 %v690, %v660
      %v692 = vadd.f32 %v691, %v661
      %v693 = vadd.f32 %v692, %v662
      %v694 = vadd.f32 %v693, %v663
      %v695 = vadd.f32 %v694, %v664
      %v696 = vadd.f32 %v695, %v665
      %v697 = vadd.f32 %v696, %v666
      %v698 = vadd.f32 %v697, %v667
      %v699 = vadd.f32 %v698, %v668
      %v700 = vadd.f32 %v699, %v669
      %v701 = vadd.f32 %v700, %v670
      %v702 = vadd.f32 %v701, %v671
      %v703 = vadd.f32 %v702, %v672
      %v704 = vadd.f32 %v703, %v673
      %v705 = vrot.slane %v704, 4
      %v706 = vadd.f32 %v704, %v705
      %v707 = vrot.slane %v706, 2
      %v708 = vadd.f32 %v706, %v707
      %v709 = vrot.slane %v708, 1
      %v710 = vadd.f32 %v708, %v709
      %711 = vst [vmem:[%s217] sm:$0x1] %v710
      %s712 = smul.u32 32, %s16
      %p713 = scmp.lt.s32.totalorder %s712, 95
      %s714 = scalar_select %p713, %s712, 95
      %s715 = smul.addr %s714, 8
      %s716 = scalar_lea.vmem %s2, %s715
      %p717 = scmp.lt.s32.totalorder %s16, 2
      %s718 = scalar_select %p717, %s16, 2
      %s719 = scalar_lea.vmem %s3, %s718
      %p720 = scmp.lt.s32.totalorder %s16, 2
      %s721 = scalar_select %p720, %s16, 2
      %s722 = scalar_lea.vmem %s4, %s721
      // Predicated region
      $region29: #{inception_stem_forward.22} parent=27 // pred_check
        %p723 = pneg %p81
      $region30: #{inception_stem_forward.22} parent=27 // pred_check_branch
        %725 = sbr.rel (%p723) target = $region32
      $region31: #{inception_stem_forward.22} parent=27 // pred_region
        %s726 = smul.u32 32, %s16
      $region32: #{inception_stem_forward.22} parent=27 // pred_fallthru
        _
      // Predicated region
      $region33: #{inception_stem_forward.22} parent=27 // pred_check
        %p727 = pneg %p107
      $region34: #{inception_stem_forward.22} parent=27 // pred_check_branch
        %729 = sbr.rel (%p727) target = $region36
      $region35: #{inception_stem_forward.22} parent=27 // pred_region
        _
      $region36: #{inception_stem_forward.22} parent=27 // pred_fallthru
        _
      // Predicated region
      $region37: #{inception_stem_forward.22} parent=27 // pred_check
        %p730 = pneg %p133
      $region38: #{inception_stem_forward.22} parent=27 // pred_check_branch
        %732 = sbr.rel (%p730) target = $region40
      $region39: #{inception_stem_forward.22} parent=27 // pred_region
        _
      $region40: #{inception_stem_forward.22} parent=27 // pred_fallthru
        _
    $region28: #{inception_stem_forward.22} parent=5 // pred_fallthru
      _
    %p733 = scmp.le.s32.totalorder 2, %s11
    // Predicated region
    $region41: #{inception_stem_forward.22} parent=5 // pred_check
      %p734 = pneg %p733
    $region42: #{inception_stem_forward.22} parent=5 // pred_check_branch
      %736 = sbr.rel (%p734) target = $region44
    $region43: #{inception_stem_forward.22} parent=5 // pred_region
      %s737 = ssub.s32 %s11, 2
      // Predicated region
      $region45: #{inception_stem_forward.22} parent=43 // pred_check
        %p738 = pneg %p87
      $region46: #{inception_stem_forward.22} parent=43 // pred_check_branch
        %740 = sbr.rel (%p738) target = $region48
      $region47: #{inception_stem_forward.22} parent=43 // pred_region
        %s741 = smul.u32 32, %s17
        %p742 = scmp.lt.s32.totalorder %s741, 95
        %s743 = scalar_select %p742, %s741, 95
        %s744 = smul.addr %s743, 8
        %s745 = scalar_lea.vmem %s2, %s744
      $region48: #{inception_stem_forward.22} parent=43 // pred_fallthru
        _
      // Predicated region
      $region49: #{inception_stem_forward.22} parent=43 // pred_check
        %p746 = pneg %p113
      $region50: #{inception_stem_forward.22} parent=43 // pred_check_branch
        %748 = sbr.rel (%p746) target = $region52
      $region51: #{inception_stem_forward.22} parent=43 // pred_region
        %p749 = scmp.lt.s32.totalorder %s17, 2
        %s750 = scalar_select %p749, %s17, 2
        %s751 = scalar_lea.vmem %s3, %s750
      $region52: #{inception_stem_forward.22} parent=43 // pred_fallthru
        _
      // Predicated region
      $region53: #{inception_stem_forward.22} parent=43 // pred_check
        %p752 = pneg %p139
      $region54: #{inception_stem_forward.22} parent=43 // pred_check_branch
        %754 = sbr.rel (%p752) target = $region56
      $region55: #{inception_stem_forward.22} parent=43 // pred_region
        %p755 = scmp.lt.s32.totalorder %s17, 2
        %s756 = scalar_select %p755, %s17, 2
        %s757 = scalar_lea.vmem %s4, %s756
      $region56: #{inception_stem_forward.22} parent=43 // pred_fallthru
        _
    $region44: #{inception_stem_forward.22} parent=5 // pred_fallthru
      _
  $region6: #{inception_stem_forward.22} parent=0 // loop_footer
    %s15 = sadd.s32 1, %s11
  $region7: #{inception_stem_forward.22} parent=0 // loop_footer_branch
    %10 = sbr.rel target = $region3
  $region8: #{inception_stem_forward.22} parent=0 // loop_exit
    _

// kernel: inception_stem_forward.23
$region0: #{inception_stem_forward.23}
  #allocation0 [shape = 'u32[]', space=smem, size = 0x4, offset = 0x4, fixed_abs, tag = 'smem constant byte address 0x4 - core index']
  #allocation1 [shape = 'u32[144,128]{1,0:T(1,128)}', space=vmem, size = 0x12000, scoped, tag = 'internal scratch']
  %s0 = inlined_call_operand.vmem [shape: f32[768,128], index: 0, kind: input, shape index: {}]
  %s1 = inlined_call_operand.vmem [shape: f32[2,128], index: 1, kind: input, shape index: {}]
  %s2 = inlined_call_operand.vmem [shape: f32[2,128], index: 2, kind: input, shape index: {}]
  %s3 = inlined_call_operand.vmem [shape: f32[768,128], index: 3, kind: output, shape index: {}]
  %s4 = sld [smem:[#allocation0]]
  $region45: #{inception_stem_forward.23} parent=0
    _
  %s6 = ssub.s32 1, %s4
  %s7 = scalar_select 0, %s6, %s4
  loop: start=0, step=1, limit=5
  $region2: #{inception_stem_forward.23} parent=0 // loop_pre_header
    _
  $region3: #{inception_stem_forward.23} parent=0 // loop_header
    %s9 = sphi 0, %s13
    %p10 = scmp.ge.s32.totalorder %s9, 5
    %s19 = sphi 0, %s21
    %s22 = sphi 0, %s19
    %s23 = sphi 0, %s22
    %s39 = sphi 0, %s23
    %s43 = sphi 0, %s43
    %s45 = sphi 0, %s43
    %s46 = sphi 0, %s45
    %s60 = sphi 0, %s46
    %s64 = sphi 0, %s64
    %s66 = sphi 0, %s64
    %s67 = sphi 0, %s66
    %s81 = sphi 0, %s67
    %s87 = sphi 0, %s89
    %s90 = sphi 0, %s87
    %s91 = sphi 0, %s90
    %s107 = sphi 0, %s91
  $region4: #{inception_stem_forward.23} parent=0 // loop_header_branch
    %12 = sbr.rel (%p10) target = $region8
  $region5: #{inception_stem_forward.23} parent=0 // loop_body
    %s14 = ssub.s32 %s9, 1
    %s15 = ssub.s32 %s9, 2
    %s16 = sadd.s32 %s9, 1
    %s17 = ssub.s32 %s9, %s16
    %p18 = scmp.eq.s32.totalorder %s17, 0
    %s20 = sadd.s32 %s19, 1
    %s21 = scalar_select %p18, %s19, %s20
    %p24 = pneg %p18
    %p25 = scmp.eq.s32.totalorder %s9, 2
    %p26 = por %p24, %p25
    %p27 = scmp.ne.s32.totalorder %s19, %s22
    %p28 = scmp.eq.s32.totalorder %s9, 0
    %p29 = por %p27, %p28
    %p30 = scmp.ne.s32.totalorder %s19, %s22
    %p31 = scmp.eq.s32.totalorder %s14, 2
    %p32 = por %p30, %p31
    %p33 = scmp.ne.s32.totalorder %s22, %s23
    %p34 = scmp.eq.s32.totalorder %s14, 0
    %p35 = por %p33, %p34
    %p36 = scmp.ne.s32.totalorder %s22, %s23
    %p37 = scmp.eq.s32.totalorder %s15, 2
    %p38 = por %p36, %p37
    %p40 = scmp.ne.s32.totalorder %s23, %s39
    %p41 = scmp.eq.s32.totalorder %s15, 0
    %p42 = por %p40, %p41
    %s44 = sadd.s32 %s43, 1
    %p47 = scmp.eq.s32.totalorder %s9, 2
    %p48 = scmp.ne.s32.totalorder %s43, %s45
    %p49 = scmp.eq.s32.totalorder %s9, 0
    %p50 = por %p48, %p49
    %p51 = scmp.ne.s32.totalorder %s43, %s45
    %p52 = scmp.eq.s32.totalorder %s14, 2
    %p53 = por %p51, %p52
    %p54 = scmp.ne.s32.totalorder %s45, %s46
    %p55 = scmp.eq.s32.totalorder %s14, 0
    %p56 = por %p54, %p55
    %p57 = scmp.ne.s32.totalorder %s45, %s46
    %p58 = scmp.eq.s32.totalorder %s15, 2
    %p59 = por %p57, %p58
    %p61 = scmp.ne.s32.totalorder %s46, %s60
    %p62 = scmp.eq.s32.totalorder %s15, 0
    %p63 = por %p61, %p62
    %s65 = sadd.s32 %s64, 1
    %p68 = scmp.eq.s32.totalorder %s9, 2
    %p69 = scmp.ne.s32.totalorder %s64, %s66
    %p70 = scmp.eq.s32.totalorder %s9, 0
    %p71 = por %p69, %p70
    %p72 = scmp.ne.s32.totalorder %s64, %s66
    %p73 = scmp.eq.s32.totalorder %s14, 2
    %p74 = por %p72, %p73
    %p75 = scmp.ne.s32.totalorder %s66, %s67
    %p76 = scmp.eq.s32.totalorder %s14, 0
    %p77 = por %p75, %p76
    %p78 = scmp.ne.s32.totalorder %s66, %s67
    %p79 = scmp.eq.s32.totalorder %s15, 2
    %p80 = por %p78, %p79
    %p82 = scmp.ne.s32.totalorder %s67, %s81
    %p83 = scmp.eq.s32.totalorder %s15, 0
    %p84 = por %p82, %p83
    %s85 = ssub.s32 %s9, %s16
    %p86 = scmp.eq.s32.totalorder %s85, 0
    %s88 = sadd.s32 %s87, 1
    %s89 = scalar_select %p86, %s87, %s88
    %p92 = pneg %p86
    %p93 = scmp.eq.s32.totalorder %s9, 2
    %p94 = por %p92, %p93
    %p95 = scmp.ne.s32.totalorder %s87, %s90
    %p96 = scmp.eq.s32.totalorder %s9, 0
    %p97 = por %p95, %p96
    %p98 = scmp.ne.s32.totalorder %s87, %s90
    %p99 = scmp.eq.s32.totalorder %s14, 2
    %p100 = por %p98, %p99
    %p101 = scmp.ne.s32.totalorder %s90, %s91
    %p102 = scmp.eq.s32.totalorder %s14, 0
    %p103 = por %p101, %p102
    %p104 = scmp.ne.s32.totalorder %s90, %s91
    %p105 = scmp.eq.s32.totalorder %s15, 2
    %p106 = por %p104, %p105
    %p108 = scmp.ne.s32.totalorder %s91, %s107
    %p109 = scmp.eq.s32.totalorder %s15, 0
    %p110 = por %p108, %p109
    %p111 = scmp.le.s32.totalorder 1, %s9
    %p112 = scmp.lt.s32.totalorder %s9, 4
    %p113 = pnand %p111, %p112
    %p114 = pneg %p113
    // Predicated region
    $region9: #{inception_stem_forward.23} parent=5 // pred_check
      _
    $region10: #{inception_stem_forward.23} parent=5 // pred_check_branch
      %116 = sbr.rel (%p113) target = $region12
    $region11: #{inception_stem_forward.23} parent=5 // pred_region
      %s117 = ssub.s32 %s9, 1
      // Predicated region
      $region13: #{inception_stem_forward.23} parent=11 // pred_check
        %p118 = pneg %p56
      $region14: #{inception_stem_forward.23} parent=11 // pred_check_branch
        %120 = sbr.rel (%p118) target = $region16
      $region15: #{inception_stem_forward.23} parent=11 // pred_region
        _
      $region16: #{inception_stem_forward.23} parent=11 // pred_fallthru
        _
      // Predicated region
      $region17: #{inception_stem_forward.23} parent=11 // pred_check
        %p121 = pneg %p77
      $region18: #{inception_stem_forward.23} parent=11 // pred_check_branch
        %123 = sbr.rel (%p121) target = $region20
      $region19: #{inception_stem_forward.23} parent=11 // pred_region
        _
      $region20: #{inception_stem_forward.23} parent=11 // pred_fallthru
        _
    $region12: #{inception_stem_forward.23} parent=5 // pred_fallthru
      _
    %p124 = scmp.lt.s32.totalorder %s9, 3
    // Predicated region
    $region21: #{inception_stem_forward.23} parent=5 // pred_check
      %p125 = pneg %p124
    $region22: #{inception_stem_forward.23} parent=5 // pred_check_branch
      %127 = sbr.rel (%p125) target = $region24
    $region23: #{inception_stem_forward.23} parent=5 // pred_region
      // Predicated region
      $region25: #{inception_stem_forward.23} parent=23 // pred_check
        %p128 = pneg %p29
      $region26: #{inception_stem_forward.23} parent=23 // pred_check_branch
        %130 = sbr.rel (%p128) target = $region28
      $region27: #{inception_stem_forward.23} parent=23 // pred_region
        %s131 = smul.u32 32, %s9
        %p132 = scmp.lt.s32.totalorder %s131, 95
        %s133 = scalar_select %p132, %s131, 95
        %s134 = smul.addr %s133, 8
        %s135 = scalar_lea.vmem %s0, %s134
        %s136 = smul.u32 32, %s9
      $region28: #{inception_stem_forward.23} parent=23 // pred_fallthru
        _
    $region24: #{inception_stem_forward.23} parent=5 // pred_fallthru
      _
    %p137 = scmp.le.s32.totalorder 1, %s9
    %p138 = scmp.lt.s32.totalorder %s9, 4
    %p139 = pnand %p137, %p138
    %p140 = pneg %p139
    // Predicated region
    $region29: #{inception_stem_forward.23} parent=5 // pred_check
      _
    $region30: #{inception_stem_forward.23} parent=5 // pred_check_branch
      %142 = sbr.rel (%p139) target = $region32
    $region31: #{inception_stem_forward.23} parent=5 // pred_region
      %s143 = ssub.s32 %s9, 1
      %s144 = smul.u32 32, %s14
      %p145 = scmp.lt.s32.totalorder %s144, 95
      %s146 = scalar_select %p145, %s144, 95
      %s147 = smul.addr %s146, 8
      %s148 = scalar_lea.vmem %s0, %s147
      %p149 = pneg %p35
      %p150 = pneg %p32
      %p151 = pneg %p56
      %p152 = pneg %p53
      %p153 = pneg %p77
      %p154 = pneg %p74
      %p155 = pneg %p103
      %p156 = pneg %p100
      %s157 = smul.u32 32, %s14
      %p158 = scmp.lt.s32.totalorder %s157, 95
      %s159 = scalar_select %p158, %s157, 95
      %s160 = smul.addr %s159, 8
      %s161 = scalar_lea.vmem %s3, %s160
      %s162 = smul.u32 32, %s14
      %p163 = scmp.lt.s32.totalorder %s162, 95
      %s164 = scalar_select %p163, %s162, 95
      %s165 = smul.addr %s164, 8
      %s166 = scalar_lea.vmem %s0, %s165
      %s167 = smul.u32 32, %s14
      %s168 = smul.u32 32, %s14
      %p169 = scmp.lt.s32.totalorder %s168, 95
      %s170 = scalar_select %p169, %s168, 95
      %s171 = smul.addr %s170, 8
      %s172 = scalar_lea.vmem %s3, %s171
      %s173 = smul.u32 32, %s14
      %v174 = vld [vmem:[%s1] sm:$0x1]
      %v175 = vmul.f32 %v174, 0.0017301039
      %v176 = vld [vmem:[%s1 + $0x1] sm:$0x1]
      %v177 = vmul.f32 %v176, 0.0017301039
      %v178 = vmul.f32 %v175, %v175
      %v179 = vsub.f32 %v177, %v178
      %v180 = vmax.f32 %v179, 0.0
      %v181 = vld [vmem:[%s2] sm:$0x1]
      %v182 = vadd.f32 %v180, 0.001
      %v183 = vrsqrt.pop %v182
      %v184 = vmul.f32 %v181, %v183
      %v185 = vld [vmem:[%s2 + $0x1] sm:$0x1]
      %v186 = vmul.f32 %v175, %v184
      %v187 = vsub.f32 %v185, %v186
      %v188 = vld [vmem:[%s166] sm:$0xff]
      %v189 = vld [vmem:[%s166 + $0x8] sm:$0xff]
      %v190 = vld [vmem:[%s166 + $0x10] sm:$0xff]
      %v191 = vld [vmem:[%s166 + $0x18] sm:$0xff]
      %v192 = vld [vmem:[%s166 + $0x20] sm:$0xff]
      %v193 = vld [vmem:[%s166 + $0x28] sm:$0xff]
      %v194 = vld [vmem:[%s166 + $0x30] sm:$0xff]
      %v195 = vld [vmem:[%s166 + $0x38] sm:$0xff]
      %v196 = vld [vmem:[%s166 + $0x40] sm:$0xff]
      %v197 = vld [vmem:[%s166 + $0x48] sm:$0xff]
      %v198 = vld [vmem:[%s166 + $0x50] sm:$0xff]
      %v199 = vld [vmem:[%s166 + $0x58] sm:$0xff]
      %v200 = vld [vmem:[%s166 + $0x60] sm:$0xff]
      %v201 = vld [vmem:[%s166 + $0x68] sm:$0xff]
      %v202 = vld [vmem:[%s166 + $0x70] sm:$0xff]
      %v203 = vld [vmem:[%s166 + $0x78] sm:$0xff]
      %v204 = vld [vmem:[%s166 + $0x80] sm:$0xff]
      %v205 = vld [vmem:[%s166 + $0x88] sm:$0xff]
      %v206 = vld [vmem:[%s166 + $0x90] sm:$0xff]
      %v207 = vld [vmem:[%s166 + $0x98] sm:$0xff]
      %v208 = vld [vmem:[%s166 + $0xa0] sm:$0xff]
      %v209 = vld [vmem:[%s166 + $0xa8] sm:$0xff]
      %v210 = vld [vmem:[%s166 + $0xb0] sm:$0xff]
      %v211 = vld [vmem:[%s166 + $0xb8] sm:$0xff]
      %v212 = vld [vmem:[%s166 + $0xc0] sm:$0xff]
      %v213 = vld [vmem:[%s166 + $0xc8] sm:$0xff]
      %v214 = vld [vmem:[%s166 + $0xd0] sm:$0xff]
      %v215 = vld [vmem:[%s166 + $0xd8] sm:$0xff]
      %v216 = vld [vmem:[%s166 + $0xe0] sm:$0xff]
      %v217 = vld [vmem:[%s166 + $0xe8] sm:$0xff]
      %v218 = vld [vmem:[%s166 + $0xf0] sm:$0xff]
      %v219 = vld [vmem:[%s166 + $0xf8] sm:$0xff]
      %v220 = vlaneseq
      %v221 = vshrl.u32 %v220, 7
      %v222 = vsub.s32 0, %v221
      %v223 = vrot.slane %v184, %v222
      %v224 = vmul.f32 %v188, %v223
      %v225 = vmul.f32 %v189, %v223
      %v226 = vmul.f32 %v190, %v223
      %v227 = vmul.f32 %v191, %v223
      %v228 = vmul.f32 %v192, %v223
      %v229 = vmul.f32 %v193, %v223
      %v230 = vmul.f32 %v194, %v223
      %v231 = vmul.f32 %v195, %v223
      %v232 = vmul.f32 %v196, %v223
      %v233 = vmul.f32 %v197, %v223
      %v234 = vmul.f32 %v198, %v223
      %v235 = vmul.f32 %v199, %v223
      %v236 = vmul.f32 %v200, %v223
      %v237 = vmul.f32 %v201, %v223
      %v238 = vmul.f32 %v202, %v223
      %v239 = vmul.f32 %v203, %v223
      %v240 = vmul.f32 %v204, %v223
      %v241 = vmul.f32 %v205, %v223
      %v242 = vmul.f32 %v206, %v223
      %v243 = vmul.f32 %v207, %v223
      %v244 = vmul.f32 %v208, %v223
      %v245 = vmul.f32 %v209, %v223
      %v246 = vmul.f32 %v210, %v223
      %v247 = vmul.f32 %v211, %v223
      %v248 = vmul.f32 %v212, %v223
      %v249 = vmul.f32 %v213, %v223
      %v250 = vmul.f32 %v214, %v223
      %v251 = vmul.f32 %v215, %v223
      %v252 = vmul.f32 %v216, %v223
      %v253 = vmul.f32 %v217, %v223
      %v254 = vmul.f32 %v218, %v223
      %v255 = vmul.f32 %v219, %v223
      %v256 = vlaneseq
      %v257 = vshrl.u32 %v256, 7
      %v258 = vsub.s32 0, %v257
      %v259 = vrot.slane %v187, %v258
      %v260 = vadd.f32 %v224, %v259
      %v261 = vadd.f32 %v225, %v259
      %v262 = vadd.f32 %v226, %v259
      %v263 = vadd.f32 %v227, %v259
      %v264 = vadd.f32 %v228, %v259
      %v265 = vadd.f32 %v229, %v259
      %v266 = vadd.f32 %v230, %v259
      %v267 = vadd.f32 %v231, %v259
      %v268 = vadd.f32 %v232, %v259
      %v269 = vadd.f32 %v233, %v259
      %v270 = vadd.f32 %v234, %v259
      %v271 = vadd.f32 %v235, %v259
      %v272 = vadd.f32 %v236, %v259
      %v273 = vadd.f32 %v237, %v259
      %v274 = vadd.f32 %v238, %v259
      %v275 = vadd.f32 %v239, %v259
      %v276 = vadd.f32 %v240, %v259
      %v277 = vadd.f32 %v241, %v259
      %v278 = vadd.f32 %v242, %v259
      %v279 = vadd.f32 %v243, %v259
      %v280 = vadd.f32 %v244, %v259
      %v281 = vadd.f32 %v245, %v259
      %v282 = vadd.f32 %v246, %v259
      %v283 = vadd.f32 %v247, %v259
      %v284 = vadd.f32 %v248, %v259
      %v285 = vadd.f32 %v249, %v259
      %v286 = vadd.f32 %v250, %v259
      %v287 = vadd.f32 %v251, %v259
      %v288 = vadd.f32 %v252, %v259
      %v289 = vadd.f32 %v253, %v259
      %v290 = vadd.f32 %v254, %v259
      %v291 = vadd.f32 %v255, %v259
      %v292 = vmax.f32 %v260, 0.0
      %v293 = vmax.f32 %v261, 0.0
      %v294 = vmax.f32 %v262, 0.0
      %v295 = vmax.f32 %v263, 0.0
      %v296 = vmax.f32 %v264, 0.0
      %v297 = vmax.f32 %v265, 0.0
      %v298 = vmax.f32 %v266, 0.0
      %v299 = vmax.f32 %v267, 0.0
      %v300 = vmax.f32 %v268, 0.0
      %v301 = vmax.f32 %v269, 0.0
      %v302 = vmax.f32 %v270, 0.0
      %v303 = vmax.f32 %v271, 0.0
      %v304 = vmax.f32 %v272, 0.0
      %v305 = vmax.f32 %v273, 0.0
      %v306 = vmax.f32 %v274, 0.0
      %v307 = vmax.f32 %v275, 0.0
      %v308 = vmax.f32 %v276, 0.0
      %v309 = vmax.f32 %v277, 0.0
      %v310 = vmax.f32 %v278, 0.0
      %v311 = vmax.f32 %v279, 0.0
      %v312 = vmax.f32 %v280, 0.0
      %v313 = vmax.f32 %v281, 0.0
      %v314 = vmax.f32 %v282, 0.0
      %v315 = vmax.f32 %v283, 0.0
      %v316 = vmax.f32 %v284, 0.0
      %v317 = vmax.f32 %v285, 0.0
      %v318 = vmax.f32 %v286, 0.0
      %v319 = vmax.f32 %v287, 0.0
      %v320 = vmax.f32 %v288, 0.0
      %v321 = vmax.f32 %v289, 0.0
      %v322 = vmax.f32 %v290, 0.0
      %v323 = vmax.f32 %v291, 0.0
      %324 = vst [vmem:[%s172] sm:$0xff] %v292
      %325 = vst [vmem:[%s172 + $0x8] sm:$0xff] %v293
      %326 = vst [vmem:[%s172 + $0x10] sm:$0xff] %v294
      %327 = vst [vmem:[%s172 + $0x18] sm:$0xff] %v295
      %328 = vst [vmem:[%s172 + $0x20] sm:$0xff] %v296
      %329 = vst [vmem:[%s172 + $0x28] sm:$0xff] %v297
      %330 = vst [vmem:[%s172 + $0x30] sm:$0xff] %v298
      %331 = vst [vmem:[%s172 + $0x38] sm:$0xff] %v299
      %332 = vst [vmem:[%s172 + $0x40] sm:$0xff] %v300
      %333 = vst [vmem:[%s172 + $0x48] sm:$0xff] %v301
      %334 = vst [vmem:[%s172 + $0x50] sm:$0xff] %v302
      %335 = vst [vmem:[%s172 + $0x58] sm:$0xff] %v303
      %336 = vst [vmem:[%s172 + $0x60] sm:$0xff] %v304
      %337 = vst [vmem:[%s172 + $0x68] sm:$0xff] %v305
      %338 = vst [vmem:[%s172 + $0x70] sm:$0xff] %v306
      %339 = vst [vmem:[%s172 + $0x78] sm:$0xff] %v307
      %340 = vst [vmem:[%s172 + $0x80] sm:$0xff] %v308
      %341 = vst [vmem:[%s172 + $0x88] sm:$0xff] %v309
      %342 = vst [vmem:[%s172 + $0x90] sm:$0xff] %v310
      %343 = vst [vmem:[%s172 + $0x98] sm:$0xff] %v311
      %344 = vst [vmem:[%s172 + $0xa0] sm:$0xff] %v312
      %345 = vst [vmem:[%s172 + $0xa8] sm:$0xff] %v313
      %346 = vst [vmem:[%s172 + $0xb0] sm:$0xff] %v314
      %347 = vst [vmem:[%s172 + $0xb8] sm:$0xff] %v315
      %348 = vst [vmem:[%s172 + $0xc0] sm:$0xff] %v316
      %349 = vst [vmem:[%s172 + $0xc8] sm:$0xff] %v317
      %350 = vst [vmem:[%s172 + $0xd0] sm:$0xff] %v318
      %351 = vst [vmem:[%s172 + $0xd8] sm:$0xff] %v319
      %352 = vst [vmem:[%s172 + $0xe0] sm:$0xff] %v320
      %353 = vst [vmem:[%s172 + $0xe8] sm:$0xff] %v321
      %354 = vst [vmem:[%s172 + $0xf0] sm:$0xff] %v322
      %355 = vst [vmem:[%s172 + $0xf8] sm:$0xff] %v323
      %s356 = smul.u32 32, %s14
      %p357 = scmp.lt.s32.totalorder %s356, 95
      %s358 = scalar_select %p357, %s356, 95
      %s359 = smul.addr %s358, 8
      %s360 = scalar_lea.vmem %s3, %s359
      // Predicated region
      $region33: #{inception_stem_forward.23} parent=31 // pred_check
        %p361 = pneg %p100
      $region34: #{inception_stem_forward.23} parent=31 // pred_check_branch
        %363 = sbr.rel (%p361) target = $region36
      $region35: #{inception_stem_forward.23} parent=31 // pred_region
        %s364 = smul.u32 32, %s14
      $region36: #{inception_stem_forward.23} parent=31 // pred_fallthru
        _
    $region32: #{inception_stem_forward.23} parent=5 // pred_fallthru
      _
    %p365 = scmp.le.s32.totalorder 2, %s9
    // Predicated region
    $region37: #{inception_stem_forward.23} parent=5 // pred_check
      %p366 = pneg %p365
    $region38: #{inception_stem_forward.23} parent=5 // pred_check_branch
      %368 = sbr.rel (%p366) target = $region40
    $region39: #{inception_stem_forward.23} parent=5 // pred_region
      %s369 = ssub.s32 %s9, 2
      // Predicated region
      $region41: #{inception_stem_forward.23} parent=39 // pred_check
        %p370 = pneg %p106
      $region42: #{inception_stem_forward.23} parent=39 // pred_check_branch
        %372 = sbr.rel (%p370) target = $region44
      $region43: #{inception_stem_forward.23} parent=39 // pred_region
        %s373 = smul.u32 32, %s15
        %p374 = scmp.lt.s32.totalorder %s373, 95
        %s375 = scalar_select %p374, %s373, 95
        %s376 = smul.addr %s375, 8
        %s377 = scalar_lea.vmem %s3, %s376
      $region44: #{inception_stem_forward.23} parent=39 // pred_fallthru
        _
    $region40: #{inception_stem_forward.23} parent=5 // pred_fallthru
      _
  $region6: #{inception_stem_forward.23} parent=0 // loop_footer
    %s13 = sadd.s32 1, %s9
  $region7: #{inception_stem_forward.23} parent=0 // loop_footer_branch
    %8 = sbr.rel target = $region3
  $region8: #{inception_stem_forward.23} parent=0 // loop_exit
    _

// kernel: inception_stem_forward.25
$region0: #{inception_stem_forward.25}
  #allocation0 [shape = 'u32[]', space=smem, size = 0x4, offset = 0x4, fixed_abs, tag = 'smem constant byte address 0x4 - core index']
  #allocation1 [shape = 'u32[144,128]{1,0:T(1,128)}', space=vmem, size = 0x12000, scoped, tag = 'internal scratch']
  %s0 = inlined_call_operand.vmem [shape: f32[464,128], index: 0, kind: input, shape index: {}]
  %s1 = inlined_call_operand.vmem [shape: f32[2,128], index: 1, kind: input, shape index: {}]
  %s2 = inlined_call_operand.vmem [shape: f32[2,128], index: 2, kind: input, shape index: {}]
  %s3 = inlined_call_operand.vmem [shape: f32[464,128], index: 3, kind: output, shape index: {}]
  %s4 = sld [smem:[#allocation0]]
  $region22: #{inception_stem_forward.25} parent=0
    _
  %s6 = ssub.s32 1, %s4
  %s7 = scalar_select 0, %s6, %s4
  // Predicated region
  $region2: #{inception_stem_forward.25} parent=0 // pred_check
    _
  $region3: #{inception_stem_forward.25} parent=0 // pred_check_branch
    %9 = sbr.rel (0) target = $region5
  $region4: #{inception_stem_forward.25} parent=0 // pred_region
    _
  $region5: #{inception_stem_forward.25} parent=0 // pred_fallthru
    _
  // Predicated region
  $region6: #{inception_stem_forward.25} parent=0 // pred_check
    _
  $region7: #{inception_stem_forward.25} parent=0 // pred_check_branch
    %11 = sbr.rel (0) target = $region9
  $region8: #{inception_stem_forward.25} parent=0 // pred_region
    _
  $region9: #{inception_stem_forward.25} parent=0 // pred_fallthru
    _
  // Predicated region
  $region10: #{inception_stem_forward.25} parent=0 // pred_check
    _
  $region11: #{inception_stem_forward.25} parent=0 // pred_check_branch
    %13 = sbr.rel (0) target = $region13
  $region12: #{inception_stem_forward.25} parent=0 // pred_region
    _
  $region13: #{inception_stem_forward.25} parent=0 // pred_fallthru
    _
  %v14 = vld [vmem:[%s1] sm:$0x1]
  %v15 = vmul.f32 %v14, 0.0022222223
  %v16 = vld [vmem:[%s1 + $0x1] sm:$0x1]
  %v17 = vmul.f32 %v16, 0.0022222223
  %v18 = vmul.f32 %v15, %v15
  %v19 = vsub.f32 %v17, %v18
  %v20 = vmax.f32 %v19, 0.0
  %v21 = vld [vmem:[%s2] sm:$0x1]
  %v22 = vadd.f32 %v20, 0.001
  %v23 = vrsqrt.pop %v22
  %v24 = vmul.f32 %v21, %v23
  %v25 = vld [vmem:[%s2 + $0x1] sm:$0x1]
  %v26 = vmul.f32 %v15, %v24
  %v27 = vsub.f32 %v25, %v26
  %v28 = vld [vmem:[%s0] sm:$0xff]
  %v29 = vld [vmem:[%s0 + $0x8] sm:$0xff]
  %v30 = vld [vmem:[%s0 + $0x10] sm:$0xff]
  %v31 = vld [vmem:[%s0 + $0x18] sm:$0xff]
  %v32 = vld [vmem:[%s0 + $0x20] sm:$0xff]
  %v33 = vld [vmem:[%s0 + $0x28] sm:$0xff]
  %v34 = vld [vmem:[%s0 + $0x30] sm:$0xff]
  %v35 = vld [vmem:[%s0 + $0x38] sm:$0xff]
  %v36 = vld [vmem:[%s0 + $0x40] sm:$0xff]
  %v37 = vld [vmem:[%s0 + $0x48] sm:$0xff]
  %v38 = vld [vmem:[%s0 + $0x50] sm:$0xff]
  %v39 = vld [vmem:[%s0 + $0x58] sm:$0xff]
  %v40 = vld [vmem:[%s0 + $0x60] sm:$0xff]
  %v41 = vld [vmem:[%s0 + $0x68] sm:$0xff]
  %v42 = vld [vmem:[%s0 + $0x70] sm:$0xff]
  %v43 = vld [vmem:[%s0 + $0x78] sm:$0xff]
  %v44 = vld [vmem:[%s0 + $0x80] sm:$0xff]
  %v45 = vld [vmem:[%s0 + $0x88] sm:$0xff]
  %v46 = vld [vmem:[%s0 + $0x90] sm:$0xff]
  %v47 = vld [vmem:[%s0 + $0x98] sm:$0xff]
  %v48 = vld [vmem:[%s0 + $0xa0] sm:$0xff]
  %v49 = vld [vmem:[%s0 + $0xa8] sm:$0xff]
  %v50 = vld [vmem:[%s0 + $0xb0] sm:$0xff]
  %v51 = vld [vmem:[%s0 + $0xb8] sm:$0xff]
  %v52 = vld [vmem:[%s0 + $0xc0] sm:$0xff]
  %v53 = vld [vmem:[%s0 + $0xc8] sm:$0xff]
  %v54 = vld [vmem:[%s0 + $0xd0] sm:$0xff]
  %v55 = vld [vmem:[%s0 + $0xd8] sm:$0xff]
  %v56 = vld [vmem:[%s0 + $0xe0] sm:$0xff]
  %v57 = vld [vmem:[%s0 + $0xe8] sm:$0xff]
  %v58 = vld [vmem:[%s0 + $0xf0] sm:$0xff]
  %v59 = vld [vmem:[%s0 + $0xf8] sm:$0xff]
  %v60 = vld [vmem:[%s0 + $0x100] sm:$0xff]
  %v61 = vld [vmem:[%s0 + $0x108] sm:$0xff]
  %v62 = vld [vmem:[%s0 + $0x110] sm:$0xff]
  %v63 = vld [vmem:[%s0 + $0x118] sm:$0xff]
  %v64 = vld [vmem:[%s0 + $0x120] sm:$0xff]
  %v65 = vld [vmem:[%s0 + $0x128] sm:$0xff]
  %v66 = vld [vmem:[%s0 + $0x130] sm:$0xff]
  %v67 = vld [vmem:[%s0 + $0x138] sm:$0xff]
  %v68 = vld [vmem:[%s0 + $0x140] sm:$0xff]
  %v69 = vld [vmem:[%s0 + $0x148] sm:$0xff]
  %v70 = vld [vmem:[%s0 + $0x150] sm:$0xff]
  %v71 = vld [vmem:[%s0 + $0x158] sm:$0xff]
  %v72 = vld [vmem:[%s0 + $0x160] sm:$0xff]
  %v73 = vld [vmem:[%s0 + $0x168] sm:$0xff]
  %v74 = vld [vmem:[%s0 + $0x170] sm:$0xff]
  %v75 = vld [vmem:[%s0 + $0x178] sm:$0xff]
  %v76 = vld [vmem:[%s0 + $0x180] sm:$0xff]
  %v77 = vld [vmem:[%s0 + $0x188] sm:$0xff]
  %v78 = vld [vmem:[%s0 + $0x190] sm:$0xff]
  %v79 = vld [vmem:[%s0 + $0x198] sm:$0xff]
  %v80 = vld [vmem:[%s0 + $0x1a0] sm:$0xff]
  %v81 = vld [vmem:[%s0 + $0x1a8] sm:$0xff]
  %v82 = vld [vmem:[%s0 + $0x1b0] sm:$0xff]
  %v83 = vld [vmem:[%s0 + $0x1b8] sm:$0xff]
  %v84 = vld [vmem:[%s0 + $0x1c0] sm:$0xff]
  %v85 = vld [vmem:[%s0 + $0x1c8] sm:$0xff]
  %v86 = vlaneseq
  %v87 = vshrl.u32 %v86, 7
  %v88 = vsub.s32 0, %v87
  %v89 = vrot.slane %v24, %v88
  %v90 = vmul.f32 %v28, %v89
  %v91 = vmul.f32 %v29, %v89
  %v92 = vmul.f32 %v30, %v89
  %v93 = vmul.f32 %v31, %v89
  %v94 = vmul.f32 %v32, %v89
  %v95 = vmul.f32 %v33, %v89
  %v96 = vmul.f32 %v34, %v89
  %v97 = vmul.f32 %v35, %v89
  %v98 = vmul.f32 %v36, %v89
  %v99 = vmul.f32 %v37, %v89
  %v100 = vmul.f32 %v38, %v89
  %v101 = vmul.f32 %v39, %v89
  %v102 = vmul.f32 %v40, %v89
  %v103 = vmul.f32 %v41, %v89
  %v104 = vmul.f32 %v42, %v89
  %v105 = vmul.f32 %v43, %v89
  %v106 = vmul.f32 %v44, %v89
  %v107 = vmul.f32 %v45, %v89
  %v108 = vmul.f32 %v46, %v89
  %v109 = vmul.f32 %v47, %v89
  %v110 = vmul.f32 %v48, %v89
  %v111 = vmul.f32 %v49, %v89
  %v112 = vmul.f32 %v50, %v89
  %v113 = vmul.f32 %v51, %v89
  %v114 = vmul.f32 %v52, %v89
  %v115 = vmul.f32 %v53, %v89
  %v116 = vmul.f32 %v54, %v89
  %v117 = vmul.f32 %v55, %v89
  %v118 = vmul.f32 %v56, %v89
  %v119 = vmul.f32 %v57, %v89
  %v120 = vmul.f32 %v58, %v89
  %v121 = vmul.f32 %v59, %v89
  %v122 = vmul.f32 %v60, %v89
  %v123 = vmul.f32 %v61, %v89
  %v124 = vmul.f32 %v62, %v89
  %v125 = vmul.f32 %v63, %v89
  %v126 = vmul.f32 %v64, %v89
  %v127 = vmul.f32 %v65, %v89
  %v128 = vmul.f32 %v66, %v89
  %v129 = vmul.f32 %v67, %v89
  %v130 = vmul.f32 %v68, %v89
  %v131 = vmul.f32 %v69, %v89
  %v132 = vmul.f32 %v70, %v89
  %v133 = vmul.f32 %v71, %v89
  %v134 = vmul.f32 %v72, %v89
  %v135 = vmul.f32 %v73, %v89
  %v136 = vmul.f32 %v74, %v89
  %v137 = vmul.f32 %v75, %v89
  %v138 = vmul.f32 %v76, %v89
  %v139 = vmul.f32 %v77, %v89
  %v140 = vmul.f32 %v78, %v89
  %v141 = vmul.f32 %v79, %v89
  %v142 = vmul.f32 %v80, %v89
  %v143 = vmul.f32 %v81, %v89
  %v144 = vmul.f32 %v82, %v89
  %v145 = vmul.f32 %v83, %v89
  %v146 = vmul.f32 %v84, %v89
  %v147 = vmul.f32 %v85, %v89
  %v148 = vlaneseq
  %v149 = vshrl.u32 %v148, 7
  %v150 = vsub.s32 0, %v149
  %v151 = vrot.slane %v27, %v150
  %v152 = vadd.f32 %v90, %v151
  %v153 = vadd.f32 %v91, %v151
  %v154 = vadd.f32 %v92, %v151
  %v155 = vadd.f32 %v93, %v151
  %v156 = vadd.f32 %v94, %v151
  %v157 = vadd.f32 %v95, %v151
  %v158 = vadd.f32 %v96, %v151
  %v159 = vadd.f32 %v97, %v151
  %v160 = vadd.f32 %v98, %v151
  %v161 = vadd.f32 %v99, %v151
  %v162 = vadd.f32 %v100, %v151
  %v163 = vadd.f32 %v101, %v151
  %v164 = vadd.f32 %v102, %v151
  %v165 = vadd.f32 %v103, %v151
  %v166 = vadd.f32 %v104, %v151
  %v167 = vadd.f32 %v105, %v151
  %v168 = vadd.f32 %v106, %v151
  %v169 = vadd.f32 %v107, %v151
  %v170 = vadd.f32 %v108, %v151
  %v171 = vadd.f32 %v109, %v151
  %v172 = vadd.f32 %v110, %v151
  %v173 = vadd.f32 %v111, %v151
  %v174 = vadd.f32 %v112, %v151
  %v175 = vadd.f32 %v113, %v151
  %v176 = vadd.f32 %v114, %v151
  %v177 = vadd.f32 %v115, %v151
  %v178 = vadd.f32 %v116, %v151
  %v179 = vadd.f32 %v117, %v151
  %v180 = vadd.f32 %v118, %v151
  %v181 = vadd.f32 %v119, %v151
  %v182 = vadd.f32 %v120, %v151
  %v183 = vadd.f32 %v121, %v151
  %v184 = vadd.f32 %v122, %v151
  %v185 = vadd.f32 %v123, %v151
  %v186 = vadd.f32 %v124, %v151
  %v187 = vadd.f32 %v125, %v151
  %v188 = vadd.f32 %v126, %v151
  %v189 = vadd.f32 %v127, %v151
  %v190 = vadd.f32 %v128, %v151
  %v191 = vadd.f32 %v129, %v151
  %v192 = vadd.f32 %v130, %v151
  %v193 = vadd.f32 %v131, %v151
  %v194 = vadd.f32 %v132, %v151
  %v195 = vadd.f32 %v133, %v151
  %v196 = vadd.f32 %v134, %v151
  %v197 = vadd.f32 %v135, %v151
  %v198 = vadd.f32 %v136, %v151
  %v199 = vadd.f32 %v137, %v151
  %v200 = vadd.f32 %v138, %v151
  %v201 = vadd.f32 %v139, %v151
  %v202 = vadd.f32 %v140, %v151
  %v203 = vadd.f32 %v141, %v151
  %v204 = vadd.f32 %v142, %v151
  %v205 = vadd.f32 %v143, %v151
  %v206 = vadd.f32 %v144, %v151
  %v207 = vadd.f32 %v145, %v151
  %v208 = vadd.f32 %v146, %v151
  %v209 = vadd.f32 %v147, %v151
  %v210 = vmax.f32 %v152, 0.0
  %v211 = vmax.f32 %v153, 0.0
  %v212 = vmax.f32 %v154, 0.0
  %v213 = vmax.f32 %v155, 0.0
  %v214 = vmax.f32 %v156, 0.0
  %v215 = vmax.f32 %v157, 0.0
  %v216 = vmax.f32 %v158, 0.0
  %v217 = vmax.f32 %v159, 0.0
  %v218 = vmax.f32 %v160, 0.0
  %v219 = vmax.f32 %v161, 0.0
  %v220 = vmax.f32 %v162, 0.0
  %v221 = vmax.f32 %v163, 0.0
  %v222 = vmax.f32 %v164, 0.0
  %v223 = vmax.f32 %v165, 0.0
  %v224 = vmax.f32 %v166, 0.0
  %v225 = vmax.f32 %v167, 0.0
  %v226 = vmax.f32 %v168, 0.0
  %v227 = vmax.f32 %v169, 0.0
  %v228 = vmax.f32 %v170, 0.0
  %v229 = vmax.f32 %v171, 0.0
  %v230 = vmax.f32 %v172, 0.0
  %v231 = vmax.f32 %v173, 0.0
  %v232 = vmax.f32 %v174, 0.0
  %v233 = vmax.f32 %v175, 0.0
  %v234 = vmax.f32 %v176, 0.0
  %v235 = vmax.f32 %v177, 0.0
  %v236 = vmax.f32 %v178, 0.0
  %v237 = vmax.f32 %v179, 0.0
  %v238 = vmax.f32 %v180, 0.0
  %v239 = vmax.f32 %v181, 0.0
  %v240 = vmax.f32 %v182, 0.0
  %v241 = vmax.f32 %v183, 0.0
  %v242 = vmax.f32 %v184, 0.0
  %v243 = vmax.f32 %v185, 0.0
  %v244 = vmax.f32 %v186, 0.0
  %v245 = vmax.f32 %v187, 0.0
  %v246 = vmax.f32 %v188, 0.0
  %v247 = vmax.f32 %v189, 0.0
  %v248 = vmax.f32 %v190, 0.0
  %v249 = vmax.f32 %v191, 0.0
  %v250 = vmax.f32 %v192, 0.0
  %v251 = vmax.f32 %v193, 0.0
  %v252 = vmax.f32 %v194, 0.0
  %v253 = vmax.f32 %v195, 0.0
  %v254 = vmax.f32 %v196, 0.0
  %v255 = vmax.f32 %v197, 0.0
  %v256 = vmax.f32 %v198, 0.0
  %v257 = vmax.f32 %v199, 0.0
  %v258 = vmax.f32 %v200, 0.0
  %v259 = vmax.f32 %v201, 0.0
  %v260 = vmax.f32 %v202, 0.0
  %v261 = vmax.f32 %v203, 0.0
  %v262 = vmax.f32 %v204, 0.0
  %v263 = vmax.f32 %v205, 0.0
  %v264 = vmax.f32 %v206, 0.0
  %v265 = vmax.f32 %v207, 0.0
  %v266 = vmax.f32 %v208, 0.0
  %v267 = vmax.f32 %v209, 0.0
  %268 = vst [vmem:[%s3] sm:$0xff] %v210
  %269 = vst [vmem:[%s3 + $0x8] sm:$0xff] %v211
  %270 = vst [vmem:[%s3 + $0x10] sm:$0xff] %v212
  %271 = vst [vmem:[%s3 + $0x18] sm:$0xff] %v213
  %272 = vst [vmem:[%s3 + $0x20] sm:$0xff] %v214
  %273 = vst [vmem:[%s3 + $0x28] sm:$0xff] %v215
  %274 = vst [vmem:[%s3 + $0x30] sm:$0xff] %v216
  %275 = vst [vmem:[%s3 + $0x38] sm:$0xff] %v217
  %276 = vst [vmem:[%s3 + $0x40] sm:$0xff] %v218
  %277 = vst [vmem:[%s3 + $0x48] sm:$0xff] %v219
  %278 = vst [vmem:[%s3 + $0x50] sm:$0xff] %v220
  %279 = vst [vmem:[%s3 + $0x58] sm:$0xff] %v221
  %280 = vst [vmem:[%s3 + $0x60] sm:$0xff] %v222
  %281 = vst [vmem:[%s3 + $0x68] sm:$0xff] %v223
  %282 = vst [vmem:[%s3 + $0x70] sm:$0xff] %v224
  %283 = vst [vmem:[%s3 + $0x78] sm:$0xff] %v225
  %284 = vst [vmem:[%s3 + $0x80] sm:$0xff] %v226
  %285 = vst [vmem:[%s3 + $0x88] sm:$0xff] %v227
  %286 = vst [vmem:[%s3 + $0x90] sm:$0xff] %v228
  %287 = vst [vmem:[%s3 + $0x98] sm:$0xff] %v229
  %288 = vst [vmem:[%s3 + $0xa0] sm:$0xff] %v230
  %289 = vst [vmem:[%s3 + $0xa8] sm:$0xff] %v231
  %290 = vst [vmem:[%s3 + $0xb0] sm:$0xff] %v232
  %291 = vst [vmem:[%s3 + $0xb8] sm:$0xff] %v233
  %292 = vst [vmem:[%s3 + $0xc0] sm:$0xff] %v234
  %293 = vst [vmem:[%s3 + $0xc8] sm:$0xff] %v235
  %294 = vst [vmem:[%s3 + $0xd0] sm:$0xff] %v236
  %295 = vst [vmem:[%s3 + $0xd8] sm:$0xff] %v237
  %296 = vst [vmem:[%s3 + $0xe0] sm:$0xff] %v238
  %297 = vst [vmem:[%s3 + $0xe8] sm:$0xff] %v239
  %298 = vst [vmem:[%s3 + $0xf0] sm:$0xff] %v240
  %299 = vst [vmem:[%s3 + $0xf8] sm:$0xff] %v241
  %300 = vst [vmem:[%s3 + $0x100] sm:$0xff] %v242
  %301 = vst [vmem:[%s3 + $0x108] sm:$0xff] %v243
  %302 = vst [vmem:[%s3 + $0x110] sm:$0xff] %v244
  %303 = vst [vmem:[%s3 + $0x118] sm:$0xff] %v245
  %304 = vst [vmem:[%s3 + $0x120] sm:$0xff] %v246
  %305 = vst [vmem:[%s3 + $0x128] sm:$0xff] %v247
  %306 = vst [vmem:[%s3 + $0x130] sm:$0xff] %v248
  %307 = vst [vmem:[%s3 + $0x138] sm:$0xff] %v249
  %308 = vst [vmem:[%s3 + $0x140] sm:$0xff] %v250
  %309 = vst [vmem:[%s3 + $0x148] sm:$0xff] %v251
  %310 = vst [vmem:[%s3 + $0x150] sm:$0xff] %v252
  %311 = vst [vmem:[%s3 + $0x158] sm:$0xff] %v253
  %312 = vst [vmem:[%s3 + $0x160] sm:$0xff] %v254
  %313 = vst [vmem:[%s3 + $0x168] sm:$0xff] %v255
  %314 = vst [vmem:[%s3 + $0x170] sm:$0xff] %v256
  %315 = vst [vmem:[%s3 + $0x178] sm:$0xff] %v257
  %316 = vst [vmem:[%s3 + $0x180] sm:$0xff] %v258
  %317 = vst [vmem:[%s3 + $0x188] sm:$0xff] %v259
  %318 = vst [vmem:[%s3 + $0x190] sm:$0xff] %v260
  %319 = vst [vmem:[%s3 + $0x198] sm:$0xff] %v261
  %320 = vst [vmem:[%s3 + $0x1a0] sm:$0xff] %v262
  %321 = vst [vmem:[%s3 + $0x1a8] sm:$0xff] %v263
  %322 = vst [vmem:[%s3 + $0x1b0] sm:$0xff] %v264
  %323 = vst [vmem:[%s3 + $0x1b8] sm:$0xff] %v265
  %324 = vst [vmem:[%s3 + $0x1c0] sm:$0xff] %v266
  %325 = vst [vmem:[%s3 + $0x1c8] sm:$0xff] %v267
  // Predicated region
  $region14: #{inception_stem_forward.25} parent=0 // pred_check
    _
  $region15: #{inception_stem_forward.25} parent=0 // pred_check_branch
    %327 = sbr.rel (0) target = $region17
  $region16: #{inception_stem_forward.25} parent=0 // pred_region
    _
  $region17: #{inception_stem_forward.25} parent=0 // pred_fallthru
    _
  // Predicated region
  $region18: #{inception_stem_forward.25} parent=0 // pred_check
    _
  $region19: #{inception_stem_forward.25} parent=0 // pred_check_branch
    %329 = sbr.rel (0) target = $region21
  $region20: #{inception_stem_forward.25} parent=0 // pred_region
    _
  $region21: #{inception_stem_forward.25} parent=0 // pred_fallthru
    _

// kernel: inception_stem_forward.24
$region0: #{inception_stem_forward.24}
  #allocation0 [shape = 'u32[]', space=smem, size = 0x4, offset = 0x4, fixed_abs, tag = 'smem constant byte address 0x4 - core index']
  #allocation1 [shape = 'u32[144,128]{1,0:T(1,128)}', space=vmem, size = 0x12000, scoped, tag = 'internal scratch']
  %s0 = inlined_call_operand.vmem [shape: bf16[464,384], index: 0, kind: input, shape index: {}]
  %s1 = inlined_call_operand.vmem [shape: bf16[384,128], index: 1, kind: input, shape index: {}]
  %s2 = inlined_call_operand.vmem [shape: f32[464,128], index: 2, kind: output, shape index: {0}]
  %s3 = inlined_call_operand.vmem [shape: f32[1,1,128], index: 3, kind: output, shape index: {1}]
  %s4 = inlined_call_operand.vmem [shape: f32[1,1,128], index: 4, kind: output, shape index: {2}]
  %5 = xla_tuple %s2, %s3, %s4
  %s6 = sld [smem:[#allocation0]]
  $region34: #{inception_stem_forward.24} parent=0
    _
  %s8 = ssub.s32 1, %s6
  %s9 = scalar_select 0, %s8, %s6
  // Predicated region
  $region2: #{inception_stem_forward.24} parent=0 // pred_check
    _
  $region3: #{inception_stem_forward.24} parent=0 // pred_check_branch
    %11 = sbr.rel (0) target = $region5
  $region4: #{inception_stem_forward.24} parent=0 // pred_region
    _
  $region5: #{inception_stem_forward.24} parent=0 // pred_fallthru
    _
  // Predicated region
  $region6: #{inception_stem_forward.24} parent=0 // pred_check
    _
  $region7: #{inception_stem_forward.24} parent=0 // pred_check_branch
    %13 = sbr.rel (0) target = $region9
  $region8: #{inception_stem_forward.24} parent=0 // pred_region
    _
  $region9: #{inception_stem_forward.24} parent=0 // pred_fallthru
    _
  %v15 = vld [vmem:[%s0] sm:$0xff]
  %v16 = vld [vmem:[%s0 + $0x8] sm:$0xf]
  %v17 = vld [vmem:[%s0 + $0xc] sm:$0xff]
  %v18 = vld [vmem:[%s0 + $0x14] sm:$0xf]
  %v19 = vld [vmem:[%s0 + $0x18] sm:$0xff]
  %v20 = vld [vmem:[%s0 + $0x20] sm:$0xf]
  %v21 = vld [vmem:[%s0 + $0x24] sm:$0xff]
  %v22 = vld [vmem:[%s0 + $0x2c] sm:$0xf]
  %v23 = vld [vmem:[%s0 + $0x30] sm:$0xff]
  %v24 = vld [vmem:[%s0 + $0x38] sm:$0xf]
  %v25 = vld [vmem:[%s0 + $0x3c] sm:$0xff]
  %v26 = vld [vmem:[%s0 + $0x44] sm:$0xf]
  %v27 = vld [vmem:[%s0 + $0x48] sm:$0xff]
  %v28 = vld [vmem:[%s0 + $0x50] sm:$0xf]
  %v29 = vld [vmem:[%s0 + $0x54] sm:$0xff]
  %v30 = vld [vmem:[%s0 + $0x5c] sm:$0xf]
  %v31 = vld [vmem:[%s0 + $0x60] sm:$0xff]
  %v32 = vld [vmem:[%s0 + $0x68] sm:$0xf]
  %v33 = vld [vmem:[%s0 + $0x6c] sm:$0xff]
  %v34 = vld [vmem:[%s0 + $0x74] sm:$0xf]
  %v35 = vld [vmem:[%s0 + $0x78] sm:$0xff]
  %v36 = vld [vmem:[%s0 + $0x80] sm:$0xf]
  %v37 = vld [vmem:[%s0 + $0x84] sm:$0xff]
  %v38 = vld [vmem:[%s0 + $0x8c] sm:$0xf]
  %v39 = vld [vmem:[%s0 + $0x90] sm:$0xff]
  %v40 = vld [vmem:[%s0 + $0x98] sm:$0xf]
  %v41 = vld [vmem:[%s0 + $0x9c] sm:$0xff]
  %v42 = vld [vmem:[%s0 + $0xa4] sm:$0xf]
  %v43 = vld [vmem:[%s0 + $0xa8] sm:$0xff]
  %v44 = vld [vmem:[%s0 + $0xb0] sm:$0xf]
  %v45 = vld [vmem:[%s0 + $0xb4] sm:$0xff]
  %v46 = vld [vmem:[%s0 + $0xbc] sm:$0xf]
  %v47 = vld [vmem:[%s0 + $0xc0] sm:$0xff]
  %v48 = vld [vmem:[%s0 + $0xc8] sm:$0xf]
  %v49 = vld [vmem:[%s0 + $0xcc] sm:$0xff]
  %v50 = vld [vmem:[%s0 + $0xd4] sm:$0xf]
  %v51 = vld [vmem:[%s0 + $0xd8] sm:$0xff]
  %v52 = vld [vmem:[%s0 + $0xe0] sm:$0xf]
  %v53 = vld [vmem:[%s0 + $0xe4] sm:$0xff]
  %v54 = vld [vmem:[%s0 + $0xec] sm:$0xf]
  %v55 = vld [vmem:[%s0 + $0xf0] sm:$0xff]
  %v56 = vld [vmem:[%s0 + $0xf8] sm:$0xf]
  %v57 = vld [vmem:[%s0 + $0xfc] sm:$0xff]
  %v58 = vld [vmem:[%s0 + $0x104] sm:$0xf]
  %v59 = vld [vmem:[%s0 + $0x108] sm:$0xff]
  %v60 = vld [vmem:[%s0 + $0x110] sm:$0xf]
  %v61 = vld [vmem:[%s0 + $0x114] sm:$0xff]
  %v62 = vld [vmem:[%s0 + $0x11c] sm:$0xf]
  %v63 = vld [vmem:[%s0 + $0x120] sm:$0xff]
  %v64 = vld [vmem:[%s0 + $0x128] sm:$0xf]
  %v65 = vld [vmem:[%s0 + $0x12c] sm:$0xff]
  %v66 = vld [vmem:[%s0 + $0x134] sm:$0xf]
  %v67 = vld [vmem:[%s0 + $0x138] sm:$0xff]
  %v68 = vld [vmem:[%s0 + $0x140] sm:$0xf]
  %v69 = vld [vmem:[%s0 + $0x144] sm:$0xff]
  %v70 = vld [vmem:[%s0 + $0x14c] sm:$0xf]
  %v71 = vld [vmem:[%s0 + $0x150] sm:$0xff]
  %v72 = vld [vmem:[%s0 + $0x158] sm:$0xf]
  %v73 = vld [vmem:[%s0 + $0x15c] sm:$0xff]
  %v74 = vld [vmem:[%s0 + $0x164] sm:$0xf]
  %v75 = vld [vmem:[%s0 + $0x168] sm:$0xff]
  %v76 = vld [vmem:[%s0 + $0x170] sm:$0xf]
  %v77 = vld [vmem:[%s0 + $0x174] sm:$0xff]
  %v78 = vld [vmem:[%s0 + $0x17c] sm:$0xf]
  %v79 = vld [vmem:[%s0 + $0x180] sm:$0xff]
  %v80 = vld [vmem:[%s0 + $0x188] sm:$0xf]
  %v81 = vld [vmem:[%s0 + $0x18c] sm:$0xff]
  %v82 = vld [vmem:[%s0 + $0x194] sm:$0xf]
  %v83 = vld [vmem:[%s0 + $0x198] sm:$0xff]
  %v84 = vld [vmem:[%s0 + $0x1a0] sm:$0xf]
  %v85 = vld [vmem:[%s0 + $0x1a4] sm:$0xff]
  %v86 = vld [vmem:[%s0 + $0x1ac] sm:$0xf]
  %v87 = vld [vmem:[%s0 + $0x1b0] sm:$0xff]
  %v88 = vld [vmem:[%s0 + $0x1b8] sm:$0xf]
  %v89 = vld [vmem:[%s0 + $0x1bc] sm:$0xff]
  %v90 = vld [vmem:[%s0 + $0x1c4] sm:$0xf]
  %v91 = vld [vmem:[%s0 + $0x1c8] sm:$0xff]
  %v92 = vld [vmem:[%s0 + $0x1d0] sm:$0xf]
  %v93 = vld [vmem:[%s0 + $0x1d4] sm:$0xff]
  %v94 = vld [vmem:[%s0 + $0x1dc] sm:$0xf]
  %v95 = vld [vmem:[%s0 + $0x1e0] sm:$0xff]
  %v96 = vld [vmem:[%s0 + $0x1e8] sm:$0xf]
  %v97 = vld [vmem:[%s0 + $0x1ec] sm:$0xff]
  %v98 = vld [vmem:[%s0 + $0x1f4] sm:$0xf]
  %v99 = vld [vmem:[%s0 + $0x1f8] sm:$0xff]
  %v100 = vld [vmem:[%s0 + $0x200] sm:$0xf]
  %v101 = vld [vmem:[%s0 + $0x204] sm:$0xff]
  %v102 = vld [vmem:[%s0 + $0x20c] sm:$0xf]
  %v103 = vld [vmem:[%s0 + $0x210] sm:$0xff]
  %v104 = vld [vmem:[%s0 + $0x218] sm:$0xf]
  %v105 = vld [vmem:[%s0 + $0x21c] sm:$0xff]
  %v106 = vld [vmem:[%s0 + $0x224] sm:$0xf]
  %v107 = vld [vmem:[%s0 + $0x228] sm:$0xff]
  %v108 = vld [vmem:[%s0 + $0x230] sm:$0xf]
  %v109 = vld [vmem:[%s0 + $0x234] sm:$0xff]
  %v110 = vld [vmem:[%s0 + $0x23c] sm:$0xf]
  %v111 = vld [vmem:[%s0 + $0x240] sm:$0xff]
  %v112 = vld [vmem:[%s0 + $0x248] sm:$0xf]
  %v113 = vld [vmem:[%s0 + $0x24c] sm:$0xff]
  %v114 = vld [vmem:[%s0 + $0x254] sm:$0xf]
  %v115 = vld [vmem:[%s0 + $0x258] sm:$0xff]
  %v116 = vld [vmem:[%s0 + $0x260] sm:$0xf]
  %v117 = vld [vmem:[%s0 + $0x264] sm:$0xff]
  %v118 = vld [vmem:[%s0 + $0x26c] sm:$0xf]
  %v119 = vld [vmem:[%s0 + $0x270] sm:$0xff]
  %v120 = vld [vmem:[%s0 + $0x278] sm:$0xf]
  %v121 = vld [vmem:[%s0 + $0x27c] sm:$0xff]
  %v122 = vld [vmem:[%s0 + $0x284] sm:$0xf]
  %v123 = vld [vmem:[%s0 + $0x288] sm:$0xff]
  %v124 = vld [vmem:[%s0 + $0x290] sm:$0xf]
  %v125 = vld [vmem:[%s0 + $0x294] sm:$0xff]
  %v126 = vld [vmem:[%s0 + $0x29c] sm:$0xf]
  %v127 = vld [vmem:[%s0 + $0x2a0] sm:$0xff]
  %v128 = vld [vmem:[%s0 + $0x2a8] sm:$0xf]
  %v129 = vld [vmem:[%s0 + $0x2ac] sm:$0xff]
  %v130 = vld [vmem:[%s0 + $0x2b4] sm:$0xf]
  %v131 = vld [vmem:[%s1] sm:$0xf]
  %v132 = vld [vmem:[%s1 + $0x4] sm:$0xf]
  %v133 = vld [vmem:[%s1 + $0x8] sm:$0xf]
  %v134 = vld [vmem:[%s1 + $0xc] sm:$0xf]
  %v135 = vld [vmem:[%s1 + $0x10] sm:$0xf]
  %v136 = vld [vmem:[%s1 + $0x14] sm:$0xf]
  %v137 = vld [vmem:[%s1 + $0x18] sm:$0xf]
  %v138 = vld [vmem:[%s1 + $0x1c] sm:$0xf]
  %v139 = vld [vmem:[%s1 + $0x20] sm:$0xf]
  %v140 = vld [vmem:[%s1 + $0x24] sm:$0xf]
  %v141 = vld [vmem:[%s1 + $0x28] sm:$0xf]
  %v142 = vld [vmem:[%s1 + $0x2c] sm:$0xf]
  %v143 = vld [vmem:[%s1 + $0x30] sm:$0xf]
  %v144 = vld [vmem:[%s1 + $0x34] sm:$0xf]
  %v145 = vld [vmem:[%s1 + $0x38] sm:$0xf]
  %v146 = vld [vmem:[%s1 + $0x3c] sm:$0xf]
  %v147 = vld [vmem:[%s1 + $0x40] sm:$0xf]
  %v148 = vld [vmem:[%s1 + $0x44] sm:$0xf]
  %v149 = vld [vmem:[%s1 + $0x48] sm:$0xf]
  %v150 = vld [vmem:[%s1 + $0x4c] sm:$0xf]
  %v151 = vld [vmem:[%s1 + $0x50] sm:$0xf]
  %v152 = vld [vmem:[%s1 + $0x54] sm:$0xf]
  %v153 = vld [vmem:[%s1 + $0x58] sm:$0xf]
  %v154 = vld [vmem:[%s1 + $0x5c] sm:$0xf]
  %v155 = vld [vmem:[%s1 + $0x60] sm:$0xf]
  %v156 = vld [vmem:[%s1 + $0x64] sm:$0xf]
  %v157 = vld [vmem:[%s1 + $0x68] sm:$0xf]
  %v158 = vld [vmem:[%s1 + $0x6c] sm:$0xf]
  %v159 = vld [vmem:[%s1 + $0x70] sm:$0xf]
  %v160 = vld [vmem:[%s1 + $0x74] sm:$0xf]
  %v161 = vld [vmem:[%s1 + $0x78] sm:$0xf]
  %v162 = vld [vmem:[%s1 + $0x7c] sm:$0xf]
  %v163 = vld [vmem:[%s1 + $0x80] sm:$0xf]
  %v164 = vld [vmem:[%s1 + $0x84] sm:$0xf]
  %v165 = vld [vmem:[%s1 + $0x88] sm:$0xf]
  %v166 = vld [vmem:[%s1 + $0x8c] sm:$0xf]
  %v167 = vld [vmem:[%s1 + $0x90] sm:$0xf]
  %v168 = vld [vmem:[%s1 + $0x94] sm:$0xf]
  %v169 = vld [vmem:[%s1 + $0x98] sm:$0xf]
  %v170 = vld [vmem:[%s1 + $0x9c] sm:$0xf]
  %v171 = vld [vmem:[%s1 + $0xa0] sm:$0xf]
  %v172 = vld [vmem:[%s1 + $0xa4] sm:$0xf]
  %v173 = vld [vmem:[%s1 + $0xa8] sm:$0xf]
  %v174 = vld [vmem:[%s1 + $0xac] sm:$0xf]
  %v175 = vld [vmem:[%s1 + $0xb0] sm:$0xf]
  %v176 = vld [vmem:[%s1 + $0xb4] sm:$0xf]
  %v177 = vld [vmem:[%s1 + $0xb8] sm:$0xf]
  %v178 = vld [vmem:[%s1 + $0xbc] sm:$0xf]
  %v295 = vunpack.c.l.b16 %v15
  %v296 = vunpack.c.h.b16 %v15
  %v297 = vunpack.c.l.b16 %v16
  %v298 = vunpack.c.l.b16 %v17
  %v299 = vunpack.c.h.b16 %v17
  %v300 = vunpack.c.l.b16 %v18
  %v301 = vunpack.c.l.b16 %v19
  %v302 = vunpack.c.h.b16 %v19
  %v303 = vunpack.c.l.b16 %v20
  %v304 = vunpack.c.l.b16 %v21
  %v305 = vunpack.c.h.b16 %v21
  %v306 = vunpack.c.l.b16 %v22
  %v307 = vunpack.c.l.b16 %v23
  %v308 = vunpack.c.h.b16 %v23
  %v309 = vunpack.c.l.b16 %v24
  %v310 = vunpack.c.l.b16 %v25
  %v311 = vunpack.c.h.b16 %v25
  %v312 = vunpack.c.l.b16 %v26
  %v313 = vunpack.c.l.b16 %v27
  %v314 = vunpack.c.h.b16 %v27
  %v315 = vunpack.c.l.b16 %v28
  %v316 = vunpack.c.l.b16 %v29
  %v317 = vunpack.c.h.b16 %v29
  %v318 = vunpack.c.l.b16 %v30
  %v319 = vunpack.c.l.b16 %v31
  %v320 = vunpack.c.h.b16 %v31
  %v321 = vunpack.c.l.b16 %v32
  %v322 = vunpack.c.l.b16 %v33
  %v323 = vunpack.c.h.b16 %v33
  %v324 = vunpack.c.l.b16 %v34
  %v325 = vunpack.c.l.b16 %v35
  %v326 = vunpack.c.h.b16 %v35
  %v327 = vunpack.c.l.b16 %v36
  %v328 = vunpack.c.l.b16 %v37
  %v329 = vunpack.c.h.b16 %v37
  %v330 = vunpack.c.l.b16 %v38
  %v331 = vunpack.c.l.b16 %v39
  %v332 = vunpack.c.h.b16 %v39
  %v333 = vunpack.c.l.b16 %v40
  %v334 = vunpack.c.l.b16 %v41
  %v335 = vunpack.c.h.b16 %v41
  %v336 = vunpack.c.l.b16 %v42
  %v337 = vunpack.c.l.b16 %v43
  %v338 = vunpack.c.h.b16 %v43
  %v339 = vunpack.c.l.b16 %v44
  %v340 = vunpack.c.l.b16 %v45
  %v341 = vunpack.c.h.b16 %v45
  %v342 = vunpack.c.l.b16 %v46
  %v343 = vunpack.c.l.b16 %v47
  %v344 = vunpack.c.h.b16 %v47
  %v345 = vunpack.c.l.b16 %v48
  %v346 = vunpack.c.l.b16 %v49
  %v347 = vunpack.c.h.b16 %v49
  %v348 = vunpack.c.l.b16 %v50
  %v349 = vunpack.c.l.b16 %v51
  %v350 = vunpack.c.h.b16 %v51
  %v351 = vunpack.c.l.b16 %v52
  %v352 = vunpack.c.l.b16 %v53
  %v353 = vunpack.c.h.b16 %v53
  %v354 = vunpack.c.l.b16 %v54
  %v355 = vunpack.c.l.b16 %v55
  %v356 = vunpack.c.h.b16 %v55
  %v357 = vunpack.c.l.b16 %v56
  %v358 = vunpack.c.l.b16 %v57
  %v359 = vunpack.c.h.b16 %v57
  %v360 = vunpack.c.l.b16 %v58
  %v361 = vunpack.c.l.b16 %v59
  %v362 = vunpack.c.h.b16 %v59
  %v363 = vunpack.c.l.b16 %v60
  %v364 = vunpack.c.l.b16 %v61
  %v365 = vunpack.c.h.b16 %v61
  %v366 = vunpack.c.l.b16 %v62
  %v367 = vunpack.c.l.b16 %v63
  %v368 = vunpack.c.h.b16 %v63
  %v369 = vunpack.c.l.b16 %v64
  %v370 = vunpack.c.l.b16 %v65
  %v371 = vunpack.c.h.b16 %v65
  %v372 = vunpack.c.l.b16 %v66
  %v373 = vunpack.c.l.b16 %v67
  %v374 = vunpack.c.h.b16 %v67
  %v375 = vunpack.c.l.b16 %v68
  %v376 = vunpack.c.l.b16 %v69
  %v377 = vunpack.c.h.b16 %v69
  %v378 = vunpack.c.l.b16 %v70
  %v379 = vunpack.c.l.b16 %v71
  %v380 = vunpack.c.h.b16 %v71
  %v381 = vunpack.c.l.b16 %v72
  %v382 = vunpack.c.l.b16 %v73
  %v383 = vunpack.c.h.b16 %v73
  %v384 = vunpack.c.l.b16 %v74
  %v385 = vunpack.c.l.b16 %v75
  %v386 = vunpack.c.h.b16 %v75
  %v387 = vunpack.c.l.b16 %v76
  %v388 = vunpack.c.l.b16 %v77
  %v389 = vunpack.c.h.b16 %v77
  %v390 = vunpack.c.l.b16 %v78
  %v391 = vunpack.c.l.b16 %v79
  %v392 = vunpack.c.h.b16 %v79
  %v393 = vunpack.c.l.b16 %v80
  %v394 = vunpack.c.l.b16 %v81
  %v395 = vunpack.c.h.b16 %v81
  %v396 = vunpack.c.l.b16 %v82
  %v397 = vunpack.c.l.b16 %v83
  %v398 = vunpack.c.h.b16 %v83
  %v399 = vunpack.c.l.b16 %v84
  %v400 = vunpack.c.l.b16 %v85
  %v401 = vunpack.c.h.b16 %v85
  %v402 = vunpack.c.l.b16 %v86
  %v403 = vunpack.c.l.b16 %v87
  %v404 = vunpack.c.h.b16 %v87
  %v405 = vunpack.c.l.b16 %v88
  %v406 = vunpack.c.l.b16 %v89
  %v407 = vunpack.c.h.b16 %v89
  %v408 = vunpack.c.l.b16 %v90
  %v409 = vunpack.c.l.b16 %v91
  %v410 = vunpack.c.h.b16 %v91
  %v411 = vunpack.c.l.b16 %v92
  %v412 = vunpack.c.l.b16 %v93
  %v413 = vunpack.c.h.b16 %v93
  %v414 = vunpack.c.l.b16 %v94
  %v415 = vunpack.c.l.b16 %v95
  %v416 = vunpack.c.h.b16 %v95
  %v417 = vunpack.c.l.b16 %v96
  %v418 = vunpack.c.l.b16 %v97
  %v419 = vunpack.c.h.b16 %v97
  %v420 = vunpack.c.l.b16 %v98
  %v421 = vunpack.c.l.b16 %v99
  %v422 = vunpack.c.h.b16 %v99
  %v423 = vunpack.c.l.b16 %v100
  %v424 = vunpack.c.l.b16 %v101
  %v425 = vunpack.c.h.b16 %v101
  %v426 = vunpack.c.l.b16 %v102
  %v427 = vunpack.c.l.b16 %v103
  %v428 = vunpack.c.h.b16 %v103
  %v429 = vunpack.c.l.b16 %v104
  %v430 = vunpack.c.l.b16 %v105
  %v431 = vunpack.c.h.b16 %v105
  %v432 = vunpack.c.l.b16 %v106
  %v433 = vunpack.c.l.b16 %v107
  %v434 = vunpack.c.h.b16 %v107
  %v435 = vunpack.c.l.b16 %v108
  %v436 = vunpack.c.l.b16 %v109
  %v437 = vunpack.c.h.b16 %v109
  %v438 = vunpack.c.l.b16 %v110
  %v439 = vunpack.c.l.b16 %v111
  %v440 = vunpack.c.h.b16 %v111
  %v441 = vunpack.c.l.b16 %v112
  %v442 = vunpack.c.l.b16 %v113
  %v443 = vunpack.c.h.b16 %v113
  %v444 = vunpack.c.l.b16 %v114
  %v445 = vunpack.c.l.b16 %v115
  %v446 = vunpack.c.h.b16 %v115
  %v447 = vunpack.c.l.b16 %v116
  %v448 = vunpack.c.l.b16 %v117
  %v449 = vunpack.c.h.b16 %v117
  %v450 = vunpack.c.l.b16 %v118
  %v451 = vunpack.c.l.b16 %v119
  %v452 = vunpack.c.h.b16 %v119
  %v453 = vunpack.c.l.b16 %v120
  %v454 = vunpack.c.l.b16 %v121
  %v455 = vunpack.c.h.b16 %v121
  %v456 = vunpack.c.l.b16 %v122
  %v457 = vunpack.c.l.b16 %v123
  %v458 = vunpack.c.h.b16 %v123
  %v459 = vunpack.c.l.b16 %v124
  %v460 = vunpack.c.l.b16 %v125
  %v461 = vunpack.c.h.b16 %v125
  %v462 = vunpack.c.l.b16 %v126
  %v463 = vunpack.c.l.b16 %v127
  %v464 = vunpack.c.h.b16 %v127
  %v465 = vunpack.c.l.b16 %v128
  %v466 = vunpack.c.l.b16 %v129
  %v467 = vunpack.c.h.b16 %v129
  %v468 = vunpack.c.l.b16 %v130
  %v469 = vpack.c.b16 %v298, %v295
  %v470 = vpack.c.b16 %v299, %v296
  %v471 = vpack.c.b16 %v300, %v297
  %v472 = vpack.c.b16 %v304, %v301
  %v473 = vpack.c.b16 %v305, %v302
  %v474 = vpack.c.b16 %v306, %v303
  %v475 = vpack.c.b16 %v310, %v307
  %v476 = vpack.c.b16 %v311, %v308
  %v477 = vpack.c.b16 %v312, %v309
  %v478 = vpack.c.b16 %v316, %v313
  %v479 = vpack.c.b16 %v317, %v314
  %v480 = vpack.c.b16 %v318, %v315
  %v481 = vpack.c.b16 %v322, %v319
  %v482 = vpack.c.b16 %v323, %v320
  %v483 = vpack.c.b16 %v324, %v321
  %v484 = vpack.c.b16 %v328, %v325
  %v485 = vpack.c.b16 %v329, %v326
  %v486 = vpack.c.b16 %v330, %v327
  %v487 = vpack.c.b16 %v334, %v331
  %v488 = vpack.c.b16 %v335, %v332
  %v489 = vpack.c.b16 %v336, %v333
  %v490 = vpack.c.b16 %v340, %v337
  %v491 = vpack.c.b16 %v341, %v338
  %v492 = vpack.c.b16 %v342, %v339
  %v493 = vpack.c.b16 %v346, %v343
  %v494 = vpack.c.b16 %v347, %v344
  %v495 = vpack.c.b16 %v348, %v345
  %v496 = vpack.c.b16 %v352, %v349
  %v497 = vpack.c.b16 %v353, %v350
  %v498 = vpack.c.b16 %v354, %v351
  %v499 = vpack.c.b16 %v358, %v355
  %v500 = vpack.c.b16 %v359, %v356
  %v501 = vpack.c.b16 %v360, %v357
  %v502 = vpack.c.b16 %v364, %v361
  %v503 = vpack.c.b16 %v365, %v362
  %v504 = vpack.c.b16 %v366, %v363
  %v505 = vpack.c.b16 %v370, %v367
  %v506 = vpack.c.b16 %v371, %v368
  %v507 = vpack.c.b16 %v372, %v369
  %v508 = vpack.c.b16 %v376, %v373
  %v509 = vpack.c.b16 %v377, %v374
  %v510 = vpack.c.b16 %v378, %v375
  %v511 = vpack.c.b16 %v382, %v379
  %v512 = vpack.c.b16 %v383, %v380
  %v513 = vpack.c.b16 %v384, %v381
  %v514 = vpack.c.b16 %v388, %v385
  %v515 = vpack.c.b16 %v389, %v386
  %v516 = vpack.c.b16 %v390, %v387
  %v517 = vpack.c.b16 %v394, %v391
  %v518 = vpack.c.b16 %v395, %v392
  %v519 = vpack.c.b16 %v396, %v393
  %v520 = vpack.c.b16 %v400, %v397
  %v521 = vpack.c.b16 %v401, %v398
  %v522 = vpack.c.b16 %v402, %v399
  %v523 = vpack.c.b16 %v406, %v403
  %v524 = vpack.c.b16 %v407, %v404
  %v525 = vpack.c.b16 %v408, %v405
  %v526 = vpack.c.b16 %v412, %v409
  %v527 = vpack.c.b16 %v413, %v410
  %v528 = vpack.c.b16 %v414, %v411
  %v529 = vpack.c.b16 %v418, %v415
  %v530 = vpack.c.b16 %v419, %v416
  %v531 = vpack.c.b16 %v420, %v417
  %v532 = vpack.c.b16 %v424, %v421
  %v533 = vpack.c.b16 %v425, %v422
  %v534 = vpack.c.b16 %v426, %v423
  %v535 = vpack.c.b16 %v430, %v427
  %v536 = vpack.c.b16 %v431, %v428
  %v537 = vpack.c.b16 %v432, %v429
  %v538 = vpack.c.b16 %v436, %v433
  %v539 = vpack.c.b16 %v437, %v434
  %v540 = vpack.c.b16 %v438, %v435
  %v541 = vpack.c.b16 %v442, %v439
  %v542 = vpack.c.b16 %v443, %v440
  %v543 = vpack.c.b16 %v444, %v441
  %v544 = vpack.c.b16 %v448, %v445
  %v545 = vpack.c.b16 %v449, %v446
  %v546 = vpack.c.b16 %v450, %v447
  %v547 = vpack.c.b16 %v454, %v451
  %v548 = vpack.c.b16 %v455, %v452
  %v549 = vpack.c.b16 %v456, %v453
  %v550 = vpack.c.b16 %v460, %v457
  %v551 = vpack.c.b16 %v461, %v458
  %v552 = vpack.c.b16 %v462, %v459
  %v553 = vpack.c.b16 %v466, %v463
  %v554 = vpack.c.b16 %v467, %v464
  %v555 = vpack.c.b16 %v468, %v465
  %v691 = vunpack.c.l.b16 %v131
  %v692 = vunpack.c.l.b16 %v132
  %v693 = vunpack.c.l.b16 %v133
  %v694 = vunpack.c.l.b16 %v134
  %v695 = vunpack.c.l.b16 %v135
  %v696 = vunpack.c.l.b16 %v136
  %v697 = vunpack.c.l.b16 %v137
  %v698 = vunpack.c.l.b16 %v138
  %v699 = vunpack.c.l.b16 %v139
  %v700 = vunpack.c.l.b16 %v140
  %v701 = vunpack.c.l.b16 %v141
  %v702 = vunpack.c.l.b16 %v142
  %v703 = vunpack.c.l.b16 %v143
  %v704 = vunpack.c.l.b16 %v144
  %v705 = vunpack.c.l.b16 %v145
  %v706 = vunpack.c.l.b16 %v146
  %v707 = vunpack.c.l.b16 %v147
  %v708 = vunpack.c.l.b16 %v148
  %v709 = vunpack.c.l.b16 %v149
  %v710 = vunpack.c.l.b16 %v150
  %v711 = vunpack.c.l.b16 %v151
  %v712 = vunpack.c.l.b16 %v152
  %v713 = vunpack.c.l.b16 %v153
  %v714 = vunpack.c.l.b16 %v154
  %v715 = vunpack.c.l.b16 %v155
  %v716 = vunpack.c.l.b16 %v156
  %v717 = vunpack.c.l.b16 %v157
  %v718 = vunpack.c.l.b16 %v158
  %v719 = vunpack.c.l.b16 %v159
  %v720 = vunpack.c.l.b16 %v160
  %v721 = vunpack.c.l.b16 %v161
  %v722 = vunpack.c.l.b16 %v162
  %v723 = vunpack.c.l.b16 %v163
  %v724 = vunpack.c.l.b16 %v164
  %v725 = vunpack.c.l.b16 %v165
  %v726 = vunpack.c.l.b16 %v166
  %v727 = vunpack.c.l.b16 %v167
  %v728 = vunpack.c.l.b16 %v168
  %v729 = vunpack.c.l.b16 %v169
  %v730 = vunpack.c.l.b16 %v170
  %v731 = vunpack.c.l.b16 %v171
  %v732 = vunpack.c.l.b16 %v172
  %v733 = vunpack.c.l.b16 %v173
  %v734 = vunpack.c.l.b16 %v174
  %v735 = vunpack.c.l.b16 %v175
  %v736 = vunpack.c.l.b16 %v176
  %v737 = vunpack.c.l.b16 %v177
  %v738 = vunpack.c.l.b16 %v178
  %v739 = vpack.c.b16 %v692, %v691
  %v740 = vpack.c.b16 %v694, %v693
  %v741 = vpack.c.b16 %v696, %v695
  %v742 = vpack.c.b16 %v698, %v697
  %v743 = vpack.c.b16 %v700, %v699
  %v744 = vpack.c.b16 %v702, %v701
  %v745 = vpack.c.b16 %v704, %v703
  %v746 = vpack.c.b16 %v706, %v705
  %v747 = vpack.c.b16 %v708, %v707
  %v748 = vpack.c.b16 %v710, %v709
  %v749 = vpack.c.b16 %v712, %v711
  %v750 = vpack.c.b16 %v714, %v713
  %v751 = vpack.c.b16 %v716, %v715
  %v752 = vpack.c.b16 %v718, %v717
  %v753 = vpack.c.b16 %v720, %v719
  %v754 = vpack.c.b16 %v722, %v721
  %v755 = vpack.c.b16 %v724, %v723
  %v756 = vpack.c.b16 %v726, %v725
  %v757 = vpack.c.b16 %v728, %v727
  %v758 = vpack.c.b16 %v730, %v729
  %v759 = vpack.c.b16 %v732, %v731
  %v760 = vpack.c.b16 %v734, %v733
  %v761 = vpack.c.b16 %v736, %v735
  %v762 = vpack.c.b16 %v738, %v737
  %787 = vmatprep.subr.bf16.mxu0 0
  %788 = vmatpush1.bf16.msra.mxu0 %v739
  %789 = vmatprep.subr.bf16.mxu0 0
  %790 = vmatpush1.bf16.msra.mxu0 %v740
  %791 = vmatprep.subr.bf16.mxu0 0
  %792 = vmatpush1.bf16.msra.mxu0 %v741
  %793 = vmatprep.subr.bf16.mxu0 0
  %794 = vmatpush1.bf16.msra.mxu0 %v742
  %795 = vmatprep.subr.bf16.mxu0 0
  %796 = vmatpush1.bf16.msra.mxu0 %v743
  %797 = vmatprep.subr.bf16.mxu0 0
  %798 = vmatpush1.bf16.msra.mxu0 %v744
  %799 = vmatprep.subr.bf16.mxu0 0
  %800 = vmatpush1.bf16.msra.mxu0 %v745
  %801 = vmatprep.subr.bf16.mxu0 0
  %802 = vmatpush1.bf16.msra.mxu0 %v746
  %803 = vmatprep.subr.bf16.mxu0 0
  %804 = vmatpush1.bf16.msra.mxu0 %v747
  %805 = vmatprep.subr.bf16.mxu0 0
  %806 = vmatpush1.bf16.msra.mxu0 %v748
  %807 = vmatprep.subr.bf16.mxu0 0
  %808 = vmatpush1.bf16.msra.mxu0 %v749
  %809 = vmatprep.subr.bf16.mxu0 0
  %810 = vmatpush1.bf16.msra.mxu0 %v750
  %811 = vmatprep.subr.bf16.mxu0 0
  %812 = vmatpush1.bf16.msra.mxu0 %v751
  %813 = vmatprep.subr.bf16.mxu0 0
  %814 = vmatpush1.bf16.msra.mxu0 %v752
  %815 = vmatprep.subr.bf16.mxu0 0
  %816 = vmatpush1.bf16.msra.mxu0 %v753
  %817 = vmatprep.subr.bf16.mxu0 0
  %818 = vmatpush1.bf16.msra.mxu0 %v754
  %819 = vmatprep.mubr.bf16.mxu0 %v470
  %820 = vmatmul.mubr.bf16.gmra.mrb[0].mxu0 %v469
  %v821 = vpop.f32.mrb[0].mxu0
  %v822 = vadd.f32 0.0, %v821
  %v823 = vpop.f32.mrb[0].mxu0
  %v824 = vpop.f32.mrb[0].mxu0
  %v825 = vadd.f32 0.0, %v824
  %v826 = vpop.f32.mrb[0].mxu0
  %827 = vmatprep.mubr.bf16.mxu0 %v473
  %828 = vmatmul.mubr.bf16.gmra.mrb[0].mxu0 %v472
  %v829 = vpop.f32.mrb[0].mxu0
  %v830 = vadd.f32 0.0, %v829
  %v831 = vpop.f32.mrb[0].mxu0
  %v832 = vpop.f32.mrb[0].mxu0
  %v833 = vadd.f32 0.0, %v832
  %v834 = vpop.f32.mrb[0].mxu0
  %835 = vmatprep.mubr.bf16.mxu0 %v476
  %836 = vmatmul.mubr.bf16.gmra.mrb[0].mxu0 %v475
  %v837 = vpop.f32.mrb[0].mxu0
  %v838 = vadd.f32 0.0, %v837
  %v839 = vpop.f32.mrb[0].mxu0
  %v840 = vpop.f32.mrb[0].mxu0
  %v841 = vadd.f32 0.0, %v840
  %v842 = vpop.f32.mrb[0].mxu0
  %843 = vmatprep.mubr.bf16.mxu0 %v479
  %844 = vmatmul.mubr.bf16.gmra.mrb[0].mxu0 %v478
  %v845 = vpop.f32.mrb[0].mxu0
  %v846 = vadd.f32 0.0, %v845
  %v847 = vpop.f32.mrb[0].mxu0
  %v848 = vpop.f32.mrb[0].mxu0
  %v849 = vadd.f32 0.0, %v848
  %v850 = vpop.f32.mrb[0].mxu0
  %851 = vmatprep.mubr.bf16.mxu0 %v482
  %852 = vmatmul.mubr.bf16.gmra.mrb[0].mxu0 %v481
  %v853 = vpop.f32.mrb[0].mxu0
  %v854 = vadd.f32 0.0, %v853
  %v855 = vpop.f32.mrb[0].mxu0
  %v856 = vpop.f32.mrb[0].mxu0
  %v857 = vadd.f32 0.0, %v856
  %v858 = vpop.f32.mrb[0].mxu0
  %859 = vmatprep.mubr.bf16.mxu0 %v485
  %860 = vmatmul.mubr.bf16.gmra.mrb[0].mxu0 %v484
  %v861 = vpop.f32.mrb[0].mxu0
  %v862 = vadd.f32 0.0, %v861
  %v863 = vpop.f32.mrb[0].mxu0
  %v864 = vpop.f32.mrb[0].mxu0
  %v865 = vadd.f32 0.0, %v864
  %v866 = vpop.f32.mrb[0].mxu0
  %867 = vmatprep.mubr.bf16.mxu0 %v488
  %868 = vmatmul.mubr.bf16.gmra.mrb[0].mxu0 %v487
  %v869 = vpop.f32.mrb[0].mxu0
  %v870 = vadd.f32 0.0, %v869
  %v871 = vpop.f32.mrb[0].mxu0
  %v872 = vpop.f32.mrb[0].mxu0
  %v873 = vadd.f32 0.0, %v872
  %v874 = vpop.f32.mrb[0].mxu0
  %875 = vmatprep.mubr.bf16.mxu0 %v491
  %876 = vmatmul.mubr.bf16.gmra.mrb[0].mxu0 %v490
  %v877 = vpop.f32.mrb[0].mxu0
  %v878 = vadd.f32 0.0, %v877
  %v879 = vpop.f32.mrb[0].mxu0
  %v880 = vpop.f32.mrb[0].mxu0
  %v881 = vadd.f32 0.0, %v880
  %v882 = vpop.f32.mrb[0].mxu0
  %883 = vmatprep.mubr.bf16.mxu0 %v494
  %884 = vmatmul.mubr.bf16.gmra.mrb[0].mxu0 %v493
  %v885 = vpop.f32.mrb[0].mxu0
  %v886 = vadd.f32 0.0, %v885
  %v887 = vpop.f32.mrb[0].mxu0
  %v888 = vpop.f32.mrb[0].mxu0
  %v889 = vadd.f32 0.0, %v888
  %v890 = vpop.f32.mrb[0].mxu0
  %891 = vmatprep.mubr.bf16.mxu0 %v497
  %892 = vmatmul.mubr.bf16.gmra.mrb[0].mxu0 %v496
  %v893 = vpop.f32.mrb[0].mxu0
  %v894 = vadd.f32 0.0, %v893
  %v895 = vpop.f32.mrb[0].mxu0
  %v896 = vpop.f32.mrb[0].mxu0
  %v897 = vadd.f32 0.0, %v896
  %v898 = vpop.f32.mrb[0].mxu0
  %899 = vmatprep.mubr.bf16.mxu0 %v500
  %900 = vmatmul.mubr.bf16.gmra.mrb[0].mxu0 %v499
  %v901 = vpop.f32.mrb[0].mxu0
  %v902 = vadd.f32 0.0, %v901
  %v903 = vpop.f32.mrb[0].mxu0
  %v904 = vpop.f32.mrb[0].mxu0
  %v905 = vadd.f32 0.0, %v904
  %v906 = vpop.f32.mrb[0].mxu0
  %907 = vmatprep.mubr.bf16.mxu0 %v503
  %908 = vmatmul.mubr.bf16.gmra.mrb[0].mxu0 %v502
  %v909 = vpop.f32.mrb[0].mxu0
  %v910 = vadd.f32 0.0, %v909
  %v911 = vpop.f32.mrb[0].mxu0
  %v912 = vpop.f32.mrb[0].mxu0
  %v913 = vadd.f32 0.0, %v912
  %v914 = vpop.f32.mrb[0].mxu0
  %915 = vmatprep.mubr.bf16.mxu0 %v506
  %916 = vmatmul.mubr.bf16.gmra.mrb[0].mxu0 %v505
  %v917 = vpop.f32.mrb[0].mxu0
  %v918 = vadd.f32 0.0, %v917
  %v919 = vpop.f32.mrb[0].mxu0
  %v920 = vpop.f32.mrb[0].mxu0
  %v921 = vadd.f32 0.0, %v920
  %v922 = vpop.f32.mrb[0].mxu0
  %923 = vmatprep.mubr.bf16.mxu0 %v509
  %924 = vmatmul.mubr.bf16.gmra.mrb[0].mxu0 %v508
  %v925 = vpop.f32.mrb[0].mxu0
  %v926 = vadd.f32 0.0, %v925
  %v927 = vpop.f32.mrb[0].mxu0
  %v928 = vpop.f32.mrb[0].mxu0
  %v929 = vadd.f32 0.0, %v928
  %v930 = vpop.f32.mrb[0].mxu0
  %931 = vmatprep.mubr.bf16.mxu0 %v512
  %932 = vmatmul.mubr.bf16.gmra.mrb[0].mxu0 %v511
  %v933 = vpop.f32.mrb[0].mxu0
  %v934 = vadd.f32 0.0, %v933
  %v935 = vpop.f32.mrb[0].mxu0
  %v936 = vpop.f32.mrb[0].mxu0
  %v937 = vadd.f32 0.0, %v936
  %v938 = vpop.f32.mrb[0].mxu0
  %939 = vmatprep.mubr.bf16.mxu0 %v515
  %940 = vmatmul.mubr.bf16.gmra.mrb[0].mxu0 %v514
  %v941 = vpop.f32.mrb[0].mxu0
  %v942 = vadd.f32 0.0, %v941
  %v943 = vpop.f32.mrb[0].mxu0
  %v944 = vpop.f32.mrb[0].mxu0
  %v945 = vadd.f32 0.0, %v944
  %v946 = vpop.f32.mrb[0].mxu0
  %947 = vmatprep.mubr.bf16.mxu0 %v518
  %948 = vmatmul.mubr.bf16.gmra.mrb[0].mxu0 %v517
  %v949 = vpop.f32.mrb[0].mxu0
  %v950 = vadd.f32 0.0, %v949
  %v951 = vpop.f32.mrb[0].mxu0
  %v952 = vpop.f32.mrb[0].mxu0
  %v953 = vadd.f32 0.0, %v952
  %v954 = vpop.f32.mrb[0].mxu0
  %955 = vmatprep.mubr.bf16.mxu0 %v521
  %956 = vmatmul.mubr.bf16.gmra.mrb[0].mxu0 %v520
  %v957 = vpop.f32.mrb[0].mxu0
  %v958 = vadd.f32 0.0, %v957
  %v959 = vpop.f32.mrb[0].mxu0
  %v960 = vpop.f32.mrb[0].mxu0
  %v961 = vadd.f32 0.0, %v960
  %v962 = vpop.f32.mrb[0].mxu0
  %963 = vmatprep.mubr.bf16.mxu0 %v524
  %964 = vmatmul.mubr.bf16.gmra.mrb[0].mxu0 %v523
  %v965 = vpop.f32.mrb[0].mxu0
  %v966 = vadd.f32 0.0, %v965
  %v967 = vpop.f32.mrb[0].mxu0
  %v968 = vpop.f32.mrb[0].mxu0
  %v969 = vadd.f32 0.0, %v968
  %v970 = vpop.f32.mrb[0].mxu0
  %971 = vmatprep.mubr.bf16.mxu0 %v527
  %972 = vmatmul.mubr.bf16.gmra.mrb[0].mxu0 %v526
  %v973 = vpop.f32.mrb[0].mxu0
  %v974 = vadd.f32 0.0, %v973
  %v975 = vpop.f32.mrb[0].mxu0
  %v976 = vpop.f32.mrb[0].mxu0
  %v977 = vadd.f32 0.0, %v976
  %v978 = vpop.f32.mrb[0].mxu0
  %979 = vmatprep.mubr.bf16.mxu0 %v530
  %980 = vmatmul.mubr.bf16.gmra.mrb[0].mxu0 %v529
  %v981 = vpop.f32.mrb[0].mxu0
  %v982 = vadd.f32 0.0, %v981
  %v983 = vpop.f32.mrb[0].mxu0
  %v984 = vpop.f32.mrb[0].mxu0
  %v985 = vadd.f32 0.0, %v984
  %v986 = vpop.f32.mrb[0].mxu0
  %987 = vmatprep.mubr.bf16.mxu0 %v533
  %988 = vmatmul.mubr.bf16.gmra.mrb[0].mxu0 %v532
  %v989 = vpop.f32.mrb[0].mxu0
  %v990 = vadd.f32 0.0, %v989
  %v991 = vpop.f32.mrb[0].mxu0
  %v992 = vpop.f32.mrb[0].mxu0
  %v993 = vadd.f32 0.0, %v992
  %v994 = vpop.f32.mrb[0].mxu0
  %995 = vmatprep.mubr.bf16.mxu0 %v536
  %996 = vmatmul.mubr.bf16.gmra.mrb[0].mxu0 %v535
  %v997 = vpop.f32.mrb[0].mxu0
  %v998 = vadd.f32 0.0, %v997
  %v999 = vpop.f32.mrb[0].mxu0
  %v1000 = vpop.f32.mrb[0].mxu0
  %v1001 = vadd.f32 0.0, %v1000
  %v1002 = vpop.f32.mrb[0].mxu0
  %1003 = vmatprep.mubr.bf16.mxu0 %v539
  %1004 = vmatmul.mubr.bf16.gmra.mrb[0].mxu0 %v538
  %v1005 = vpop.f32.mrb[0].mxu0
  %v1006 = vadd.f32 0.0, %v1005
  %v1007 = vpop.f32.mrb[0].mxu0
  %v1008 = vpop.f32.mrb[0].mxu0
  %v1009 = vadd.f32 0.0, %v1008
  %v1010 = vpop.f32.mrb[0].mxu0
  %1011 = vmatprep.mubr.bf16.mxu0 %v542
  %1012 = vmatmul.mubr.bf16.gmra.mrb[0].mxu0 %v541
  %v1013 = vpop.f32.mrb[0].mxu0
  %v1014 = vadd.f32 0.0, %v1013
  %v1015 = vpop.f32.mrb[0].mxu0
  %v1016 = vpop.f32.mrb[0].mxu0
  %v1017 = vadd.f32 0.0, %v1016
  %v1018 = vpop.f32.mrb[0].mxu0
  %1019 = vmatprep.mubr.bf16.mxu0 %v545
  %1020 = vmatmul.mubr.bf16.gmra.mrb[0].mxu0 %v544
  %v1021 = vpop.f32.mrb[0].mxu0
  %v1022 = vadd.f32 0.0, %v1021
  %v1023 = vpop.f32.mrb[0].mxu0
  %v1024 = vpop.f32.mrb[0].mxu0
  %v1025 = vadd.f32 0.0, %v1024
  %v1026 = vpop.f32.mrb[0].mxu0
  %1027 = vmatprep.mubr.bf16.mxu0 %v548
  %1028 = vmatmul.mubr.bf16.gmra.mrb[0].mxu0 %v547
  %v1029 = vpop.f32.mrb[0].mxu0
  %v1030 = vadd.f32 0.0, %v1029
  %v1031 = vpop.f32.mrb[0].mxu0
  %v1032 = vpop.f32.mrb[0].mxu0
  %v1033 = vadd.f32 0.0, %v1032
  %v1034 = vpop.f32.mrb[0].mxu0
  %1035 = vmatprep.mubr.bf16.mxu0 %v551
  %1036 = vmatmul.mubr.bf16.gmra.mrb[0].mxu0 %v550
  %v1037 = vpop.f32.mrb[0].mxu0
  %v1038 = vadd.f32 0.0, %v1037
  %v1039 = vpop.f32.mrb[0].mxu0
  %v1040 = vpop.f32.mrb[0].mxu0
  %v1041 = vadd.f32 0.0, %v1040
  %v1042 = vpop.f32.mrb[0].mxu0
  %1043 = vmatprep.mubr.bf16.mxu0 %v554
  %1044 = vmatmul.mubr.bf16.gmra.mrb[0].mxu0 %v553
  %v1045 = vpop.f32.mrb[0].mxu0
  %v1046 = vadd.f32 0.0, %v1045
  %v1047 = vpop.f32.mrb[0].mxu0
  %v1048 = vpop.f32.mrb[0].mxu0
  %v1049 = vadd.f32 0.0, %v1048
  %v1050 = vpop.f32.mrb[0].mxu0
  %1051 = vdwg.mxu0
  %1052 = vmatprep.subr.bf16.mxu0 0
  %1053 = vmatpush1.bf16.msra.mxu0 %v755
  %1054 = vmatprep.subr.bf16.mxu0 0
  %1055 = vmatpush1.bf16.msra.mxu0 %v756
  %1056 = vmatprep.subr.bf16.mxu0 0
  %1057 = vmatpush1.bf16.msra.mxu0 %v757
  %1058 = vmatprep.subr.bf16.mxu0 0
  %1059 = vmatpush1.bf16.msra.mxu0 %v758
  %1060 = vmatprep.subr.bf16.mxu0 0
  %1061 = vmatpush1.bf16.msra.mxu0 %v759
  %1062 = vmatprep.subr.bf16.mxu0 0
  %1063 = vmatpush1.bf16.msra.mxu0 %v760
  %1064 = vmatprep.subr.bf16.mxu0 0
  %1065 = vmatpush1.bf16.msra.mxu0 %v761
  %1066 = vmatprep.subr.bf16.mxu0 0
  %1067 = vmatpush1.bf16.msra.mxu0 %v762
  %1068 = vmatprep.subr.bf16.mxu0 0
  %1069 = vmatpush1.bf16.msra.mxu0 0
  %1070 = vmatprep.subr.bf16.mxu0 0
  %1071 = vmatpush1.bf16.msra.mxu0 0
  %1072 = vmatprep.subr.bf16.mxu0 0
  %1073 = vmatpush1.bf16.msra.mxu0 0
  %1074 = vmatprep.subr.bf16.mxu0 0
  %1075 = vmatpush1.bf16.msra.mxu0 0
  %1076 = vmatprep.subr.bf16.mxu0 0
  %1077 = vmatpush1.bf16.msra.mxu0 0
  %1078 = vmatprep.subr.bf16.mxu0 0
  %1079 = vmatpush1.bf16.msra.mxu0 0
  %1080 = vmatprep.subr.bf16.mxu0 0
  %1081 = vmatpush1.bf16.msra.mxu0 0
  %1082 = vmatprep.subr.bf16.mxu0 0
  %1083 = vmatpush1.bf16.msra.mxu0 0
  %1084 = vmatprep.mubr.bf16.mxu0 0
  %1085 = vmatmul.mubr.bf16.gmra.mrb[0].mxu0 %v471
  %v1086 = vpop.f32.mrb[0].mxu0
  %v1087 = vadd.f32 %v822, %v1086
  %v1088 = vpop.f32.mrb[0].mxu0
  %v1089 = vpop.f32.mrb[0].mxu0
  %v1090 = vadd.f32 %v825, %v1089
  %v1091 = vpop.f32.mrb[0].mxu0
  %1092 = vmatprep.mubr.bf16.mxu0 0
  %1093 = vmatmul.mubr.bf16.gmra.mrb[0].mxu0 %v474
  %v1094 = vpop.f32.mrb[0].mxu0
  %v1095 = vadd.f32 %v830, %v1094
  %v1096 = vpop.f32.mrb[0].mxu0
  %v1097 = vpop.f32.mrb[0].mxu0
  %v1098 = vadd.f32 %v833, %v1097
  %v1099 = vpop.f32.mrb[0].mxu0
  %1100 = vmatprep.mubr.bf16.mxu0 0
  %1101 = vmatmul.mubr.bf16.gmra.mrb[0].mxu0 %v477
  %v1102 = vpop.f32.mrb[0].mxu0
  %v1103 = vadd.f32 %v838, %v1102
  %v1104 = vpop.f32.mrb[0].mxu0
  %v1105 = vpop.f32.mrb[0].mxu0
  %v1106 = vadd.f32 %v841, %v1105
  %v1107 = vpop.f32.mrb[0].mxu0
  %1108 = vmatprep.mubr.bf16.mxu0 0
  %1109 = vmatmul.mubr.bf16.gmra.mrb[0].mxu0 %v480
  %v1110 = vpop.f32.mrb[0].mxu0
  %v1111 = vadd.f32 %v846, %v1110
  %v1112 = vpop.f32.mrb[0].mxu0
  %v1113 = vpop.f32.mrb[0].mxu0
  %v1114 = vadd.f32 %v849, %v1113
  %v1115 = vpop.f32.mrb[0].mxu0
  %1116 = vmatprep.mubr.bf16.mxu0 0
  %1117 = vmatmul.mubr.bf16.gmra.mrb[0].mxu0 %v483
  %v1118 = vpop.f32.mrb[0].mxu0
  %v1119 = vadd.f32 %v854, %v1118
  %v1120 = vpop.f32.mrb[0].mxu0
  %v1121 = vpop.f32.mrb[0].mxu0
  %v1122 = vadd.f32 %v857, %v1121
  %v1123 = vpop.f32.mrb[0].mxu0
  %1124 = vmatprep.mubr.bf16.mxu0 0
  %1125 = vmatmul.mubr.bf16.gmra.mrb[0].mxu0 %v486
  %v1126 = vpop.f32.mrb[0].mxu0
  %v1127 = vadd.f32 %v862, %v1126
  %v1128 = vpop.f32.mrb[0].mxu0
  %v1129 = vpop.f32.mrb[0].mxu0
  %v1130 = vadd.f32 %v865, %v1129
  %v1131 = vpop.f32.mrb[0].mxu0
  %1132 = vmatprep.mubr.bf16.mxu0 0
  %1133 = vmatmul.mubr.bf16.gmra.mrb[0].mxu0 %v489
  %v1134 = vpop.f32.mrb[0].mxu0
  %v1135 = vadd.f32 %v870, %v1134
  %v1136 = vpop.f32.mrb[0].mxu0
  %v1137 = vpop.f32.mrb[0].mxu0
  %v1138 = vadd.f32 %v873, %v1137
  %v1139 = vpop.f32.mrb[0].mxu0
  %1140 = vmatprep.mubr.bf16.mxu0 0
  %1141 = vmatmul.mubr.bf16.gmra.mrb[0].mxu0 %v492
  %v1142 = vpop.f32.mrb[0].mxu0
  %v1143 = vadd.f32 %v878, %v1142
  %v1144 = vpop.f32.mrb[0].mxu0
  %v1145 = vpop.f32.mrb[0].mxu0
  %v1146 = vadd.f32 %v881, %v1145
  %v1147 = vpop.f32.mrb[0].mxu0
  %1148 = vmatprep.mubr.bf16.mxu0 0
  %1149 = vmatmul.mubr.bf16.gmra.mrb[0].mxu0 %v495
  %v1150 = vpop.f32.mrb[0].mxu0
  %v1151 = vadd.f32 %v886, %v1150
  %v1152 = vpop.f32.mrb[0].mxu0
  %v1153 = vpop.f32.mrb[0].mxu0
  %v1154 = vadd.f32 %v889, %v1153
  %v1155 = vpop.f32.mrb[0].mxu0
  %1156 = vmatprep.mubr.bf16.mxu0 0
  %1157 = vmatmul.mubr.bf16.gmra.mrb[0].mxu0 %v498
  %v1158 = vpop.f32.mrb[0].mxu0
  %v1159 = vadd.f32 %v894, %v1158
  %v1160 = vpop.f32.mrb[0].mxu0
  %v1161 = vpop.f32.mrb[0].mxu0
  %v1162 = vadd.f32 %v897, %v1161
  %v1163 = vpop.f32.mrb[0].mxu0
  %1164 = vmatprep.mubr.bf16.mxu0 0
  %1165 = vmatmul.mubr.bf16.gmra.mrb[0].mxu0 %v501
  %v1166 = vpop.f32.mrb[0].mxu0
  %v1167 = vadd.f32 %v902, %v1166
  %v1168 = vpop.f32.mrb[0].mxu0
  %v1169 = vpop.f32.mrb[0].mxu0
  %v1170 = vadd.f32 %v905, %v1169
  %v1171 = vpop.f32.mrb[0].mxu0
  %1172 = vmatprep.mubr.bf16.mxu0 0
  %1173 = vmatmul.mubr.bf16.gmra.mrb[0].mxu0 %v504
  %v1174 = vpop.f32.mrb[0].mxu0
  %v1175 = vadd.f32 %v910, %v1174
  %v1176 = vpop.f32.mrb[0].mxu0
  %v1177 = vpop.f32.mrb[0].mxu0
  %v1178 = vadd.f32 %v913, %v1177
  %v1179 = vpop.f32.mrb[0].mxu0
  %1180 = vmatprep.mubr.bf16.mxu0 0
  %1181 = vmatmul.mubr.bf16.gmra.mrb[0].mxu0 %v507
  %v1182 = vpop.f32.mrb[0].mxu0
  %v1183 = vadd.f32 %v918, %v1182
  %v1184 = vpop.f32.mrb[0].mxu0
  %v1185 = vpop.f32.mrb[0].mxu0
  %v1186 = vadd.f32 %v921, %v1185
  %v1187 = vpop.f32.mrb[0].mxu0
  %1188 = vmatprep.mubr.bf16.mxu0 0
  %1189 = vmatmul.mubr.bf16.gmra.mrb[0].mxu0 %v510
  %v1190 = vpop.f32.mrb[0].mxu0
  %v1191 = vadd.f32 %v926, %v1190
  %v1192 = vpop.f32.mrb[0].mxu0
  %v1193 = vpop.f32.mrb[0].mxu0
  %v1194 = vadd.f32 %v929, %v1193
  %v1195 = vpop.f32.mrb[0].mxu0
  %1196 = vmatprep.mubr.bf16.mxu0 0
  %1197 = vmatmul.mubr.bf16.gmra.mrb[0].mxu0 %v513
  %v1198 = vpop.f32.mrb[0].mxu0
  %v1199 = vadd.f32 %v934, %v1198
  %v1200 = vpop.f32.mrb[0].mxu0
  %v1201 = vpop.f32.mrb[0].mxu0
  %v1202 = vadd.f32 %v937, %v1201
  %v1203 = vpop.f32.mrb[0].mxu0
  %1204 = vmatprep.mubr.bf16.mxu0 0
  %1205 = vmatmul.mubr.bf16.gmra.mrb[0].mxu0 %v516
  %v1206 = vpop.f32.mrb[0].mxu0
  %v1207 = vadd.f32 %v942, %v1206
  %v1208 = vpop.f32.mrb[0].mxu0
  %v1209 = vpop.f32.mrb[0].mxu0
  %v1210 = vadd.f32 %v945, %v1209
  %v1211 = vpop.f32.mrb[0].mxu0
  %1212 = vmatprep.mubr.bf16.mxu0 0
  %1213 = vmatmul.mubr.bf16.gmra.mrb[0].mxu0 %v519
  %v1214 = vpop.f32.mrb[0].mxu0
  %v1215 = vadd.f32 %v950, %v1214
  %v1216 = vpop.f32.mrb[0].mxu0
  %v1217 = vpop.f32.mrb[0].mxu0
  %v1218 = vadd.f32 %v953, %v1217
  %v1219 = vpop.f32.mrb[0].mxu0
  %1220 = vmatprep.mubr.bf16.mxu0 0
  %1221 = vmatmul.mubr.bf16.gmra.mrb[0].mxu0 %v522
  %v1222 = vpop.f32.mrb[0].mxu0
  %v1223 = vadd.f32 %v958, %v1222
  %v1224 = vpop.f32.mrb[0].mxu0
  %v1225 = vpop.f32.mrb[0].mxu0
  %v1226 = vadd.f32 %v961, %v1225
  %v1227 = vpop.f32.mrb[0].mxu0
  %1228 = vmatprep.mubr.bf16.mxu0 0
  %1229 = vmatmul.mubr.bf16.gmra.mrb[0].mxu0 %v525
  %v1230 = vpop.f32.mrb[0].mxu0
  %v1231 = vadd.f32 %v966, %v1230
  %v1232 = vpop.f32.mrb[0].mxu0
  %v1233 = vpop.f32.mrb[0].mxu0
  %v1234 = vadd.f32 %v969, %v1233
  %v1235 = vpop.f32.mrb[0].mxu0
  %1236 = vmatprep.mubr.bf16.mxu0 0
  %1237 = vmatmul.mubr.bf16.gmra.mrb[0].mxu0 %v528
  %v1238 = vpop.f32.mrb[0].mxu0
  %v1239 = vadd.f32 %v974, %v1238
  %v1240 = vpop.f32.mrb[0].mxu0
  %v1241 = vpop.f32.mrb[0].mxu0
  %v1242 = vadd.f32 %v977, %v1241
  %v1243 = vpop.f32.mrb[0].mxu0
  %1244 = vmatprep.mubr.bf16.mxu0 0
  %1245 = vmatmul.mubr.bf16.gmra.mrb[0].mxu0 %v531
  %v1246 = vpop.f32.mrb[0].mxu0
  %v1247 = vadd.f32 %v982, %v1246
  %v1248 = vpop.f32.mrb[0].mxu0
  %v1249 = vpop.f32.mrb[0].mxu0
  %v1250 = vadd.f32 %v985, %v1249
  %v1251 = vpop.f32.mrb[0].mxu0
  %1252 = vmatprep.mubr.bf16.mxu0 0
  %1253 = vmatmul.mubr.bf16.gmra.mrb[0].mxu0 %v534
  %v1254 = vpop.f32.mrb[0].mxu0
  %v1255 = vadd.f32 %v990, %v1254
  %v1256 = vpop.f32.mrb[0].mxu0
  %v1257 = vpop.f32.mrb[0].mxu0
  %v1258 = vadd.f32 %v993, %v1257
  %v1259 = vpop.f32.mrb[0].mxu0
  %1260 = vmatprep.mubr.bf16.mxu0 0
  %1261 = vmatmul.mubr.bf16.gmra.mrb[0].mxu0 %v537
  %v1262 = vpop.f32.mrb[0].mxu0
  %v1263 = vadd.f32 %v998, %v1262
  %v1264 = vpop.f32.mrb[0].mxu0
  %v1265 = vpop.f32.mrb[0].mxu0
  %v1266 = vadd.f32 %v1001, %v1265
  %v1267 = vpop.f32.mrb[0].mxu0
  %1268 = vmatprep.mubr.bf16.mxu0 0
  %1269 = vmatmul.mubr.bf16.gmra.mrb[0].mxu0 %v540
  %v1270 = vpop.f32.mrb[0].mxu0
  %v1271 = vadd.f32 %v1006, %v1270
  %v1272 = vpop.f32.mrb[0].mxu0
  %v1273 = vpop.f32.mrb[0].mxu0
  %v1274 = vadd.f32 %v1009, %v1273
  %v1275 = vpop.f32.mrb[0].mxu0
  %1276 = vmatprep.mubr.bf16.mxu0 0
  %1277 = vmatmul.mubr.bf16.gmra.mrb[0].mxu0 %v543
  %v1278 = vpop.f32.mrb[0].mxu0
  %v1279 = vadd.f32 %v1014, %v1278
  %v1280 = vpop.f32.mrb[0].mxu0
  %v1281 = vpop.f32.mrb[0].mxu0
  %v1282 = vadd.f32 %v1017, %v1281
  %v1283 = vpop.f32.mrb[0].mxu0
  %1284 = vmatprep.mubr.bf16.mxu0 0
  %1285 = vmatmul.mubr.bf16.gmra.mrb[0].mxu0 %v546
  %v1286 = vpop.f32.mrb[0].mxu0
  %v1287 = vadd.f32 %v1022, %v1286
  %v1288 = vpop.f32.mrb[0].mxu0
  %v1289 = vpop.f32.mrb[0].mxu0
  %v1290 = vadd.f32 %v1025, %v1289
  %v1291 = vpop.f32.mrb[0].mxu0
  %1292 = vmatprep.mubr.bf16.mxu0 0
  %1293 = vmatmul.mubr.bf16.gmra.mrb[0].mxu0 %v549
  %v1294 = vpop.f32.mrb[0].mxu0
  %v1295 = vadd.f32 %v1030, %v1294
  %v1296 = vpop.f32.mrb[0].mxu0
  %v1297 = vpop.f32.mrb[0].mxu0
  %v1298 = vadd.f32 %v1033, %v1297
  %v1299 = vpop.f32.mrb[0].mxu0
  %1300 = vmatprep.mubr.bf16.mxu0 0
  %1301 = vmatmul.mubr.bf16.gmra.mrb[0].mxu0 %v552
  %v1302 = vpop.f32.mrb[0].mxu0
  %v1303 = vadd.f32 %v1038, %v1302
  %v1304 = vpop.f32.mrb[0].mxu0
  %v1305 = vpop.f32.mrb[0].mxu0
  %v1306 = vadd.f32 %v1041, %v1305
  %v1307 = vpop.f32.mrb[0].mxu0
  %1308 = vmatprep.mubr.bf16.mxu0 0
  %1309 = vmatmul.mubr.bf16.gmra.mrb[0].mxu0 %v555
  %v1310 = vpop.f32.mrb[0].mxu0
  %v1311 = vadd.f32 %v1046, %v1310
  %v1312 = vpop.f32.mrb[0].mxu0
  %v1313 = vpop.f32.mrb[0].mxu0
  %v1314 = vadd.f32 %v1049, %v1313
  %v1315 = vpop.f32.mrb[0].mxu0
  %1316 = vdwg.mxu0
  %1317 = vst [vmem:[%s2] sm:$0xff] %v1087
  %1318 = vst [vmem:[%s2 + $0x8] sm:$0xff] %v1090
  %1319 = vst [vmem:[%s2 + $0x10] sm:$0xff] %v1095
  %1320 = vst [vmem:[%s2 + $0x18] sm:$0xff] %v1098
  %1321 = vst [vmem:[%s2 + $0x20] sm:$0xff] %v1103
  %1322 = vst [vmem:[%s2 + $0x28] sm:$0xff] %v1106
  %1323 = vst [vmem:[%s2 + $0x30] sm:$0xff] %v1111
  %1324 = vst [vmem:[%s2 + $0x38] sm:$0xff] %v1114
  %1325 = vst [vmem:[%s2 + $0x40] sm:$0xff] %v1119
  %1326 = vst [vmem:[%s2 + $0x48] sm:$0xff] %v1122
  %1327 = vst [vmem:[%s2 + $0x50] sm:$0xff] %v1127
  %1328 = vst [vmem:[%s2 + $0x58] sm:$0xff] %v1130
  %1329 = vst [vmem:[%s2 + $0x60] sm:$0xff] %v1135
  %1330 = vst [vmem:[%s2 + $0x68] sm:$0xff] %v1138
  %1331 = vst [vmem:[%s2 + $0x70] sm:$0xff] %v1143
  %1332 = vst [vmem:[%s2 + $0x78] sm:$0xff] %v1146
  %1333 = vst [vmem:[%s2 + $0x80] sm:$0xff] %v1151
  %1334 = vst [vmem:[%s2 + $0x88] sm:$0xff] %v1154
  %1335 = vst [vmem:[%s2 + $0x90] sm:$0xff] %v1159
  %1336 = vst [vmem:[%s2 + $0x98] sm:$0xff] %v1162
  %1337 = vst [vmem:[%s2 + $0xa0] sm:$0xff] %v1167
  %1338 = vst [vmem:[%s2 + $0xa8] sm:$0xff] %v1170
  %1339 = vst [vmem:[%s2 + $0xb0] sm:$0xff] %v1175
  %1340 = vst [vmem:[%s2 + $0xb8] sm:$0xff] %v1178
  %1341 = vst [vmem:[%s2 + $0xc0] sm:$0xff] %v1183
  %1342 = vst [vmem:[%s2 + $0xc8] sm:$0xff] %v1186
  %1343 = vst [vmem:[%s2 + $0xd0] sm:$0xff] %v1191
  %1344 = vst [vmem:[%s2 + $0xd8] sm:$0xff] %v1194
  %1345 = vst [vmem:[%s2 + $0xe0] sm:$0xff] %v1199
  %1346 = vst [vmem:[%s2 + $0xe8] sm:$0xff] %v1202
  %1347 = vst [vmem:[%s2 + $0xf0] sm:$0xff] %v1207
  %1348 = vst [vmem:[%s2 + $0xf8] sm:$0xff] %v1210
  %1349 = vst [vmem:[%s2 + $0x100] sm:$0xff] %v1215
  %1350 = vst [vmem:[%s2 + $0x108] sm:$0xff] %v1218
  %1351 = vst [vmem:[%s2 + $0x110] sm:$0xff] %v1223
  %1352 = vst [vmem:[%s2 + $0x118] sm:$0xff] %v1226
  %1353 = vst [vmem:[%s2 + $0x120] sm:$0xff] %v1231
  %1354 = vst [vmem:[%s2 + $0x128] sm:$0xff] %v1234
  %1355 = vst [vmem:[%s2 + $0x130] sm:$0xff] %v1239
  %1356 = vst [vmem:[%s2 + $0x138] sm:$0xff] %v1242
  %1357 = vst [vmem:[%s2 + $0x140] sm:$0xff] %v1247
  %1358 = vst [vmem:[%s2 + $0x148] sm:$0xff] %v1250
  %1359 = vst [vmem:[%s2 + $0x150] sm:$0xff] %v1255
  %1360 = vst [vmem:[%s2 + $0x158] sm:$0xff] %v1258
  %1361 = vst [vmem:[%s2 + $0x160] sm:$0xff] %v1263
  %1362 = vst [vmem:[%s2 + $0x168] sm:$0xff] %v1266
  %1363 = vst [vmem:[%s2 + $0x170] sm:$0xff] %v1271
  %1364 = vst [vmem:[%s2 + $0x178] sm:$0xff] %v1274
  %1365 = vst [vmem:[%s2 + $0x180] sm:$0xff] %v1279
  %1366 = vst [vmem:[%s2 + $0x188] sm:$0xff] %v1282
  %1367 = vst [vmem:[%s2 + $0x190] sm:$0xff] %v1287
  %1368 = vst [vmem:[%s2 + $0x198] sm:$0xff] %v1290
  %1369 = vst [vmem:[%s2 + $0x1a0] sm:$0xff] %v1295
  %1370 = vst [vmem:[%s2 + $0x1a8] sm:$0xff] %v1298
  %1371 = vst [vmem:[%s2 + $0x1b0] sm:$0xff] %v1303
  %1372 = vst [vmem:[%s2 + $0x1b8] sm:$0xff] %v1306
  %1373 = vst [vmem:[%s2 + $0x1c0] sm:$0xff] %v1311
  %1374 = vst [vmem:[%s2 + $0x1c8] sm:$0xff] %v1314
  %v1375 = vadd.f32 %v1087, %v1090
  %v1376 = vadd.f32 %v1375, %v1095
  %v1377 = vadd.f32 %v1376, %v1098
  %v1378 = vadd.f32 %v1377, %v1103
  %v1379 = vadd.f32 %v1378, %v1106
  %v1380 = vadd.f32 %v1379, %v1111
  %v1381 = vadd.f32 %v1380, %v1114
  %v1382 = vadd.f32 %v1381, %v1119
  %v1383 = vadd.f32 %v1382, %v1122
  %v1384 = vadd.f32 %v1383, %v1127
  %v1385 = vadd.f32 %v1384, %v1130
  %v1386 = vadd.f32 %v1385, %v1135
  %v1387 = vadd.f32 %v1386, %v1138
  %v1388 = vadd.f32 %v1387, %v1143
  %v1389 = vadd.f32 %v1388, %v1146
  %v1390 = vadd.f32 %v1389, %v1151
  %v1391 = vadd.f32 %v1390, %v1154
  %v1392 = vadd.f32 %v1391, %v1159
  %v1393 = vadd.f32 %v1392, %v1162
  %v1394 = vadd.f32 %v1393, %v1167
  %v1395 = vadd.f32 %v1394, %v1170
  %v1396 = vadd.f32 %v1395, %v1175
  %v1397 = vadd.f32 %v1396, %v1178
  %v1398 = vadd.f32 %v1397, %v1183
  %v1399 = vadd.f32 %v1398, %v1186
  %v1400 = vadd.f32 %v1399, %v1191
  %v1401 = vadd.f32 %v1400, %v1194
  %v1402 = vadd.f32 %v1401, %v1199
  %v1403 = vadd.f32 %v1402, %v1202
  %v1404 = vadd.f32 %v1403, %v1207
  %v1405 = vadd.f32 %v1404, %v1210
  %v1406 = vadd.f32 %v1405, %v1215
  %v1407 = vadd.f32 %v1406, %v1218
  %v1408 = vadd.f32 %v1407, %v1223
  %v1409 = vadd.f32 %v1408, %v1226
  %v1410 = vadd.f32 %v1409, %v1231
  %v1411 = vadd.f32 %v1410, %v1234
  %v1412 = vadd.f32 %v1411, %v1239
  %v1413 = vadd.f32 %v1412, %v1242
  %v1414 = vadd.f32 %v1413, %v1247
  %v1415 = vadd.f32 %v1414, %v1250
  %v1416 = vadd.f32 %v1415, %v1255
  %v1417 = vadd.f32 %v1416, %v1258
  %v1418 = vadd.f32 %v1417, %v1263
  %v1419 = vadd.f32 %v1418, %v1266
  %v1420 = vadd.f32 %v1419, %v1271
  %v1421 = vadd.f32 %v1420, %v1274
  %v1422 = vadd.f32 %v1421, %v1279
  %v1423 = vadd.f32 %v1422, %v1282
  %v1424 = vadd.f32 %v1423, %v1287
  %v1425 = vadd.f32 %v1424, %v1290
  %v1426 = vadd.f32 %v1425, %v1295
  %v1427 = vadd.f32 %v1426, %v1298
  %v1428 = vadd.f32 %v1427, %v1303
  %v1429 = vadd.f32 %v1428, %v1306
  %v1430 = vadd.f32 %v1429, %v1311
  %v1431 = vadd.f32 %v1430, %v1314
  %v1432 = vrot.slane %v1431, 4
  %v1433 = vadd.f32 %v1431, %v1432
  %v1434 = vrot.slane %v1433, 2
  %v1435 = vadd.f32 %v1433, %v1434
  %v1436 = vrot.slane %v1435, 1
  %v1437 = vadd.f32 %v1435, %v1436
  %1438 = vst [vmem:[%s3] sm:$0x1] %v1437
  %v1439 = vmul.f32 %v1087, %v1087
  %v1440 = vmul.f32 %v1090, %v1090
  %v1441 = vmul.f32 %v1095, %v1095
  %v1442 = vmul.f32 %v1098, %v1098
  %v1443 = vmul.f32 %v1103, %v1103
  %v1444 = vmul.f32 %v1106, %v1106
  %v1445 = vmul.f32 %v1111, %v1111
  %v1446 = vmul.f32 %v1114, %v1114
  %v1447 = vmul.f32 %v1119, %v1119
  %v1448 = vmul.f32 %v1122, %v1122
  %v1449 = vmul.f32 %v1127, %v1127
  %v1450 = vmul.f32 %v1130, %v1130
  %v1451 = vmul.f32 %v1135, %v1135
  %v1452 = vmul.f32 %v1138, %v1138
  %v1453 = vmul.f32 %v1143, %v1143
  %v1454 = vmul.f32 %v1146, %v1146
  %v1455 = vmul.f32 %v1151, %v1151
  %v1456 = vmul.f32 %v1154, %v1154
  %v1457 = vmul.f32 %v1159, %v1159
  %v1458 = vmul.f32 %v1162, %v1162
  %v1459 = vmul.f32 %v1167, %v1167
  %v1460 = vmul.f32 %v1170, %v1170
  %v1461 = vmul.f32 %v1175, %v1175
  %v1462 = vmul.f32 %v1178, %v1178
  %v1463 = vmul.f32 %v1183, %v1183
  %v1464 = vmul.f32 %v1186, %v1186
  %v1465 = vmul.f32 %v1191, %v1191
  %v1466 = vmul.f32 %v1194, %v1194
  %v1467 = vmul.f32 %v1199, %v1199
  %v1468 = vmul.f32 %v1202, %v1202
  %v1469 = vmul.f32 %v1207, %v1207
  %v1470 = vmul.f32 %v1210, %v1210
  %v1471 = vmul.f32 %v1215, %v1215
  %v1472 = vmul.f32 %v1218, %v1218
  %v1473 = vmul.f32 %v1223, %v1223
  %v1474 = vmul.f32 %v1226, %v1226
  %v1475 = vmul.f32 %v1231, %v1231
  %v1476 = vmul.f32 %v1234, %v1234
  %v1477 = vmul.f32 %v1239, %v1239
  %v1478 = vmul.f32 %v1242, %v1242
  %v1479 = vmul.f32 %v1247, %v1247
  %v1480 = vmul.f32 %v1250, %v1250
  %v1481 = vmul.f32 %v1255, %v1255
  %v1482 = vmul.f32 %v1258, %v1258
  %v1483 = vmul.f32 %v1263, %v1263
  %v1484 = vmul.f32 %v1266, %v1266
  %v1485 = vmul.f32 %v1271, %v1271
  %v1486 = vmul.f32 %v1274, %v1274
  %v1487 = vmul.f32 %v1279, %v1279
  %v1488 = vmul.f32 %v1282, %v1282
  %v1489 = vmul.f32 %v1287, %v1287
  %v1490 = vmul.f32 %v1290, %v1290
  %v1491 = vmul.f32 %v1295, %v1295
  %v1492 = vmul.f32 %v1298, %v1298
  %v1493 = vmul.f32 %v1303, %v1303
  %v1494 = vmul.f32 %v1306, %v1306
  %v1495 = vmul.f32 %v1311, %v1311
  %v1496 = vmul.f32 %v1314, %v1314
  %v1497 = vadd.f32 %v1439, %v1440
  %v1498 = vadd.f32 %v1497, %v1441
  %v1499 = vadd.f32 %v1498, %v1442
  %v1500 = vadd.f32 %v1499, %v1443
  %v1501 = vadd.f32 %v1500, %v1444
  %v1502 = vadd.f32 %v1501, %v1445
  %v1503 = vadd.f32 %v1502, %v1446
  %v1504 = vadd.f32 %v1503, %v1447
  %v1505 = vadd.f32 %v1504, %v1448
  %v1506 = vadd.f32 %v1505, %v1449
  %v1507 = vadd.f32 %v1506, %v1450
  %v1508 = vadd.f32 %v1507, %v1451
  %v1509 = vadd.f32 %v1508, %v1452
  %v1510 = vadd.f32 %v1509, %v1453
  %v1511 = vadd.f32 %v1510, %v1454
  %v1512 = vadd.f32 %v1511, %v1455
  %v1513 = vadd.f32 %v1512, %v1456
  %v1514 = vadd.f32 %v1513, %v1457
  %v1515 = vadd.f32 %v1514, %v1458
  %v1516 = vadd.f32 %v1515, %v1459
  %v1517 = vadd.f32 %v1516, %v1460
  %v1518 = vadd.f32 %v1517, %v1461
  %v1519 = vadd.f32 %v1518, %v1462
  %v1520 = vadd.f32 %v1519, %v1463
  %v1521 = vadd.f32 %v1520, %v1464
  %v1522 = vadd.f32 %v1521, %v1465
  %v1523 = vadd.f32 %v1522, %v1466
  %v1524 = vadd.f32 %v1523, %v1467
  %v1525 = vadd.f32 %v1524, %v1468
  %v1526 = vadd.f32 %v1525, %v1469
  %v1527 = vadd.f32 %v1526, %v1470
  %v1528 = vadd.f32 %v1527, %v1471
  %v1529 = vadd.f32 %v1528, %v1472
  %v1530 = vadd.f32 %v1529, %v1473
  %v1531 = vadd.f32 %v1530, %v1474
  %v1532 = vadd.f32 %v1531, %v1475
  %v1533 = vadd.f32 %v1532, %v1476
  %v1534 = vadd.f32 %v1533, %v1477
  %v1535 = vadd.f32 %v1534, %v1478
  %v1536 = vadd.f32 %v1535, %v1479
  %v1537 = vadd.f32 %v1536, %v1480
  %v1538 = vadd.f32 %v1537, %v1481
  %v1539 = vadd.f32 %v1538, %v1482
  %v1540 = vadd.f32 %v1539, %v1483
  %v1541 = vadd.f32 %v1540, %v1484
  %v1542 = vadd.f32 %v1541, %v1485
  %v1543 = vadd.f32 %v1542, %v1486
  %v1544 = vadd.f32 %v1543, %v1487
  %v1545 = vadd.f32 %v1544, %v1488
  %v1546 = vadd.f32 %v1545, %v1489
  %v1547 = vadd.f32 %v1546, %v1490
  %v1548 = vadd.f32 %v1547, %v1491
  %v1549 = vadd.f32 %v1548, %v1492
  %v1550 = vadd.f32 %v1549, %v1493
  %v1551 = vadd.f32 %v1550, %v1494
  %v1552 = vadd.f32 %v1551, %v1495
  %v1553 = vadd.f32 %v1552, %v1496
  %v1554 = vrot.slane %v1553, 4
  %v1555 = vadd.f32 %v1553, %v1554
  %v1556 = vrot.slane %v1555, 2
  %v1557 = vadd.f32 %v1555, %v1556
  %v1558 = vrot.slane %v1557, 1
  %v1559 = vadd.f32 %v1557, %v1558
  %1560 = vst [vmem:[%s4] sm:$0x1] %v1559
  // Predicated region
  $region10: #{inception_stem_forward.24} parent=0 // pred_check
    _
  $region11: #{inception_stem_forward.24} parent=0 // pred_check_branch
    %1562 = sbr.rel (0) target = $region13
  $region12: #{inception_stem_forward.24} parent=0 // pred_region
    _
  $region13: #{inception_stem_forward.24} parent=0 // pred_fallthru
    _
  // Predicated region
  $region14: #{inception_stem_forward.24} parent=0 // pred_check
    _
  $region15: #{inception_stem_forward.24} parent=0 // pred_check_branch
    %1564 = sbr.rel (0) target = $region17
  $region16: #{inception_stem_forward.24} parent=0 // pred_region
    _
  $region17: #{inception_stem_forward.24} parent=0 // pred_fallthru
    _
  // Predicated region
  $region18: #{inception_stem_forward.24} parent=0 // pred_check
    _
  $region19: #{inception_stem_forward.24} parent=0 // pred_check_branch
    %1566 = sbr.rel (0) target = $region21
  $region20: #{inception_stem_forward.24} parent=0 // pred_region
    _
  $region21: #{inception_stem_forward.24} parent=0 // pred_fallthru
    _
  // Predicated region
  $region22: #{inception_stem_forward.24} parent=0 // pred_check
    _
  $region23: #{inception_stem_forward.24} parent=0 // pred_check_branch
    %1568 = sbr.rel (0) target = $region25
  $region24: #{inception_stem_forward.24} parent=0 // pred_region
    _
  $region25: #{inception_stem_forward.24} parent=0 // pred_fallthru
    _
  // Predicated region
  $region26: #{inception_stem_forward.24} parent=0 // pred_check
    _
  $region27: #{inception_stem_forward.24} parent=0 // pred_check_branch
    %1570 = sbr.rel (0) target = $region29
  $region28: #{inception_stem_forward.24} parent=0 // pred_region
    _
  $region29: #{inception_stem_forward.24} parent=0 // pred_fallthru
    _
  // Predicated region
  $region30: #{inception_stem_forward.24} parent=0 // pred_check
    _
  $region31: #{inception_stem_forward.24} parent=0 // pred_check_branch
    %1572 = sbr.rel (0) target = $region33
  $region32: #{inception_stem_forward.24} parent=0 // pred_region
    _
  $region33: #{inception_stem_forward.24} parent=0 // pred_fallthru
    _

// kernel: inception_stem_forward.28
$region0: #{inception_stem_forward.28}
  #allocation0 [shape = 'u32[]', space=smem, size = 0x4, offset = 0x4, fixed_abs, tag = 'smem constant byte address 0x4 - core index']
  #allocation1 [shape = 'u32[144,128]{1,0:T(1,128)}', space=vmem, size = 0x12000, scoped, tag = 'internal scratch']
  %s0 = inlined_call_operand.vmem [shape: bf16[112,640], index: 0, kind: input, shape index: {}]
  %s1 = inlined_call_operand.vmem [shape: bf16[640,128], index: 1, kind: input, shape index: {}]
  %s2 = inlined_call_operand.vmem [shape: f32[112,128], index: 2, kind: output, shape index: {0}]
  %s3 = inlined_call_operand.vmem [shape: f32[1,1,128], index: 3, kind: output, shape index: {1}]
  %s4 = inlined_call_operand.vmem [shape: f32[1,1,128], index: 4, kind: output, shape index: {2}]
  %5 = xla_tuple %s2, %s3, %s4
  %s6 = sld [smem:[#allocation0]]
  $region34: #{inception_stem_forward.28} parent=0
    _
  %s8 = ssub.s32 1, %s6
  %s9 = scalar_select 0, %s8, %s6
  // Predicated region
  $region2: #{inception_stem_forward.28} parent=0 // pred_check
    _
  $region3: #{inception_stem_forward.28} parent=0 // pred_check_branch
    %11 = sbr.rel (0) target = $region5
  $region4: #{inception_stem_forward.28} parent=0 // pred_region
    _
  $region5: #{inception_stem_forward.28} parent=0 // pred_fallthru
    _
  // Predicated region
  $region6: #{inception_stem_forward.28} parent=0 // pred_check
    _
  $region7: #{inception_stem_forward.28} parent=0 // pred_check_branch
    %13 = sbr.rel (0) target = $region9
  $region8: #{inception_stem_forward.28} parent=0 // pred_region
    _
  $region9: #{inception_stem_forward.28} parent=0 // pred_fallthru
    _
  %v15 = vld [vmem:[%s0] sm:$0xff]
  %v16 = vld [vmem:[%s0 + $0x8] sm:$0xff]
  %v17 = vld [vmem:[%s0 + $0x10] sm:$0xf]
  %v18 = vld [vmem:[%s0 + $0x14] sm:$0xff]
  %v19 = vld [vmem:[%s0 + $0x1c] sm:$0xff]
  %v20 = vld [vmem:[%s0 + $0x24] sm:$0xf]
  %v21 = vld [vmem:[%s0 + $0x28] sm:$0xff]
  %v22 = vld [vmem:[%s0 + $0x30] sm:$0xff]
  %v23 = vld [vmem:[%s0 + $0x38] sm:$0xf]
  %v24 = vld [vmem:[%s0 + $0x3c] sm:$0xff]
  %v25 = vld [vmem:[%s0 + $0x44] sm:$0xff]
  %v26 = vld [vmem:[%s0 + $0x4c] sm:$0xf]
  %v27 = vld [vmem:[%s0 + $0x50] sm:$0xff]
  %v28 = vld [vmem:[%s0 + $0x58] sm:$0xff]
  %v29 = vld [vmem:[%s0 + $0x60] sm:$0xf]
  %v30 = vld [vmem:[%s0 + $0x64] sm:$0xff]
  %v31 = vld [vmem:[%s0 + $0x6c] sm:$0xff]
  %v32 = vld [vmem:[%s0 + $0x74] sm:$0xf]
  %v33 = vld [vmem:[%s0 + $0x78] sm:$0xff]
  %v34 = vld [vmem:[%s0 + $0x80] sm:$0xff]
  %v35 = vld [vmem:[%s0 + $0x88] sm:$0xf]
  %v36 = vld [vmem:[%s0 + $0x8c] sm:$0xff]
  %v37 = vld [vmem:[%s0 + $0x94] sm:$0xff]
  %v38 = vld [vmem:[%s0 + $0x9c] sm:$0xf]
  %v39 = vld [vmem:[%s0 + $0xa0] sm:$0xff]
  %v40 = vld [vmem:[%s0 + $0xa8] sm:$0xff]
  %v41 = vld [vmem:[%s0 + $0xb0] sm:$0xf]
  %v42 = vld [vmem:[%s0 + $0xb4] sm:$0xff]
  %v43 = vld [vmem:[%s0 + $0xbc] sm:$0xff]
  %v44 = vld [vmem:[%s0 + $0xc4] sm:$0xf]
  %v45 = vld [vmem:[%s0 + $0xc8] sm:$0xff]
  %v46 = vld [vmem:[%s0 + $0xd0] sm:$0xff]
  %v47 = vld [vmem:[%s0 + $0xd8] sm:$0xf]
  %v48 = vld [vmem:[%s0 + $0xdc] sm:$0xff]
  %v49 = vld [vmem:[%s0 + $0xe4] sm:$0xff]
  %v50 = vld [vmem:[%s0 + $0xec] sm:$0xf]
  %v51 = vld [vmem:[%s0 + $0xf0] sm:$0xff]
  %v52 = vld [vmem:[%s0 + $0xf8] sm:$0xff]
  %v53 = vld [vmem:[%s0 + $0x100] sm:$0xf]
  %v54 = vld [vmem:[%s0 + $0x104] sm:$0xff]
  %v55 = vld [vmem:[%s0 + $0x10c] sm:$0xff]
  %v56 = vld [vmem:[%s0 + $0x114] sm:$0xf]
  %v57 = vld [vmem:[%s1] sm:$0xf]
  %v58 = vld [vmem:[%s1 + $0x4] sm:$0xf]
  %v59 = vld [vmem:[%s1 + $0x8] sm:$0xf]
  %v60 = vld [vmem:[%s1 + $0xc] sm:$0xf]
  %v61 = vld [vmem:[%s1 + $0x10] sm:$0xf]
  %v62 = vld [vmem:[%s1 + $0x14] sm:$0xf]
  %v63 = vld [vmem:[%s1 + $0x18] sm:$0xf]
  %v64 = vld [vmem:[%s1 + $0x1c] sm:$0xf]
  %v65 = vld [vmem:[%s1 + $0x20] sm:$0xf]
  %v66 = vld [vmem:[%s1 + $0x24] sm:$0xf]
  %v67 = vld [vmem:[%s1 + $0x28] sm:$0xf]
  %v68 = vld [vmem:[%s1 + $0x2c] sm:$0xf]
  %v69 = vld [vmem:[%s1 + $0x30] sm:$0xf]
  %v70 = vld [vmem:[%s1 + $0x34] sm:$0xf]
  %v71 = vld [vmem:[%s1 + $0x38] sm:$0xf]
  %v72 = vld [vmem:[%s1 + $0x3c] sm:$0xf]
  %v73 = vld [vmem:[%s1 + $0x40] sm:$0xf]
  %v74 = vld [vmem:[%s1 + $0x44] sm:$0xf]
  %v75 = vld [vmem:[%s1 + $0x48] sm:$0xf]
  %v76 = vld [vmem:[%s1 + $0x4c] sm:$0xf]
  %v77 = vld [vmem:[%s1 + $0x50] sm:$0xf]
  %v78 = vld [vmem:[%s1 + $0x54] sm:$0xf]
  %v79 = vld [vmem:[%s1 + $0x58] sm:$0xf]
  %v80 = vld [vmem:[%s1 + $0x5c] sm:$0xf]
  %v81 = vld [vmem:[%s1 + $0x60] sm:$0xf]
  %v82 = vld [vmem:[%s1 + $0x64] sm:$0xf]
  %v83 = vld [vmem:[%s1 + $0x68] sm:$0xf]
  %v84 = vld [vmem:[%s1 + $0x6c] sm:$0xf]
  %v85 = vld [vmem:[%s1 + $0x70] sm:$0xf]
  %v86 = vld [vmem:[%s1 + $0x74] sm:$0xf]
  %v87 = vld [vmem:[%s1 + $0x78] sm:$0xf]
  %v88 = vld [vmem:[%s1 + $0x7c] sm:$0xf]
  %v89 = vld [vmem:[%s1 + $0x80] sm:$0xf]
  %v90 = vld [vmem:[%s1 + $0x84] sm:$0xf]
  %v91 = vld [vmem:[%s1 + $0x88] sm:$0xf]
  %v92 = vld [vmem:[%s1 + $0x8c] sm:$0xf]
  %v93 = vld [vmem:[%s1 + $0x90] sm:$0xf]
  %v94 = vld [vmem:[%s1 + $0x94] sm:$0xf]
  %v95 = vld [vmem:[%s1 + $0x98] sm:$0xf]
  %v96 = vld [vmem:[%s1 + $0x9c] sm:$0xf]
  %v97 = vld [vmem:[%s1 + $0xa0] sm:$0xf]
  %v98 = vld [vmem:[%s1 + $0xa4] sm:$0xf]
  %v99 = vld [vmem:[%s1 + $0xa8] sm:$0xf]
  %v100 = vld [vmem:[%s1 + $0xac] sm:$0xf]
  %v101 = vld [vmem:[%s1 + $0xb0] sm:$0xf]
  %v102 = vld [vmem:[%s1 + $0xb4] sm:$0xf]
  %v103 = vld [vmem:[%s1 + $0xb8] sm:$0xf]
  %v104 = vld [vmem:[%s1 + $0xbc] sm:$0xf]
  %v105 = vld [vmem:[%s1 + $0xc0] sm:$0xf]
  %v106 = vld [vmem:[%s1 + $0xc4] sm:$0xf]
  %v107 = vld [vmem:[%s1 + $0xc8] sm:$0xf]
  %v108 = vld [vmem:[%s1 + $0xcc] sm:$0xf]
  %v109 = vld [vmem:[%s1 + $0xd0] sm:$0xf]
  %v110 = vld [vmem:[%s1 + $0xd4] sm:$0xf]
  %v111 = vld [vmem:[%s1 + $0xd8] sm:$0xf]
  %v112 = vld [vmem:[%s1 + $0xdc] sm:$0xf]
  %v113 = vld [vmem:[%s1 + $0xe0] sm:$0xf]
  %v114 = vld [vmem:[%s1 + $0xe4] sm:$0xf]
  %v115 = vld [vmem:[%s1 + $0xe8] sm:$0xf]
  %v116 = vld [vmem:[%s1 + $0xec] sm:$0xf]
  %v117 = vld [vmem:[%s1 + $0xf0] sm:$0xf]
  %v118 = vld [vmem:[%s1 + $0xf4] sm:$0xf]
  %v119 = vld [vmem:[%s1 + $0xf8] sm:$0xf]
  %v120 = vld [vmem:[%s1 + $0xfc] sm:$0xf]
  %v121 = vld [vmem:[%s1 + $0x100] sm:$0xf]
  %v122 = vld [vmem:[%s1 + $0x104] sm:$0xf]
  %v123 = vld [vmem:[%s1 + $0x108] sm:$0xf]
  %v124 = vld [vmem:[%s1 + $0x10c] sm:$0xf]
  %v125 = vld [vmem:[%s1 + $0x110] sm:$0xf]
  %v126 = vld [vmem:[%s1 + $0x114] sm:$0xf]
  %v127 = vld [vmem:[%s1 + $0x118] sm:$0xf]
  %v128 = vld [vmem:[%s1 + $0x11c] sm:$0xf]
  %v129 = vld [vmem:[%s1 + $0x120] sm:$0xf]
  %v130 = vld [vmem:[%s1 + $0x124] sm:$0xf]
  %v131 = vld [vmem:[%s1 + $0x128] sm:$0xf]
  %v132 = vld [vmem:[%s1 + $0x12c] sm:$0xf]
  %v133 = vld [vmem:[%s1 + $0x130] sm:$0xf]
  %v134 = vld [vmem:[%s1 + $0x134] sm:$0xf]
  %v135 = vld [vmem:[%s1 + $0x138] sm:$0xf]
  %v136 = vld [vmem:[%s1 + $0x13c] sm:$0xf]
  %v179 = vunpack.c.l.b16 %v15
  %v180 = vunpack.c.h.b16 %v15
  %v181 = vunpack.c.l.b16 %v16
  %v182 = vunpack.c.h.b16 %v16
  %v183 = vunpack.c.l.b16 %v17
  %v184 = vunpack.c.l.b16 %v18
  %v185 = vunpack.c.h.b16 %v18
  %v186 = vunpack.c.l.b16 %v19
  %v187 = vunpack.c.h.b16 %v19
  %v188 = vunpack.c.l.b16 %v20
  %v189 = vunpack.c.l.b16 %v21
  %v190 = vunpack.c.h.b16 %v21
  %v191 = vunpack.c.l.b16 %v22
  %v192 = vunpack.c.h.b16 %v22
  %v193 = vunpack.c.l.b16 %v23
  %v194 = vunpack.c.l.b16 %v24
  %v195 = vunpack.c.h.b16 %v24
  %v196 = vunpack.c.l.b16 %v25
  %v197 = vunpack.c.h.b16 %v25
  %v198 = vunpack.c.l.b16 %v26
  %v199 = vunpack.c.l.b16 %v27
  %v200 = vunpack.c.h.b16 %v27
  %v201 = vunpack.c.l.b16 %v28
  %v202 = vunpack.c.h.b16 %v28
  %v203 = vunpack.c.l.b16 %v29
  %v204 = vunpack.c.l.b16 %v30
  %v205 = vunpack.c.h.b16 %v30
  %v206 = vunpack.c.l.b16 %v31
  %v207 = vunpack.c.h.b16 %v31
  %v208 = vunpack.c.l.b16 %v32
  %v209 = vunpack.c.l.b16 %v33
  %v210 = vunpack.c.h.b16 %v33
  %v211 = vunpack.c.l.b16 %v34
  %v212 = vunpack.c.h.b16 %v34
  %v213 = vunpack.c.l.b16 %v35
  %v214 = vunpack.c.l.b16 %v36
  %v215 = vunpack.c.h.b16 %v36
  %v216 = vunpack.c.l.b16 %v37
  %v217 = vunpack.c.h.b16 %v37
  %v218 = vunpack.c.l.b16 %v38
  %v219 = vunpack.c.l.b16 %v39
  %v220 = vunpack.c.h.b16 %v39
  %v221 = vunpack.c.l.b16 %v40
  %v222 = vunpack.c.h.b16 %v40
  %v223 = vunpack.c.l.b16 %v41
  %v224 = vunpack.c.l.b16 %v42
  %v225 = vunpack.c.h.b16 %v42
  %v226 = vunpack.c.l.b16 %v43
  %v227 = vunpack.c.h.b16 %v43
  %v228 = vunpack.c.l.b16 %v44
  %v229 = vunpack.c.l.b16 %v45
  %v230 = vunpack.c.h.b16 %v45
  %v231 = vunpack.c.l.b16 %v46
  %v232 = vunpack.c.h.b16 %v46
  %v233 = vunpack.c.l.b16 %v47
  %v234 = vunpack.c.l.b16 %v48
  %v235 = vunpack.c.h.b16 %v48
  %v236 = vunpack.c.l.b16 %v49
  %v237 = vunpack.c.h.b16 %v49
  %v238 = vunpack.c.l.b16 %v50
  %v239 = vunpack.c.l.b16 %v51
  %v240 = vunpack.c.h.b16 %v51
  %v241 = vunpack.c.l.b16 %v52
  %v242 = vunpack.c.h.b16 %v52
  %v243 = vunpack.c.l.b16 %v53
  %v244 = vunpack.c.l.b16 %v54
  %v245 = vunpack.c.h.b16 %v54
  %v246 = vunpack.c.l.b16 %v55
  %v247 = vunpack.c.h.b16 %v55
  %v248 = vunpack.c.l.b16 %v56
  %v249 = vpack.c.b16 %v184, %v179
  %v250 = vpack.c.b16 %v185, %v180
  %v251 = vpack.c.b16 %v186, %v181
  %v252 = vpack.c.b16 %v187, %v182
  %v253 = vpack.c.b16 %v188, %v183
  %v254 = vpack.c.b16 %v194, %v189
  %v255 = vpack.c.b16 %v195, %v190
  %v256 = vpack.c.b16 %v196, %v191
  %v257 = vpack.c.b16 %v197, %v192
  %v258 = vpack.c.b16 %v198, %v193
  %v259 = vpack.c.b16 %v204, %v199
  %v260 = vpack.c.b16 %v205, %v200
  %v261 = vpack.c.b16 %v206, %v201
  %v262 = vpack.c.b16 %v207, %v202
  %v263 = vpack.c.b16 %v208, %v203
  %v264 = vpack.c.b16 %v214, %v209
  %v265 = vpack.c.b16 %v215, %v210
  %v266 = vpack.c.b16 %v216, %v211
  %v267 = vpack.c.b16 %v217, %v212
  %v268 = vpack.c.b16 %v218, %v213
  %v269 = vpack.c.b16 %v224, %v219
  %v270 = vpack.c.b16 %v225, %v220
  %v271 = vpack.c.b16 %v226, %v221
  %v272 = vpack.c.b16 %v227, %v222
  %v273 = vpack.c.b16 %v228, %v223
  %v274 = vpack.c.b16 %v234, %v229
  %v275 = vpack.c.b16 %v235, %v230
  %v276 = vpack.c.b16 %v236, %v231
  %v277 = vpack.c.b16 %v237, %v232
  %v278 = vpack.c.b16 %v238, %v233
  %v279 = vpack.c.b16 %v244, %v239
  %v280 = vpack.c.b16 %v245, %v240
  %v281 = vpack.c.b16 %v246, %v241
  %v282 = vpack.c.b16 %v247, %v242
  %v283 = vpack.c.b16 %v248, %v243
  %v399 = vunpack.c.l.b16 %v57
  %v400 = vunpack.c.l.b16 %v58
  %v401 = vunpack.c.l.b16 %v59
  %v402 = vunpack.c.l.b16 %v60
  %v403 = vunpack.c.l.b16 %v61
  %v404 = vunpack.c.l.b16 %v62
  %v405 = vunpack.c.l.b16 %v63
  %v406 = vunpack.c.l.b16 %v64
  %v407 = vunpack.c.l.b16 %v65
  %v408 = vunpack.c.l.b16 %v66
  %v409 = vunpack.c.l.b16 %v67
  %v410 = vunpack.c.l.b16 %v68
  %v411 = vunpack.c.l.b16 %v69
  %v412 = vunpack.c.l.b16 %v70
  %v413 = vunpack.c.l.b16 %v71
  %v414 = vunpack.c.l.b16 %v72
  %v415 = vunpack.c.l.b16 %v73
  %v416 = vunpack.c.l.b16 %v74
  %v417 = vunpack.c.l.b16 %v75
  %v418 = vunpack.c.l.b16 %v76
  %v419 = vunpack.c.l.b16 %v77
  %v420 = vunpack.c.l.b16 %v78
  %v421 = vunpack.c.l.b16 %v79
  %v422 = vunpack.c.l.b16 %v80
  %v423 = vunpack.c.l.b16 %v81
  %v424 = vunpack.c.l.b16 %v82
  %v425 = vunpack.c.l.b16 %v83
  %v426 = vunpack.c.l.b16 %v84
  %v427 = vunpack.c.l.b16 %v85
  %v428 = vunpack.c.l.b16 %v86
  %v429 = vunpack.c.l.b16 %v87
  %v430 = vunpack.c.l.b16 %v88
  %v431 = vunpack.c.l.b16 %v89
  %v432 = vunpack.c.l.b16 %v90
  %v433 = vunpack.c.l.b16 %v91
  %v434 = vunpack.c.l.b16 %v92
  %v435 = vunpack.c.l.b16 %v93
  %v436 = vunpack.c.l.b16 %v94
  %v437 = vunpack.c.l.b16 %v95
  %v438 = vunpack.c.l.b16 %v96
  %v439 = vunpack.c.l.b16 %v97
  %v440 = vunpack.c.l.b16 %v98
  %v441 = vunpack.c.l.b16 %v99
  %v442 = vunpack.c.l.b16 %v100
  %v443 = vunpack.c.l.b16 %v101
  %v444 = vunpack.c.l.b16 %v102
  %v445 = vunpack.c.l.b16 %v103
  %v446 = vunpack.c.l.b16 %v104
  %v447 = vunpack.c.l.b16 %v105
  %v448 = vunpack.c.l.b16 %v106
  %v449 = vunpack.c.l.b16 %v107
  %v450 = vunpack.c.l.b16 %v108
  %v451 = vunpack.c.l.b16 %v109
  %v452 = vunpack.c.l.b16 %v110
  %v453 = vunpack.c.l.b16 %v111
  %v454 = vunpack.c.l.b16 %v112
  %v455 = vunpack.c.l.b16 %v113
  %v456 = vunpack.c.l.b16 %v114
  %v457 = vunpack.c.l.b16 %v115
  %v458 = vunpack.c.l.b16 %v116
  %v459 = vunpack.c.l.b16 %v117
  %v460 = vunpack.c.l.b16 %v118
  %v461 = vunpack.c.l.b16 %v119
  %v462 = vunpack.c.l.b16 %v120
  %v463 = vunpack.c.l.b16 %v121
  %v464 = vunpack.c.l.b16 %v122
  %v465 = vunpack.c.l.b16 %v123
  %v466 = vunpack.c.l.b16 %v124
  %v467 = vunpack.c.l.b16 %v125
  %v468 = vunpack.c.l.b16 %v126
  %v469 = vunpack.c.l.b16 %v127
  %v470 = vunpack.c.l.b16 %v128
  %v471 = vunpack.c.l.b16 %v129
  %v472 = vunpack.c.l.b16 %v130
  %v473 = vunpack.c.l.b16 %v131
  %v474 = vunpack.c.l.b16 %v132
  %v475 = vunpack.c.l.b16 %v133
  %v476 = vunpack.c.l.b16 %v134
  %v477 = vunpack.c.l.b16 %v135
  %v478 = vunpack.c.l.b16 %v136
  %v479 = vpack.c.b16 %v400, %v399
  %v480 = vpack.c.b16 %v402, %v401
  %v481 = vpack.c.b16 %v404, %v403
  %v482 = vpack.c.b16 %v406, %v405
  %v483 = vpack.c.b16 %v408, %v407
  %v484 = vpack.c.b16 %v410, %v409
  %v485 = vpack.c.b16 %v412, %v411
  %v486 = vpack.c.b16 %v414, %v413
  %v487 = vpack.c.b16 %v416, %v415
  %v488 = vpack.c.b16 %v418, %v417
  %v489 = vpack.c.b16 %v420, %v419
  %v490 = vpack.c.b16 %v422, %v421
  %v491 = vpack.c.b16 %v424, %v423
  %v492 = vpack.c.b16 %v426, %v425
  %v493 = vpack.c.b16 %v428, %v427
  %v494 = vpack.c.b16 %v430, %v429
  %v495 = vpack.c.b16 %v432, %v431
  %v496 = vpack.c.b16 %v434, %v433
  %v497 = vpack.c.b16 %v436, %v435
  %v498 = vpack.c.b16 %v438, %v437
  %v499 = vpack.c.b16 %v440, %v439
  %v500 = vpack.c.b16 %v442, %v441
  %v501 = vpack.c.b16 %v444, %v443
  %v502 = vpack.c.b16 %v446, %v445
  %v503 = vpack.c.b16 %v448, %v447
  %v504 = vpack.c.b16 %v450, %v449
  %v505 = vpack.c.b16 %v452, %v451
  %v506 = vpack.c.b16 %v454, %v453
  %v507 = vpack.c.b16 %v456, %v455
  %v508 = vpack.c.b16 %v458, %v457
  %v509 = vpack.c.b16 %v460, %v459
  %v510 = vpack.c.b16 %v462, %v461
  %v511 = vpack.c.b16 %v464, %v463
  %v512 = vpack.c.b16 %v466, %v465
  %v513 = vpack.c.b16 %v468, %v467
  %v514 = vpack.c.b16 %v470, %v469
  %v515 = vpack.c.b16 %v472, %v471
  %v516 = vpack.c.b16 %v474, %v473
  %v517 = vpack.c.b16 %v476, %v475
  %v518 = vpack.c.b16 %v478, %v477
  %559 = vmatprep.subr.bf16.mxu0 0
  %560 = vmatpush1.bf16.msra.mxu0 %v479
  %561 = vmatprep.subr.bf16.mxu0 0
  %562 = vmatpush1.bf16.msra.mxu0 %v480
  %563 = vmatprep.subr.bf16.mxu0 0
  %564 = vmatpush1.bf16.msra.mxu0 %v481
  %565 = vmatprep.subr.bf16.mxu0 0
  %566 = vmatpush1.bf16.msra.mxu0 %v482
  %567 = vmatprep.subr.bf16.mxu0 0
  %568 = vmatpush1.bf16.msra.mxu0 %v483
  %569 = vmatprep.subr.bf16.mxu0 0
  %570 = vmatpush1.bf16.msra.mxu0 %v484
  %571 = vmatprep.subr.bf16.mxu0 0
  %572 = vmatpush1.bf16.msra.mxu0 %v485
  %573 = vmatprep.subr.bf16.mxu0 0
  %574 = vmatpush1.bf16.msra.mxu0 %v486
  %575 = vmatprep.subr.bf16.mxu0 0
  %576 = vmatpush1.bf16.msra.mxu0 %v487
  %577 = vmatprep.subr.bf16.mxu0 0
  %578 = vmatpush1.bf16.msra.mxu0 %v488
  %579 = vmatprep.subr.bf16.mxu0 0
  %580 = vmatpush1.bf16.msra.mxu0 %v489
  %581 = vmatprep.subr.bf16.mxu0 0
  %582 = vmatpush1.bf16.msra.mxu0 %v490
  %583 = vmatprep.subr.bf16.mxu0 0
  %584 = vmatpush1.bf16.msra.mxu0 %v491
  %585 = vmatprep.subr.bf16.mxu0 0
  %586 = vmatpush1.bf16.msra.mxu0 %v492
  %587 = vmatprep.subr.bf16.mxu0 0
  %588 = vmatpush1.bf16.msra.mxu0 %v493
  %589 = vmatprep.subr.bf16.mxu0 0
  %590 = vmatpush1.bf16.msra.mxu0 %v494
  %591 = vmatprep.mubr.bf16.mxu0 %v250
  %592 = vmatmul.mubr.bf16.gmra.mrb[0].mxu0 %v249
  %v593 = vpop.f32.mrb[0].mxu0
  %v594 = vadd.f32 0.0, %v593
  %v595 = vpop.f32.mrb[0].mxu0
  %v596 = vpop.f32.mrb[0].mxu0
  %v597 = vadd.f32 0.0, %v596
  %v598 = vpop.f32.mrb[0].mxu0
  %599 = vmatprep.mubr.bf16.mxu0 %v255
  %600 = vmatmul.mubr.bf16.gmra.mrb[0].mxu0 %v254
  %v601 = vpop.f32.mrb[0].mxu0
  %v602 = vadd.f32 0.0, %v601
  %v603 = vpop.f32.mrb[0].mxu0
  %v604 = vpop.f32.mrb[0].mxu0
  %v605 = vadd.f32 0.0, %v604
  %v606 = vpop.f32.mrb[0].mxu0
  %607 = vmatprep.mubr.bf16.mxu0 %v260
  %608 = vmatmul.mubr.bf16.gmra.mrb[0].mxu0 %v259
  %v609 = vpop.f32.mrb[0].mxu0
  %v610 = vadd.f32 0.0, %v609
  %v611 = vpop.f32.mrb[0].mxu0
  %v612 = vpop.f32.mrb[0].mxu0
  %v613 = vadd.f32 0.0, %v612
  %v614 = vpop.f32.mrb[0].mxu0
  %615 = vmatprep.mubr.bf16.mxu0 %v265
  %616 = vmatmul.mubr.bf16.gmra.mrb[0].mxu0 %v264
  %v617 = vpop.f32.mrb[0].mxu0
  %v618 = vadd.f32 0.0, %v617
  %v619 = vpop.f32.mrb[0].mxu0
  %v620 = vpop.f32.mrb[0].mxu0
  %v621 = vadd.f32 0.0, %v620
  %v622 = vpop.f32.mrb[0].mxu0
  %623 = vmatprep.mubr.bf16.mxu0 %v270
  %624 = vmatmul.mubr.bf16.gmra.mrb[0].mxu0 %v269
  %v625 = vpop.f32.mrb[0].mxu0
  %v626 = vadd.f32 0.0, %v625
  %v627 = vpop.f32.mrb[0].mxu0
  %v628 = vpop.f32.mrb[0].mxu0
  %v629 = vadd.f32 0.0, %v628
  %v630 = vpop.f32.mrb[0].mxu0
  %631 = vmatprep.mubr.bf16.mxu0 %v275
  %632 = vmatmul.mubr.bf16.gmra.mrb[0].mxu0 %v274
  %v633 = vpop.f32.mrb[0].mxu0
  %v634 = vadd.f32 0.0, %v633
  %v635 = vpop.f32.mrb[0].mxu0
  %v636 = vpop.f32.mrb[0].mxu0
  %v637 = vadd.f32 0.0, %v636
  %v638 = vpop.f32.mrb[0].mxu0
  %639 = vmatprep.mubr.bf16.mxu0 %v280
  %640 = vmatmul.mubr.bf16.gmra.mrb[0].mxu0 %v279
  %v641 = vpop.f32.mrb[0].mxu0
  %v642 = vadd.f32 0.0, %v641
  %v643 = vpop.f32.mrb[0].mxu0
  %v644 = vpop.f32.mrb[0].mxu0
  %v645 = vadd.f32 0.0, %v644
  %v646 = vpop.f32.mrb[0].mxu0
  %647 = vdwg.mxu0
  %648 = vmatprep.subr.bf16.mxu0 0
  %649 = vmatpush1.bf16.msra.mxu0 %v495
  %650 = vmatprep.subr.bf16.mxu0 0
  %651 = vmatpush1.bf16.msra.mxu0 %v496
  %652 = vmatprep.subr.bf16.mxu0 0
  %653 = vmatpush1.bf16.msra.mxu0 %v497
  %654 = vmatprep.subr.bf16.mxu0 0
  %655 = vmatpush1.bf16.msra.mxu0 %v498
  %656 = vmatprep.subr.bf16.mxu0 0
  %657 = vmatpush1.bf16.msra.mxu0 %v499
  %658 = vmatprep.subr.bf16.mxu0 0
  %659 = vmatpush1.bf16.msra.mxu0 %v500
  %660 = vmatprep.subr.bf16.mxu0 0
  %661 = vmatpush1.bf16.msra.mxu0 %v501
  %662 = vmatprep.subr.bf16.mxu0 0
  %663 = vmatpush1.bf16.msra.mxu0 %v502
  %664 = vmatprep.subr.bf16.mxu0 0
  %665 = vmatpush1.bf16.msra.mxu0 %v503
  %666 = vmatprep.subr.bf16.mxu0 0
  %667 = vmatpush1.bf16.msra.mxu0 %v504
  %668 = vmatprep.subr.bf16.mxu0 0
  %669 = vmatpush1.bf16.msra.mxu0 %v505
  %670 = vmatprep.subr.bf16.mxu0 0
  %671 = vmatpush1.bf16.msra.mxu0 %v506
  %672 = vmatprep.subr.bf16.mxu0 0
  %673 = vmatpush1.bf16.msra.mxu0 %v507
  %674 = vmatprep.subr.bf16.mxu0 0
  %675 = vmatpush1.bf16.msra.mxu0 %v508
  %676 = vmatprep.subr.bf16.mxu0 0
  %677 = vmatpush1.bf16.msra.mxu0 %v509
  %678 = vmatprep.subr.bf16.mxu0 0
  %679 = vmatpush1.bf16.msra.mxu0 %v510
  %680 = vmatprep.mubr.bf16.mxu0 %v252
  %681 = vmatmul.mubr.bf16.gmra.mrb[0].mxu0 %v251
  %v682 = vpop.f32.mrb[0].mxu0
  %v683 = vadd.f32 %v594, %v682
  %v684 = vpop.f32.mrb[0].mxu0
  %v685 = vpop.f32.mrb[0].mxu0
  %v686 = vadd.f32 %v597, %v685
  %v687 = vpop.f32.mrb[0].mxu0
  %688 = vmatprep.mubr.bf16.mxu0 %v257
  %689 = vmatmul.mubr.bf16.gmra.mrb[0].mxu0 %v256
  %v690 = vpop.f32.mrb[0].mxu0
  %v691 = vadd.f32 %v602, %v690
  %v692 = vpop.f32.mrb[0].mxu0
  %v693 = vpop.f32.mrb[0].mxu0
  %v694 = vadd.f32 %v605, %v693
  %v695 = vpop.f32.mrb[0].mxu0
  %696 = vmatprep.mubr.bf16.mxu0 %v262
  %697 = vmatmul.mubr.bf16.gmra.mrb[0].mxu0 %v261
  %v698 = vpop.f32.mrb[0].mxu0
  %v699 = vadd.f32 %v610, %v698
  %v700 = vpop.f32.mrb[0].mxu0
  %v701 = vpop.f32.mrb[0].mxu0
  %v702 = vadd.f32 %v613, %v701
  %v703 = vpop.f32.mrb[0].mxu0
  %704 = vmatprep.mubr.bf16.mxu0 %v267
  %705 = vmatmul.mubr.bf16.gmra.mrb[0].mxu0 %v266
  %v706 = vpop.f32.mrb[0].mxu0
  %v707 = vadd.f32 %v618, %v706
  %v708 = vpop.f32.mrb[0].mxu0
  %v709 = vpop.f32.mrb[0].mxu0
  %v710 = vadd.f32 %v621, %v709
  %v711 = vpop.f32.mrb[0].mxu0
  %712 = vmatprep.mubr.bf16.mxu0 %v272
  %713 = vmatmul.mubr.bf16.gmra.mrb[0].mxu0 %v271
  %v714 = vpop.f32.mrb[0].mxu0
  %v715 = vadd.f32 %v626, %v714
  %v716 = vpop.f32.mrb[0].mxu0
  %v717 = vpop.f32.mrb[0].mxu0
  %v718 = vadd.f32 %v629, %v717
  %v719 = vpop.f32.mrb[0].mxu0
  %720 = vmatprep.mubr.bf16.mxu0 %v277
  %721 = vmatmul.mubr.bf16.gmra.mrb[0].mxu0 %v276
  %v722 = vpop.f32.mrb[0].mxu0
  %v723 = vadd.f32 %v634, %v722
  %v724 = vpop.f32.mrb[0].mxu0
  %v725 = vpop.f32.mrb[0].mxu0
  %v726 = vadd.f32 %v637, %v725
  %v727 = vpop.f32.mrb[0].mxu0
  %728 = vmatprep.mubr.bf16.mxu0 %v282
  %729 = vmatmul.mubr.bf16.gmra.mrb[0].mxu0 %v281
  %v730 = vpop.f32.mrb[0].mxu0
  %v731 = vadd.f32 %v642, %v730
  %v732 = vpop.f32.mrb[0].mxu0
  %v733 = vpop.f32.mrb[0].mxu0
  %v734 = vadd.f32 %v645, %v733
  %v735 = vpop.f32.mrb[0].mxu0
  %736 = vdwg.mxu0
  %737 = vmatprep.subr.bf16.mxu0 0
  %738 = vmatpush1.bf16.msra.mxu0 %v511
  %739 = vmatprep.subr.bf16.mxu0 0
  %740 = vmatpush1.bf16.msra.mxu0 %v512
  %741 = vmatprep.subr.bf16.mxu0 0
  %742 = vmatpush1.bf16.msra.mxu0 %v513
  %743 = vmatprep.subr.bf16.mxu0 0
  %744 = vmatpush1.bf16.msra.mxu0 %v514
  %745 = vmatprep.subr.bf16.mxu0 0
  %746 = vmatpush1.bf16.msra.mxu0 %v515
  %747 = vmatprep.subr.bf16.mxu0 0
  %748 = vmatpush1.bf16.msra.mxu0 %v516
  %749 = vmatprep.subr.bf16.mxu0 0
  %750 = vmatpush1.bf16.msra.mxu0 %v517
  %751 = vmatprep.subr.bf16.mxu0 0
  %752 = vmatpush1.bf16.msra.mxu0 %v518
  %753 = vmatprep.subr.bf16.mxu0 0
  %754 = vmatpush1.bf16.msra.mxu0 0
  %755 = vmatprep.subr.bf16.mxu0 0
  %756 = vmatpush1.bf16.msra.mxu0 0
  %757 = vmatprep.subr.bf16.mxu0 0
  %758 = vmatpush1.bf16.msra.mxu0 0
  %759 = vmatprep.subr.bf16.mxu0 0
  %760 = vmatpush1.bf16.msra.mxu0 0
  %761 = vmatprep.subr.bf16.mxu0 0
  %762 = vmatpush1.bf16.msra.mxu0 0
  %763 = vmatprep.subr.bf16.mxu0 0
  %764 = vmatpush1.bf16.msra.mxu0 0
  %765 = vmatprep.subr.bf16.mxu0 0
  %766 = vmatpush1.bf16.msra.mxu0 0
  %767 = vmatprep.subr.bf16.mxu0 0
  %768 = vmatpush1.bf16.msra.mxu0 0
  %769 = vmatprep.mubr.bf16.mxu0 0
  %770 = vmatmul.mubr.bf16.gmra.mrb[0].mxu0 %v253
  %v771 = vpop.f32.mrb[0].mxu0
  %v772 = vadd.f32 %v683, %v771
  %v773 = vpop.f32.mrb[0].mxu0
  %v774 = vpop.f32.mrb[0].mxu0
  %v775 = vadd.f32 %v686, %v774
  %v776 = vpop.f32.mrb[0].mxu0
  %777 = vmatprep.mubr.bf16.mxu0 0
  %778 = vmatmul.mubr.bf16.gmra.mrb[0].mxu0 %v258
  %v779 = vpop.f32.mrb[0].mxu0
  %v780 = vadd.f32 %v691, %v779
  %v781 = vpop.f32.mrb[0].mxu0
  %v782 = vpop.f32.mrb[0].mxu0
  %v783 = vadd.f32 %v694, %v782
  %v784 = vpop.f32.mrb[0].mxu0
  %785 = vmatprep.mubr.bf16.mxu0 0
  %786 = vmatmul.mubr.bf16.gmra.mrb[0].mxu0 %v263
  %v787 = vpop.f32.mrb[0].mxu0
  %v788 = vadd.f32 %v699, %v787
  %v789 = vpop.f32.mrb[0].mxu0
  %v790 = vpop.f32.mrb[0].mxu0
  %v791 = vadd.f32 %v702, %v790
  %v792 = vpop.f32.mrb[0].mxu0
  %793 = vmatprep.mubr.bf16.mxu0 0
  %794 = vmatmul.mubr.bf16.gmra.mrb[0].mxu0 %v268
  %v795 = vpop.f32.mrb[0].mxu0
  %v796 = vadd.f32 %v707, %v795
  %v797 = vpop.f32.mrb[0].mxu0
  %v798 = vpop.f32.mrb[0].mxu0
  %v799 = vadd.f32 %v710, %v798
  %v800 = vpop.f32.mrb[0].mxu0
  %801 = vmatprep.mubr.bf16.mxu0 0
  %802 = vmatmul.mubr.bf16.gmra.mrb[0].mxu0 %v273
  %v803 = vpop.f32.mrb[0].mxu0
  %v804 = vadd.f32 %v715, %v803
  %v805 = vpop.f32.mrb[0].mxu0
  %v806 = vpop.f32.mrb[0].mxu0
  %v807 = vadd.f32 %v718, %v806
  %v808 = vpop.f32.mrb[0].mxu0
  %809 = vmatprep.mubr.bf16.mxu0 0
  %810 = vmatmul.mubr.bf16.gmra.mrb[0].mxu0 %v278
  %v811 = vpop.f32.mrb[0].mxu0
  %v812 = vadd.f32 %v723, %v811
  %v813 = vpop.f32.mrb[0].mxu0
  %v814 = vpop.f32.mrb[0].mxu0
  %v815 = vadd.f32 %v726, %v814
  %v816 = vpop.f32.mrb[0].mxu0
  %817 = vmatprep.mubr.bf16.mxu0 0
  %818 = vmatmul.mubr.bf16.gmra.mrb[0].mxu0 %v283
  %v819 = vpop.f32.mrb[0].mxu0
  %v820 = vadd.f32 %v731, %v819
  %v821 = vpop.f32.mrb[0].mxu0
  %v822 = vpop.f32.mrb[0].mxu0
  %v823 = vadd.f32 %v734, %v822
  %v824 = vpop.f32.mrb[0].mxu0
  %825 = vdwg.mxu0
  %826 = vst [vmem:[%s2] sm:$0xff] %v772
  %827 = vst [vmem:[%s2 + $0x8] sm:$0xff] %v775
  %828 = vst [vmem:[%s2 + $0x10] sm:$0xff] %v780
  %829 = vst [vmem:[%s2 + $0x18] sm:$0xff] %v783
  %830 = vst [vmem:[%s2 + $0x20] sm:$0xff] %v788
  %831 = vst [vmem:[%s2 + $0x28] sm:$0xff] %v791
  %832 = vst [vmem:[%s2 + $0x30] sm:$0xff] %v796
  %833 = vst [vmem:[%s2 + $0x38] sm:$0xff] %v799
  %834 = vst [vmem:[%s2 + $0x40] sm:$0xff] %v804
  %835 = vst [vmem:[%s2 + $0x48] sm:$0xff] %v807
  %836 = vst [vmem:[%s2 + $0x50] sm:$0xff] %v812
  %837 = vst [vmem:[%s2 + $0x58] sm:$0xff] %v815
  %838 = vst [vmem:[%s2 + $0x60] sm:$0xff] %v820
  %839 = vst [vmem:[%s2 + $0x68] sm:$0xff] %v823
  %v840 = vadd.f32 %v772, %v775
  %v841 = vadd.f32 %v840, %v780
  %v842 = vadd.f32 %v841, %v783
  %v843 = vadd.f32 %v842, %v788
  %v844 = vadd.f32 %v843, %v791
  %v845 = vadd.f32 %v844, %v796
  %v846 = vadd.f32 %v845, %v799
  %v847 = vadd.f32 %v846, %v804
  %v848 = vadd.f32 %v847, %v807
  %v849 = vadd.f32 %v848, %v812
  %v850 = vadd.f32 %v849, %v815
  %v851 = vadd.f32 %v850, %v820
  %v852 = vadd.f32 %v851, %v823
  %v853 = vrot.slane %v852, 4
  %v854 = vadd.f32 %v852, %v853
  %v855 = vrot.slane %v854, 2
  %v856 = vadd.f32 %v854, %v855
  %v857 = vrot.slane %v856, 1
  %v858 = vadd.f32 %v856, %v857
  %859 = vst [vmem:[%s3] sm:$0x1] %v858
  %v860 = vmul.f32 %v772, %v772
  %v861 = vmul.f32 %v775, %v775
  %v862 = vmul.f32 %v780, %v780
  %v863 = vmul.f32 %v783, %v783
  %v864 = vmul.f32 %v788, %v788
  %v865 = vmul.f32 %v791, %v791
  %v866 = vmul.f32 %v796, %v796
  %v867 = vmul.f32 %v799, %v799
  %v868 = vmul.f32 %v804, %v804
  %v869 = vmul.f32 %v807, %v807
  %v870 = vmul.f32 %v812, %v812
  %v871 = vmul.f32 %v815, %v815
  %v872 = vmul.f32 %v820, %v820
  %v873 = vmul.f32 %v823, %v823
  %v874 = vadd.f32 %v860, %v861
  %v875 = vadd.f32 %v874, %v862
  %v876 = vadd.f32 %v875, %v863
  %v877 = vadd.f32 %v876, %v864
  %v878 = vadd.f32 %v877, %v865
  %v879 = vadd.f32 %v878, %v866
  %v880 = vadd.f32 %v879, %v867
  %v881 = vadd.f32 %v880, %v868
  %v882 = vadd.f32 %v881, %v869
  %v883 = vadd.f32 %v882, %v870
  %v884 = vadd.f32 %v883, %v871
  %v885 = vadd.f32 %v884, %v872
  %v886 = vadd.f32 %v885, %v873
  %v887 = vrot.slane %v886, 4
  %v888 = vadd.f32 %v886, %v887
  %v889 = vrot.slane %v888, 2
  %v890 = vadd.f32 %v888, %v889
  %v891 = vrot.slane %v890, 1
  %v892 = vadd.f32 %v890, %v891
  %893 = vst [vmem:[%s4] sm:$0x1] %v892
  // Predicated region
  $region10: #{inception_stem_forward.28} parent=0 // pred_check
    _
  $region11: #{inception_stem_forward.28} parent=0 // pred_check_branch
    %895 = sbr.rel (0) target = $region13
  $region12: #{inception_stem_forward.28} parent=0 // pred_region
    _
  $region13: #{inception_stem_forward.28} parent=0 // pred_fallthru
    _
  // Predicated region
  $region14: #{inception_stem_forward.28} parent=0 // pred_check
    _
  $region15: #{inception_stem_forward.28} parent=0 // pred_check_branch
    %897 = sbr.rel (0) target = $region17
  $region16: #{inception_stem_forward.28} parent=0 // pred_region
    _
  $region17: #{inception_stem_forward.28} parent=0 // pred_fallthru
    _
  // Predicated region
  $region18: #{inception_stem_forward.28} parent=0 // pred_check
    _
  $region19: #{inception_stem_forward.28} parent=0 // pred_check_branch
    %899 = sbr.rel (0) target = $region21
  $region20: #{inception_stem_forward.28} parent=0 // pred_region
    _
  $region21: #{inception_stem_forward.28} parent=0 // pred_fallthru
    _
  // Predicated region
  $region22: #{inception_stem_forward.28} parent=0 // pred_check
    _
  $region23: #{inception_stem_forward.28} parent=0 // pred_check_branch
    %901 = sbr.rel (0) target = $region25
  $region24: #{inception_stem_forward.28} parent=0 // pred_region
    _
  $region25: #{inception_stem_forward.28} parent=0 // pred_fallthru
    _
  // Predicated region
  $region26: #{inception_stem_forward.28} parent=0 // pred_check
    _
  $region27: #{inception_stem_forward.28} parent=0 // pred_check_branch
    %903 = sbr.rel (0) target = $region29
  $region28: #{inception_stem_forward.28} parent=0 // pred_region
    _
  $region29: #{inception_stem_forward.28} parent=0 // pred_fallthru
    _
  // Predicated region
  $region30: #{inception_stem_forward.28} parent=0 // pred_check
    _
  $region31: #{inception_stem_forward.28} parent=0 // pred_check_branch
    %905 = sbr.rel (0) target = $region33
  $region32: #{inception_stem_forward.28} parent=0 // pred_region
    _
  $region33: #{inception_stem_forward.28} parent=0 // pred_fallthru
    _

// kernel: inception_stem_forward.29
$region0: #{inception_stem_forward.29}
  #allocation0 [shape = 'u32[]', space=smem, size = 0x4, offset = 0x4, fixed_abs, tag = 'smem constant byte address 0x4 - core index']
  #allocation1 [shape = 'u32[144,128]{1,0:T(1,128)}', space=vmem, size = 0x12000, scoped, tag = 'internal scratch']
  %s0 = inlined_call_operand.vmem [shape: f32[112,128], index: 0, kind: input, shape index: {}]
  %s1 = inlined_call_operand.vmem [shape: f32[2,128], index: 1, kind: input, shape index: {}]
  %s2 = inlined_call_operand.vmem [shape: f32[2,128], index: 2, kind: input, shape index: {}]
  %s3 = inlined_call_operand.vmem [shape: f32[112,128], index: 3, kind: output, shape index: {}]
  %s4 = sld [smem:[#allocation0]]
  $region22: #{inception_stem_forward.29} parent=0
    _
  %s6 = ssub.s32 1, %s4
  %s7 = scalar_select 0, %s6, %s4
  // Predicated region
  $region2: #{inception_stem_forward.29} parent=0 // pred_check
    _
  $region3: #{inception_stem_forward.29} parent=0 // pred_check_branch
    %9 = sbr.rel (0) target = $region5
  $region4: #{inception_stem_forward.29} parent=0 // pred_region
    _
  $region5: #{inception_stem_forward.29} parent=0 // pred_fallthru
    _
  // Predicated region
  $region6: #{inception_stem_forward.29} parent=0 // pred_check
    _
  $region7: #{inception_stem_forward.29} parent=0 // pred_check_branch
    %11 = sbr.rel (0) target = $region9
  $region8: #{inception_stem_forward.29} parent=0 // pred_region
    _
  $region9: #{inception_stem_forward.29} parent=0 // pred_fallthru
    _
  // Predicated region
  $region10: #{inception_stem_forward.29} parent=0 // pred_check
    _
  $region11: #{inception_stem_forward.29} parent=0 // pred_check_branch
    %13 = sbr.rel (0) target = $region13
  $region12: #{inception_stem_forward.29} parent=0 // pred_region
    _
  $region13: #{inception_stem_forward.29} parent=0 // pred_fallthru
    _
  %v14 = vld [vmem:[%s1] sm:$0x1]
  %v15 = vmul.f32 %v14, 0.010204081
  %v16 = vld [vmem:[%s1 + $0x1] sm:$0x1]
  %v17 = vmul.f32 %v16, 0.010204081
  %v18 = vmul.f32 %v15, %v15
  %v19 = vsub.f32 %v17, %v18
  %v20 = vmax.f32 %v19, 0.0
  %v21 = vld [vmem:[%s2] sm:$0x1]
  %v22 = vadd.f32 %v20, 0.001
  %v23 = vrsqrt.pop %v22
  %v24 = vmul.f32 %v21, %v23
  %v25 = vld [vmem:[%s2 + $0x1] sm:$0x1]
  %v26 = vmul.f32 %v15, %v24
  %v27 = vsub.f32 %v25, %v26
  %v28 = vld [vmem:[%s0] sm:$0xff]
  %v29 = vld [vmem:[%s0 + $0x8] sm:$0xff]
  %v30 = vld [vmem:[%s0 + $0x10] sm:$0xff]
  %v31 = vld [vmem:[%s0 + $0x18] sm:$0xff]
  %v32 = vld [vmem:[%s0 + $0x20] sm:$0xff]
  %v33 = vld [vmem:[%s0 + $0x28] sm:$0xff]
  %v34 = vld [vmem:[%s0 + $0x30] sm:$0xff]
  %v35 = vld [vmem:[%s0 + $0x38] sm:$0xff]
  %v36 = vld [vmem:[%s0 + $0x40] sm:$0xff]
  %v37 = vld [vmem:[%s0 + $0x48] sm:$0xff]
  %v38 = vld [vmem:[%s0 + $0x50] sm:$0xff]
  %v39 = vld [vmem:[%s0 + $0x58] sm:$0xff]
  %v40 = vld [vmem:[%s0 + $0x60] sm:$0xff]
  %v41 = vld [vmem:[%s0 + $0x68] sm:$0xff]
  %v42 = vlaneseq
  %v43 = vshrl.u32 %v42, 7
  %v44 = vsub.s32 0, %v43
  %v45 = vrot.slane %v24, %v44
  %v46 = vmul.f32 %v28, %v45
  %v47 = vmul.f32 %v29, %v45
  %v48 = vmul.f32 %v30, %v45
  %v49 = vmul.f32 %v31, %v45
  %v50 = vmul.f32 %v32, %v45
  %v51 = vmul.f32 %v33, %v45
  %v52 = vmul.f32 %v34, %v45
  %v53 = vmul.f32 %v35, %v45
  %v54 = vmul.f32 %v36, %v45
  %v55 = vmul.f32 %v37, %v45
  %v56 = vmul.f32 %v38, %v45
  %v57 = vmul.f32 %v39, %v45
  %v58 = vmul.f32 %v40, %v45
  %v59 = vmul.f32 %v41, %v45
  %v60 = vlaneseq
  %v61 = vshrl.u32 %v60, 7
  %v62 = vsub.s32 0, %v61
  %v63 = vrot.slane %v27, %v62
  %v64 = vadd.f32 %v46, %v63
  %v65 = vadd.f32 %v47, %v63
  %v66 = vadd.f32 %v48, %v63
  %v67 = vadd.f32 %v49, %v63
  %v68 = vadd.f32 %v50, %v63
  %v69 = vadd.f32 %v51, %v63
  %v70 = vadd.f32 %v52, %v63
  %v71 = vadd.f32 %v53, %v63
  %v72 = vadd.f32 %v54, %v63
  %v73 = vadd.f32 %v55, %v63
  %v74 = vadd.f32 %v56, %v63
  %v75 = vadd.f32 %v57, %v63
  %v76 = vadd.f32 %v58, %v63
  %v77 = vadd.f32 %v59, %v63
  %v78 = vmax.f32 %v64, 0.0
  %v79 = vmax.f32 %v65, 0.0
  %v80 = vmax.f32 %v66, 0.0
  %v81 = vmax.f32 %v67, 0.0
  %v82 = vmax.f32 %v68, 0.0
  %v83 = vmax.f32 %v69, 0.0
  %v84 = vmax.f32 %v70, 0.0
  %v85 = vmax.f32 %v71, 0.0
  %v86 = vmax.f32 %v72, 0.0
  %v87 = vmax.f32 %v73, 0.0
  %v88 = vmax.f32 %v74, 0.0
  %v89 = vmax.f32 %v75, 0.0
  %v90 = vmax.f32 %v76, 0.0
  %v91 = vmax.f32 %v77, 0.0
  %92 = vst [vmem:[%s3] sm:$0xff] %v78
  %93 = vst [vmem:[%s3 + $0x8] sm:$0xff] %v79
  %94 = vst [vmem:[%s3 + $0x10] sm:$0xff] %v80
  %95 = vst [vmem:[%s3 + $0x18] sm:$0xff] %v81
  %96 = vst [vmem:[%s3 + $0x20] sm:$0xff] %v82
  %97 = vst [vmem:[%s3 + $0x28] sm:$0xff] %v83
  %98 = vst [vmem:[%s3 + $0x30] sm:$0xff] %v84
  %99 = vst [vmem:[%s3 + $0x38] sm:$0xff] %v85
  %100 = vst [vmem:[%s3 + $0x40] sm:$0xff] %v86
  %101 = vst [vmem:[%s3 + $0x48] sm:$0xff] %v87
  %102 = vst [vmem:[%s3 + $0x50] sm:$0xff] %v88
  %103 = vst [vmem:[%s3 + $0x58] sm:$0xff] %v89
  %104 = vst [vmem:[%s3 + $0x60] sm:$0xff] %v90
  %105 = vst [vmem:[%s3 + $0x68] sm:$0xff] %v91
  // Predicated region
  $region14: #{inception_stem_forward.29} parent=0 // pred_check
    _
  $region15: #{inception_stem_forward.29} parent=0 // pred_check_branch
    %107 = sbr.rel (0) target = $region17
  $region16: #{inception_stem_forward.29} parent=0 // pred_region
    _
  $region17: #{inception_stem_forward.29} parent=0 // pred_fallthru
    _
  // Predicated region
  $region18: #{inception_stem_forward.29} parent=0 // pred_check
    _
  $region19: #{inception_stem_forward.29} parent=0 // pred_check_branch
    %109 = sbr.rel (0) target = $region21
  $region20: #{inception_stem_forward.29} parent=0 // pred_region
    _
  $region21: #{inception_stem_forward.29} parent=0 // pred_fallthru
    _

// kernel: inception_stem_forward.30
$region0: #{inception_stem_forward.30}
  #allocation0 [shape = 'u32[]', space=smem, size = 0x4, offset = 0x4, fixed_abs, tag = 'smem constant byte address 0x4 - core index']
  #allocation1 [shape = 'u32[144,128]{1,0:T(1,128)}', space=vmem, size = 0x12000, scoped, tag = 'internal scratch']
  %s0 = inlined_call_operand.vmem [shape: f32[112,64], index: 0, kind: input, shape index: {}]
  %s1 = inlined_call_operand.vmem [shape: f32[112,64], index: 1, kind: input, shape index: {}]
  %s2 = inlined_call_operand.vmem [shape: f32[112,64], index: 2, kind: input, shape index: {}]
  %s3 = inlined_call_operand.vmem [shape: f32[112,64], index: 3, kind: input, shape index: {}]
  %s4 = inlined_call_operand.vmem [shape: f32[112,64], index: 4, kind: input, shape index: {}]
  %s5 = inlined_call_operand.vmem [shape: f32[112,64], index: 5, kind: input, shape index: {}]
  %s6 = inlined_call_operand.vmem [shape: f32[112,64], index: 6, kind: input, shape index: {}]
  %s7 = inlined_call_operand.vmem [shape: f32[112,64], index: 7, kind: input, shape index: {}]
  %s8 = inlined_call_operand.vmem [shape: f32[112,64], index: 8, kind: input, shape index: {}]
  %s9 = inlined_call_operand.vmem [shape: f32[112,64], index: 9, kind: output, shape index: {}]
  %s10 = sld [smem:[#allocation0]]
  $region46: #{inception_stem_forward.30} parent=0
    _
  %s12 = ssub.s32 1, %s10
  %s13 = scalar_select 0, %s12, %s10
  // Predicated region
  $region2: #{inception_stem_forward.30} parent=0 // pred_check
    _
  $region3: #{inception_stem_forward.30} parent=0 // pred_check_branch
    %15 = sbr.rel (0) target = $region5
  $region4: #{inception_stem_forward.30} parent=0 // pred_region
    _
  $region5: #{inception_stem_forward.30} parent=0 // pred_fallthru
    _
  // Predicated region
  $region6: #{inception_stem_forward.30} parent=0 // pred_check
    _
  $region7: #{inception_stem_forward.30} parent=0 // pred_check_branch
    %17 = sbr.rel (0) target = $region9
  $region8: #{inception_stem_forward.30} parent=0 // pred_region
    _
  $region9: #{inception_stem_forward.30} parent=0 // pred_fallthru
    _
  // Predicated region
  $region10: #{inception_stem_forward.30} parent=0 // pred_check
    _
  $region11: #{inception_stem_forward.30} parent=0 // pred_check_branch
    %19 = sbr.rel (0) target = $region13
  $region12: #{inception_stem_forward.30} parent=0 // pred_region
    _
  $region13: #{inception_stem_forward.30} parent=0 // pred_fallthru
    _
  // Predicated region
  $region14: #{inception_stem_forward.30} parent=0 // pred_check
    _
  $region15: #{inception_stem_forward.30} parent=0 // pred_check_branch
    %21 = sbr.rel (0) target = $region17
  $region16: #{inception_stem_forward.30} parent=0 // pred_region
    _
  $region17: #{inception_stem_forward.30} parent=0 // pred_fallthru
    _
  // Predicated region
  $region18: #{inception_stem_forward.30} parent=0 // pred_check
    _
  $region19: #{inception_stem_forward.30} parent=0 // pred_check_branch
    %23 = sbr.rel (0) target = $region21
  $region20: #{inception_stem_forward.30} parent=0 // pred_region
    _
  $region21: #{inception_stem_forward.30} parent=0 // pred_fallthru
    _
  // Predicated region
  $region22: #{inception_stem_forward.30} parent=0 // pred_check
    _
  $region23: #{inception_stem_forward.30} parent=0 // pred_check_branch
    %25 = sbr.rel (0) target = $region25
  $region24: #{inception_stem_forward.30} parent=0 // pred_region
    _
  $region25: #{inception_stem_forward.30} parent=0 // pred_fallthru
    _
  // Predicated region
  $region26: #{inception_stem_forward.30} parent=0 // pred_check
    _
  $region27: #{inception_stem_forward.30} parent=0 // pred_check_branch
    %27 = sbr.rel (0) target = $region29
  $region28: #{inception_stem_forward.30} parent=0 // pred_region
    _
  $region29: #{inception_stem_forward.30} parent=0 // pred_fallthru
    _
  // Predicated region
  $region30: #{inception_stem_forward.30} parent=0 // pred_check
    _
  $region31: #{inception_stem_forward.30} parent=0 // pred_check_branch
    %29 = sbr.rel (0) target = $region33
  $region32: #{inception_stem_forward.30} parent=0 // pred_region
    _
  $region33: #{inception_stem_forward.30} parent=0 // pred_fallthru
    _
  // Predicated region
  $region34: #{inception_stem_forward.30} parent=0 // pred_check
    _
  $region35: #{inception_stem_forward.30} parent=0 // pred_check_branch
    %31 = sbr.rel (0) target = $region37
  $region36: #{inception_stem_forward.30} parent=0 // pred_region
    _
  $region37: #{inception_stem_forward.30} parent=0 // pred_fallthru
    _
  %v32 = vld [vmem:[%s0] sm:$0xff]
  %v33 = vld [vmem:[%s0 + $0x8] sm:$0xff]
  %v34 = vld [vmem:[%s0 + $0x10] sm:$0xff]
  %v35 = vld [vmem:[%s0 + $0x18] sm:$0xff]
  %v36 = vld [vmem:[%s0 + $0x20] sm:$0xff]
  %v37 = vld [vmem:[%s0 + $0x28] sm:$0xff]
  %v38 = vld [vmem:[%s0 + $0x30] sm:$0xff]
  %v39 = vld [vmem:[%s0 + $0x38] sm:$0xff]
  %v40 = vld [vmem:[%s0 + $0x40] sm:$0xff]
  %v41 = vld [vmem:[%s0 + $0x48] sm:$0xff]
  %v42 = vld [vmem:[%s0 + $0x50] sm:$0xff]
  %v43 = vld [vmem:[%s0 + $0x58] sm:$0xff]
  %v44 = vld [vmem:[%s0 + $0x60] sm:$0xff]
  %v45 = vld [vmem:[%s0 + $0x68] sm:$0xff]
  %v46 = vld [vmem:[%s1] sm:$0xff]
  %v47 = vld [vmem:[%s1 + $0x8] sm:$0xff]
  %v48 = vld [vmem:[%s1 + $0x10] sm:$0xff]
  %v49 = vld [vmem:[%s1 + $0x18] sm:$0xff]
  %v50 = vld [vmem:[%s1 + $0x20] sm:$0xff]
  %v51 = vld [vmem:[%s1 + $0x28] sm:$0xff]
  %v52 = vld [vmem:[%s1 + $0x30] sm:$0xff]
  %v53 = vld [vmem:[%s1 + $0x38] sm:$0xff]
  %v54 = vld [vmem:[%s1 + $0x40] sm:$0xff]
  %v55 = vld [vmem:[%s1 + $0x48] sm:$0xff]
  %v56 = vld [vmem:[%s1 + $0x50] sm:$0xff]
  %v57 = vld [vmem:[%s1 + $0x58] sm:$0xff]
  %v58 = vld [vmem:[%s1 + $0x60] sm:$0xff]
  %v59 = vld [vmem:[%s1 + $0x68] sm:$0xff]
  %v60 = vmax.f32 %v32, %v46
  %v61 = vmax.f32 %v33, %v47
  %v62 = vmax.f32 %v34, %v48
  %v63 = vmax.f32 %v35, %v49
  %v64 = vmax.f32 %v36, %v50
  %v65 = vmax.f32 %v37, %v51
  %v66 = vmax.f32 %v38, %v52
  %v67 = vmax.f32 %v39, %v53
  %v68 = vmax.f32 %v40, %v54
  %v69 = vmax.f32 %v41, %v55
  %v70 = vmax.f32 %v42, %v56
  %v71 = vmax.f32 %v43, %v57
  %v72 = vmax.f32 %v44, %v58
  %v73 = vmax.f32 %v45, %v59
  %v74 = vld [vmem:[%s2] sm:$0xff]
  %v75 = vld [vmem:[%s2 + $0x8] sm:$0xff]
  %v76 = vld [vmem:[%s2 + $0x10] sm:$0xff]
  %v77 = vld [vmem:[%s2 + $0x18] sm:$0xff]
  %v78 = vld [vmem:[%s2 + $0x20] sm:$0xff]
  %v79 = vld [vmem:[%s2 + $0x28] sm:$0xff]
  %v80 = vld [vmem:[%s2 + $0x30] sm:$0xff]
  %v81 = vld [vmem:[%s2 + $0x38] sm:$0xff]
  %v82 = vld [vmem:[%s2 + $0x40] sm:$0xff]
  %v83 = vld [vmem:[%s2 + $0x48] sm:$0xff]
  %v84 = vld [vmem:[%s2 + $0x50] sm:$0xff]
  %v85 = vld [vmem:[%s2 + $0x58] sm:$0xff]
  %v86 = vld [vmem:[%s2 + $0x60] sm:$0xff]
  %v87 = vld [vmem:[%s2 + $0x68] sm:$0xff]
  %v88 = vmax.f32 %v60, %v74
  %v89 = vmax.f32 %v61, %v75
  %v90 = vmax.f32 %v62, %v76
  %v91 = vmax.f32 %v63, %v77
  %v92 = vmax.f32 %v64, %v78
  %v93 = vmax.f32 %v65, %v79
  %v94 = vmax.f32 %v66, %v80
  %v95 = vmax.f32 %v67, %v81
  %v96 = vmax.f32 %v68, %v82
  %v97 = vmax.f32 %v69, %v83
  %v98 = vmax.f32 %v70, %v84
  %v99 = vmax.f32 %v71, %v85
  %v100 = vmax.f32 %v72, %v86
  %v101 = vmax.f32 %v73, %v87
  %v102 = vld [vmem:[%s3] sm:$0xff]
  %v103 = vld [vmem:[%s3 + $0x8] sm:$0xff]
  %v104 = vld [vmem:[%s3 + $0x10] sm:$0xff]
  %v105 = vld [vmem:[%s3 + $0x18] sm:$0xff]
  %v106 = vld [vmem:[%s3 + $0x20] sm:$0xff]
  %v107 = vld [vmem:[%s3 + $0x28] sm:$0xff]
  %v108 = vld [vmem:[%s3 + $0x30] sm:$0xff]
  %v109 = vld [vmem:[%s3 + $0x38] sm:$0xff]
  %v110 = vld [vmem:[%s3 + $0x40] sm:$0xff]
  %v111 = vld [vmem:[%s3 + $0x48] sm:$0xff]
  %v112 = vld [vmem:[%s3 + $0x50] sm:$0xff]
  %v113 = vld [vmem:[%s3 + $0x58] sm:$0xff]
  %v114 = vld [vmem:[%s3 + $0x60] sm:$0xff]
  %v115 = vld [vmem:[%s3 + $0x68] sm:$0xff]
  %v116 = vmax.f32 %v88, %v102
  %v117 = vmax.f32 %v89, %v103
  %v118 = vmax.f32 %v90, %v104
  %v119 = vmax.f32 %v91, %v105
  %v120 = vmax.f32 %v92, %v106
  %v121 = vmax.f32 %v93, %v107
  %v122 = vmax.f32 %v94, %v108
  %v123 = vmax.f32 %v95, %v109
  %v124 = vmax.f32 %v96, %v110
  %v125 = vmax.f32 %v97, %v111
  %v126 = vmax.f32 %v98, %v112
  %v127 = vmax.f32 %v99, %v113
  %v128 = vmax.f32 %v100, %v114
  %v129 = vmax.f32 %v101, %v115
  %v130 = vld [vmem:[%s4] sm:$0xff]
  %v131 = vld [vmem:[%s4 + $0x8] sm:$0xff]
  %v132 = vld [vmem:[%s4 + $0x10] sm:$0xff]
  %v133 = vld [vmem:[%s4 + $0x18] sm:$0xff]
  %v134 = vld [vmem:[%s4 + $0x20] sm:$0xff]
  %v135 = vld [vmem:[%s4 + $0x28] sm:$0xff]
  %v136 = vld [vmem:[%s4 + $0x30] sm:$0xff]
  %v137 = vld [vmem:[%s4 + $0x38] sm:$0xff]
  %v138 = vld [vmem:[%s4 + $0x40] sm:$0xff]
  %v139 = vld [vmem:[%s4 + $0x48] sm:$0xff]
  %v140 = vld [vmem:[%s4 + $0x50] sm:$0xff]
  %v141 = vld [vmem:[%s4 + $0x58] sm:$0xff]
  %v142 = vld [vmem:[%s4 + $0x60] sm:$0xff]
  %v143 = vld [vmem:[%s4 + $0x68] sm:$0xff]
  %v144 = vmax.f32 %v116, %v130
  %v145 = vmax.f32 %v117, %v131
  %v146 = vmax.f32 %v118, %v132
  %v147 = vmax.f32 %v119, %v133
  %v148 = vmax.f32 %v120, %v134
  %v149 = vmax.f32 %v121, %v135
  %v150 = vmax.f32 %v122, %v136
  %v151 = vmax.f32 %v123, %v137
  %v152 = vmax.f32 %v124, %v138
  %v153 = vmax.f32 %v125, %v139
  %v154 = vmax.f32 %v126, %v140
  %v155 = vmax.f32 %v127, %v141
  %v156 = vmax.f32 %v128, %v142
  %v157 = vmax.f32 %v129, %v143
  %v158 = vld [vmem:[%s5] sm:$0xff]
  %v159 = vld [vmem:[%s5 + $0x8] sm:$0xff]
  %v160 = vld [vmem:[%s5 + $0x10] sm:$0xff]
  %v161 = vld [vmem:[%s5 + $0x18] sm:$0xff]
  %v162 = vld [vmem:[%s5 + $0x20] sm:$0xff]
  %v163 = vld [vmem:[%s5 + $0x28] sm:$0xff]
  %v164 = vld [vmem:[%s5 + $0x30] sm:$0xff]
  %v165 = vld [vmem:[%s5 + $0x38] sm:$0xff]
  %v166 = vld [vmem:[%s5 + $0x40] sm:$0xff]
  %v167 = vld [vmem:[%s5 + $0x48] sm:$0xff]
  %v168 = vld [vmem:[%s5 + $0x50] sm:$0xff]
  %v169 = vld [vmem:[%s5 + $0x58] sm:$0xff]
  %v170 = vld [vmem:[%s5 + $0x60] sm:$0xff]
  %v171 = vld [vmem:[%s5 + $0x68] sm:$0xff]
  %v172 = vmax.f32 %v144, %v158
  %v173 = vmax.f32 %v145, %v159
  %v174 = vmax.f32 %v146, %v160
  %v175 = vmax.f32 %v147, %v161
  %v176 = vmax.f32 %v148, %v162
  %v177 = vmax.f32 %v149, %v163
  %v178 = vmax.f32 %v150, %v164
  %v179 = vmax.f32 %v151, %v165
  %v180 = vmax.f32 %v152, %v166
  %v181 = vmax.f32 %v153, %v167
  %v182 = vmax.f32 %v154, %v168
  %v183 = vmax.f32 %v155, %v169
  %v184 = vmax.f32 %v156, %v170
  %v185 = vmax.f32 %v157, %v171
  %v186 = vld [vmem:[%s6] sm:$0xff]
  %v187 = vld [vmem:[%s6 + $0x8] sm:$0xff]
  %v188 = vld [vmem:[%s6 + $0x10] sm:$0xff]
  %v189 = vld [vmem:[%s6 + $0x18] sm:$0xff]
  %v190 = vld [vmem:[%s6 + $0x20] sm:$0xff]
  %v191 = vld [vmem:[%s6 + $0x28] sm:$0xff]
  %v192 = vld [vmem:[%s6 + $0x30] sm:$0xff]
  %v193 = vld [vmem:[%s6 + $0x38] sm:$0xff]
  %v194 = vld [vmem:[%s6 + $0x40] sm:$0xff]
  %v195 = vld [vmem:[%s6 + $0x48] sm:$0xff]
  %v196 = vld [vmem:[%s6 + $0x50] sm:$0xff]
  %v197 = vld [vmem:[%s6 + $0x58] sm:$0xff]
  %v198 = vld [vmem:[%s6 + $0x60] sm:$0xff]
  %v199 = vld [vmem:[%s6 + $0x68] sm:$0xff]
  %v200 = vmax.f32 %v172, %v186
  %v201 = vmax.f32 %v173, %v187
  %v202 = vmax.f32 %v174, %v188
  %v203 = vmax.f32 %v175, %v189
  %v204 = vmax.f32 %v176, %v190
  %v205 = vmax.f32 %v177, %v191
  %v206 = vmax.f32 %v178, %v192
  %v207 = vmax.f32 %v179, %v193
  %v208 = vmax.f32 %v180, %v194
  %v209 = vmax.f32 %v181, %v195
  %v210 = vmax.f32 %v182, %v196
  %v211 = vmax.f32 %v183, %v197
  %v212 = vmax.f32 %v184, %v198
  %v213 = vmax.f32 %v185, %v199
  %v214 = vld [vmem:[%s7] sm:$0xff]
  %v215 = vld [vmem:[%s7 + $0x8] sm:$0xff]
  %v216 = vld [vmem:[%s7 + $0x10] sm:$0xff]
  %v217 = vld [vmem:[%s7 + $0x18] sm:$0xff]
  %v218 = vld [vmem:[%s7 + $0x20] sm:$0xff]
  %v219 = vld [vmem:[%s7 + $0x28] sm:$0xff]
  %v220 = vld [vmem:[%s7 + $0x30] sm:$0xff]
  %v221 = vld [vmem:[%s7 + $0x38] sm:$0xff]
  %v222 = vld [vmem:[%s7 + $0x40] sm:$0xff]
  %v223 = vld [vmem:[%s7 + $0x48] sm:$0xff]
  %v224 = vld [vmem:[%s7 + $0x50] sm:$0xff]
  %v225 = vld [vmem:[%s7 + $0x58] sm:$0xff]
  %v226 = vld [vmem:[%s7 + $0x60] sm:$0xff]
  %v227 = vld [vmem:[%s7 + $0x68] sm:$0xff]
  %v228 = vmax.f32 %v200, %v214
  %v229 = vmax.f32 %v201, %v215
  %v230 = vmax.f32 %v202, %v216
  %v231 = vmax.f32 %v203, %v217
  %v232 = vmax.f32 %v204, %v218
  %v233 = vmax.f32 %v205, %v219
  %v234 = vmax.f32 %v206, %v220
  %v235 = vmax.f32 %v207, %v221
  %v236 = vmax.f32 %v208, %v222
  %v237 = vmax.f32 %v209, %v223
  %v238 = vmax.f32 %v210, %v224
  %v239 = vmax.f32 %v211, %v225
  %v240 = vmax.f32 %v212, %v226
  %v241 = vmax.f32 %v213, %v227
  %v242 = vld [vmem:[%s8] sm:$0xff]
  %v243 = vld [vmem:[%s8 + $0x8] sm:$0xff]
  %v244 = vld [vmem:[%s8 + $0x10] sm:$0xff]
  %v245 = vld [vmem:[%s8 + $0x18] sm:$0xff]
  %v246 = vld [vmem:[%s8 + $0x20] sm:$0xff]
  %v247 = vld [vmem:[%s8 + $0x28] sm:$0xff]
  %v248 = vld [vmem:[%s8 + $0x30] sm:$0xff]
  %v249 = vld [vmem:[%s8 + $0x38] sm:$0xff]
  %v250 = vld [vmem:[%s8 + $0x40] sm:$0xff]
  %v251 = vld [vmem:[%s8 + $0x48] sm:$0xff]
  %v252 = vld [vmem:[%s8 + $0x50] sm:$0xff]
  %v253 = vld [vmem:[%s8 + $0x58] sm:$0xff]
  %v254 = vld [vmem:[%s8 + $0x60] sm:$0xff]
  %v255 = vld [vmem:[%s8 + $0x68] sm:$0xff]
  %v256 = vmax.f32 %v228, %v242
  %v257 = vmax.f32 %v229, %v243
  %v258 = vmax.f32 %v230, %v244
  %v259 = vmax.f32 %v231, %v245
  %v260 = vmax.f32 %v232, %v246
  %v261 = vmax.f32 %v233, %v247
  %v262 = vmax.f32 %v234, %v248
  %v263 = vmax.f32 %v235, %v249
  %v264 = vmax.f32 %v236, %v250
  %v265 = vmax.f32 %v237, %v251
  %v266 = vmax.f32 %v238, %v252
  %v267 = vmax.f32 %v239, %v253
  %v268 = vmax.f32 %v240, %v254
  %v269 = vmax.f32 %v241, %v255
  %vm270 = vcmask 523264
  %271 = vst.msk [vmem:[%s9] sm:$0xff] %vm270, %v256
  %272 = vst.msk [vmem:[%s9 + $0x8] sm:$0xff] %vm270, %v257
  %273 = vst.msk [vmem:[%s9 + $0x10] sm:$0xff] %vm270, %v258
  %274 = vst.msk [vmem:[%s9 + $0x18] sm:$0xff] %vm270, %v259
  %275 = vst.msk [vmem:[%s9 + $0x20] sm:$0xff] %vm270, %v260
  %276 = vst.msk [vmem:[%s9 + $0x28] sm:$0xff] %vm270, %v261
  %277 = vst.msk [vmem:[%s9 + $0x30] sm:$0xff] %vm270, %v262
  %278 = vst.msk [vmem:[%s9 + $0x38] sm:$0xff] %vm270, %v263
  %279 = vst.msk [vmem:[%s9 + $0x40] sm:$0xff] %vm270, %v264
  %280 = vst.msk [vmem:[%s9 + $0x48] sm:$0xff] %vm270, %v265
  %281 = vst.msk [vmem:[%s9 + $0x50] sm:$0xff] %vm270, %v266
  %282 = vst.msk [vmem:[%s9 + $0x58] sm:$0xff] %vm270, %v267
  %283 = vst.msk [vmem:[%s9 + $0x60] sm:$0xff] %vm270, %v268
  %284 = vst.msk [vmem:[%s9 + $0x68] sm:$0xff] %vm270, %v269
  // Predicated region
  $region38: #{inception_stem_forward.30} parent=0 // pred_check
    _
  $region39: #{inception_stem_forward.30} parent=0 // pred_check_branch
    %286 = sbr.rel (0) target = $region41
  $region40: #{inception_stem_forward.30} parent=0 // pred_region
    _
  $region41: #{inception_stem_forward.30} parent=0 // pred_fallthru
    _
  // Predicated region
  $region42: #{inception_stem_forward.30} parent=0 // pred_check
    _
  $region43: #{inception_stem_forward.30} parent=0 // pred_check_branch
    %288 = sbr.rel (0) target = $region45
  $region44: #{inception_stem_forward.30} parent=0 // pred_region
    _
  $region45: #{inception_stem_forward.30} parent=0 // pred_fallthru
    _

// kernel: inception_stem_forward.31
$region0: #{inception_stem_forward.31}
  #allocation0 [shape = 'u32[]', space=smem, size = 0x4, offset = 0x4, fixed_abs, tag = 'smem constant byte address 0x4 - core index']
  #allocation1 [shape = 'u32[144,128]{1,0:T(1,128)}', space=vmem, size = 0x12000, scoped, tag = 'internal scratch']
  %s0 = inlined_call_operand.vmem [shape: bf16[112,256], index: 0, kind: input, shape index: {}]
  %s1 = inlined_call_operand.vmem [shape: bf16[256,128], index: 1, kind: input, shape index: {}]
  %s2 = inlined_call_operand.vmem [shape: f32[112,128], index: 2, kind: output, shape index: {0}]
  %s3 = inlined_call_operand.vmem [shape: f32[1,1,128], index: 3, kind: output, shape index: {1}]
  %s4 = inlined_call_operand.vmem [shape: f32[1,1,128], index: 4, kind: output, shape index: {2}]
  %5 = xla_tuple %s2, %s3, %s4
  %s6 = sld [smem:[#allocation0]]
  $region34: #{inception_stem_forward.31} parent=0
    _
  %s8 = ssub.s32 1, %s6
  %s9 = scalar_select 0, %s8, %s6
  // Predicated region
  $region2: #{inception_stem_forward.31} parent=0 // pred_check
    _
  $region3: #{inception_stem_forward.31} parent=0 // pred_check_branch
    %11 = sbr.rel (0) target = $region5
  $region4: #{inception_stem_forward.31} parent=0 // pred_region
    _
  $region5: #{inception_stem_forward.31} parent=0 // pred_fallthru
    _
  // Predicated region
  $region6: #{inception_stem_forward.31} parent=0 // pred_check
    _
  $region7: #{inception_stem_forward.31} parent=0 // pred_check_branch
    %13 = sbr.rel (0) target = $region9
  $region8: #{inception_stem_forward.31} parent=0 // pred_region
    _
  $region9: #{inception_stem_forward.31} parent=0 // pred_fallthru
    _
  %v15 = vld [vmem:[%s0] sm:$0xff]
  %v16 = vld [vmem:[%s0 + $0x8] sm:$0xff]
  %v17 = vld [vmem:[%s0 + $0x10] sm:$0xff]
  %v18 = vld [vmem:[%s0 + $0x18] sm:$0xff]
  %v19 = vld [vmem:[%s0 + $0x20] sm:$0xff]
  %v20 = vld [vmem:[%s0 + $0x28] sm:$0xff]
  %v21 = vld [vmem:[%s0 + $0x30] sm:$0xff]
  %v22 = vld [vmem:[%s0 + $0x38] sm:$0xff]
  %v23 = vld [vmem:[%s0 + $0x40] sm:$0xff]
  %v24 = vld [vmem:[%s0 + $0x48] sm:$0xff]
  %v25 = vld [vmem:[%s0 + $0x50] sm:$0xff]
  %v26 = vld [vmem:[%s0 + $0x58] sm:$0xff]
  %v27 = vld [vmem:[%s0 + $0x60] sm:$0xff]
  %v28 = vld [vmem:[%s0 + $0x68] sm:$0xff]
  %v29 = vld [vmem:[%s1] sm:$0xf]
  %v30 = vld [vmem:[%s1 + $0x4] sm:$0xf]
  %v31 = vld [vmem:[%s1 + $0x8] sm:$0xf]
  %v32 = vld [vmem:[%s1 + $0xc] sm:$0xf]
  %v33 = vld [vmem:[%s1 + $0x10] sm:$0xf]
  %v34 = vld [vmem:[%s1 + $0x14] sm:$0xf]
  %v35 = vld [vmem:[%s1 + $0x18] sm:$0xf]
  %v36 = vld [vmem:[%s1 + $0x1c] sm:$0xf]
  %v37 = vld [vmem:[%s1 + $0x20] sm:$0xf]
  %v38 = vld [vmem:[%s1 + $0x24] sm:$0xf]
  %v39 = vld [vmem:[%s1 + $0x28] sm:$0xf]
  %v40 = vld [vmem:[%s1 + $0x2c] sm:$0xf]
  %v41 = vld [vmem:[%s1 + $0x30] sm:$0xf]
  %v42 = vld [vmem:[%s1 + $0x34] sm:$0xf]
  %v43 = vld [vmem:[%s1 + $0x38] sm:$0xf]
  %v44 = vld [vmem:[%s1 + $0x3c] sm:$0xf]
  %v45 = vld [vmem:[%s1 + $0x40] sm:$0xf]
  %v46 = vld [vmem:[%s1 + $0x44] sm:$0xf]
  %v47 = vld [vmem:[%s1 + $0x48] sm:$0xf]
  %v48 = vld [vmem:[%s1 + $0x4c] sm:$0xf]
  %v49 = vld [vmem:[%s1 + $0x50] sm:$0xf]
  %v50 = vld [vmem:[%s1 + $0x54] sm:$0xf]
  %v51 = vld [vmem:[%s1 + $0x58] sm:$0xf]
  %v52 = vld [vmem:[%s1 + $0x5c] sm:$0xf]
  %v53 = vld [vmem:[%s1 + $0x60] sm:$0xf]
  %v54 = vld [vmem:[%s1 + $0x64] sm:$0xf]
  %v55 = vld [vmem:[%s1 + $0x68] sm:$0xf]
  %v56 = vld [vmem:[%s1 + $0x6c] sm:$0xf]
  %v57 = vld [vmem:[%s1 + $0x70] sm:$0xf]
  %v58 = vld [vmem:[%s1 + $0x74] sm:$0xf]
  %v59 = vld [vmem:[%s1 + $0x78] sm:$0xf]
  %v60 = vld [vmem:[%s1 + $0x7c] sm:$0xf]
  %v75 = vunpack.c.l.b16 %v15
  %v76 = vunpack.c.h.b16 %v15
  %v77 = vunpack.c.l.b16 %v16
  %v78 = vunpack.c.h.b16 %v16
  %v79 = vunpack.c.l.b16 %v17
  %v80 = vunpack.c.h.b16 %v17
  %v81 = vunpack.c.l.b16 %v18
  %v82 = vunpack.c.h.b16 %v18
  %v83 = vunpack.c.l.b16 %v19
  %v84 = vunpack.c.h.b16 %v19
  %v85 = vunpack.c.l.b16 %v20
  %v86 = vunpack.c.h.b16 %v20
  %v87 = vunpack.c.l.b16 %v21
  %v88 = vunpack.c.h.b16 %v21
  %v89 = vunpack.c.l.b16 %v22
  %v90 = vunpack.c.h.b16 %v22
  %v91 = vunpack.c.l.b16 %v23
  %v92 = vunpack.c.h.b16 %v23
  %v93 = vunpack.c.l.b16 %v24
  %v94 = vunpack.c.h.b16 %v24
  %v95 = vunpack.c.l.b16 %v25
  %v96 = vunpack.c.h.b16 %v25
  %v97 = vunpack.c.l.b16 %v26
  %v98 = vunpack.c.h.b16 %v26
  %v99 = vunpack.c.l.b16 %v27
  %v100 = vunpack.c.h.b16 %v27
  %v101 = vunpack.c.l.b16 %v28
  %v102 = vunpack.c.h.b16 %v28
  %v103 = vpack.c.b16 %v77, %v75
  %v104 = vpack.c.b16 %v78, %v76
  %v105 = vpack.c.b16 %v81, %v79
  %v106 = vpack.c.b16 %v82, %v80
  %v107 = vpack.c.b16 %v85, %v83
  %v108 = vpack.c.b16 %v86, %v84
  %v109 = vpack.c.b16 %v89, %v87
  %v110 = vpack.c.b16 %v90, %v88
  %v111 = vpack.c.b16 %v93, %v91
  %v112 = vpack.c.b16 %v94, %v92
  %v113 = vpack.c.b16 %v97, %v95
  %v114 = vpack.c.b16 %v98, %v96
  %v115 = vpack.c.b16 %v101, %v99
  %v116 = vpack.c.b16 %v102, %v100
  %v163 = vunpack.c.l.b16 %v29
  %v164 = vunpack.c.l.b16 %v30
  %v165 = vunpack.c.l.b16 %v31
  %v166 = vunpack.c.l.b16 %v32
  %v167 = vunpack.c.l.b16 %v33
  %v168 = vunpack.c.l.b16 %v34
  %v169 = vunpack.c.l.b16 %v35
  %v170 = vunpack.c.l.b16 %v36
  %v171 = vunpack.c.l.b16 %v37
  %v172 = vunpack.c.l.b16 %v38
  %v173 = vunpack.c.l.b16 %v39
  %v174 = vunpack.c.l.b16 %v40
  %v175 = vunpack.c.l.b16 %v41
  %v176 = vunpack.c.l.b16 %v42
  %v177 = vunpack.c.l.b16 %v43
  %v178 = vunpack.c.l.b16 %v44
  %v179 = vunpack.c.l.b16 %v45
  %v180 = vunpack.c.l.b16 %v46
  %v181 = vunpack.c.l.b16 %v47
  %v182 = vunpack.c.l.b16 %v48
  %v183 = vunpack.c.l.b16 %v49
  %v184 = vunpack.c.l.b16 %v50
  %v185 = vunpack.c.l.b16 %v51
  %v186 = vunpack.c.l.b16 %v52
  %v187 = vunpack.c.l.b16 %v53
  %v188 = vunpack.c.l.b16 %v54
  %v189 = vunpack.c.l.b16 %v55
  %v190 = vunpack.c.l.b16 %v56
  %v191 = vunpack.c.l.b16 %v57
  %v192 = vunpack.c.l.b16 %v58
  %v193 = vunpack.c.l.b16 %v59
  %v194 = vunpack.c.l.b16 %v60
  %v195 = vpack.c.b16 %v164, %v163
  %v196 = vpack.c.b16 %v166, %v165
  %v197 = vpack.c.b16 %v168, %v167
  %v198 = vpack.c.b16 %v170, %v169
  %v199 = vpack.c.b16 %v172, %v171
  %v200 = vpack.c.b16 %v174, %v173
  %v201 = vpack.c.b16 %v176, %v175
  %v202 = vpack.c.b16 %v178, %v177
  %v203 = vpack.c.b16 %v180, %v179
  %v204 = vpack.c.b16 %v182, %v181
  %v205 = vpack.c.b16 %v184, %v183
  %v206 = vpack.c.b16 %v186, %v185
  %v207 = vpack.c.b16 %v188, %v187
  %v208 = vpack.c.b16 %v190, %v189
  %v209 = vpack.c.b16 %v192, %v191
  %v210 = vpack.c.b16 %v194, %v193
  %227 = vmatprep.subr.bf16.mxu0 0
  %228 = vmatpush1.bf16.msra.mxu0 %v195
  %229 = vmatprep.subr.bf16.mxu0 0
  %230 = vmatpush1.bf16.msra.mxu0 %v196
  %231 = vmatprep.subr.bf16.mxu0 0
  %232 = vmatpush1.bf16.msra.mxu0 %v197
  %233 = vmatprep.subr.bf16.mxu0 0
  %234 = vmatpush1.bf16.msra.mxu0 %v198
  %235 = vmatprep.subr.bf16.mxu0 0
  %236 = vmatpush1.bf16.msra.mxu0 %v199
  %237 = vmatprep.subr.bf16.mxu0 0
  %238 = vmatpush1.bf16.msra.mxu0 %v200
  %239 = vmatprep.subr.bf16.mxu0 0
  %240 = vmatpush1.bf16.msra.mxu0 %v201
  %241 = vmatprep.subr.bf16.mxu0 0
  %242 = vmatpush1.bf16.msra.mxu0 %v202
  %243 = vmatprep.subr.bf16.mxu0 0
  %244 = vmatpush1.bf16.msra.mxu0 %v203
  %245 = vmatprep.subr.bf16.mxu0 0
  %246 = vmatpush1.bf16.msra.mxu0 %v204
  %247 = vmatprep.subr.bf16.mxu0 0
  %248 = vmatpush1.bf16.msra.mxu0 %v205
  %249 = vmatprep.subr.bf16.mxu0 0
  %250 = vmatpush1.bf16.msra.mxu0 %v206
  %251 = vmatprep.subr.bf16.mxu0 0
  %252 = vmatpush1.bf16.msra.mxu0 %v207
  %253 = vmatprep.subr.bf16.mxu0 0
  %254 = vmatpush1.bf16.msra.mxu0 %v208
  %255 = vmatprep.subr.bf16.mxu0 0
  %256 = vmatpush1.bf16.msra.mxu0 %v209
  %257 = vmatprep.subr.bf16.mxu0 0
  %258 = vmatpush1.bf16.msra.mxu0 %v210
  %259 = vmatprep.mubr.bf16.mxu0 %v104
  %260 = vmatmul.mubr.bf16.gmra.mrb[0].mxu0 %v103
  %v261 = vpop.f32.mrb[0].mxu0
  %v262 = vadd.f32 0.0, %v261
  %v263 = vpop.f32.mrb[0].mxu0
  %v264 = vpop.f32.mrb[0].mxu0
  %v265 = vadd.f32 0.0, %v264
  %v266 = vpop.f32.mrb[0].mxu0
  %267 = vmatprep.mubr.bf16.mxu0 %v106
  %268 = vmatmul.mubr.bf16.gmra.mrb[0].mxu0 %v105
  %v269 = vpop.f32.mrb[0].mxu0
  %v270 = vadd.f32 0.0, %v269
  %v271 = vpop.f32.mrb[0].mxu0
  %v272 = vpop.f32.mrb[0].mxu0
  %v273 = vadd.f32 0.0, %v272
  %v274 = vpop.f32.mrb[0].mxu0
  %275 = vmatprep.mubr.bf16.mxu0 %v108
  %276 = vmatmul.mubr.bf16.gmra.mrb[0].mxu0 %v107
  %v277 = vpop.f32.mrb[0].mxu0
  %v278 = vadd.f32 0.0, %v277
  %v279 = vpop.f32.mrb[0].mxu0
  %v280 = vpop.f32.mrb[0].mxu0
  %v281 = vadd.f32 0.0, %v280
  %v282 = vpop.f32.mrb[0].mxu0
  %283 = vmatprep.mubr.bf16.mxu0 %v110
  %284 = vmatmul.mubr.bf16.gmra.mrb[0].mxu0 %v109
  %v285 = vpop.f32.mrb[0].mxu0
  %v286 = vadd.f32 0.0, %v285
  %v287 = vpop.f32.mrb[0].mxu0
  %v288 = vpop.f32.mrb[0].mxu0
  %v289 = vadd.f32 0.0, %v288
  %v290 = vpop.f32.mrb[0].mxu0
  %291 = vmatprep.mubr.bf16.mxu0 %v112
  %292 = vmatmul.mubr.bf16.gmra.mrb[0].mxu0 %v111
  %v293 = vpop.f32.mrb[0].mxu0
  %v294 = vadd.f32 0.0, %v293
  %v295 = vpop.f32.mrb[0].mxu0
  %v296 = vpop.f32.mrb[0].mxu0
  %v297 = vadd.f32 0.0, %v296
  %v298 = vpop.f32.mrb[0].mxu0
  %299 = vmatprep.mubr.bf16.mxu0 %v114
  %300 = vmatmul.mubr.bf16.gmra.mrb[0].mxu0 %v113
  %v301 = vpop.f32.mrb[0].mxu0
  %v302 = vadd.f32 0.0, %v301
  %v303 = vpop.f32.mrb[0].mxu0
  %v304 = vpop.f32.mrb[0].mxu0
  %v305 = vadd.f32 0.0, %v304
  %v306 = vpop.f32.mrb[0].mxu0
  %307 = vmatprep.mubr.bf16.mxu0 %v116
  %308 = vmatmul.mubr.bf16.gmra.mrb[0].mxu0 %v115
  %v309 = vpop.f32.mrb[0].mxu0
  %v310 = vadd.f32 0.0, %v309
  %v311 = vpop.f32.mrb[0].mxu0
  %v312 = vpop.f32.mrb[0].mxu0
  %v313 = vadd.f32 0.0, %v312
  %v314 = vpop.f32.mrb[0].mxu0
  %315 = vdwg.mxu0
  %316 = vst [vmem:[%s2] sm:$0xff] %v262
  %317 = vst [vmem:[%s2 + $0x8] sm:$0xff] %v265
  %318 = vst [vmem:[%s2 + $0x10] sm:$0xff] %v270
  %319 = vst [vmem:[%s2 + $0x18] sm:$0xff] %v273
  %320 = vst [vmem:[%s2 + $0x20] sm:$0xff] %v278
  %321 = vst [vmem:[%s2 + $0x28] sm:$0xff] %v281
  %322 = vst [vmem:[%s2 + $0x30] sm:$0xff] %v286
  %323 = vst [vmem:[%s2 + $0x38] sm:$0xff] %v289
  %324 = vst [vmem:[%s2 + $0x40] sm:$0xff] %v294
  %325 = vst [vmem:[%s2 + $0x48] sm:$0xff] %v297
  %326 = vst [vmem:[%s2 + $0x50] sm:$0xff] %v302
  %327 = vst [vmem:[%s2 + $0x58] sm:$0xff] %v305
  %328 = vst [vmem:[%s2 + $0x60] sm:$0xff] %v310
  %329 = vst [vmem:[%s2 + $0x68] sm:$0xff] %v313
  %v330 = vadd.f32 %v262, %v265
  %v331 = vadd.f32 %v330, %v270
  %v332 = vadd.f32 %v331, %v273
  %v333 = vadd.f32 %v332, %v278
  %v334 = vadd.f32 %v333, %v281
  %v335 = vadd.f32 %v334, %v286
  %v336 = vadd.f32 %v335, %v289
  %v337 = vadd.f32 %v336, %v294
  %v338 = vadd.f32 %v337, %v297
  %v339 = vadd.f32 %v338, %v302
  %v340 = vadd.f32 %v339, %v305
  %v341 = vadd.f32 %v340, %v310
  %v342 = vadd.f32 %v341, %v313
  %v343 = vrot.slane %v342, 4
  %v344 = vadd.f32 %v342, %v343
  %v345 = vrot.slane %v344, 2
  %v346 = vadd.f32 %v344, %v345
  %v347 = vrot.slane %v346, 1
  %v348 = vadd.f32 %v346, %v347
  %349 = vst [vmem:[%s3] sm:$0x1] %v348
  %v350 = vmul.f32 %v262, %v262
  %v351 = vmul.f32 %v265, %v265
  %v352 = vmul.f32 %v270, %v270
  %v353 = vmul.f32 %v273, %v273
  %v354 = vmul.f32 %v278, %v278
  %v355 = vmul.f32 %v281, %v281
  %v356 = vmul.f32 %v286, %v286
  %v357 = vmul.f32 %v289, %v289
  %v358 = vmul.f32 %v294, %v294
  %v359 = vmul.f32 %v297, %v297
  %v360 = vmul.f32 %v302, %v302
  %v361 = vmul.f32 %v305, %v305
  %v362 = vmul.f32 %v310, %v310
  %v363 = vmul.f32 %v313, %v313
  %v364 = vadd.f32 %v350, %v351
  %v365 = vadd.f32 %v364, %v352
  %v366 = vadd.f32 %v365, %v353
  %v367 = vadd.f32 %v366, %v354
  %v368 = vadd.f32 %v367, %v355
  %v369 = vadd.f32 %v368, %v356
  %v370 = vadd.f32 %v369, %v357
  %v371 = vadd.f32 %v370, %v358
  %v372 = vadd.f32 %v371, %v359
  %v373 = vadd.f32 %v372, %v360
  %v374 = vadd.f32 %v373, %v361
  %v375 = vadd.f32 %v374, %v362
  %v376 = vadd.f32 %v375, %v363
  %v377 = vrot.slane %v376, 4
  %v378 = vadd.f32 %v376, %v377
  %v379 = vrot.slane %v378, 2
  %v380 = vadd.f32 %v378, %v379
  %v381 = vrot.slane %v380, 1
  %v382 = vadd.f32 %v380, %v381
  %383 = vst [vmem:[%s4] sm:$0x1] %v382
  // Predicated region
  $region10: #{inception_stem_forward.31} parent=0 // pred_check
    _
  $region11: #{inception_stem_forward.31} parent=0 // pred_check_branch
    %385 = sbr.rel (0) target = $region13
  $region12: #{inception_stem_forward.31} parent=0 // pred_region
    _
  $region13: #{inception_stem_forward.31} parent=0 // pred_fallthru
    _
  // Predicated region
  $region14: #{inception_stem_forward.31} parent=0 // pred_check
    _
  $region15: #{inception_stem_forward.31} parent=0 // pred_check_branch
    %387 = sbr.rel (0) target = $region17
  $region16: #{inception_stem_forward.31} parent=0 // pred_region
    _
  $region17: #{inception_stem_forward.31} parent=0 // pred_fallthru
    _
  // Predicated region
  $region18: #{inception_stem_forward.31} parent=0 // pred_check
    _
  $region19: #{inception_stem_forward.31} parent=0 // pred_check_branch
    %389 = sbr.rel (0) target = $region21
  $region20: #{inception_stem_forward.31} parent=0 // pred_region
    _
  $region21: #{inception_stem_forward.31} parent=0 // pred_fallthru
    _
  // Predicated region
  $region22: #{inception_stem_forward.31} parent=0 // pred_check
    _
  $region23: #{inception_stem_forward.31} parent=0 // pred_check_branch
    %391 = sbr.rel (0) target = $region25
  $region24: #{inception_stem_forward.31} parent=0 // pred_region
    _
  $region25: #{inception_stem_forward.31} parent=0 // pred_fallthru
    _
  // Predicated region
  $region26: #{inception_stem_forward.31} parent=0 // pred_check
    _
  $region27: #{inception_stem_forward.31} parent=0 // pred_check_branch
    %393 = sbr.rel (0) target = $region29
  $region28: #{inception_stem_forward.31} parent=0 // pred_region
    _
  $region29: #{inception_stem_forward.31} parent=0 // pred_fallthru
    _
  // Predicated region
  $region30: #{inception_stem_forward.31} parent=0 // pred_check
    _
  $region31: #{inception_stem_forward.31} parent=0 // pred_check_branch
    %395 = sbr.rel (0) target = $region33
  $region32: #{inception_stem_forward.31} parent=0 // pred_region
    _
  $region33: #{inception_stem_forward.31} parent=0 // pred_fallthru
    _

// kernel: inception_stem_forward.34
$region0: #{inception_stem_forward.34}
  #allocation0 [shape = 'u32[]', space=smem, size = 0x4, offset = 0x4, fixed_abs, tag = 'smem constant byte address 0x4 - core index']
  #allocation1 [shape = 'u32[144,128]{1,0:T(1,128)}', space=vmem, size = 0x12000, scoped, tag = 'internal scratch']
  %s0 = inlined_call_operand.vmem [shape: f32[64,128], index: 0, kind: input, shape index: {}]
  %s1 = inlined_call_operand.vmem [shape: f32[2,128], index: 1, kind: input, shape index: {}]
  %s2 = inlined_call_operand.vmem [shape: f32[2,128], index: 2, kind: input, shape index: {}]
  %s3 = inlined_call_operand.vmem [shape: f32[64,128], index: 3, kind: output, shape index: {}]
  %s4 = sld [smem:[#allocation0]]
  $region22: #{inception_stem_forward.34} parent=0
    _
  %s6 = ssub.s32 1, %s4
  %s7 = scalar_select 0, %s6, %s4
  // Predicated region
  $region2: #{inception_stem_forward.34} parent=0 // pred_check
    _
  $region3: #{inception_stem_forward.34} parent=0 // pred_check_branch
    %9 = sbr.rel (0) target = $region5
  $region4: #{inception_stem_forward.34} parent=0 // pred_region
    _
  $region5: #{inception_stem_forward.34} parent=0 // pred_fallthru
    _
  // Predicated region
  $region6: #{inception_stem_forward.34} parent=0 // pred_check
    _
  $region7: #{inception_stem_forward.34} parent=0 // pred_check_branch
    %11 = sbr.rel (0) target = $region9
  $region8: #{inception_stem_forward.34} parent=0 // pred_region
    _
  $region9: #{inception_stem_forward.34} parent=0 // pred_fallthru
    _
  // Predicated region
  $region10: #{inception_stem_forward.34} parent=0 // pred_check
    _
  $region11: #{inception_stem_forward.34} parent=0 // pred_check_branch
    %13 = sbr.rel (0) target = $region13
  $region12: #{inception_stem_forward.34} parent=0 // pred_region
    _
  $region13: #{inception_stem_forward.34} parent=0 // pred_fallthru
    _
  %v14 = vld [vmem:[%s1] sm:$0x1]
  %v15 = vmul.f32 %v14, 0.02
  %v16 = vld [vmem:[%s1 + $0x1] sm:$0x1]
  %v17 = vmul.f32 %v16, 0.02
  %v18 = vmul.f32 %v15, %v15
  %v19 = vsub.f32 %v17, %v18
  %v20 = vmax.f32 %v19, 0.0
  %v21 = vld [vmem:[%s2] sm:$0x1]
  %v22 = vadd.f32 %v20, 0.001
  %v23 = vrsqrt.pop %v22
  %v24 = vmul.f32 %v21, %v23
  %v25 = vld [vmem:[%s2 + $0x1] sm:$0x1]
  %v26 = vmul.f32 %v15, %v24
  %v27 = vsub.f32 %v25, %v26
  %v28 = vld [vmem:[%s0] sm:$0xff]
  %v29 = vld [vmem:[%s0 + $0x8] sm:$0xff]
  %v30 = vld [vmem:[%s0 + $0x10] sm:$0xff]
  %v31 = vld [vmem:[%s0 + $0x18] sm:$0xff]
  %v32 = vld [vmem:[%s0 + $0x20] sm:$0xff]
  %v33 = vld [vmem:[%s0 + $0x28] sm:$0xff]
  %v34 = vld [vmem:[%s0 + $0x30] sm:$0xff]
  %v35 = vld [vmem:[%s0 + $0x38] sm:$0xff]
  %v36 = vlaneseq
  %v37 = vshrl.u32 %v36, 7
  %v38 = vsub.s32 0, %v37
  %v39 = vrot.slane %v24, %v38
  %v40 = vmul.f32 %v28, %v39
  %v41 = vmul.f32 %v29, %v39
  %v42 = vmul.f32 %v30, %v39
  %v43 = vmul.f32 %v31, %v39
  %v44 = vmul.f32 %v32, %v39
  %v45 = vmul.f32 %v33, %v39
  %v46 = vmul.f32 %v34, %v39
  %v47 = vmul.f32 %v35, %v39
  %v48 = vlaneseq
  %v49 = vshrl.u32 %v48, 7
  %v50 = vsub.s32 0, %v49
  %v51 = vrot.slane %v27, %v50
  %v52 = vadd.f32 %v40, %v51
  %v53 = vadd.f32 %v41, %v51
  %v54 = vadd.f32 %v42, %v51
  %v55 = vadd.f32 %v43, %v51
  %v56 = vadd.f32 %v44, %v51
  %v57 = vadd.f32 %v45, %v51
  %v58 = vadd.f32 %v46, %v51
  %v59 = vadd.f32 %v47, %v51
  %v60 = vmax.f32 %v52, 0.0
  %v61 = vmax.f32 %v53, 0.0
  %v62 = vmax.f32 %v54, 0.0
  %v63 = vmax.f32 %v55, 0.0
  %v64 = vmax.f32 %v56, 0.0
  %v65 = vmax.f32 %v57, 0.0
  %v66 = vmax.f32 %v58, 0.0
  %v67 = vmax.f32 %v59, 0.0
  %68 = vst [vmem:[%s3] sm:$0xff] %v60
  %69 = vst [vmem:[%s3 + $0x8] sm:$0xff] %v61
  %70 = vst [vmem:[%s3 + $0x10] sm:$0xff] %v62
  %71 = vst [vmem:[%s3 + $0x18] sm:$0xff] %v63
  %72 = vst [vmem:[%s3 + $0x20] sm:$0xff] %v64
  %73 = vst [vmem:[%s3 + $0x28] sm:$0xff] %v65
  %74 = vst [vmem:[%s3 + $0x30] sm:$0xff] %v66
  %75 = vst [vmem:[%s3 + $0x38] sm:$0xff] %v67
  // Predicated region
  $region14: #{inception_stem_forward.34} parent=0 // pred_check
    _
  $region15: #{inception_stem_forward.34} parent=0 // pred_check_branch
    %77 = sbr.rel (0) target = $region17
  $region16: #{inception_stem_forward.34} parent=0 // pred_region
    _
  $region17: #{inception_stem_forward.34} parent=0 // pred_fallthru
    _
  // Predicated region
  $region18: #{inception_stem_forward.34} parent=0 // pred_check
    _
  $region19: #{inception_stem_forward.34} parent=0 // pred_check_branch
    %79 = sbr.rel (0) target = $region21
  $region20: #{inception_stem_forward.34} parent=0 // pred_region
    _
  $region21: #{inception_stem_forward.34} parent=0 // pred_fallthru
    _

// kernel: inception_stem_forward.33
$region0: #{inception_stem_forward.33}
  #allocation0 [shape = 'u32[]', space=smem, size = 0x4, offset = 0x4, fixed_abs, tag = 'smem constant byte address 0x4 - core index']
  #allocation1 [shape = 'u32[144,128]{1,0:T(1,128)}', space=vmem, size = 0x12000, scoped, tag = 'internal scratch']
  %s0 = inlined_call_operand.vmem [shape: bf16[64,640], index: 0, kind: input, shape index: {}]
  %s1 = inlined_call_operand.vmem [shape: bf16[640,128], index: 1, kind: input, shape index: {}]
  %s2 = inlined_call_operand.vmem [shape: f32[64,128], index: 2, kind: output, shape index: {0}]
  %s3 = inlined_call_operand.vmem [shape: f32[1,1,128], index: 3, kind: output, shape index: {1}]
  %s4 = inlined_call_operand.vmem [shape: f32[1,1,128], index: 4, kind: output, shape index: {2}]
  %5 = xla_tuple %s2, %s3, %s4
  %s6 = sld [smem:[#allocation0]]
  $region34: #{inception_stem_forward.33} parent=0
    _
  %s8 = ssub.s32 1, %s6
  %s9 = scalar_select 0, %s8, %s6
  // Predicated region
  $region2: #{inception_stem_forward.33} parent=0 // pred_check
    _
  $region3: #{inception_stem_forward.33} parent=0 // pred_check_branch
    %11 = sbr.rel (0) target = $region5
  $region4: #{inception_stem_forward.33} parent=0 // pred_region
    _
  $region5: #{inception_stem_forward.33} parent=0 // pred_fallthru
    _
  // Predicated region
  $region6: #{inception_stem_forward.33} parent=0 // pred_check
    _
  $region7: #{inception_stem_forward.33} parent=0 // pred_check_branch
    %13 = sbr.rel (0) target = $region9
  $region8: #{inception_stem_forward.33} parent=0 // pred_region
    _
  $region9: #{inception_stem_forward.33} parent=0 // pred_fallthru
    _
  %v15 = vld [vmem:[%s0] sm:$0xff]
  %v16 = vld [vmem:[%s0 + $0x8] sm:$0xff]
  %v17 = vld [vmem:[%s0 + $0x10] sm:$0xf]
  %v18 = vld [vmem:[%s0 + $0x14] sm:$0xff]
  %v19 = vld [vmem:[%s0 + $0x1c] sm:$0xff]
  %v20 = vld [vmem:[%s0 + $0x24] sm:$0xf]
  %v21 = vld [vmem:[%s0 + $0x28] sm:$0xff]
  %v22 = vld [vmem:[%s0 + $0x30] sm:$0xff]
  %v23 = vld [vmem:[%s0 + $0x38] sm:$0xf]
  %v24 = vld [vmem:[%s0 + $0x3c] sm:$0xff]
  %v25 = vld [vmem:[%s0 + $0x44] sm:$0xff]
  %v26 = vld [vmem:[%s0 + $0x4c] sm:$0xf]
  %v27 = vld [vmem:[%s0 + $0x50] sm:$0xff]
  %v28 = vld [vmem:[%s0 + $0x58] sm:$0xff]
  %v29 = vld [vmem:[%s0 + $0x60] sm:$0xf]
  %v30 = vld [vmem:[%s0 + $0x64] sm:$0xff]
  %v31 = vld [vmem:[%s0 + $0x6c] sm:$0xff]
  %v32 = vld [vmem:[%s0 + $0x74] sm:$0xf]
  %v33 = vld [vmem:[%s0 + $0x78] sm:$0xff]
  %v34 = vld [vmem:[%s0 + $0x80] sm:$0xff]
  %v35 = vld [vmem:[%s0 + $0x88] sm:$0xf]
  %v36 = vld [vmem:[%s0 + $0x8c] sm:$0xff]
  %v37 = vld [vmem:[%s0 + $0x94] sm:$0xff]
  %v38 = vld [vmem:[%s0 + $0x9c] sm:$0xf]
  %v39 = vld [vmem:[%s1] sm:$0xf]
  %v40 = vld [vmem:[%s1 + $0x4] sm:$0xf]
  %v41 = vld [vmem:[%s1 + $0x8] sm:$0xf]
  %v42 = vld [vmem:[%s1 + $0xc] sm:$0xf]
  %v43 = vld [vmem:[%s1 + $0x10] sm:$0xf]
  %v44 = vld [vmem:[%s1 + $0x14] sm:$0xf]
  %v45 = vld [vmem:[%s1 + $0x18] sm:$0xf]
  %v46 = vld [vmem:[%s1 + $0x1c] sm:$0xf]
  %v47 = vld [vmem:[%s1 + $0x20] sm:$0xf]
  %v48 = vld [vmem:[%s1 + $0x24] sm:$0xf]
  %v49 = vld [vmem:[%s1 + $0x28] sm:$0xf]
  %v50 = vld [vmem:[%s1 + $0x2c] sm:$0xf]
  %v51 = vld [vmem:[%s1 + $0x30] sm:$0xf]
  %v52 = vld [vmem:[%s1 + $0x34] sm:$0xf]
  %v53 = vld [vmem:[%s1 + $0x38] sm:$0xf]
  %v54 = vld [vmem:[%s1 + $0x3c] sm:$0xf]
  %v55 = vld [vmem:[%s1 + $0x40] sm:$0xf]
  %v56 = vld [vmem:[%s1 + $0x44] sm:$0xf]
  %v57 = vld [vmem:[%s1 + $0x48] sm:$0xf]
  %v58 = vld [vmem:[%s1 + $0x4c] sm:$0xf]
  %v59 = vld [vmem:[%s1 + $0x50] sm:$0xf]
  %v60 = vld [vmem:[%s1 + $0x54] sm:$0xf]
  %v61 = vld [vmem:[%s1 + $0x58] sm:$0xf]
  %v62 = vld [vmem:[%s1 + $0x5c] sm:$0xf]
  %v63 = vld [vmem:[%s1 + $0x60] sm:$0xf]
  %v64 = vld [vmem:[%s1 + $0x64] sm:$0xf]
  %v65 = vld [vmem:[%s1 + $0x68] sm:$0xf]
  %v66 = vld [vmem:[%s1 + $0x6c] sm:$0xf]
  %v67 = vld [vmem:[%s1 + $0x70] sm:$0xf]
  %v68 = vld [vmem:[%s1 + $0x74] sm:$0xf]
  %v69 = vld [vmem:[%s1 + $0x78] sm:$0xf]
  %v70 = vld [vmem:[%s1 + $0x7c] sm:$0xf]
  %v71 = vld [vmem:[%s1 + $0x80] sm:$0xf]
  %v72 = vld [vmem:[%s1 + $0x84] sm:$0xf]
  %v73 = vld [vmem:[%s1 + $0x88] sm:$0xf]
  %v74 = vld [vmem:[%s1 + $0x8c] sm:$0xf]
  %v75 = vld [vmem:[%s1 + $0x90] sm:$0xf]
  %v76 = vld [vmem:[%s1 + $0x94] sm:$0xf]
  %v77 = vld [vmem:[%s1 + $0x98] sm:$0xf]
  %v78 = vld [vmem:[%s1 + $0x9c] sm:$0xf]
  %v79 = vld [vmem:[%s1 + $0xa0] sm:$0xf]
  %v80 = vld [vmem:[%s1 + $0xa4] sm:$0xf]
  %v81 = vld [vmem:[%s1 + $0xa8] sm:$0xf]
  %v82 = vld [vmem:[%s1 + $0xac] sm:$0xf]
  %v83 = vld [vmem:[%s1 + $0xb0] sm:$0xf]
  %v84 = vld [vmem:[%s1 + $0xb4] sm:$0xf]
  %v85 = vld [vmem:[%s1 + $0xb8] sm:$0xf]
  %v86 = vld [vmem:[%s1 + $0xbc] sm:$0xf]
  %v87 = vld [vmem:[%s1 + $0xc0] sm:$0xf]
  %v88 = vld [vmem:[%s1 + $0xc4] sm:$0xf]
  %v89 = vld [vmem:[%s1 + $0xc8] sm:$0xf]
  %v90 = vld [vmem:[%s1 + $0xcc] sm:$0xf]
  %v91 = vld [vmem:[%s1 + $0xd0] sm:$0xf]
  %v92 = vld [vmem:[%s1 + $0xd4] sm:$0xf]
  %v93 = vld [vmem:[%s1 + $0xd8] sm:$0xf]
  %v94 = vld [vmem:[%s1 + $0xdc] sm:$0xf]
  %v95 = vld [vmem:[%s1 + $0xe0] sm:$0xf]
  %v96 = vld [vmem:[%s1 + $0xe4] sm:$0xf]
  %v97 = vld [vmem:[%s1 + $0xe8] sm:$0xf]
  %v98 = vld [vmem:[%s1 + $0xec] sm:$0xf]
  %v99 = vld [vmem:[%s1 + $0xf0] sm:$0xf]
  %v100 = vld [vmem:[%s1 + $0xf4] sm:$0xf]
  %v101 = vld [vmem:[%s1 + $0xf8] sm:$0xf]
  %v102 = vld [vmem:[%s1 + $0xfc] sm:$0xf]
  %v103 = vld [vmem:[%s1 + $0x100] sm:$0xf]
  %v104 = vld [vmem:[%s1 + $0x104] sm:$0xf]
  %v105 = vld [vmem:[%s1 + $0x108] sm:$0xf]
  %v106 = vld [vmem:[%s1 + $0x10c] sm:$0xf]
  %v107 = vld [vmem:[%s1 + $0x110] sm:$0xf]
  %v108 = vld [vmem:[%s1 + $0x114] sm:$0xf]
  %v109 = vld [vmem:[%s1 + $0x118] sm:$0xf]
  %v110 = vld [vmem:[%s1 + $0x11c] sm:$0xf]
  %v111 = vld [vmem:[%s1 + $0x120] sm:$0xf]
  %v112 = vld [vmem:[%s1 + $0x124] sm:$0xf]
  %v113 = vld [vmem:[%s1 + $0x128] sm:$0xf]
  %v114 = vld [vmem:[%s1 + $0x12c] sm:$0xf]
  %v115 = vld [vmem:[%s1 + $0x130] sm:$0xf]
  %v116 = vld [vmem:[%s1 + $0x134] sm:$0xf]
  %v117 = vld [vmem:[%s1 + $0x138] sm:$0xf]
  %v118 = vld [vmem:[%s1 + $0x13c] sm:$0xf]
  %v143 = vunpack.c.l.b16 %v15
  %v144 = vunpack.c.h.b16 %v15
  %v145 = vunpack.c.l.b16 %v16
  %v146 = vunpack.c.h.b16 %v16
  %v147 = vunpack.c.l.b16 %v17
  %v148 = vunpack.c.l.b16 %v18
  %v149 = vunpack.c.h.b16 %v18
  %v150 = vunpack.c.l.b16 %v19
  %v151 = vunpack.c.h.b16 %v19
  %v152 = vunpack.c.l.b16 %v20
  %v153 = vunpack.c.l.b16 %v21
  %v154 = vunpack.c.h.b16 %v21
  %v155 = vunpack.c.l.b16 %v22
  %v156 = vunpack.c.h.b16 %v22
  %v157 = vunpack.c.l.b16 %v23
  %v158 = vunpack.c.l.b16 %v24
  %v159 = vunpack.c.h.b16 %v24
  %v160 = vunpack.c.l.b16 %v25
  %v161 = vunpack.c.h.b16 %v25
  %v162 = vunpack.c.l.b16 %v26
  %v163 = vunpack.c.l.b16 %v27
  %v164 = vunpack.c.h.b16 %v27
  %v165 = vunpack.c.l.b16 %v28
  %v166 = vunpack.c.h.b16 %v28
  %v167 = vunpack.c.l.b16 %v29
  %v168 = vunpack.c.l.b16 %v30
  %v169 = vunpack.c.h.b16 %v30
  %v170 = vunpack.c.l.b16 %v31
  %v171 = vunpack.c.h.b16 %v31
  %v172 = vunpack.c.l.b16 %v32
  %v173 = vunpack.c.l.b16 %v33
  %v174 = vunpack.c.h.b16 %v33
  %v175 = vunpack.c.l.b16 %v34
  %v176 = vunpack.c.h.b16 %v34
  %v177 = vunpack.c.l.b16 %v35
  %v178 = vunpack.c.l.b16 %v36
  %v179 = vunpack.c.h.b16 %v36
  %v180 = vunpack.c.l.b16 %v37
  %v181 = vunpack.c.h.b16 %v37
  %v182 = vunpack.c.l.b16 %v38
  %v183 = vpack.c.b16 %v148, %v143
  %v184 = vpack.c.b16 %v149, %v144
  %v185 = vpack.c.b16 %v150, %v145
  %v186 = vpack.c.b16 %v151, %v146
  %v187 = vpack.c.b16 %v152, %v147
  %v188 = vpack.c.b16 %v158, %v153
  %v189 = vpack.c.b16 %v159, %v154
  %v190 = vpack.c.b16 %v160, %v155
  %v191 = vpack.c.b16 %v161, %v156
  %v192 = vpack.c.b16 %v162, %v157
  %v193 = vpack.c.b16 %v168, %v163
  %v194 = vpack.c.b16 %v169, %v164
  %v195 = vpack.c.b16 %v170, %v165
  %v196 = vpack.c.b16 %v171, %v166
  %v197 = vpack.c.b16 %v172, %v167
  %v198 = vpack.c.b16 %v178, %v173
  %v199 = vpack.c.b16 %v179, %v174
  %v200 = vpack.c.b16 %v180, %v175
  %v201 = vpack.c.b16 %v181, %v176
  %v202 = vpack.c.b16 %v182, %v177
  %v303 = vunpack.c.l.b16 %v39
  %v304 = vunpack.c.l.b16 %v40
  %v305 = vunpack.c.l.b16 %v41
  %v306 = vunpack.c.l.b16 %v42
  %v307 = vunpack.c.l.b16 %v43
  %v308 = vunpack.c.l.b16 %v44
  %v309 = vunpack.c.l.b16 %v45
  %v310 = vunpack.c.l.b16 %v46
  %v311 = vunpack.c.l.b16 %v47
  %v312 = vunpack.c.l.b16 %v48
  %v313 = vunpack.c.l.b16 %v49
  %v314 = vunpack.c.l.b16 %v50
  %v315 = vunpack.c.l.b16 %v51
  %v316 = vunpack.c.l.b16 %v52
  %v317 = vunpack.c.l.b16 %v53
  %v318 = vunpack.c.l.b16 %v54
  %v319 = vunpack.c.l.b16 %v55
  %v320 = vunpack.c.l.b16 %v56
  %v321 = vunpack.c.l.b16 %v57
  %v322 = vunpack.c.l.b16 %v58
  %v323 = vunpack.c.l.b16 %v59
  %v324 = vunpack.c.l.b16 %v60
  %v325 = vunpack.c.l.b16 %v61
  %v326 = vunpack.c.l.b16 %v62
  %v327 = vunpack.c.l.b16 %v63
  %v328 = vunpack.c.l.b16 %v64
  %v329 = vunpack.c.l.b16 %v65
  %v330 = vunpack.c.l.b16 %v66
  %v331 = vunpack.c.l.b16 %v67
  %v332 = vunpack.c.l.b16 %v68
  %v333 = vunpack.c.l.b16 %v69
  %v334 = vunpack.c.l.b16 %v70
  %v335 = vunpack.c.l.b16 %v71
  %v336 = vunpack.c.l.b16 %v72
  %v337 = vunpack.c.l.b16 %v73
  %v338 = vunpack.c.l.b16 %v74
  %v339 = vunpack.c.l.b16 %v75
  %v340 = vunpack.c.l.b16 %v76
  %v341 = vunpack.c.l.b16 %v77
  %v342 = vunpack.c.l.b16 %v78
  %v343 = vunpack.c.l.b16 %v79
  %v344 = vunpack.c.l.b16 %v80
  %v345 = vunpack.c.l.b16 %v81
  %v346 = vunpack.c.l.b16 %v82
  %v347 = vunpack.c.l.b16 %v83
  %v348 = vunpack.c.l.b16 %v84
  %v349 = vunpack.c.l.b16 %v85
  %v350 = vunpack.c.l.b16 %v86
  %v351 = vunpack.c.l.b16 %v87
  %v352 = vunpack.c.l.b16 %v88
  %v353 = vunpack.c.l.b16 %v89
  %v354 = vunpack.c.l.b16 %v90
  %v355 = vunpack.c.l.b16 %v91
  %v356 = vunpack.c.l.b16 %v92
  %v357 = vunpack.c.l.b16 %v93
  %v358 = vunpack.c.l.b16 %v94
  %v359 = vunpack.c.l.b16 %v95
  %v360 = vunpack.c.l.b16 %v96
  %v361 = vunpack.c.l.b16 %v97
  %v362 = vunpack.c.l.b16 %v98
  %v363 = vunpack.c.l.b16 %v99
  %v364 = vunpack.c.l.b16 %v100
  %v365 = vunpack.c.l.b16 %v101
  %v366 = vunpack.c.l.b16 %v102
  %v367 = vunpack.c.l.b16 %v103
  %v368 = vunpack.c.l.b16 %v104
  %v369 = vunpack.c.l.b16 %v105
  %v370 = vunpack.c.l.b16 %v106
  %v371 = vunpack.c.l.b16 %v107
  %v372 = vunpack.c.l.b16 %v108
  %v373 = vunpack.c.l.b16 %v109
  %v374 = vunpack.c.l.b16 %v110
  %v375 = vunpack.c.l.b16 %v111
  %v376 = vunpack.c.l.b16 %v112
  %v377 = vunpack.c.l.b16 %v113
  %v378 = vunpack.c.l.b16 %v114
  %v379 = vunpack.c.l.b16 %v115
  %v380 = vunpack.c.l.b16 %v116
  %v381 = vunpack.c.l.b16 %v117
  %v382 = vunpack.c.l.b16 %v118
  %v383 = vpack.c.b16 %v304, %v303
  %v384 = vpack.c.b16 %v306, %v305
  %v385 = vpack.c.b16 %v308, %v307
  %v386 = vpack.c.b16 %v310, %v309
  %v387 = vpack.c.b16 %v312, %v311
  %v388 = vpack.c.b16 %v314, %v313
  %v389 = vpack.c.b16 %v316, %v315
  %v390 = vpack.c.b16 %v318, %v317
  %v391 = vpack.c.b16 %v320, %v319
  %v392 = vpack.c.b16 %v322, %v321
  %v393 = vpack.c.b16 %v324, %v323
  %v394 = vpack.c.b16 %v326, %v325
  %v395 = vpack.c.b16 %v328, %v327
  %v396 = vpack.c.b16 %v330, %v329
  %v397 = vpack.c.b16 %v332, %v331
  %v398 = vpack.c.b16 %v334, %v333
  %v399 = vpack.c.b16 %v336, %v335
  %v400 = vpack.c.b16 %v338, %v337
  %v401 = vpack.c.b16 %v340, %v339
  %v402 = vpack.c.b16 %v342, %v341
  %v403 = vpack.c.b16 %v344, %v343
  %v404 = vpack.c.b16 %v346, %v345
  %v405 = vpack.c.b16 %v348, %v347
  %v406 = vpack.c.b16 %v350, %v349
  %v407 = vpack.c.b16 %v352, %v351
  %v408 = vpack.c.b16 %v354, %v353
  %v409 = vpack.c.b16 %v356, %v355
  %v410 = vpack.c.b16 %v358, %v357
  %v411 = vpack.c.b16 %v360, %v359
  %v412 = vpack.c.b16 %v362, %v361
  %v413 = vpack.c.b16 %v364, %v363
  %v414 = vpack.c.b16 %v366, %v365
  %v415 = vpack.c.b16 %v368, %v367
  %v416 = vpack.c.b16 %v370, %v369
  %v417 = vpack.c.b16 %v372, %v371
  %v418 = vpack.c.b16 %v374, %v373
  %v419 = vpack.c.b16 %v376, %v375
  %v420 = vpack.c.b16 %v378, %v377
  %v421 = vpack.c.b16 %v380, %v379
  %v422 = vpack.c.b16 %v382, %v381
  %463 = vmatprep.subr.bf16.mxu0 0
  %464 = vmatpush1.bf16.msra.mxu0 %v383
  %465 = vmatprep.subr.bf16.mxu0 0
  %466 = vmatpush1.bf16.msra.mxu0 %v384
  %467 = vmatprep.subr.bf16.mxu0 0
  %468 = vmatpush1.bf16.msra.mxu0 %v385
  %469 = vmatprep.subr.bf16.mxu0 0
  %470 = vmatpush1.bf16.msra.mxu0 %v386
  %471 = vmatprep.subr.bf16.mxu0 0
  %472 = vmatpush1.bf16.msra.mxu0 %v387
  %473 = vmatprep.subr.bf16.mxu0 0
  %474 = vmatpush1.bf16.msra.mxu0 %v388
  %475 = vmatprep.subr.bf16.mxu0 0
  %476 = vmatpush1.bf16.msra.mxu0 %v389
  %477 = vmatprep.subr.bf16.mxu0 0
  %478 = vmatpush1.bf16.msra.mxu0 %v390
  %479 = vmatprep.subr.bf16.mxu0 0
  %480 = vmatpush1.bf16.msra.mxu0 %v391
  %481 = vmatprep.subr.bf16.mxu0 0
  %482 = vmatpush1.bf16.msra.mxu0 %v392
  %483 = vmatprep.subr.bf16.mxu0 0
  %484 = vmatpush1.bf16.msra.mxu0 %v393
  %485 = vmatprep.subr.bf16.mxu0 0
  %486 = vmatpush1.bf16.msra.mxu0 %v394
  %487 = vmatprep.subr.bf16.mxu0 0
  %488 = vmatpush1.bf16.msra.mxu0 %v395
  %489 = vmatprep.subr.bf16.mxu0 0
  %490 = vmatpush1.bf16.msra.mxu0 %v396
  %491 = vmatprep.subr.bf16.mxu0 0
  %492 = vmatpush1.bf16.msra.mxu0 %v397
  %493 = vmatprep.subr.bf16.mxu0 0
  %494 = vmatpush1.bf16.msra.mxu0 %v398
  %495 = vmatprep.mubr.bf16.mxu0 %v184
  %496 = vmatmul.mubr.bf16.gmra.mrb[0].mxu0 %v183
  %v497 = vpop.f32.mrb[0].mxu0
  %v498 = vadd.f32 0.0, %v497
  %v499 = vpop.f32.mrb[0].mxu0
  %v500 = vpop.f32.mrb[0].mxu0
  %v501 = vadd.f32 0.0, %v500
  %v502 = vpop.f32.mrb[0].mxu0
  %503 = vmatprep.mubr.bf16.mxu0 %v189
  %504 = vmatmul.mubr.bf16.gmra.mrb[0].mxu0 %v188
  %v505 = vpop.f32.mrb[0].mxu0
  %v506 = vadd.f32 0.0, %v505
  %v507 = vpop.f32.mrb[0].mxu0
  %v508 = vpop.f32.mrb[0].mxu0
  %v509 = vadd.f32 0.0, %v508
  %v510 = vpop.f32.mrb[0].mxu0
  %511 = vmatprep.mubr.bf16.mxu0 %v194
  %512 = vmatmul.mubr.bf16.gmra.mrb[0].mxu0 %v193
  %v513 = vpop.f32.mrb[0].mxu0
  %v514 = vadd.f32 0.0, %v513
  %v515 = vpop.f32.mrb[0].mxu0
  %v516 = vpop.f32.mrb[0].mxu0
  %v517 = vadd.f32 0.0, %v516
  %v518 = vpop.f32.mrb[0].mxu0
  %519 = vmatprep.mubr.bf16.mxu0 %v199
  %520 = vmatmul.mubr.bf16.gmra.mrb[0].mxu0 %v198
  %v521 = vpop.f32.mrb[0].mxu0
  %v522 = vadd.f32 0.0, %v521
  %v523 = vpop.f32.mrb[0].mxu0
  %v524 = vpop.f32.mrb[0].mxu0
  %v525 = vadd.f32 0.0, %v524
  %v526 = vpop.f32.mrb[0].mxu0
  %527 = vdwg.mxu0
  %528 = vmatprep.subr.bf16.mxu0 0
  %529 = vmatpush1.bf16.msra.mxu0 %v399
  %530 = vmatprep.subr.bf16.mxu0 0
  %531 = vmatpush1.bf16.msra.mxu0 %v400
  %532 = vmatprep.subr.bf16.mxu0 0
  %533 = vmatpush1.bf16.msra.mxu0 %v401
  %534 = vmatprep.subr.bf16.mxu0 0
  %535 = vmatpush1.bf16.msra.mxu0 %v402
  %536 = vmatprep.subr.bf16.mxu0 0
  %537 = vmatpush1.bf16.msra.mxu0 %v403
  %538 = vmatprep.subr.bf16.mxu0 0
  %539 = vmatpush1.bf16.msra.mxu0 %v404
  %540 = vmatprep.subr.bf16.mxu0 0
  %541 = vmatpush1.bf16.msra.mxu0 %v405
  %542 = vmatprep.subr.bf16.mxu0 0
  %543 = vmatpush1.bf16.msra.mxu0 %v406
  %544 = vmatprep.subr.bf16.mxu0 0
  %545 = vmatpush1.bf16.msra.mxu0 %v407
  %546 = vmatprep.subr.bf16.mxu0 0
  %547 = vmatpush1.bf16.msra.mxu0 %v408
  %548 = vmatprep.subr.bf16.mxu0 0
  %549 = vmatpush1.bf16.msra.mxu0 %v409
  %550 = vmatprep.subr.bf16.mxu0 0
  %551 = vmatpush1.bf16.msra.mxu0 %v410
  %552 = vmatprep.subr.bf16.mxu0 0
  %553 = vmatpush1.bf16.msra.mxu0 %v411
  %554 = vmatprep.subr.bf16.mxu0 0
  %555 = vmatpush1.bf16.msra.mxu0 %v412
  %556 = vmatprep.subr.bf16.mxu0 0
  %557 = vmatpush1.bf16.msra.mxu0 %v413
  %558 = vmatprep.subr.bf16.mxu0 0
  %559 = vmatpush1.bf16.msra.mxu0 %v414
  %560 = vmatprep.mubr.bf16.mxu0 %v186
  %561 = vmatmul.mubr.bf16.gmra.mrb[0].mxu0 %v185
  %v562 = vpop.f32.mrb[0].mxu0
  %v563 = vadd.f32 %v498, %v562
  %v564 = vpop.f32.mrb[0].mxu0
  %v565 = vpop.f32.mrb[0].mxu0
  %v566 = vadd.f32 %v501, %v565
  %v567 = vpop.f32.mrb[0].mxu0
  %568 = vmatprep.mubr.bf16.mxu0 %v191
  %569 = vmatmul.mubr.bf16.gmra.mrb[0].mxu0 %v190
  %v570 = vpop.f32.mrb[0].mxu0
  %v571 = vadd.f32 %v506, %v570
  %v572 = vpop.f32.mrb[0].mxu0
  %v573 = vpop.f32.mrb[0].mxu0
  %v574 = vadd.f32 %v509, %v573
  %v575 = vpop.f32.mrb[0].mxu0
  %576 = vmatprep.mubr.bf16.mxu0 %v196
  %577 = vmatmul.mubr.bf16.gmra.mrb[0].mxu0 %v195
  %v578 = vpop.f32.mrb[0].mxu0
  %v579 = vadd.f32 %v514, %v578
  %v580 = vpop.f32.mrb[0].mxu0
  %v581 = vpop.f32.mrb[0].mxu0
  %v582 = vadd.f32 %v517, %v581
  %v583 = vpop.f32.mrb[0].mxu0
  %584 = vmatprep.mubr.bf16.mxu0 %v201
  %585 = vmatmul.mubr.bf16.gmra.mrb[0].mxu0 %v200
  %v586 = vpop.f32.mrb[0].mxu0
  %v587 = vadd.f32 %v522, %v586
  %v588 = vpop.f32.mrb[0].mxu0
  %v589 = vpop.f32.mrb[0].mxu0
  %v590 = vadd.f32 %v525, %v589
  %v591 = vpop.f32.mrb[0].mxu0
  %592 = vdwg.mxu0
  %593 = vmatprep.subr.bf16.mxu0 0
  %594 = vmatpush1.bf16.msra.mxu0 %v415
  %595 = vmatprep.subr.bf16.mxu0 0
  %596 = vmatpush1.bf16.msra.mxu0 %v416
  %597 = vmatprep.subr.bf16.mxu0 0
  %598 = vmatpush1.bf16.msra.mxu0 %v417
  %599 = vmatprep.subr.bf16.mxu0 0
  %600 = vmatpush1.bf16.msra.mxu0 %v418
  %601 = vmatprep.subr.bf16.mxu0 0
  %602 = vmatpush1.bf16.msra.mxu0 %v419
  %603 = vmatprep.subr.bf16.mxu0 0
  %604 = vmatpush1.bf16.msra.mxu0 %v420
  %605 = vmatprep.subr.bf16.mxu0 0
  %606 = vmatpush1.bf16.msra.mxu0 %v421
  %607 = vmatprep.subr.bf16.mxu0 0
  %608 = vmatpush1.bf16.msra.mxu0 %v422
  %609 = vmatprep.subr.bf16.mxu0 0
  %610 = vmatpush1.bf16.msra.mxu0 0
  %611 = vmatprep.subr.bf16.mxu0 0
  %612 = vmatpush1.bf16.msra.mxu0 0
  %613 = vmatprep.subr.bf16.mxu0 0
  %614 = vmatpush1.bf16.msra.mxu0 0
  %615 = vmatprep.subr.bf16.mxu0 0
  %616 = vmatpush1.bf16.msra.mxu0 0
  %617 = vmatprep.subr.bf16.mxu0 0
  %618 = vmatpush1.bf16.msra.mxu0 0
  %619 = vmatprep.subr.bf16.mxu0 0
  %620 = vmatpush1.bf16.msra.mxu0 0
  %621 = vmatprep.subr.bf16.mxu0 0
  %622 = vmatpush1.bf16.msra.mxu0 0
  %623 = vmatprep.subr.bf16.mxu0 0
  %624 = vmatpush1.bf16.msra.mxu0 0
  %625 = vmatprep.mubr.bf16.mxu0 0
  %626 = vmatmul.mubr.bf16.gmra.mrb[0].mxu0 %v187
  %v627 = vpop.f32.mrb[0].mxu0
  %v628 = vadd.f32 %v563, %v627
  %v629 = vpop.f32.mrb[0].mxu0
  %v630 = vpop.f32.mrb[0].mxu0
  %v631 = vadd.f32 %v566, %v630
  %v632 = vpop.f32.mrb[0].mxu0
  %633 = vmatprep.mubr.bf16.mxu0 0
  %634 = vmatmul.mubr.bf16.gmra.mrb[0].mxu0 %v192
  %v635 = vpop.f32.mrb[0].mxu0
  %v636 = vadd.f32 %v571, %v635
  %v637 = vpop.f32.mrb[0].mxu0
  %v638 = vpop.f32.mrb[0].mxu0
  %v639 = vadd.f32 %v574, %v638
  %v640 = vpop.f32.mrb[0].mxu0
  %641 = vmatprep.mubr.bf16.mxu0 0
  %642 = vmatmul.mubr.bf16.gmra.mrb[0].mxu0 %v197
  %v643 = vpop.f32.mrb[0].mxu0
  %v644 = vadd.f32 %v579, %v643
  %v645 = vpop.f32.mrb[0].mxu0
  %v646 = vpop.f32.mrb[0].mxu0
  %v647 = vadd.f32 %v582, %v646
  %v648 = vpop.f32.mrb[0].mxu0
  %649 = vmatprep.mubr.bf16.mxu0 0
  %650 = vmatmul.mubr.bf16.gmra.mrb[0].mxu0 %v202
  %v651 = vpop.f32.mrb[0].mxu0
  %v652 = vadd.f32 %v587, %v651
  %v653 = vpop.f32.mrb[0].mxu0
  %v654 = vpop.f32.mrb[0].mxu0
  %v655 = vadd.f32 %v590, %v654
  %v656 = vpop.f32.mrb[0].mxu0
  %657 = vdwg.mxu0
  %658 = vst [vmem:[%s2] sm:$0xff] %v628
  %659 = vst [vmem:[%s2 + $0x8] sm:$0xff] %v631
  %660 = vst [vmem:[%s2 + $0x10] sm:$0xff] %v636
  %661 = vst [vmem:[%s2 + $0x18] sm:$0xff] %v639
  %662 = vst [vmem:[%s2 + $0x20] sm:$0xff] %v644
  %663 = vst [vmem:[%s2 + $0x28] sm:$0xff] %v647
  %664 = vst [vmem:[%s2 + $0x30] sm:$0xff] %v652
  %665 = vst [vmem:[%s2 + $0x38] sm:$0xff] %v655
  %v666 = vadd.f32 %v628, %v631
  %v667 = vadd.f32 %v666, %v636
  %v668 = vadd.f32 %v667, %v639
  %v669 = vadd.f32 %v668, %v644
  %v670 = vadd.f32 %v669, %v647
  %v671 = vadd.f32 %v670, %v652
  %v672 = vadd.f32 %v671, %v655
  %v673 = vrot.slane %v672, 4
  %v674 = vadd.f32 %v672, %v673
  %v675 = vrot.slane %v674, 2
  %v676 = vadd.f32 %v674, %v675
  %v677 = vrot.slane %v676, 1
  %v678 = vadd.f32 %v676, %v677
  %679 = vst [vmem:[%s3] sm:$0x1] %v678
  %v680 = vmul.f32 %v628, %v628
  %v681 = vmul.f32 %v631, %v631
  %v682 = vmul.f32 %v636, %v636
  %v683 = vmul.f32 %v639, %v639
  %v684 = vmul.f32 %v644, %v644
  %v685 = vmul.f32 %v647, %v647
  %v686 = vmul.f32 %v652, %v652
  %v687 = vmul.f32 %v655, %v655
  %v688 = vadd.f32 %v680, %v681
  %v689 = vadd.f32 %v688, %v682
  %v690 = vadd.f32 %v689, %v683
  %v691 = vadd.f32 %v690, %v684
  %v692 = vadd.f32 %v691, %v685
  %v693 = vadd.f32 %v692, %v686
  %v694 = vadd.f32 %v693, %v687
  %v695 = vrot.slane %v694, 4
  %v696 = vadd.f32 %v694, %v695
  %v697 = vrot.slane %v696, 2
  %v698 = vadd.f32 %v696, %v697
  %v699 = vrot.slane %v698, 1
  %v700 = vadd.f32 %v698, %v699
  %701 = vst [vmem:[%s4] sm:$0x1] %v700
  // Predicated region
  $region10: #{inception_stem_forward.33} parent=0 // pred_check
    _
  $region11: #{inception_stem_forward.33} parent=0 // pred_check_branch
    %703 = sbr.rel (0) target = $region13
  $region12: #{inception_stem_forward.33} parent=0 // pred_region
    _
  $region13: #{inception_stem_forward.33} parent=0 // pred_fallthru
    _
  // Predicated region
  $region14: #{inception_stem_forward.33} parent=0 // pred_check
    _
  $region15: #{inception_stem_forward.33} parent=0 // pred_check_branch
    %705 = sbr.rel (0) target = $region17
  $region16: #{inception_stem_forward.33} parent=0 // pred_region
    _
  $region17: #{inception_stem_forward.33} parent=0 // pred_fallthru
    _
  // Predicated region
  $region18: #{inception_stem_forward.33} parent=0 // pred_check
    _
  $region19: #{inception_stem_forward.33} parent=0 // pred_check_branch
    %707 = sbr.rel (0) target = $region21
  $region20: #{inception_stem_forward.33} parent=0 // pred_region
    _
  $region21: #{inception_stem_forward.33} parent=0 // pred_fallthru
    _
  // Predicated region
  $region22: #{inception_stem_forward.33} parent=0 // pred_check
    _
  $region23: #{inception_stem_forward.33} parent=0 // pred_check_branch
    %709 = sbr.rel (0) target = $region25
  $region24: #{inception_stem_forward.33} parent=0 // pred_region
    _
  $region25: #{inception_stem_forward.33} parent=0 // pred_fallthru
    _
  // Predicated region
  $region26: #{inception_stem_forward.33} parent=0 // pred_check
    _
  $region27: #{inception_stem_forward.33} parent=0 // pred_check_branch
    %711 = sbr.rel (0) target = $region29
  $region28: #{inception_stem_forward.33} parent=0 // pred_region
    _
  $region29: #{inception_stem_forward.33} parent=0 // pred_fallthru
    _
  // Predicated region
  $region30: #{inception_stem_forward.33} parent=0 // pred_check
    _
  $region31: #{inception_stem_forward.33} parent=0 // pred_check_branch
    %713 = sbr.rel (0) target = $region33
  $region32: #{inception_stem_forward.33} parent=0 // pred_region
    _
  $region33: #{inception_stem_forward.33} parent=0 // pred_fallthru
    _

// kernel: inception_stem_forward.35
$region0: #{inception_stem_forward.35}
  #allocation0 [shape = 'u32[]', space=smem, size = 0x4, offset = 0x4, fixed_abs, tag = 'smem constant byte address 0x4 - core index']
  #allocation1 [shape = 'u32[144,128]{1,0:T(1,128)}', space=vmem, size = 0x12000, scoped, tag = 'internal scratch']
  %s0 = inlined_call_operand.vmem [shape: bf16[112,512], index: 0, kind: input, shape index: {}]
  %s1 = inlined_call_operand.vmem [shape: bf16[512,128], index: 1, kind: input, shape index: {}]
  %s2 = inlined_call_operand.vmem [shape: f32[112,128], index: 2, kind: output, shape index: {0}]
  %s3 = inlined_call_operand.vmem [shape: f32[1,1,128], index: 3, kind: output, shape index: {1}]
  %s4 = inlined_call_operand.vmem [shape: f32[1,1,128], index: 4, kind: output, shape index: {2}]
  %5 = xla_tuple %s2, %s3, %s4
  %s6 = sld [smem:[#allocation0]]
  $region34: #{inception_stem_forward.35} parent=0
    _
  %s8 = ssub.s32 1, %s6
  %s9 = scalar_select 0, %s8, %s6
  // Predicated region
  $region2: #{inception_stem_forward.35} parent=0 // pred_check
    _
  $region3: #{inception_stem_forward.35} parent=0 // pred_check_branch
    %11 = sbr.rel (0) target = $region5
  $region4: #{inception_stem_forward.35} parent=0 // pred_region
    _
  $region5: #{inception_stem_forward.35} parent=0 // pred_fallthru
    _
  // Predicated region
  $region6: #{inception_stem_forward.35} parent=0 // pred_check
    _
  $region7: #{inception_stem_forward.35} parent=0 // pred_check_branch
    %13 = sbr.rel (0) target = $region9
  $region8: #{inception_stem_forward.35} parent=0 // pred_region
    _
  $region9: #{inception_stem_forward.35} parent=0 // pred_fallthru
    _
  %v15 = vld [vmem:[%s0] sm:$0xff]
  %v16 = vld [vmem:[%s0 + $0x8] sm:$0xff]
  %v17 = vld [vmem:[%s0 + $0x10] sm:$0xff]
  %v18 = vld [vmem:[%s0 + $0x18] sm:$0xff]
  %v19 = vld [vmem:[%s0 + $0x20] sm:$0xff]
  %v20 = vld [vmem:[%s0 + $0x28] sm:$0xff]
  %v21 = vld [vmem:[%s0 + $0x30] sm:$0xff]
  %v22 = vld [vmem:[%s0 + $0x38] sm:$0xff]
  %v23 = vld [vmem:[%s0 + $0x40] sm:$0xff]
  %v24 = vld [vmem:[%s0 + $0x48] sm:$0xff]
  %v25 = vld [vmem:[%s0 + $0x50] sm:$0xff]
  %v26 = vld [vmem:[%s0 + $0x58] sm:$0xff]
  %v27 = vld [vmem:[%s0 + $0x60] sm:$0xff]
  %v28 = vld [vmem:[%s0 + $0x68] sm:$0xff]
  %v29 = vld [vmem:[%s0 + $0x70] sm:$0xff]
  %v30 = vld [vmem:[%s0 + $0x78] sm:$0xff]
  %v31 = vld [vmem:[%s0 + $0x80] sm:$0xff]
  %v32 = vld [vmem:[%s0 + $0x88] sm:$0xff]
  %v33 = vld [vmem:[%s0 + $0x90] sm:$0xff]
  %v34 = vld [vmem:[%s0 + $0x98] sm:$0xff]
  %v35 = vld [vmem:[%s0 + $0xa0] sm:$0xff]
  %v36 = vld [vmem:[%s0 + $0xa8] sm:$0xff]
  %v37 = vld [vmem:[%s0 + $0xb0] sm:$0xff]
  %v38 = vld [vmem:[%s0 + $0xb8] sm:$0xff]
  %v39 = vld [vmem:[%s0 + $0xc0] sm:$0xff]
  %v40 = vld [vmem:[%s0 + $0xc8] sm:$0xff]
  %v41 = vld [vmem:[%s0 + $0xd0] sm:$0xff]
  %v42 = vld [vmem:[%s0 + $0xd8] sm:$0xff]
  %v43 = vld [vmem:[%s1] sm:$0xf]
  %v44 = vld [vmem:[%s1 + $0x4] sm:$0xf]
  %v45 = vld [vmem:[%s1 + $0x8] sm:$0xf]
  %v46 = vld [vmem:[%s1 + $0xc] sm:$0xf]
  %v47 = vld [vmem:[%s1 + $0x10] sm:$0xf]
  %v48 = vld [vmem:[%s1 + $0x14] sm:$0xf]
  %v49 = vld [vmem:[%s1 + $0x18] sm:$0xf]
  %v50 = vld [vmem:[%s1 + $0x1c] sm:$0xf]
  %v51 = vld [vmem:[%s1 + $0x20] sm:$0xf]
  %v52 = vld [vmem:[%s1 + $0x24] sm:$0xf]
  %v53 = vld [vmem:[%s1 + $0x28] sm:$0xf]
  %v54 = vld [vmem:[%s1 + $0x2c] sm:$0xf]
  %v55 = vld [vmem:[%s1 + $0x30] sm:$0xf]
  %v56 = vld [vmem:[%s1 + $0x34] sm:$0xf]
  %v57 = vld [vmem:[%s1 + $0x38] sm:$0xf]
  %v58 = vld [vmem:[%s1 + $0x3c] sm:$0xf]
  %v59 = vld [vmem:[%s1 + $0x40] sm:$0xf]
  %v60 = vld [vmem:[%s1 + $0x44] sm:$0xf]
  %v61 = vld [vmem:[%s1 + $0x48] sm:$0xf]
  %v62 = vld [vmem:[%s1 + $0x4c] sm:$0xf]
  %v63 = vld [vmem:[%s1 + $0x50] sm:$0xf]
  %v64 = vld [vmem:[%s1 + $0x54] sm:$0xf]
  %v65 = vld [vmem:[%s1 + $0x58] sm:$0xf]
  %v66 = vld [vmem:[%s1 + $0x5c] sm:$0xf]
  %v67 = vld [vmem:[%s1 + $0x60] sm:$0xf]
  %v68 = vld [vmem:[%s1 + $0x64] sm:$0xf]
  %v69 = vld [vmem:[%s1 + $0x68] sm:$0xf]
  %v70 = vld [vmem:[%s1 + $0x6c] sm:$0xf]
  %v71 = vld [vmem:[%s1 + $0x70] sm:$0xf]
  %v72 = vld [vmem:[%s1 + $0x74] sm:$0xf]
  %v73 = vld [vmem:[%s1 + $0x78] sm:$0xf]
  %v74 = vld [vmem:[%s1 + $0x7c] sm:$0xf]
  %v75 = vld [vmem:[%s1 + $0x80] sm:$0xf]
  %v76 = vld [vmem:[%s1 + $0x84] sm:$0xf]
  %v77 = vld [vmem:[%s1 + $0x88] sm:$0xf]
  %v78 = vld [vmem:[%s1 + $0x8c] sm:$0xf]
  %v79 = vld [vmem:[%s1 + $0x90] sm:$0xf]
  %v80 = vld [vmem:[%s1 + $0x94] sm:$0xf]
  %v81 = vld [vmem:[%s1 + $0x98] sm:$0xf]
  %v82 = vld [vmem:[%s1 + $0x9c] sm:$0xf]
  %v83 = vld [vmem:[%s1 + $0xa0] sm:$0xf]
  %v84 = vld [vmem:[%s1 + $0xa4] sm:$0xf]
  %v85 = vld [vmem:[%s1 + $0xa8] sm:$0xf]
  %v86 = vld [vmem:[%s1 + $0xac] sm:$0xf]
  %v87 = vld [vmem:[%s1 + $0xb0] sm:$0xf]
  %v88 = vld [vmem:[%s1 + $0xb4] sm:$0xf]
  %v89 = vld [vmem:[%s1 + $0xb8] sm:$0xf]
  %v90 = vld [vmem:[%s1 + $0xbc] sm:$0xf]
  %v91 = vld [vmem:[%s1 + $0xc0] sm:$0xf]
  %v92 = vld [vmem:[%s1 + $0xc4] sm:$0xf]
  %v93 = vld [vmem:[%s1 + $0xc8] sm:$0xf]
  %v94 = vld [vmem:[%s1 + $0xcc] sm:$0xf]
  %v95 = vld [vmem:[%s1 + $0xd0] sm:$0xf]
  %v96 = vld [vmem:[%s1 + $0xd4] sm:$0xf]
  %v97 = vld [vmem:[%s1 + $0xd8] sm:$0xf]
  %v98 = vld [vmem:[%s1 + $0xdc] sm:$0xf]
  %v99 = vld [vmem:[%s1 + $0xe0] sm:$0xf]
  %v100 = vld [vmem:[%s1 + $0xe4] sm:$0xf]
  %v101 = vld [vmem:[%s1 + $0xe8] sm:$0xf]
  %v102 = vld [vmem:[%s1 + $0xec] sm:$0xf]
  %v103 = vld [vmem:[%s1 + $0xf0] sm:$0xf]
  %v104 = vld [vmem:[%s1 + $0xf4] sm:$0xf]
  %v105 = vld [vmem:[%s1 + $0xf8] sm:$0xf]
  %v106 = vld [vmem:[%s1 + $0xfc] sm:$0xf]
  %v135 = vunpack.c.l.b16 %v15
  %v136 = vunpack.c.h.b16 %v15
  %v137 = vunpack.c.l.b16 %v16
  %v138 = vunpack.c.h.b16 %v16
  %v139 = vunpack.c.l.b16 %v17
  %v140 = vunpack.c.h.b16 %v17
  %v141 = vunpack.c.l.b16 %v18
  %v142 = vunpack.c.h.b16 %v18
  %v143 = vunpack.c.l.b16 %v19
  %v144 = vunpack.c.h.b16 %v19
  %v145 = vunpack.c.l.b16 %v20
  %v146 = vunpack.c.h.b16 %v20
  %v147 = vunpack.c.l.b16 %v21
  %v148 = vunpack.c.h.b16 %v21
  %v149 = vunpack.c.l.b16 %v22
  %v150 = vunpack.c.h.b16 %v22
  %v151 = vunpack.c.l.b16 %v23
  %v152 = vunpack.c.h.b16 %v23
  %v153 = vunpack.c.l.b16 %v24
  %v154 = vunpack.c.h.b16 %v24
  %v155 = vunpack.c.l.b16 %v25
  %v156 = vunpack.c.h.b16 %v25
  %v157 = vunpack.c.l.b16 %v26
  %v158 = vunpack.c.h.b16 %v26
  %v159 = vunpack.c.l.b16 %v27
  %v160 = vunpack.c.h.b16 %v27
  %v161 = vunpack.c.l.b16 %v28
  %v162 = vunpack.c.h.b16 %v28
  %v163 = vunpack.c.l.b16 %v29
  %v164 = vunpack.c.h.b16 %v29
  %v165 = vunpack.c.l.b16 %v30
  %v166 = vunpack.c.h.b16 %v30
  %v167 = vunpack.c.l.b16 %v31
  %v168 = vunpack.c.h.b16 %v31
  %v169 = vunpack.c.l.b16 %v32
  %v170 = vunpack.c.h.b16 %v32
  %v171 = vunpack.c.l.b16 %v33
  %v172 = vunpack.c.h.b16 %v33
  %v173 = vunpack.c.l.b16 %v34
  %v174 = vunpack.c.h.b16 %v34
  %v175 = vunpack.c.l.b16 %v35
  %v176 = vunpack.c.h.b16 %v35
  %v177 = vunpack.c.l.b16 %v36
  %v178 = vunpack.c.h.b16 %v36
  %v179 = vunpack.c.l.b16 %v37
  %v180 = vunpack.c.h.b16 %v37
  %v181 = vunpack.c.l.b16 %v38
  %v182 = vunpack.c.h.b16 %v38
  %v183 = vunpack.c.l.b16 %v39
  %v184 = vunpack.c.h.b16 %v39
  %v185 = vunpack.c.l.b16 %v40
  %v186 = vunpack.c.h.b16 %v40
  %v187 = vunpack.c.l.b16 %v41
  %v188 = vunpack.c.h.b16 %v41
  %v189 = vunpack.c.l.b16 %v42
  %v190 = vunpack.c.h.b16 %v42
  %v191 = vpack.c.b16 %v139, %v135
  %v192 = vpack.c.b16 %v140, %v136
  %v193 = vpack.c.b16 %v141, %v137
  %v194 = vpack.c.b16 %v142, %v138
  %v195 = vpack.c.b16 %v147, %v143
  %v196 = vpack.c.b16 %v148, %v144
  %v197 = vpack.c.b16 %v149, %v145
  %v198 = vpack.c.b16 %v150, %v146
  %v199 = vpack.c.b16 %v155, %v151
  %v200 = vpack.c.b16 %v156, %v152
  %v201 = vpack.c.b16 %v157, %v153
  %v202 = vpack.c.b16 %v158, %v154
  %v203 = vpack.c.b16 %v163, %v159
  %v204 = vpack.c.b16 %v164, %v160
  %v205 = vpack.c.b16 %v165, %v161
  %v206 = vpack.c.b16 %v166, %v162
  %v207 = vpack.c.b16 %v171, %v167
  %v208 = vpack.c.b16 %v172, %v168
  %v209 = vpack.c.b16 %v173, %v169
  %v210 = vpack.c.b16 %v174, %v170
  %v211 = vpack.c.b16 %v179, %v175
  %v212 = vpack.c.b16 %v180, %v176
  %v213 = vpack.c.b16 %v181, %v177
  %v214 = vpack.c.b16 %v182, %v178
  %v215 = vpack.c.b16 %v187, %v183
  %v216 = vpack.c.b16 %v188, %v184
  %v217 = vpack.c.b16 %v189, %v185
  %v218 = vpack.c.b16 %v190, %v186
  %v311 = vunpack.c.l.b16 %v43
  %v312 = vunpack.c.l.b16 %v44
  %v313 = vunpack.c.l.b16 %v45
  %v314 = vunpack.c.l.b16 %v46
  %v315 = vunpack.c.l.b16 %v47
  %v316 = vunpack.c.l.b16 %v48
  %v317 = vunpack.c.l.b16 %v49
  %v318 = vunpack.c.l.b16 %v50
  %v319 = vunpack.c.l.b16 %v51
  %v320 = vunpack.c.l.b16 %v52
  %v321 = vunpack.c.l.b16 %v53
  %v322 = vunpack.c.l.b16 %v54
  %v323 = vunpack.c.l.b16 %v55
  %v324 = vunpack.c.l.b16 %v56
  %v325 = vunpack.c.l.b16 %v57
  %v326 = vunpack.c.l.b16 %v58
  %v327 = vunpack.c.l.b16 %v59
  %v328 = vunpack.c.l.b16 %v60
  %v329 = vunpack.c.l.b16 %v61
  %v330 = vunpack.c.l.b16 %v62
  %v331 = vunpack.c.l.b16 %v63
  %v332 = vunpack.c.l.b16 %v64
  %v333 = vunpack.c.l.b16 %v65
  %v334 = vunpack.c.l.b16 %v66
  %v335 = vunpack.c.l.b16 %v67
  %v336 = vunpack.c.l.b16 %v68
  %v337 = vunpack.c.l.b16 %v69
  %v338 = vunpack.c.l.b16 %v70
  %v339 = vunpack.c.l.b16 %v71
  %v340 = vunpack.c.l.b16 %v72
  %v341 = vunpack.c.l.b16 %v73
  %v342 = vunpack.c.l.b16 %v74
  %v343 = vunpack.c.l.b16 %v75
  %v344 = vunpack.c.l.b16 %v76
  %v345 = vunpack.c.l.b16 %v77
  %v346 = vunpack.c.l.b16 %v78
  %v347 = vunpack.c.l.b16 %v79
  %v348 = vunpack.c.l.b16 %v80
  %v349 = vunpack.c.l.b16 %v81
  %v350 = vunpack.c.l.b16 %v82
  %v351 = vunpack.c.l.b16 %v83
  %v352 = vunpack.c.l.b16 %v84
  %v353 = vunpack.c.l.b16 %v85
  %v354 = vunpack.c.l.b16 %v86
  %v355 = vunpack.c.l.b16 %v87
  %v356 = vunpack.c.l.b16 %v88
  %v357 = vunpack.c.l.b16 %v89
  %v358 = vunpack.c.l.b16 %v90
  %v359 = vunpack.c.l.b16 %v91
  %v360 = vunpack.c.l.b16 %v92
  %v361 = vunpack.c.l.b16 %v93
  %v362 = vunpack.c.l.b16 %v94
  %v363 = vunpack.c.l.b16 %v95
  %v364 = vunpack.c.l.b16 %v96
  %v365 = vunpack.c.l.b16 %v97
  %v366 = vunpack.c.l.b16 %v98
  %v367 = vunpack.c.l.b16 %v99
  %v368 = vunpack.c.l.b16 %v100
  %v369 = vunpack.c.l.b16 %v101
  %v370 = vunpack.c.l.b16 %v102
  %v371 = vunpack.c.l.b16 %v103
  %v372 = vunpack.c.l.b16 %v104
  %v373 = vunpack.c.l.b16 %v105
  %v374 = vunpack.c.l.b16 %v106
  %v375 = vpack.c.b16 %v312, %v311
  %v376 = vpack.c.b16 %v314, %v313
  %v377 = vpack.c.b16 %v316, %v315
  %v378 = vpack.c.b16 %v318, %v317
  %v379 = vpack.c.b16 %v320, %v319
  %v380 = vpack.c.b16 %v322, %v321
  %v381 = vpack.c.b16 %v324, %v323
  %v382 = vpack.c.b16 %v326, %v325
  %v383 = vpack.c.b16 %v328, %v327
  %v384 = vpack.c.b16 %v330, %v329
  %v385 = vpack.c.b16 %v332, %v331
  %v386 = vpack.c.b16 %v334, %v333
  %v387 = vpack.c.b16 %v336, %v335
  %v388 = vpack.c.b16 %v338, %v337
  %v389 = vpack.c.b16 %v340, %v339
  %v390 = vpack.c.b16 %v342, %v341
  %v391 = vpack.c.b16 %v344, %v343
  %v392 = vpack.c.b16 %v346, %v345
  %v393 = vpack.c.b16 %v348, %v347
  %v394 = vpack.c.b16 %v350, %v349
  %v395 = vpack.c.b16 %v352, %v351
  %v396 = vpack.c.b16 %v354, %v353
  %v397 = vpack.c.b16 %v356, %v355
  %v398 = vpack.c.b16 %v358, %v357
  %v399 = vpack.c.b16 %v360, %v359
  %v400 = vpack.c.b16 %v362, %v361
  %v401 = vpack.c.b16 %v364, %v363
  %v402 = vpack.c.b16 %v366, %v365
  %v403 = vpack.c.b16 %v368, %v367
  %v404 = vpack.c.b16 %v370, %v369
  %v405 = vpack.c.b16 %v372, %v371
  %v406 = vpack.c.b16 %v374, %v373
  %439 = vmatprep.subr.bf16.mxu0 0
  %440 = vmatpush1.bf16.msra.mxu0 %v375
  %441 = vmatprep.subr.bf16.mxu0 0
  %442 = vmatpush1.bf16.msra.mxu0 %v376
  %443 = vmatprep.subr.bf16.mxu0 0
  %444 = vmatpush1.bf16.msra.mxu0 %v377
  %445 = vmatprep.subr.bf16.mxu0 0
  %446 = vmatpush1.bf16.msra.mxu0 %v378
  %447 = vmatprep.subr.bf16.mxu0 0
  %448 = vmatpush1.bf16.msra.mxu0 %v379
  %449 = vmatprep.subr.bf16.mxu0 0
  %450 = vmatpush1.bf16.msra.mxu0 %v380
  %451 = vmatprep.subr.bf16.mxu0 0
  %452 = vmatpush1.bf16.msra.mxu0 %v381
  %453 = vmatprep.subr.bf16.mxu0 0
  %454 = vmatpush1.bf16.msra.mxu0 %v382
  %455 = vmatprep.subr.bf16.mxu0 0
  %456 = vmatpush1.bf16.msra.mxu0 %v383
  %457 = vmatprep.subr.bf16.mxu0 0
  %458 = vmatpush1.bf16.msra.mxu0 %v384
  %459 = vmatprep.subr.bf16.mxu0 0
  %460 = vmatpush1.bf16.msra.mxu0 %v385
  %461 = vmatprep.subr.bf16.mxu0 0
  %462 = vmatpush1.bf16.msra.mxu0 %v386
  %463 = vmatprep.subr.bf16.mxu0 0
  %464 = vmatpush1.bf16.msra.mxu0 %v387
  %465 = vmatprep.subr.bf16.mxu0 0
  %466 = vmatpush1.bf16.msra.mxu0 %v388
  %467 = vmatprep.subr.bf16.mxu0 0
  %468 = vmatpush1.bf16.msra.mxu0 %v389
  %469 = vmatprep.subr.bf16.mxu0 0
  %470 = vmatpush1.bf16.msra.mxu0 %v390
  %471 = vmatprep.mubr.bf16.mxu0 %v192
  %472 = vmatmul.mubr.bf16.gmra.mrb[0].mxu0 %v191
  %v473 = vpop.f32.mrb[0].mxu0
  %v474 = vadd.f32 0.0, %v473
  %v475 = vpop.f32.mrb[0].mxu0
  %v476 = vpop.f32.mrb[0].mxu0
  %v477 = vadd.f32 0.0, %v476
  %v478 = vpop.f32.mrb[0].mxu0
  %479 = vmatprep.mubr.bf16.mxu0 %v196
  %480 = vmatmul.mubr.bf16.gmra.mrb[0].mxu0 %v195
  %v481 = vpop.f32.mrb[0].mxu0
  %v482 = vadd.f32 0.0, %v481
  %v483 = vpop.f32.mrb[0].mxu0
  %v484 = vpop.f32.mrb[0].mxu0
  %v485 = vadd.f32 0.0, %v484
  %v486 = vpop.f32.mrb[0].mxu0
  %487 = vmatprep.mubr.bf16.mxu0 %v200
  %488 = vmatmul.mubr.bf16.gmra.mrb[0].mxu0 %v199
  %v489 = vpop.f32.mrb[0].mxu0
  %v490 = vadd.f32 0.0, %v489
  %v491 = vpop.f32.mrb[0].mxu0
  %v492 = vpop.f32.mrb[0].mxu0
  %v493 = vadd.f32 0.0, %v492
  %v494 = vpop.f32.mrb[0].mxu0
  %495 = vmatprep.mubr.bf16.mxu0 %v204
  %496 = vmatmul.mubr.bf16.gmra.mrb[0].mxu0 %v203
  %v497 = vpop.f32.mrb[0].mxu0
  %v498 = vadd.f32 0.0, %v497
  %v499 = vpop.f32.mrb[0].mxu0
  %v500 = vpop.f32.mrb[0].mxu0
  %v501 = vadd.f32 0.0, %v500
  %v502 = vpop.f32.mrb[0].mxu0
  %503 = vmatprep.mubr.bf16.mxu0 %v208
  %504 = vmatmul.mubr.bf16.gmra.mrb[0].mxu0 %v207
  %v505 = vpop.f32.mrb[0].mxu0
  %v506 = vadd.f32 0.0, %v505
  %v507 = vpop.f32.mrb[0].mxu0
  %v508 = vpop.f32.mrb[0].mxu0
  %v509 = vadd.f32 0.0, %v508
  %v510 = vpop.f32.mrb[0].mxu0
  %511 = vmatprep.mubr.bf16.mxu0 %v212
  %512 = vmatmul.mubr.bf16.gmra.mrb[0].mxu0 %v211
  %v513 = vpop.f32.mrb[0].mxu0
  %v514 = vadd.f32 0.0, %v513
  %v515 = vpop.f32.mrb[0].mxu0
  %v516 = vpop.f32.mrb[0].mxu0
  %v517 = vadd.f32 0.0, %v516
  %v518 = vpop.f32.mrb[0].mxu0
  %519 = vmatprep.mubr.bf16.mxu0 %v216
  %520 = vmatmul.mubr.bf16.gmra.mrb[0].mxu0 %v215
  %v521 = vpop.f32.mrb[0].mxu0
  %v522 = vadd.f32 0.0, %v521
  %v523 = vpop.f32.mrb[0].mxu0
  %v524 = vpop.f32.mrb[0].mxu0
  %v525 = vadd.f32 0.0, %v524
  %v526 = vpop.f32.mrb[0].mxu0
  %527 = vdwg.mxu0
  %528 = vmatprep.subr.bf16.mxu0 0
  %529 = vmatpush1.bf16.msra.mxu0 %v391
  %530 = vmatprep.subr.bf16.mxu0 0
  %531 = vmatpush1.bf16.msra.mxu0 %v392
  %532 = vmatprep.subr.bf16.mxu0 0
  %533 = vmatpush1.bf16.msra.mxu0 %v393
  %534 = vmatprep.subr.bf16.mxu0 0
  %535 = vmatpush1.bf16.msra.mxu0 %v394
  %536 = vmatprep.subr.bf16.mxu0 0
  %537 = vmatpush1.bf16.msra.mxu0 %v395
  %538 = vmatprep.subr.bf16.mxu0 0
  %539 = vmatpush1.bf16.msra.mxu0 %v396
  %540 = vmatprep.subr.bf16.mxu0 0
  %541 = vmatpush1.bf16.msra.mxu0 %v397
  %542 = vmatprep.subr.bf16.mxu0 0
  %543 = vmatpush1.bf16.msra.mxu0 %v398
  %544 = vmatprep.subr.bf16.mxu0 0
  %545 = vmatpush1.bf16.msra.mxu0 %v399
  %546 = vmatprep.subr.bf16.mxu0 0
  %547 = vmatpush1.bf16.msra.mxu0 %v400
  %548 = vmatprep.subr.bf16.mxu0 0
  %549 = vmatpush1.bf16.msra.mxu0 %v401
  %550 = vmatprep.subr.bf16.mxu0 0
  %551 = vmatpush1.bf16.msra.mxu0 %v402
  %552 = vmatprep.subr.bf16.mxu0 0
  %553 = vmatpush1.bf16.msra.mxu0 %v403
  %554 = vmatprep.subr.bf16.mxu0 0
  %555 = vmatpush1.bf16.msra.mxu0 %v404
  %556 = vmatprep.subr.bf16.mxu0 0
  %557 = vmatpush1.bf16.msra.mxu0 %v405
  %558 = vmatprep.subr.bf16.mxu0 0
  %559 = vmatpush1.bf16.msra.mxu0 %v406
  %560 = vmatprep.mubr.bf16.mxu0 %v194
  %561 = vmatmul.mubr.bf16.gmra.mrb[0].mxu0 %v193
  %v562 = vpop.f32.mrb[0].mxu0
  %v563 = vadd.f32 %v474, %v562
  %v564 = vpop.f32.mrb[0].mxu0
  %v565 = vpop.f32.mrb[0].mxu0
  %v566 = vadd.f32 %v477, %v565
  %v567 = vpop.f32.mrb[0].mxu0
  %568 = vmatprep.mubr.bf16.mxu0 %v198
  %569 = vmatmul.mubr.bf16.gmra.mrb[0].mxu0 %v197
  %v570 = vpop.f32.mrb[0].mxu0
  %v571 = vadd.f32 %v482, %v570
  %v572 = vpop.f32.mrb[0].mxu0
  %v573 = vpop.f32.mrb[0].mxu0
  %v574 = vadd.f32 %v485, %v573
  %v575 = vpop.f32.mrb[0].mxu0
  %576 = vmatprep.mubr.bf16.mxu0 %v202
  %577 = vmatmul.mubr.bf16.gmra.mrb[0].mxu0 %v201
  %v578 = vpop.f32.mrb[0].mxu0
  %v579 = vadd.f32 %v490, %v578
  %v580 = vpop.f32.mrb[0].mxu0
  %v581 = vpop.f32.mrb[0].mxu0
  %v582 = vadd.f32 %v493, %v581
  %v583 = vpop.f32.mrb[0].mxu0
  %584 = vmatprep.mubr.bf16.mxu0 %v206
  %585 = vmatmul.mubr.bf16.gmra.mrb[0].mxu0 %v205
  %v586 = vpop.f32.mrb[0].mxu0
  %v587 = vadd.f32 %v498, %v586
  %v588 = vpop.f32.mrb[0].mxu0
  %v589 = vpop.f32.mrb[0].mxu0
  %v590 = vadd.f32 %v501, %v589
  %v591 = vpop.f32.mrb[0].mxu0
  %592 = vmatprep.mubr.bf16.mxu0 %v210
  %593 = vmatmul.mubr.bf16.gmra.mrb[0].mxu0 %v209
  %v594 = vpop.f32.mrb[0].mxu0
  %v595 = vadd.f32 %v506, %v594
  %v596 = vpop.f32.mrb[0].mxu0
  %v597 = vpop.f32.mrb[0].mxu0
  %v598 = vadd.f32 %v509, %v597
  %v599 = vpop.f32.mrb[0].mxu0
  %600 = vmatprep.mubr.bf16.mxu0 %v214
  %601 = vmatmul.mubr.bf16.gmra.mrb[0].mxu0 %v213
  %v602 = vpop.f32.mrb[0].mxu0
  %v603 = vadd.f32 %v514, %v602
  %v604 = vpop.f32.mrb[0].mxu0
  %v605 = vpop.f32.mrb[0].mxu0
  %v606 = vadd.f32 %v517, %v605
  %v607 = vpop.f32.mrb[0].mxu0
  %608 = vmatprep.mubr.bf16.mxu0 %v218
  %609 = vmatmul.mubr.bf16.gmra.mrb[0].mxu0 %v217
  %v610 = vpop.f32.mrb[0].mxu0
  %v611 = vadd.f32 %v522, %v610
  %v612 = vpop.f32.mrb[0].mxu0
  %v613 = vpop.f32.mrb[0].mxu0
  %v614 = vadd.f32 %v525, %v613
  %v615 = vpop.f32.mrb[0].mxu0
  %616 = vdwg.mxu0
  %617 = vst [vmem:[%s2] sm:$0xff] %v563
  %618 = vst [vmem:[%s2 + $0x8] sm:$0xff] %v566
  %619 = vst [vmem:[%s2 + $0x10] sm:$0xff] %v571
  %620 = vst [vmem:[%s2 + $0x18] sm:$0xff] %v574
  %621 = vst [vmem:[%s2 + $0x20] sm:$0xff] %v579
  %622 = vst [vmem:[%s2 + $0x28] sm:$0xff] %v582
  %623 = vst [vmem:[%s2 + $0x30] sm:$0xff] %v587
  %624 = vst [vmem:[%s2 + $0x38] sm:$0xff] %v590
  %625 = vst [vmem:[%s2 + $0x40] sm:$0xff] %v595
  %626 = vst [vmem:[%s2 + $0x48] sm:$0xff] %v598
  %627 = vst [vmem:[%s2 + $0x50] sm:$0xff] %v603
  %628 = vst [vmem:[%s2 + $0x58] sm:$0xff] %v606
  %629 = vst [vmem:[%s2 + $0x60] sm:$0xff] %v611
  %630 = vst [vmem:[%s2 + $0x68] sm:$0xff] %v614
  %v631 = vadd.f32 %v563, %v566
  %v632 = vadd.f32 %v631, %v571
  %v633 = vadd.f32 %v632, %v574
  %v634 = vadd.f32 %v633, %v579
  %v635 = vadd.f32 %v634, %v582
  %v636 = vadd.f32 %v635, %v587
  %v637 = vadd.f32 %v636, %v590
  %v638 = vadd.f32 %v637, %v595
  %v639 = vadd.f32 %v638, %v598
  %v640 = vadd.f32 %v639, %v603
  %v641 = vadd.f32 %v640, %v606
  %v642 = vadd.f32 %v641, %v611
  %v643 = vadd.f32 %v642, %v614
  %v644 = vrot.slane %v643, 4
  %v645 = vadd.f32 %v643, %v644
  %v646 = vrot.slane %v645, 2
  %v647 = vadd.f32 %v645, %v646
  %v648 = vrot.slane %v647, 1
  %v649 = vadd.f32 %v647, %v648
  %650 = vst [vmem:[%s3] sm:$0x1] %v649
  %v651 = vmul.f32 %v563, %v563
  %v652 = vmul.f32 %v566, %v566
  %v653 = vmul.f32 %v571, %v571
  %v654 = vmul.f32 %v574, %v574
  %v655 = vmul.f32 %v579, %v579
  %v656 = vmul.f32 %v582, %v582
  %v657 = vmul.f32 %v587, %v587
  %v658 = vmul.f32 %v590, %v590
  %v659 = vmul.f32 %v595, %v595
  %v660 = vmul.f32 %v598, %v598
  %v661 = vmul.f32 %v603, %v603
  %v662 = vmul.f32 %v606, %v606
  %v663 = vmul.f32 %v611, %v611
  %v664 = vmul.f32 %v614, %v614
  %v665 = vadd.f32 %v651, %v652
  %v666 = vadd.f32 %v665, %v653
  %v667 = vadd.f32 %v666, %v654
  %v668 = vadd.f32 %v667, %v655
  %v669 = vadd.f32 %v668, %v656
  %v670 = vadd.f32 %v669, %v657
  %v671 = vadd.f32 %v670, %v658
  %v672 = vadd.f32 %v671, %v659
  %v673 = vadd.f32 %v672, %v660
  %v674 = vadd.f32 %v673, %v661
  %v675 = vadd.f32 %v674, %v662
  %v676 = vadd.f32 %v675, %v663
  %v677 = vadd.f32 %v676, %v664
  %v678 = vrot.slane %v677, 4
  %v679 = vadd.f32 %v677, %v678
  %v680 = vrot.slane %v679, 2
  %v681 = vadd.f32 %v679, %v680
  %v682 = vrot.slane %v681, 1
  %v683 = vadd.f32 %v681, %v682
  %684 = vst [vmem:[%s4] sm:$0x1] %v683
  // Predicated region
  $region10: #{inception_stem_forward.35} parent=0 // pred_check
    _
  $region11: #{inception_stem_forward.35} parent=0 // pred_check_branch
    %686 = sbr.rel (0) target = $region13
  $region12: #{inception_stem_forward.35} parent=0 // pred_region
    _
  $region13: #{inception_stem_forward.35} parent=0 // pred_fallthru
    _
  // Predicated region
  $region14: #{inception_stem_forward.35} parent=0 // pred_check
    _
  $region15: #{inception_stem_forward.35} parent=0 // pred_check_branch
    %688 = sbr.rel (0) target = $region17
  $region16: #{inception_stem_forward.35} parent=0 // pred_region
    _
  $region17: #{inception_stem_forward.35} parent=0 // pred_fallthru
    _
  // Predicated region
  $region18: #{inception_stem_forward.35} parent=0 // pred_check
    _
  $region19: #{inception_stem_forward.35} parent=0 // pred_check_branch
    %690 = sbr.rel (0) target = $region21
  $region20: #{inception_stem_forward.35} parent=0 // pred_region
    _
  $region21: #{inception_stem_forward.35} parent=0 // pred_fallthru
    _
  // Predicated region
  $region22: #{inception_stem_forward.35} parent=0 // pred_check
    _
  $region23: #{inception_stem_forward.35} parent=0 // pred_check_branch
    %692 = sbr.rel (0) target = $region25
  $region24: #{inception_stem_forward.35} parent=0 // pred_region
    _
  $region25: #{inception_stem_forward.35} parent=0 // pred_fallthru
    _
  // Predicated region
  $region26: #{inception_stem_forward.35} parent=0 // pred_check
    _
  $region27: #{inception_stem_forward.35} parent=0 // pred_check_branch
    %694 = sbr.rel (0) target = $region29
  $region28: #{inception_stem_forward.35} parent=0 // pred_region
    _
  $region29: #{inception_stem_forward.35} parent=0 // pred_fallthru
    _
  // Predicated region
  $region30: #{inception_stem_forward.35} parent=0 // pred_check
    _
  $region31: #{inception_stem_forward.35} parent=0 // pred_check_branch
    %696 = sbr.rel (0) target = $region33
  $region32: #{inception_stem_forward.35} parent=0 // pred_region
    _
  $region33: #{inception_stem_forward.35} parent=0 // pred_fallthru
    _

// kernel: inception_stem_forward.41
$region0: #{inception_stem_forward.41}
  #allocation0 [shape = 'u32[]', space=smem, size = 0x4, offset = 0x4, fixed_abs, tag = 'smem constant byte address 0x4 - core index']
  #allocation1 [shape = 'u32[144,128]{1,0:T(1,128)}', space=vmem, size = 0x12000, scoped, tag = 'internal scratch']
  %s0 = inlined_call_operand.vmem [shape: bf16[16,1792], index: 0, kind: input, shape index: {}]
  %s1 = inlined_call_operand.vmem [shape: bf16[1792,256], index: 1, kind: input, shape index: {}]
  %s2 = inlined_call_operand.vmem [shape: f32[16,256], index: 2, kind: output, shape index: {0}]
  %s3 = inlined_call_operand.vmem [shape: f32[1,1,256], index: 3, kind: output, shape index: {1}]
  %s4 = inlined_call_operand.vmem [shape: f32[1,1,256], index: 4, kind: output, shape index: {2}]
  %5 = xla_tuple %s2, %s3, %s4
  %s6 = sld [smem:[#allocation0]]
  $region34: #{inception_stem_forward.41} parent=0
    _
  %s8 = ssub.s32 1, %s6
  %s9 = scalar_select 0, %s8, %s6
  // Predicated region
  $region2: #{inception_stem_forward.41} parent=0 // pred_check
    _
  $region3: #{inception_stem_forward.41} parent=0 // pred_check_branch
    %11 = sbr.rel (0) target = $region5
  $region4: #{inception_stem_forward.41} parent=0 // pred_region
    _
  $region5: #{inception_stem_forward.41} parent=0 // pred_fallthru
    _
  // Predicated region
  $region6: #{inception_stem_forward.41} parent=0 // pred_check
    _
  $region7: #{inception_stem_forward.41} parent=0 // pred_check_branch
    %13 = sbr.rel (0) target = $region9
  $region8: #{inception_stem_forward.41} parent=0 // pred_region
    _
  $region9: #{inception_stem_forward.41} parent=0 // pred_fallthru
    _
  %v14 = vld [vmem:[%s0] sm:$0xff]
  %v15 = vld [vmem:[%s0 + $0x8] sm:$0xff]
  %v16 = vld [vmem:[%s0 + $0x10] sm:$0xff]
  %v17 = vld [vmem:[%s0 + $0x18] sm:$0xff]
  %v18 = vld [vmem:[%s0 + $0x20] sm:$0xff]
  %v19 = vld [vmem:[%s0 + $0x28] sm:$0xff]
  %v20 = vld [vmem:[%s0 + $0x30] sm:$0xff]
  %v21 = vld [vmem:[%s0 + $0x38] sm:$0xff]
  %v22 = vld [vmem:[%s0 + $0x40] sm:$0xff]
  %v23 = vld [vmem:[%s0 + $0x48] sm:$0xff]
  %v24 = vld [vmem:[%s0 + $0x50] sm:$0xff]
  %v25 = vld [vmem:[%s0 + $0x58] sm:$0xff]
  %v26 = vld [vmem:[%s0 + $0x60] sm:$0xff]
  %v27 = vld [vmem:[%s0 + $0x68] sm:$0xff]
  %v28 = vld [vmem:[%s1] sm:$0xff]
  %v29 = vld [vmem:[%s1 + $0x8] sm:$0xff]
  %v30 = vld [vmem:[%s1 + $0x10] sm:$0xff]
  %v31 = vld [vmem:[%s1 + $0x18] sm:$0xff]
  %v32 = vld [vmem:[%s1 + $0x20] sm:$0xff]
  %v33 = vld [vmem:[%s1 + $0x28] sm:$0xff]
  %v34 = vld [vmem:[%s1 + $0x30] sm:$0xff]
  %v35 = vld [vmem:[%s1 + $0x38] sm:$0xff]
  %v36 = vld [vmem:[%s1 + $0x40] sm:$0xff]
  %v37 = vld [vmem:[%s1 + $0x48] sm:$0xff]
  %v38 = vld [vmem:[%s1 + $0x50] sm:$0xff]
  %v39 = vld [vmem:[%s1 + $0x58] sm:$0xff]
  %v40 = vld [vmem:[%s1 + $0x60] sm:$0xff]
  %v41 = vld [vmem:[%s1 + $0x68] sm:$0xff]
  %v42 = vld [vmem:[%s1 + $0x70] sm:$0xff]
  %v43 = vld [vmem:[%s1 + $0x78] sm:$0xff]
  %v44 = vld [vmem:[%s1 + $0x80] sm:$0xff]
  %v45 = vld [vmem:[%s1 + $0x88] sm:$0xff]
  %v46 = vld [vmem:[%s1 + $0x90] sm:$0xff]
  %v47 = vld [vmem:[%s1 + $0x98] sm:$0xff]
  %v48 = vld [vmem:[%s1 + $0xa0] sm:$0xff]
  %v49 = vld [vmem:[%s1 + $0xa8] sm:$0xff]
  %v50 = vld [vmem:[%s1 + $0xb0] sm:$0xff]
  %v51 = vld [vmem:[%s1 + $0xb8] sm:$0xff]
  %v52 = vld [vmem:[%s1 + $0xc0] sm:$0xff]
  %v53 = vld [vmem:[%s1 + $0xc8] sm:$0xff]
  %v54 = vld [vmem:[%s1 + $0xd0] sm:$0xff]
  %v55 = vld [vmem:[%s1 + $0xd8] sm:$0xff]
  %v56 = vld [vmem:[%s1 + $0xe0] sm:$0xff]
  %v57 = vld [vmem:[%s1 + $0xe8] sm:$0xff]
  %v58 = vld [vmem:[%s1 + $0xf0] sm:$0xff]
  %v59 = vld [vmem:[%s1 + $0xf8] sm:$0xff]
  %v60 = vld [vmem:[%s1 + $0x100] sm:$0xff]
  %v61 = vld [vmem:[%s1 + $0x108] sm:$0xff]
  %v62 = vld [vmem:[%s1 + $0x110] sm:$0xff]
  %v63 = vld [vmem:[%s1 + $0x118] sm:$0xff]
  %v64 = vld [vmem:[%s1 + $0x120] sm:$0xff]
  %v65 = vld [vmem:[%s1 + $0x128] sm:$0xff]
  %v66 = vld [vmem:[%s1 + $0x130] sm:$0xff]
  %v67 = vld [vmem:[%s1 + $0x138] sm:$0xff]
  %v68 = vld [vmem:[%s1 + $0x140] sm:$0xff]
  %v69 = vld [vmem:[%s1 + $0x148] sm:$0xff]
  %v70 = vld [vmem:[%s1 + $0x150] sm:$0xff]
  %v71 = vld [vmem:[%s1 + $0x158] sm:$0xff]
  %v72 = vld [vmem:[%s1 + $0x160] sm:$0xff]
  %v73 = vld [vmem:[%s1 + $0x168] sm:$0xff]
  %v74 = vld [vmem:[%s1 + $0x170] sm:$0xff]
  %v75 = vld [vmem:[%s1 + $0x178] sm:$0xff]
  %v76 = vld [vmem:[%s1 + $0x180] sm:$0xff]
  %v77 = vld [vmem:[%s1 + $0x188] sm:$0xff]
  %v78 = vld [vmem:[%s1 + $0x190] sm:$0xff]
  %v79 = vld [vmem:[%s1 + $0x198] sm:$0xff]
  %v80 = vld [vmem:[%s1 + $0x1a0] sm:$0xff]
  %v81 = vld [vmem:[%s1 + $0x1a8] sm:$0xff]
  %v82 = vld [vmem:[%s1 + $0x1b0] sm:$0xff]
  %v83 = vld [vmem:[%s1 + $0x1b8] sm:$0xff]
  %v84 = vld [vmem:[%s1 + $0x1c0] sm:$0xff]
  %v85 = vld [vmem:[%s1 + $0x1c8] sm:$0xff]
  %v86 = vld [vmem:[%s1 + $0x1d0] sm:$0xff]
  %v87 = vld [vmem:[%s1 + $0x1d8] sm:$0xff]
  %v88 = vld [vmem:[%s1 + $0x1e0] sm:$0xff]
  %v89 = vld [vmem:[%s1 + $0x1e8] sm:$0xff]
  %v90 = vld [vmem:[%s1 + $0x1f0] sm:$0xff]
  %v91 = vld [vmem:[%s1 + $0x1f8] sm:$0xff]
  %v92 = vld [vmem:[%s1 + $0x200] sm:$0xff]
  %v93 = vld [vmem:[%s1 + $0x208] sm:$0xff]
  %v94 = vld [vmem:[%s1 + $0x210] sm:$0xff]
  %v95 = vld [vmem:[%s1 + $0x218] sm:$0xff]
  %v96 = vld [vmem:[%s1 + $0x220] sm:$0xff]
  %v97 = vld [vmem:[%s1 + $0x228] sm:$0xff]
  %v98 = vld [vmem:[%s1 + $0x230] sm:$0xff]
  %v99 = vld [vmem:[%s1 + $0x238] sm:$0xff]
  %v100 = vld [vmem:[%s1 + $0x240] sm:$0xff]
  %v101 = vld [vmem:[%s1 + $0x248] sm:$0xff]
  %v102 = vld [vmem:[%s1 + $0x250] sm:$0xff]
  %v103 = vld [vmem:[%s1 + $0x258] sm:$0xff]
  %v104 = vld [vmem:[%s1 + $0x260] sm:$0xff]
  %v105 = vld [vmem:[%s1 + $0x268] sm:$0xff]
  %v106 = vld [vmem:[%s1 + $0x270] sm:$0xff]
  %v107 = vld [vmem:[%s1 + $0x278] sm:$0xff]
  %v108 = vld [vmem:[%s1 + $0x280] sm:$0xff]
  %v109 = vld [vmem:[%s1 + $0x288] sm:$0xff]
  %v110 = vld [vmem:[%s1 + $0x290] sm:$0xff]
  %v111 = vld [vmem:[%s1 + $0x298] sm:$0xff]
  %v112 = vld [vmem:[%s1 + $0x2a0] sm:$0xff]
  %v113 = vld [vmem:[%s1 + $0x2a8] sm:$0xff]
  %v114 = vld [vmem:[%s1 + $0x2b0] sm:$0xff]
  %v115 = vld [vmem:[%s1 + $0x2b8] sm:$0xff]
  %v116 = vld [vmem:[%s1 + $0x2c0] sm:$0xff]
  %v117 = vld [vmem:[%s1 + $0x2c8] sm:$0xff]
  %v118 = vld [vmem:[%s1 + $0x2d0] sm:$0xff]
  %v119 = vld [vmem:[%s1 + $0x2d8] sm:$0xff]
  %v120 = vld [vmem:[%s1 + $0x2e0] sm:$0xff]
  %v121 = vld [vmem:[%s1 + $0x2e8] sm:$0xff]
  %v122 = vld [vmem:[%s1 + $0x2f0] sm:$0xff]
  %v123 = vld [vmem:[%s1 + $0x2f8] sm:$0xff]
  %v124 = vld [vmem:[%s1 + $0x300] sm:$0xff]
  %v125 = vld [vmem:[%s1 + $0x308] sm:$0xff]
  %v126 = vld [vmem:[%s1 + $0x310] sm:$0xff]
  %v127 = vld [vmem:[%s1 + $0x318] sm:$0xff]
  %v128 = vld [vmem:[%s1 + $0x320] sm:$0xff]
  %v129 = vld [vmem:[%s1 + $0x328] sm:$0xff]
  %v130 = vld [vmem:[%s1 + $0x330] sm:$0xff]
  %v131 = vld [vmem:[%s1 + $0x338] sm:$0xff]
  %v132 = vld [vmem:[%s1 + $0x340] sm:$0xff]
  %v133 = vld [vmem:[%s1 + $0x348] sm:$0xff]
  %v134 = vld [vmem:[%s1 + $0x350] sm:$0xff]
  %v135 = vld [vmem:[%s1 + $0x358] sm:$0xff]
  %v136 = vld [vmem:[%s1 + $0x360] sm:$0xff]
  %v137 = vld [vmem:[%s1 + $0x368] sm:$0xff]
  %v138 = vld [vmem:[%s1 + $0x370] sm:$0xff]
  %v139 = vld [vmem:[%s1 + $0x378] sm:$0xff]
  %v140 = vld [vmem:[%s1 + $0x380] sm:$0xff]
  %v141 = vld [vmem:[%s1 + $0x388] sm:$0xff]
  %v142 = vld [vmem:[%s1 + $0x390] sm:$0xff]
  %v143 = vld [vmem:[%s1 + $0x398] sm:$0xff]
  %v144 = vld [vmem:[%s1 + $0x3a0] sm:$0xff]
  %v145 = vld [vmem:[%s1 + $0x3a8] sm:$0xff]
  %v146 = vld [vmem:[%s1 + $0x3b0] sm:$0xff]
  %v147 = vld [vmem:[%s1 + $0x3b8] sm:$0xff]
  %v148 = vld [vmem:[%s1 + $0x3c0] sm:$0xff]
  %v149 = vld [vmem:[%s1 + $0x3c8] sm:$0xff]
  %v150 = vld [vmem:[%s1 + $0x3d0] sm:$0xff]
  %v151 = vld [vmem:[%s1 + $0x3d8] sm:$0xff]
  %v152 = vld [vmem:[%s1 + $0x3e0] sm:$0xff]
  %v153 = vld [vmem:[%s1 + $0x3e8] sm:$0xff]
  %v154 = vld [vmem:[%s1 + $0x3f0] sm:$0xff]
  %v155 = vld [vmem:[%s1 + $0x3f8] sm:$0xff]
  %v156 = vld [vmem:[%s1 + $0x400] sm:$0xff]
  %v157 = vld [vmem:[%s1 + $0x408] sm:$0xff]
  %v158 = vld [vmem:[%s1 + $0x410] sm:$0xff]
  %v159 = vld [vmem:[%s1 + $0x418] sm:$0xff]
  %v160 = vld [vmem:[%s1 + $0x420] sm:$0xff]
  %v161 = vld [vmem:[%s1 + $0x428] sm:$0xff]
  %v162 = vld [vmem:[%s1 + $0x430] sm:$0xff]
  %v163 = vld [vmem:[%s1 + $0x438] sm:$0xff]
  %v164 = vld [vmem:[%s1 + $0x440] sm:$0xff]
  %v165 = vld [vmem:[%s1 + $0x448] sm:$0xff]
  %v166 = vld [vmem:[%s1 + $0x450] sm:$0xff]
  %v167 = vld [vmem:[%s1 + $0x458] sm:$0xff]
  %v168 = vld [vmem:[%s1 + $0x460] sm:$0xff]
  %v169 = vld [vmem:[%s1 + $0x468] sm:$0xff]
  %v170 = vld [vmem:[%s1 + $0x470] sm:$0xff]
  %v171 = vld [vmem:[%s1 + $0x478] sm:$0xff]
  %v172 = vld [vmem:[%s1 + $0x480] sm:$0xff]
  %v173 = vld [vmem:[%s1 + $0x488] sm:$0xff]
  %v174 = vld [vmem:[%s1 + $0x490] sm:$0xff]
  %v175 = vld [vmem:[%s1 + $0x498] sm:$0xff]
  %v176 = vld [vmem:[%s1 + $0x4a0] sm:$0xff]
  %v177 = vld [vmem:[%s1 + $0x4a8] sm:$0xff]
  %v178 = vld [vmem:[%s1 + $0x4b0] sm:$0xff]
  %v179 = vld [vmem:[%s1 + $0x4b8] sm:$0xff]
  %v180 = vld [vmem:[%s1 + $0x4c0] sm:$0xff]
  %v181 = vld [vmem:[%s1 + $0x4c8] sm:$0xff]
  %v182 = vld [vmem:[%s1 + $0x4d0] sm:$0xff]
  %v183 = vld [vmem:[%s1 + $0x4d8] sm:$0xff]
  %v184 = vld [vmem:[%s1 + $0x4e0] sm:$0xff]
  %v185 = vld [vmem:[%s1 + $0x4e8] sm:$0xff]
  %v186 = vld [vmem:[%s1 + $0x4f0] sm:$0xff]
  %v187 = vld [vmem:[%s1 + $0x4f8] sm:$0xff]
  %v188 = vld [vmem:[%s1 + $0x500] sm:$0xff]
  %v189 = vld [vmem:[%s1 + $0x508] sm:$0xff]
  %v190 = vld [vmem:[%s1 + $0x510] sm:$0xff]
  %v191 = vld [vmem:[%s1 + $0x518] sm:$0xff]
  %v192 = vld [vmem:[%s1 + $0x520] sm:$0xff]
  %v193 = vld [vmem:[%s1 + $0x528] sm:$0xff]
  %v194 = vld [vmem:[%s1 + $0x530] sm:$0xff]
  %v195 = vld [vmem:[%s1 + $0x538] sm:$0xff]
  %v196 = vld [vmem:[%s1 + $0x540] sm:$0xff]
  %v197 = vld [vmem:[%s1 + $0x548] sm:$0xff]
  %v198 = vld [vmem:[%s1 + $0x550] sm:$0xff]
  %v199 = vld [vmem:[%s1 + $0x558] sm:$0xff]
  %v200 = vld [vmem:[%s1 + $0x560] sm:$0xff]
  %v201 = vld [vmem:[%s1 + $0x568] sm:$0xff]
  %v202 = vld [vmem:[%s1 + $0x570] sm:$0xff]
  %v203 = vld [vmem:[%s1 + $0x578] sm:$0xff]
  %v204 = vld [vmem:[%s1 + $0x580] sm:$0xff]
  %v205 = vld [vmem:[%s1 + $0x588] sm:$0xff]
  %v206 = vld [vmem:[%s1 + $0x590] sm:$0xff]
  %v207 = vld [vmem:[%s1 + $0x598] sm:$0xff]
  %v208 = vld [vmem:[%s1 + $0x5a0] sm:$0xff]
  %v209 = vld [vmem:[%s1 + $0x5a8] sm:$0xff]
  %v210 = vld [vmem:[%s1 + $0x5b0] sm:$0xff]
  %v211 = vld [vmem:[%s1 + $0x5b8] sm:$0xff]
  %v212 = vld [vmem:[%s1 + $0x5c0] sm:$0xff]
  %v213 = vld [vmem:[%s1 + $0x5c8] sm:$0xff]
  %v214 = vld [vmem:[%s1 + $0x5d0] sm:$0xff]
  %v215 = vld [vmem:[%s1 + $0x5d8] sm:$0xff]
  %v216 = vld [vmem:[%s1 + $0x5e0] sm:$0xff]
  %v217 = vld [vmem:[%s1 + $0x5e8] sm:$0xff]
  %v218 = vld [vmem:[%s1 + $0x5f0] sm:$0xff]
  %v219 = vld [vmem:[%s1 + $0x5f8] sm:$0xff]
  %v220 = vld [vmem:[%s1 + $0x600] sm:$0xff]
  %v221 = vld [vmem:[%s1 + $0x608] sm:$0xff]
  %v222 = vld [vmem:[%s1 + $0x610] sm:$0xff]
  %v223 = vld [vmem:[%s1 + $0x618] sm:$0xff]
  %v224 = vld [vmem:[%s1 + $0x620] sm:$0xff]
  %v225 = vld [vmem:[%s1 + $0x628] sm:$0xff]
  %v226 = vld [vmem:[%s1 + $0x630] sm:$0xff]
  %v227 = vld [vmem:[%s1 + $0x638] sm:$0xff]
  %v228 = vld [vmem:[%s1 + $0x640] sm:$0xff]
  %v229 = vld [vmem:[%s1 + $0x648] sm:$0xff]
  %v230 = vld [vmem:[%s1 + $0x650] sm:$0xff]
  %v231 = vld [vmem:[%s1 + $0x658] sm:$0xff]
  %v232 = vld [vmem:[%s1 + $0x660] sm:$0xff]
  %v233 = vld [vmem:[%s1 + $0x668] sm:$0xff]
  %v234 = vld [vmem:[%s1 + $0x670] sm:$0xff]
  %v235 = vld [vmem:[%s1 + $0x678] sm:$0xff]
  %v236 = vld [vmem:[%s1 + $0x680] sm:$0xff]
  %v237 = vld [vmem:[%s1 + $0x688] sm:$0xff]
  %v238 = vld [vmem:[%s1 + $0x690] sm:$0xff]
  %v239 = vld [vmem:[%s1 + $0x698] sm:$0xff]
  %v240 = vld [vmem:[%s1 + $0x6a0] sm:$0xff]
  %v241 = vld [vmem:[%s1 + $0x6a8] sm:$0xff]
  %v242 = vld [vmem:[%s1 + $0x6b0] sm:$0xff]
  %v243 = vld [vmem:[%s1 + $0x6b8] sm:$0xff]
  %v244 = vld [vmem:[%s1 + $0x6c0] sm:$0xff]
  %v245 = vld [vmem:[%s1 + $0x6c8] sm:$0xff]
  %v246 = vld [vmem:[%s1 + $0x6d0] sm:$0xff]
  %v247 = vld [vmem:[%s1 + $0x6d8] sm:$0xff]
  %v248 = vld [vmem:[%s1 + $0x6e0] sm:$0xff]
  %v249 = vld [vmem:[%s1 + $0x6e8] sm:$0xff]
  %v250 = vld [vmem:[%s1 + $0x6f0] sm:$0xff]
  %v251 = vld [vmem:[%s1 + $0x6f8] sm:$0xff]
  %v266 = vunpack.c.l.b16 %v14
  %v267 = vunpack.c.h.b16 %v14
  %v268 = vunpack.c.l.b16 %v15
  %v269 = vunpack.c.h.b16 %v15
  %v270 = vunpack.c.l.b16 %v16
  %v271 = vunpack.c.h.b16 %v16
  %v272 = vunpack.c.l.b16 %v17
  %v273 = vunpack.c.h.b16 %v17
  %v274 = vunpack.c.l.b16 %v18
  %v275 = vunpack.c.h.b16 %v18
  %v276 = vunpack.c.l.b16 %v19
  %v277 = vunpack.c.h.b16 %v19
  %v278 = vunpack.c.l.b16 %v20
  %v279 = vunpack.c.h.b16 %v20
  %v280 = vunpack.c.l.b16 %v21
  %v281 = vunpack.c.h.b16 %v21
  %v282 = vunpack.c.l.b16 %v22
  %v283 = vunpack.c.h.b16 %v22
  %v284 = vunpack.c.l.b16 %v23
  %v285 = vunpack.c.h.b16 %v23
  %v286 = vunpack.c.l.b16 %v24
  %v287 = vunpack.c.h.b16 %v24
  %v288 = vunpack.c.l.b16 %v25
  %v289 = vunpack.c.h.b16 %v25
  %v290 = vunpack.c.l.b16 %v26
  %v291 = vunpack.c.h.b16 %v26
  %v292 = vunpack.c.l.b16 %v27
  %v293 = vunpack.c.h.b16 %v27
  %v294 = vpack.c.b16 %v280, %v266
  %v295 = vpack.c.b16 %v281, %v267
  %v296 = vpack.c.b16 %v282, %v268
  %v297 = vpack.c.b16 %v283, %v269
  %v298 = vpack.c.b16 %v284, %v270
  %v299 = vpack.c.b16 %v285, %v271
  %v300 = vpack.c.b16 %v286, %v272
  %v301 = vpack.c.b16 %v287, %v273
  %v302 = vpack.c.b16 %v288, %v274
  %v303 = vpack.c.b16 %v289, %v275
  %v304 = vpack.c.b16 %v290, %v276
  %v305 = vpack.c.b16 %v291, %v277
  %v306 = vpack.c.b16 %v292, %v278
  %v307 = vpack.c.b16 %v293, %v279
  %v546 = vunpack.c.l.b16 %v28
  %v547 = vunpack.c.h.b16 %v28
  %v548 = vunpack.c.l.b16 %v29
  %v549 = vunpack.c.h.b16 %v29
  %v550 = vunpack.c.l.b16 %v30
  %v551 = vunpack.c.h.b16 %v30
  %v552 = vunpack.c.l.b16 %v31
  %v553 = vunpack.c.h.b16 %v31
  %v554 = vunpack.c.l.b16 %v32
  %v555 = vunpack.c.h.b16 %v32
  %v556 = vunpack.c.l.b16 %v33
  %v557 = vunpack.c.h.b16 %v33
  %v558 = vunpack.c.l.b16 %v34
  %v559 = vunpack.c.h.b16 %v34
  %v560 = vunpack.c.l.b16 %v35
  %v561 = vunpack.c.h.b16 %v35
  %v562 = vunpack.c.l.b16 %v36
  %v563 = vunpack.c.h.b16 %v36
  %v564 = vunpack.c.l.b16 %v37
  %v565 = vunpack.c.h.b16 %v37
  %v566 = vunpack.c.l.b16 %v38
  %v567 = vunpack.c.h.b16 %v38
  %v568 = vunpack.c.l.b16 %v39
  %v569 = vunpack.c.h.b16 %v39
  %v570 = vunpack.c.l.b16 %v40
  %v571 = vunpack.c.h.b16 %v40
  %v572 = vunpack.c.l.b16 %v41
  %v573 = vunpack.c.h.b16 %v41
  %v574 = vunpack.c.l.b16 %v42
  %v575 = vunpack.c.h.b16 %v42
  %v576 = vunpack.c.l.b16 %v43
  %v577 = vunpack.c.h.b16 %v43
  %v578 = vunpack.c.l.b16 %v44
  %v579 = vunpack.c.h.b16 %v44
  %v580 = vunpack.c.l.b16 %v45
  %v581 = vunpack.c.h.b16 %v45
  %v582 = vunpack.c.l.b16 %v46
  %v583 = vunpack.c.h.b16 %v46
  %v584 = vunpack.c.l.b16 %v47
  %v585 = vunpack.c.h.b16 %v47
  %v586 = vunpack.c.l.b16 %v48
  %v587 = vunpack.c.h.b16 %v48
  %v588 = vunpack.c.l.b16 %v49
  %v589 = vunpack.c.h.b16 %v49
  %v590 = vunpack.c.l.b16 %v50
  %v591 = vunpack.c.h.b16 %v50
  %v592 = vunpack.c.l.b16 %v51
  %v593 = vunpack.c.h.b16 %v51
  %v594 = vunpack.c.l.b16 %v52
  %v595 = vunpack.c.h.b16 %v52
  %v596 = vunpack.c.l.b16 %v53
  %v597 = vunpack.c.h.b16 %v53
  %v598 = vunpack.c.l.b16 %v54
  %v599 = vunpack.c.h.b16 %v54
  %v600 = vunpack.c.l.b16 %v55
  %v601 = vunpack.c.h.b16 %v55
  %v602 = vunpack.c.l.b16 %v56
  %v603 = vunpack.c.h.b16 %v56
  %v604 = vunpack.c.l.b16 %v57
  %v605 = vunpack.c.h.b16 %v57
  %v606 = vunpack.c.l.b16 %v58
  %v607 = vunpack.c.h.b16 %v58
  %v608 = vunpack.c.l.b16 %v59
  %v609 = vunpack.c.h.b16 %v59
  %v610 = vunpack.c.l.b16 %v60
  %v611 = vunpack.c.h.b16 %v60
  %v612 = vunpack.c.l.b16 %v61
  %v613 = vunpack.c.h.b16 %v61
  %v614 = vunpack.c.l.b16 %v62
  %v615 = vunpack.c.h.b16 %v62
  %v616 = vunpack.c.l.b16 %v63
  %v617 = vunpack.c.h.b16 %v63
  %v618 = vunpack.c.l.b16 %v64
  %v619 = vunpack.c.h.b16 %v64
  %v620 = vunpack.c.l.b16 %v65
  %v621 = vunpack.c.h.b16 %v65
  %v622 = vunpack.c.l.b16 %v66
  %v623 = vunpack.c.h.b16 %v66
  %v624 = vunpack.c.l.b16 %v67
  %v625 = vunpack.c.h.b16 %v67
  %v626 = vunpack.c.l.b16 %v68
  %v627 = vunpack.c.h.b16 %v68
  %v628 = vunpack.c.l.b16 %v69
  %v629 = vunpack.c.h.b16 %v69
  %v630 = vunpack.c.l.b16 %v70
  %v631 = vunpack.c.h.b16 %v70
  %v632 = vunpack.c.l.b16 %v71
  %v633 = vunpack.c.h.b16 %v71
  %v634 = vunpack.c.l.b16 %v72
  %v635 = vunpack.c.h.b16 %v72
  %v636 = vunpack.c.l.b16 %v73
  %v637 = vunpack.c.h.b16 %v73
  %v638 = vunpack.c.l.b16 %v74
  %v639 = vunpack.c.h.b16 %v74
  %v640 = vunpack.c.l.b16 %v75
  %v641 = vunpack.c.h.b16 %v75
  %v642 = vunpack.c.l.b16 %v76
  %v643 = vunpack.c.h.b16 %v76
  %v644 = vunpack.c.l.b16 %v77
  %v645 = vunpack.c.h.b16 %v77
  %v646 = vunpack.c.l.b16 %v78
  %v647 = vunpack.c.h.b16 %v78
  %v648 = vunpack.c.l.b16 %v79
  %v649 = vunpack.c.h.b16 %v79
  %v650 = vunpack.c.l.b16 %v80
  %v651 = vunpack.c.h.b16 %v80
  %v652 = vunpack.c.l.b16 %v81
  %v653 = vunpack.c.h.b16 %v81
  %v654 = vunpack.c.l.b16 %v82
  %v655 = vunpack.c.h.b16 %v82
  %v656 = vunpack.c.l.b16 %v83
  %v657 = vunpack.c.h.b16 %v83
  %v658 = vunpack.c.l.b16 %v84
  %v659 = vunpack.c.h.b16 %v84
  %v660 = vunpack.c.l.b16 %v85
  %v661 = vunpack.c.h.b16 %v85
  %v662 = vunpack.c.l.b16 %v86
  %v663 = vunpack.c.h.b16 %v86
  %v664 = vunpack.c.l.b16 %v87
  %v665 = vunpack.c.h.b16 %v87
  %v666 = vunpack.c.l.b16 %v88
  %v667 = vunpack.c.h.b16 %v88
  %v668 = vunpack.c.l.b16 %v89
  %v669 = vunpack.c.h.b16 %v89
  %v670 = vunpack.c.l.b16 %v90
  %v671 = vunpack.c.h.b16 %v90
  %v672 = vunpack.c.l.b16 %v91
  %v673 = vunpack.c.h.b16 %v91
  %v674 = vunpack.c.l.b16 %v92
  %v675 = vunpack.c.h.b16 %v92
  %v676 = vunpack.c.l.b16 %v93
  %v677 = vunpack.c.h.b16 %v93
  %v678 = vunpack.c.l.b16 %v94
  %v679 = vunpack.c.h.b16 %v94
  %v680 = vunpack.c.l.b16 %v95
  %v681 = vunpack.c.h.b16 %v95
  %v682 = vunpack.c.l.b16 %v96
  %v683 = vunpack.c.h.b16 %v96
  %v684 = vunpack.c.l.b16 %v97
  %v685 = vunpack.c.h.b16 %v97
  %v686 = vunpack.c.l.b16 %v98
  %v687 = vunpack.c.h.b16 %v98
  %v688 = vunpack.c.l.b16 %v99
  %v689 = vunpack.c.h.b16 %v99
  %v690 = vunpack.c.l.b16 %v100
  %v691 = vunpack.c.h.b16 %v100
  %v692 = vunpack.c.l.b16 %v101
  %v693 = vunpack.c.h.b16 %v101
  %v694 = vunpack.c.l.b16 %v102
  %v695 = vunpack.c.h.b16 %v102
  %v696 = vunpack.c.l.b16 %v103
  %v697 = vunpack.c.h.b16 %v103
  %v698 = vunpack.c.l.b16 %v104
  %v699 = vunpack.c.h.b16 %v104
  %v700 = vunpack.c.l.b16 %v105
  %v701 = vunpack.c.h.b16 %v105
  %v702 = vunpack.c.l.b16 %v106
  %v703 = vunpack.c.h.b16 %v106
  %v704 = vunpack.c.l.b16 %v107
  %v705 = vunpack.c.h.b16 %v107
  %v706 = vunpack.c.l.b16 %v108
  %v707 = vunpack.c.h.b16 %v108
  %v708 = vunpack.c.l.b16 %v109
  %v709 = vunpack.c.h.b16 %v109
  %v710 = vunpack.c.l.b16 %v110
  %v711 = vunpack.c.h.b16 %v110
  %v712 = vunpack.c.l.b16 %v111
  %v713 = vunpack.c.h.b16 %v111
  %v714 = vunpack.c.l.b16 %v112
  %v715 = vunpack.c.h.b16 %v112
  %v716 = vunpack.c.l.b16 %v113
  %v717 = vunpack.c.h.b16 %v113
  %v718 = vunpack.c.l.b16 %v114
  %v719 = vunpack.c.h.b16 %v114
  %v720 = vunpack.c.l.b16 %v115
  %v721 = vunpack.c.h.b16 %v115
  %v722 = vunpack.c.l.b16 %v116
  %v723 = vunpack.c.h.b16 %v116
  %v724 = vunpack.c.l.b16 %v117
  %v725 = vunpack.c.h.b16 %v117
  %v726 = vunpack.c.l.b16 %v118
  %v727 = vunpack.c.h.b16 %v118
  %v728 = vunpack.c.l.b16 %v119
  %v729 = vunpack.c.h.b16 %v119
  %v730 = vunpack.c.l.b16 %v120
  %v731 = vunpack.c.h.b16 %v120
  %v732 = vunpack.c.l.b16 %v121
  %v733 = vunpack.c.h.b16 %v121
  %v734 = vunpack.c.l.b16 %v122
  %v735 = vunpack.c.h.b16 %v122
  %v736 = vunpack.c.l.b16 %v123
  %v737 = vunpack.c.h.b16 %v123
  %v738 = vunpack.c.l.b16 %v124
  %v739 = vunpack.c.h.b16 %v124
  %v740 = vunpack.c.l.b16 %v125
  %v741 = vunpack.c.h.b16 %v125
  %v742 = vunpack.c.l.b16 %v126
  %v743 = vunpack.c.h.b16 %v126
  %v744 = vunpack.c.l.b16 %v127
  %v745 = vunpack.c.h.b16 %v127
  %v746 = vunpack.c.l.b16 %v128
  %v747 = vunpack.c.h.b16 %v128
  %v748 = vunpack.c.l.b16 %v129
  %v749 = vunpack.c.h.b16 %v129
  %v750 = vunpack.c.l.b16 %v130
  %v751 = vunpack.c.h.b16 %v130
  %v752 = vunpack.c.l.b16 %v131
  %v753 = vunpack.c.h.b16 %v131
  %v754 = vunpack.c.l.b16 %v132
  %v755 = vunpack.c.h.b16 %v132
  %v756 = vunpack.c.l.b16 %v133
  %v757 = vunpack.c.h.b16 %v133
  %v758 = vunpack.c.l.b16 %v134
  %v759 = vunpack.c.h.b16 %v134
  %v760 = vunpack.c.l.b16 %v135
  %v761 = vunpack.c.h.b16 %v135
  %v762 = vunpack.c.l.b16 %v136
  %v763 = vunpack.c.h.b16 %v136
  %v764 = vunpack.c.l.b16 %v137
  %v765 = vunpack.c.h.b16 %v137
  %v766 = vunpack.c.l.b16 %v138
  %v767 = vunpack.c.h.b16 %v138
  %v768 = vunpack.c.l.b16 %v139
  %v769 = vunpack.c.h.b16 %v139
  %v770 = vunpack.c.l.b16 %v140
  %v771 = vunpack.c.h.b16 %v140
  %v772 = vunpack.c.l.b16 %v141
  %v773 = vunpack.c.h.b16 %v141
  %v774 = vunpack.c.l.b16 %v142
  %v775 = vunpack.c.h.b16 %v142
  %v776 = vunpack.c.l.b16 %v143
  %v777 = vunpack.c.h.b16 %v143
  %v778 = vunpack.c.l.b16 %v144
  %v779 = vunpack.c.h.b16 %v144
  %v780 = vunpack.c.l.b16 %v145
  %v781 = vunpack.c.h.b16 %v145
  %v782 = vunpack.c.l.b16 %v146
  %v783 = vunpack.c.h.b16 %v146
  %v784 = vunpack.c.l.b16 %v147
  %v785 = vunpack.c.h.b16 %v147
  %v786 = vunpack.c.l.b16 %v148
  %v787 = vunpack.c.h.b16 %v148
  %v788 = vunpack.c.l.b16 %v149
  %v789 = vunpack.c.h.b16 %v149
  %v790 = vunpack.c.l.b16 %v150
  %v791 = vunpack.c.h.b16 %v150
  %v792 = vunpack.c.l.b16 %v151
  %v793 = vunpack.c.h.b16 %v151
  %v794 = vunpack.c.l.b16 %v152
  %v795 = vunpack.c.h.b16 %v152
  %v796 = vunpack.c.l.b16 %v153
  %v797 = vunpack.c.h.b16 %v153
  %v798 = vunpack.c.l.b16 %v154
  %v799 = vunpack.c.h.b16 %v154
  %v800 = vunpack.c.l.b16 %v155
  %v801 = vunpack.c.h.b16 %v155
  %v802 = vunpack.c.l.b16 %v156
  %v803 = vunpack.c.h.b16 %v156
  %v804 = vunpack.c.l.b16 %v157
  %v805 = vunpack.c.h.b16 %v157
  %v806 = vunpack.c.l.b16 %v158
  %v807 = vunpack.c.h.b16 %v158
  %v808 = vunpack.c.l.b16 %v159
  %v809 = vunpack.c.h.b16 %v159
  %v810 = vunpack.c.l.b16 %v160
  %v811 = vunpack.c.h.b16 %v160
  %v812 = vunpack.c.l.b16 %v161
  %v813 = vunpack.c.h.b16 %v161
  %v814 = vunpack.c.l.b16 %v162
  %v815 = vunpack.c.h.b16 %v162
  %v816 = vunpack.c.l.b16 %v163
  %v817 = vunpack.c.h.b16 %v163
  %v818 = vunpack.c.l.b16 %v164
  %v819 = vunpack.c.h.b16 %v164
  %v820 = vunpack.c.l.b16 %v165
  %v821 = vunpack.c.h.b16 %v165
  %v822 = vunpack.c.l.b16 %v166
  %v823 = vunpack.c.h.b16 %v166
  %v824 = vunpack.c.l.b16 %v167
  %v825 = vunpack.c.h.b16 %v167
  %v826 = vunpack.c.l.b16 %v168
  %v827 = vunpack.c.h.b16 %v168
  %v828 = vunpack.c.l.b16 %v169
  %v829 = vunpack.c.h.b16 %v169
  %v830 = vunpack.c.l.b16 %v170
  %v831 = vunpack.c.h.b16 %v170
  %v832 = vunpack.c.l.b16 %v171
  %v833 = vunpack.c.h.b16 %v171
  %v834 = vunpack.c.l.b16 %v172
  %v835 = vunpack.c.h.b16 %v172
  %v836 = vunpack.c.l.b16 %v173
  %v837 = vunpack.c.h.b16 %v173
  %v838 = vunpack.c.l.b16 %v174
  %v839 = vunpack.c.h.b16 %v174
  %v840 = vunpack.c.l.b16 %v175
  %v841 = vunpack.c.h.b16 %v175
  %v842 = vunpack.c.l.b16 %v176
  %v843 = vunpack.c.h.b16 %v176
  %v844 = vunpack.c.l.b16 %v177
  %v845 = vunpack.c.h.b16 %v177
  %v846 = vunpack.c.l.b16 %v178
  %v847 = vunpack.c.h.b16 %v178
  %v848 = vunpack.c.l.b16 %v179
  %v849 = vunpack.c.h.b16 %v179
  %v850 = vunpack.c.l.b16 %v180
  %v851 = vunpack.c.h.b16 %v180
  %v852 = vunpack.c.l.b16 %v181
  %v853 = vunpack.c.h.b16 %v181
  %v854 = vunpack.c.l.b16 %v182
  %v855 = vunpack.c.h.b16 %v182
  %v856 = vunpack.c.l.b16 %v183
  %v857 = vunpack.c.h.b16 %v183
  %v858 = vunpack.c.l.b16 %v184
  %v859 = vunpack.c.h.b16 %v184
  %v860 = vunpack.c.l.b16 %v185
  %v861 = vunpack.c.h.b16 %v185
  %v862 = vunpack.c.l.b16 %v186
  %v863 = vunpack.c.h.b16 %v186
  %v864 = vunpack.c.l.b16 %v187
  %v865 = vunpack.c.h.b16 %v187
  %v866 = vunpack.c.l.b16 %v188
  %v867 = vunpack.c.h.b16 %v188
  %v868 = vunpack.c.l.b16 %v189
  %v869 = vunpack.c.h.b16 %v189
  %v870 = vunpack.c.l.b16 %v190
  %v871 = vunpack.c.h.b16 %v190
  %v872 = vunpack.c.l.b16 %v191
  %v873 = vunpack.c.h.b16 %v191
  %v874 = vunpack.c.l.b16 %v192
  %v875 = vunpack.c.h.b16 %v192
  %v876 = vunpack.c.l.b16 %v193
  %v877 = vunpack.c.h.b16 %v193
  %v878 = vunpack.c.l.b16 %v194
  %v879 = vunpack.c.h.b16 %v194
  %v880 = vunpack.c.l.b16 %v195
  %v881 = vunpack.c.h.b16 %v195
  %v882 = vunpack.c.l.b16 %v196
  %v883 = vunpack.c.h.b16 %v196
  %v884 = vunpack.c.l.b16 %v197
  %v885 = vunpack.c.h.b16 %v197
  %v886 = vunpack.c.l.b16 %v198
  %v887 = vunpack.c.h.b16 %v198
  %v888 = vunpack.c.l.b16 %v199
  %v889 = vunpack.c.h.b16 %v199
  %v890 = vunpack.c.l.b16 %v200
  %v891 = vunpack.c.h.b16 %v200
  %v892 = vunpack.c.l.b16 %v201
  %v893 = vunpack.c.h.b16 %v201
  %v894 = vunpack.c.l.b16 %v202
  %v895 = vunpack.c.h.b16 %v202
  %v896 = vunpack.c.l.b16 %v203
  %v897 = vunpack.c.h.b16 %v203
  %v898 = vunpack.c.l.b16 %v204
  %v899 = vunpack.c.h.b16 %v204
  %v900 = vunpack.c.l.b16 %v205
  %v901 = vunpack.c.h.b16 %v205
  %v902 = vunpack.c.l.b16 %v206
  %v903 = vunpack.c.h.b16 %v206
  %v904 = vunpack.c.l.b16 %v207
  %v905 = vunpack.c.h.b16 %v207
  %v906 = vunpack.c.l.b16 %v208
  %v907 = vunpack.c.h.b16 %v208
  %v908 = vunpack.c.l.b16 %v209
  %v909 = vunpack.c.h.b16 %v209
  %v910 = vunpack.c.l.b16 %v210
  %v911 = vunpack.c.h.b16 %v210
  %v912 = vunpack.c.l.b16 %v211
  %v913 = vunpack.c.h.b16 %v211
  %v914 = vunpack.c.l.b16 %v212
  %v915 = vunpack.c.h.b16 %v212
  %v916 = vunpack.c.l.b16 %v213
  %v917 = vunpack.c.h.b16 %v213
  %v918 = vunpack.c.l.b16 %v214
  %v919 = vunpack.c.h.b16 %v214
  %v920 = vunpack.c.l.b16 %v215
  %v921 = vunpack.c.h.b16 %v215
  %v922 = vunpack.c.l.b16 %v216
  %v923 = vunpack.c.h.b16 %v216
  %v924 = vunpack.c.l.b16 %v217
  %v925 = vunpack.c.h.b16 %v217
  %v926 = vunpack.c.l.b16 %v218
  %v927 = vunpack.c.h.b16 %v218
  %v928 = vunpack.c.l.b16 %v219
  %v929 = vunpack.c.h.b16 %v219
  %v930 = vunpack.c.l.b16 %v220
  %v931 = vunpack.c.h.b16 %v220
  %v932 = vunpack.c.l.b16 %v221
  %v933 = vunpack.c.h.b16 %v221
  %v934 = vunpack.c.l.b16 %v222
  %v935 = vunpack.c.h.b16 %v222
  %v936 = vunpack.c.l.b16 %v223
  %v937 = vunpack.c.h.b16 %v223
  %v938 = vunpack.c.l.b16 %v224
  %v939 = vunpack.c.h.b16 %v224
  %v940 = vunpack.c.l.b16 %v225
  %v941 = vunpack.c.h.b16 %v225
  %v942 = vunpack.c.l.b16 %v226
  %v943 = vunpack.c.h.b16 %v226
  %v944 = vunpack.c.l.b16 %v227
  %v945 = vunpack.c.h.b16 %v227
  %v946 = vunpack.c.l.b16 %v228
  %v947 = vunpack.c.h.b16 %v228
  %v948 = vunpack.c.l.b16 %v229
  %v949 = vunpack.c.h.b16 %v229
  %v950 = vunpack.c.l.b16 %v230
  %v951 = vunpack.c.h.b16 %v230
  %v952 = vunpack.c.l.b16 %v231
  %v953 = vunpack.c.h.b16 %v231
  %v954 = vunpack.c.l.b16 %v232
  %v955 = vunpack.c.h.b16 %v232
  %v956 = vunpack.c.l.b16 %v233
  %v957 = vunpack.c.h.b16 %v233
  %v958 = vunpack.c.l.b16 %v234
  %v959 = vunpack.c.h.b16 %v234
  %v960 = vunpack.c.l.b16 %v235
  %v961 = vunpack.c.h.b16 %v235
  %v962 = vunpack.c.l.b16 %v236
  %v963 = vunpack.c.h.b16 %v236
  %v964 = vunpack.c.l.b16 %v237
  %v965 = vunpack.c.h.b16 %v237
  %v966 = vunpack.c.l.b16 %v238
  %v967 = vunpack.c.h.b16 %v238
  %v968 = vunpack.c.l.b16 %v239
  %v969 = vunpack.c.h.b16 %v239
  %v970 = vunpack.c.l.b16 %v240
  %v971 = vunpack.c.h.b16 %v240
  %v972 = vunpack.c.l.b16 %v241
  %v973 = vunpack.c.h.b16 %v241
  %v974 = vunpack.c.l.b16 %v242
  %v975 = vunpack.c.h.b16 %v242
  %v976 = vunpack.c.l.b16 %v243
  %v977 = vunpack.c.h.b16 %v243
  %v978 = vunpack.c.l.b16 %v244
  %v979 = vunpack.c.h.b16 %v244
  %v980 = vunpack.c.l.b16 %v245
  %v981 = vunpack.c.h.b16 %v245
  %v982 = vunpack.c.l.b16 %v246
  %v983 = vunpack.c.h.b16 %v246
  %v984 = vunpack.c.l.b16 %v247
  %v985 = vunpack.c.h.b16 %v247
  %v986 = vunpack.c.l.b16 %v248
  %v987 = vunpack.c.h.b16 %v248
  %v988 = vunpack.c.l.b16 %v249
  %v989 = vunpack.c.h.b16 %v249
  %v990 = vunpack.c.l.b16 %v250
  %v991 = vunpack.c.h.b16 %v250
  %v992 = vunpack.c.l.b16 %v251
  %v993 = vunpack.c.h.b16 %v251
  %v994 = vpack.c.b16 %v548, %v546
  %v995 = vpack.c.b16 %v549, %v547
  %v996 = vpack.c.b16 %v552, %v550
  %v997 = vpack.c.b16 %v553, %v551
  %v998 = vpack.c.b16 %v556, %v554
  %v999 = vpack.c.b16 %v557, %v555
  %v1000 = vpack.c.b16 %v560, %v558
  %v1001 = vpack.c.b16 %v561, %v559
  %v1002 = vpack.c.b16 %v564, %v562
  %v1003 = vpack.c.b16 %v565, %v563
  %v1004 = vpack.c.b16 %v568, %v566
  %v1005 = vpack.c.b16 %v569, %v567
  %v1006 = vpack.c.b16 %v572, %v570
  %v1007 = vpack.c.b16 %v573, %v571
  %v1008 = vpack.c.b16 %v576, %v574
  %v1009 = vpack.c.b16 %v577, %v575
  %v1010 = vpack.c.b16 %v580, %v578
  %v1011 = vpack.c.b16 %v581, %v579
  %v1012 = vpack.c.b16 %v584, %v582
  %v1013 = vpack.c.b16 %v585, %v583
  %v1014 = vpack.c.b16 %v588, %v586
  %v1015 = vpack.c.b16 %v589, %v587
  %v1016 = vpack.c.b16 %v592, %v590
  %v1017 = vpack.c.b16 %v593, %v591
  %v1018 = vpack.c.b16 %v596, %v594
  %v1019 = vpack.c.b16 %v597, %v595
  %v1020 = vpack.c.b16 %v600, %v598
  %v1021 = vpack.c.b16 %v601, %v599
  %v1022 = vpack.c.b16 %v604, %v602
  %v1023 = vpack.c.b16 %v605, %v603
  %v1024 = vpack.c.b16 %v608, %v606
  %v1025 = vpack.c.b16 %v609, %v607
  %v1026 = vpack.c.b16 %v612, %v610
  %v1027 = vpack.c.b16 %v613, %v611
  %v1028 = vpack.c.b16 %v616, %v614
  %v1029 = vpack.c.b16 %v617, %v615
  %v1030 = vpack.c.b16 %v620, %v618
  %v1031 = vpack.c.b16 %v621, %v619
  %v1032 = vpack.c.b16 %v624, %v622
  %v1033 = vpack.c.b16 %v625, %v623
  %v1034 = vpack.c.b16 %v628, %v626
  %v1035 = vpack.c.b16 %v629, %v627
  %v1036 = vpack.c.b16 %v632, %v630
  %v1037 = vpack.c.b16 %v633, %v631
  %v1038 = vpack.c.b16 %v636, %v634
  %v1039 = vpack.c.b16 %v637, %v635
  %v1040 = vpack.c.b16 %v640, %v638
  %v1041 = vpack.c.b16 %v641, %v639
  %v1042 = vpack.c.b16 %v644, %v642
  %v1043 = vpack.c.b16 %v645, %v643
  %v1044 = vpack.c.b16 %v648, %v646
  %v1045 = vpack.c.b16 %v649, %v647
  %v1046 = vpack.c.b16 %v652, %v650
  %v1047 = vpack.c.b16 %v653, %v651
  %v1048 = vpack.c.b16 %v656, %v654
  %v1049 = vpack.c.b16 %v657, %v655
  %v1050 = vpack.c.b16 %v660, %v658
  %v1051 = vpack.c.b16 %v661, %v659
  %v1052 = vpack.c.b16 %v664, %v662
  %v1053 = vpack.c.b16 %v665, %v663
  %v1054 = vpack.c.b16 %v668, %v666
  %v1055 = vpack.c.b16 %v669, %v667
  %v1056 = vpack.c.b16 %v672, %v670
  %v1057 = vpack.c.b16 %v673, %v671
  %v1058 = vpack.c.b16 %v676, %v674
  %v1059 = vpack.c.b16 %v677, %v675
  %v1060 = vpack.c.b16 %v680, %v678
  %v1061 = vpack.c.b16 %v681, %v679
  %v1062 = vpack.c.b16 %v684, %v682
  %v1063 = vpack.c.b16 %v685, %v683
  %v1064 = vpack.c.b16 %v688, %v686
  %v1065 = vpack.c.b16 %v689, %v687
  %v1066 = vpack.c.b16 %v692, %v690
  %v1067 = vpack.c.b16 %v693, %v691
  %v1068 = vpack.c.b16 %v696, %v694
  %v1069 = vpack.c.b16 %v697, %v695
  %v1070 = vpack.c.b16 %v700, %v698
  %v1071 = vpack.c.b16 %v701, %v699
  %v1072 = vpack.c.b16 %v704, %v702
  %v1073 = vpack.c.b16 %v705, %v703
  %v1074 = vpack.c.b16 %v708, %v706
  %v1075 = vpack.c.b16 %v709, %v707
  %v1076 = vpack.c.b16 %v712, %v710
  %v1077 = vpack.c.b16 %v713, %v711
  %v1078 = vpack.c.b16 %v716, %v714
  %v1079 = vpack.c.b16 %v717, %v715
  %v1080 = vpack.c.b16 %v720, %v718
  %v1081 = vpack.c.b16 %v721, %v719
  %v1082 = vpack.c.b16 %v724, %v722
  %v1083 = vpack.c.b16 %v725, %v723
  %v1084 = vpack.c.b16 %v728, %v726
  %v1085 = vpack.c.b16 %v729, %v727
  %v1086 = vpack.c.b16 %v732, %v730
  %v1087 = vpack.c.b16 %v733, %v731
  %v1088 = vpack.c.b16 %v736, %v734
  %v1089 = vpack.c.b16 %v737, %v735
  %v1090 = vpack.c.b16 %v740, %v738
  %v1091 = vpack.c.b16 %v741, %v739
  %v1092 = vpack.c.b16 %v744, %v742
  %v1093 = vpack.c.b16 %v745, %v743
  %v1094 = vpack.c.b16 %v748, %v746
  %v1095 = vpack.c.b16 %v749, %v747
  %v1096 = vpack.c.b16 %v752, %v750
  %v1097 = vpack.c.b16 %v753, %v751
  %v1098 = vpack.c.b16 %v756, %v754
  %v1099 = vpack.c.b16 %v757, %v755
  %v1100 = vpack.c.b16 %v760, %v758
  %v1101 = vpack.c.b16 %v761, %v759
  %v1102 = vpack.c.b16 %v764, %v762
  %v1103 = vpack.c.b16 %v765, %v763
  %v1104 = vpack.c.b16 %v768, %v766
  %v1105 = vpack.c.b16 %v769, %v767
  %v1106 = vpack.c.b16 %v772, %v770
  %v1107 = vpack.c.b16 %v773, %v771
  %v1108 = vpack.c.b16 %v776, %v774
  %v1109 = vpack.c.b16 %v777, %v775
  %v1110 = vpack.c.b16 %v780, %v778
  %v1111 = vpack.c.b16 %v781, %v779
  %v1112 = vpack.c.b16 %v784, %v782
  %v1113 = vpack.c.b16 %v785, %v783
  %v1114 = vpack.c.b16 %v788, %v786
  %v1115 = vpack.c.b16 %v789, %v787
  %v1116 = vpack.c.b16 %v792, %v790
  %v1117 = vpack.c.b16 %v793, %v791
  %v1118 = vpack.c.b16 %v796, %v794
  %v1119 = vpack.c.b16 %v797, %v795
  %v1120 = vpack.c.b16 %v800, %v798
  %v1121 = vpack.c.b16 %v801, %v799
  %v1122 = vpack.c.b16 %v804, %v802
  %v1123 = vpack.c.b16 %v805, %v803
  %v1124 = vpack.c.b16 %v808, %v806
  %v1125 = vpack.c.b16 %v809, %v807
  %v1126 = vpack.c.b16 %v812, %v810
  %v1127 = vpack.c.b16 %v813, %v811
  %v1128 = vpack.c.b16 %v816, %v814
  %v1129 = vpack.c.b16 %v817, %v815
  %v1130 = vpack.c.b16 %v820, %v818
  %v1131 = vpack.c.b16 %v821, %v819
  %v1132 = vpack.c.b16 %v824, %v822
  %v1133 = vpack.c.b16 %v825, %v823
  %v1134 = vpack.c.b16 %v828, %v826
  %v1135 = vpack.c.b16 %v829, %v827
  %v1136 = vpack.c.b16 %v832, %v830
  %v1137 = vpack.c.b16 %v833, %v831
  %v1138 = vpack.c.b16 %v836, %v834
  %v1139 = vpack.c.b16 %v837, %v835
  %v1140 = vpack.c.b16 %v840, %v838
  %v1141 = vpack.c.b16 %v841, %v839
  %v1142 = vpack.c.b16 %v844, %v842
  %v1143 = vpack.c.b16 %v845, %v843
  %v1144 = vpack.c.b16 %v848, %v846
  %v1145 = vpack.c.b16 %v849, %v847
  %v1146 = vpack.c.b16 %v852, %v850
  %v1147 = vpack.c.b16 %v853, %v851
  %v1148 = vpack.c.b16 %v856, %v854
  %v1149 = vpack.c.b16 %v857, %v855
  %v1150 = vpack.c.b16 %v860, %v858
  %v1151 = vpack.c.b16 %v861, %v859
  %v1152 = vpack.c.b16 %v864, %v862
  %v1153 = vpack.c.b16 %v865, %v863
  %v1154 = vpack.c.b16 %v868, %v866
  %v1155 = vpack.c.b16 %v869, %v867
  %v1156 = vpack.c.b16 %v872, %v870
  %v1157 = vpack.c.b16 %v873, %v871
  %v1158 = vpack.c.b16 %v876, %v874
  %v1159 = vpack.c.b16 %v877, %v875
  %v1160 = vpack.c.b16 %v880, %v878
  %v1161 = vpack.c.b16 %v881, %v879
  %v1162 = vpack.c.b16 %v884, %v882
  %v1163 = vpack.c.b16 %v885, %v883
  %v1164 = vpack.c.b16 %v888, %v886
  %v1165 = vpack.c.b16 %v889, %v887
  %v1166 = vpack.c.b16 %v892, %v890
  %v1167 = vpack.c.b16 %v893, %v891
  %v1168 = vpack.c.b16 %v896, %v894
  %v1169 = vpack.c.b16 %v897, %v895
  %v1170 = vpack.c.b16 %v900, %v898
  %v1171 = vpack.c.b16 %v901, %v899
  %v1172 = vpack.c.b16 %v904, %v902
  %v1173 = vpack.c.b16 %v905, %v903
  %v1174 = vpack.c.b16 %v908, %v906
  %v1175 = vpack.c.b16 %v909, %v907
  %v1176 = vpack.c.b16 %v912, %v910
  %v1177 = vpack.c.b16 %v913, %v911
  %v1178 = vpack.c.b16 %v916, %v914
  %v1179 = vpack.c.b16 %v917, %v915
  %v1180 = vpack.c.b16 %v920, %v918
  %v1181 = vpack.c.b16 %v921, %v919
  %v1182 = vpack.c.b16 %v924, %v922
  %v1183 = vpack.c.b16 %v925, %v923
  %v1184 = vpack.c.b16 %v928, %v926
  %v1185 = vpack.c.b16 %v929, %v927
  %v1186 = vpack.c.b16 %v932, %v930
  %v1187 = vpack.c.b16 %v933, %v931
  %v1188 = vpack.c.b16 %v936, %v934
  %v1189 = vpack.c.b16 %v937, %v935
  %v1190 = vpack.c.b16 %v940, %v938
  %v1191 = vpack.c.b16 %v941, %v939
  %v1192 = vpack.c.b16 %v944, %v942
  %v1193 = vpack.c.b16 %v945, %v943
  %v1194 = vpack.c.b16 %v948, %v946
  %v1195 = vpack.c.b16 %v949, %v947
  %v1196 = vpack.c.b16 %v952, %v950
  %v1197 = vpack.c.b16 %v953, %v951
  %v1198 = vpack.c.b16 %v956, %v954
  %v1199 = vpack.c.b16 %v957, %v955
  %v1200 = vpack.c.b16 %v960, %v958
  %v1201 = vpack.c.b16 %v961, %v959
  %v1202 = vpack.c.b16 %v964, %v962
  %v1203 = vpack.c.b16 %v965, %v963
  %v1204 = vpack.c.b16 %v968, %v966
  %v1205 = vpack.c.b16 %v969, %v967
  %v1206 = vpack.c.b16 %v972, %v970
  %v1207 = vpack.c.b16 %v973, %v971
  %v1208 = vpack.c.b16 %v976, %v974
  %v1209 = vpack.c.b16 %v977, %v975
  %v1210 = vpack.c.b16 %v980, %v978
  %v1211 = vpack.c.b16 %v981, %v979
  %v1212 = vpack.c.b16 %v984, %v982
  %v1213 = vpack.c.b16 %v985, %v983
  %v1214 = vpack.c.b16 %v988, %v986
  %v1215 = vpack.c.b16 %v989, %v987
  %v1216 = vpack.c.b16 %v992, %v990
  %v1217 = vpack.c.b16 %v993, %v991
  %1442 = vmatprep.subr.bf16.mxu0 %v995
  %1443 = vmatpush1.bf16.msra.mxu0 %v994
  %1444 = vmatprep.subr.bf16.mxu0 %v997
  %1445 = vmatpush1.bf16.msra.mxu0 %v996
  %1446 = vmatprep.subr.bf16.mxu0 %v999
  %1447 = vmatpush1.bf16.msra.mxu0 %v998
  %1448 = vmatprep.subr.bf16.mxu0 %v1001
  %1449 = vmatpush1.bf16.msra.mxu0 %v1000
  %1450 = vmatprep.subr.bf16.mxu0 %v1003
  %1451 = vmatpush1.bf16.msra.mxu0 %v1002
  %1452 = vmatprep.subr.bf16.mxu0 %v1005
  %1453 = vmatpush1.bf16.msra.mxu0 %v1004
  %1454 = vmatprep.subr.bf16.mxu0 %v1007
  %1455 = vmatpush1.bf16.msra.mxu0 %v1006
  %1456 = vmatprep.subr.bf16.mxu0 %v1009
  %1457 = vmatpush1.bf16.msra.mxu0 %v1008
  %1458 = vmatprep.subr.bf16.mxu0 %v1011
  %1459 = vmatpush1.bf16.msra.mxu0 %v1010
  %1460 = vmatprep.subr.bf16.mxu0 %v1013
  %1461 = vmatpush1.bf16.msra.mxu0 %v1012
  %1462 = vmatprep.subr.bf16.mxu0 %v1015
  %1463 = vmatpush1.bf16.msra.mxu0 %v1014
  %1464 = vmatprep.subr.bf16.mxu0 %v1017
  %1465 = vmatpush1.bf16.msra.mxu0 %v1016
  %1466 = vmatprep.subr.bf16.mxu0 %v1019
  %1467 = vmatpush1.bf16.msra.mxu0 %v1018
  %1468 = vmatprep.subr.bf16.mxu0 %v1021
  %1469 = vmatpush1.bf16.msra.mxu0 %v1020
  %1470 = vmatprep.subr.bf16.mxu0 %v1023
  %1471 = vmatpush1.bf16.msra.mxu0 %v1022
  %1472 = vmatprep.subr.bf16.mxu0 %v1025
  %1473 = vmatpush1.bf16.msra.mxu0 %v1024
  %1474 = vmatprep.mubr.bf16.mxu0 %v295
  %1475 = vmatmul.mubr.bf16.gmra.mrb[0].mxu0 %v294
  %v1476 = vpop.f32.mrb[0].mxu0
  %v1477 = vadd.f32 0.0, %v1476
  %v1478 = vpop.f32.mrb[0].mxu0
  %v1479 = vadd.f32 0.0, %v1478
  %v1480 = vpop.f32.mrb[0].mxu0
  %v1481 = vadd.f32 0.0, %v1480
  %v1482 = vpop.f32.mrb[0].mxu0
  %v1483 = vadd.f32 0.0, %v1482
  %1484 = vdwg.mxu0
  %1485 = vmatprep.subr.bf16.mxu0 %v1027
  %1486 = vmatpush1.bf16.msra.mxu0 %v1026
  %1487 = vmatprep.subr.bf16.mxu0 %v1029
  %1488 = vmatpush1.bf16.msra.mxu0 %v1028
  %1489 = vmatprep.subr.bf16.mxu0 %v1031
  %1490 = vmatpush1.bf16.msra.mxu0 %v1030
  %1491 = vmatprep.subr.bf16.mxu0 %v1033
  %1492 = vmatpush1.bf16.msra.mxu0 %v1032
  %1493 = vmatprep.subr.bf16.mxu0 %v1035
  %1494 = vmatpush1.bf16.msra.mxu0 %v1034
  %1495 = vmatprep.subr.bf16.mxu0 %v1037
  %1496 = vmatpush1.bf16.msra.mxu0 %v1036
  %1497 = vmatprep.subr.bf16.mxu0 %v1039
  %1498 = vmatpush1.bf16.msra.mxu0 %v1038
  %1499 = vmatprep.subr.bf16.mxu0 %v1041
  %1500 = vmatpush1.bf16.msra.mxu0 %v1040
  %1501 = vmatprep.subr.bf16.mxu0 %v1043
  %1502 = vmatpush1.bf16.msra.mxu0 %v1042
  %1503 = vmatprep.subr.bf16.mxu0 %v1045
  %1504 = vmatpush1.bf16.msra.mxu0 %v1044
  %1505 = vmatprep.subr.bf16.mxu0 %v1047
  %1506 = vmatpush1.bf16.msra.mxu0 %v1046
  %1507 = vmatprep.subr.bf16.mxu0 %v1049
  %1508 = vmatpush1.bf16.msra.mxu0 %v1048
  %1509 = vmatprep.subr.bf16.mxu0 %v1051
  %1510 = vmatpush1.bf16.msra.mxu0 %v1050
  %1511 = vmatprep.subr.bf16.mxu0 %v1053
  %1512 = vmatpush1.bf16.msra.mxu0 %v1052
  %1513 = vmatprep.subr.bf16.mxu0 %v1055
  %1514 = vmatpush1.bf16.msra.mxu0 %v1054
  %1515 = vmatprep.subr.bf16.mxu0 %v1057
  %1516 = vmatpush1.bf16.msra.mxu0 %v1056
  %1517 = vmatprep.mubr.bf16.mxu0 %v297
  %1518 = vmatmul.mubr.bf16.gmra.mrb[0].mxu0 %v296
  %v1519 = vpop.f32.mrb[0].mxu0
  %v1520 = vadd.f32 %v1477, %v1519
  %v1521 = vpop.f32.mrb[0].mxu0
  %v1522 = vadd.f32 %v1479, %v1521
  %v1523 = vpop.f32.mrb[0].mxu0
  %v1524 = vadd.f32 %v1481, %v1523
  %v1525 = vpop.f32.mrb[0].mxu0
  %v1526 = vadd.f32 %v1483, %v1525
  %1527 = vdwg.mxu0
  %1528 = vmatprep.subr.bf16.mxu0 %v1059
  %1529 = vmatpush1.bf16.msra.mxu0 %v1058
  %1530 = vmatprep.subr.bf16.mxu0 %v1061
  %1531 = vmatpush1.bf16.msra.mxu0 %v1060
  %1532 = vmatprep.subr.bf16.mxu0 %v1063
  %1533 = vmatpush1.bf16.msra.mxu0 %v1062
  %1534 = vmatprep.subr.bf16.mxu0 %v1065
  %1535 = vmatpush1.bf16.msra.mxu0 %v1064
  %1536 = vmatprep.subr.bf16.mxu0 %v1067
  %1537 = vmatpush1.bf16.msra.mxu0 %v1066
  %1538 = vmatprep.subr.bf16.mxu0 %v1069
  %1539 = vmatpush1.bf16.msra.mxu0 %v1068
  %1540 = vmatprep.subr.bf16.mxu0 %v1071
  %1541 = vmatpush1.bf16.msra.mxu0 %v1070
  %1542 = vmatprep.subr.bf16.mxu0 %v1073
  %1543 = vmatpush1.bf16.msra.mxu0 %v1072
  %1544 = vmatprep.subr.bf16.mxu0 %v1075
  %1545 = vmatpush1.bf16.msra.mxu0 %v1074
  %1546 = vmatprep.subr.bf16.mxu0 %v1077
  %1547 = vmatpush1.bf16.msra.mxu0 %v1076
  %1548 = vmatprep.subr.bf16.mxu0 %v1079
  %1549 = vmatpush1.bf16.msra.mxu0 %v1078
  %1550 = vmatprep.subr.bf16.mxu0 %v1081
  %1551 = vmatpush1.bf16.msra.mxu0 %v1080
  %1552 = vmatprep.subr.bf16.mxu0 %v1083
  %1553 = vmatpush1.bf16.msra.mxu0 %v1082
  %1554 = vmatprep.subr.bf16.mxu0 %v1085
  %1555 = vmatpush1.bf16.msra.mxu0 %v1084
  %1556 = vmatprep.subr.bf16.mxu0 %v1087
  %1557 = vmatpush1.bf16.msra.mxu0 %v1086
  %1558 = vmatprep.subr.bf16.mxu0 %v1089
  %1559 = vmatpush1.bf16.msra.mxu0 %v1088
  %1560 = vmatprep.mubr.bf16.mxu0 %v299
  %1561 = vmatmul.mubr.bf16.gmra.mrb[0].mxu0 %v298
  %v1562 = vpop.f32.mrb[0].mxu0
  %v1563 = vadd.f32 %v1520, %v1562
  %v1564 = vpop.f32.mrb[0].mxu0
  %v1565 = vadd.f32 %v1522, %v1564
  %v1566 = vpop.f32.mrb[0].mxu0
  %v1567 = vadd.f32 %v1524, %v1566
  %v1568 = vpop.f32.mrb[0].mxu0
  %v1569 = vadd.f32 %v1526, %v1568
  %1570 = vdwg.mxu0
  %1571 = vmatprep.subr.bf16.mxu0 %v1091
  %1572 = vmatpush1.bf16.msra.mxu0 %v1090
  %1573 = vmatprep.subr.bf16.mxu0 %v1093
  %1574 = vmatpush1.bf16.msra.mxu0 %v1092
  %1575 = vmatprep.subr.bf16.mxu0 %v1095
  %1576 = vmatpush1.bf16.msra.mxu0 %v1094
  %1577 = vmatprep.subr.bf16.mxu0 %v1097
  %1578 = vmatpush1.bf16.msra.mxu0 %v1096
  %1579 = vmatprep.subr.bf16.mxu0 %v1099
  %1580 = vmatpush1.bf16.msra.mxu0 %v1098
  %1581 = vmatprep.subr.bf16.mxu0 %v1101
  %1582 = vmatpush1.bf16.msra.mxu0 %v1100
  %1583 = vmatprep.subr.bf16.mxu0 %v1103
  %1584 = vmatpush1.bf16.msra.mxu0 %v1102
  %1585 = vmatprep.subr.bf16.mxu0 %v1105
  %1586 = vmatpush1.bf16.msra.mxu0 %v1104
  %1587 = vmatprep.subr.bf16.mxu0 %v1107
  %1588 = vmatpush1.bf16.msra.mxu0 %v1106
  %1589 = vmatprep.subr.bf16.mxu0 %v1109
  %1590 = vmatpush1.bf16.msra.mxu0 %v1108
  %1591 = vmatprep.subr.bf16.mxu0 %v1111
  %1592 = vmatpush1.bf16.msra.mxu0 %v1110
  %1593 = vmatprep.subr.bf16.mxu0 %v1113
  %1594 = vmatpush1.bf16.msra.mxu0 %v1112
  %1595 = vmatprep.subr.bf16.mxu0 %v1115
  %1596 = vmatpush1.bf16.msra.mxu0 %v1114
  %1597 = vmatprep.subr.bf16.mxu0 %v1117
  %1598 = vmatpush1.bf16.msra.mxu0 %v1116
  %1599 = vmatprep.subr.bf16.mxu0 %v1119
  %1600 = vmatpush1.bf16.msra.mxu0 %v1118
  %1601 = vmatprep.subr.bf16.mxu0 %v1121
  %1602 = vmatpush1.bf16.msra.mxu0 %v1120
  %1603 = vmatprep.mubr.bf16.mxu0 %v301
  %1604 = vmatmul.mubr.bf16.gmra.mrb[0].mxu0 %v300
  %v1605 = vpop.f32.mrb[0].mxu0
  %v1606 = vadd.f32 %v1563, %v1605
  %v1607 = vpop.f32.mrb[0].mxu0
  %v1608 = vadd.f32 %v1565, %v1607
  %v1609 = vpop.f32.mrb[0].mxu0
  %v1610 = vadd.f32 %v1567, %v1609
  %v1611 = vpop.f32.mrb[0].mxu0
  %v1612 = vadd.f32 %v1569, %v1611
  %1613 = vdwg.mxu0
  %1614 = vmatprep.subr.bf16.mxu0 %v1123
  %1615 = vmatpush1.bf16.msra.mxu0 %v1122
  %1616 = vmatprep.subr.bf16.mxu0 %v1125
  %1617 = vmatpush1.bf16.msra.mxu0 %v1124
  %1618 = vmatprep.subr.bf16.mxu0 %v1127
  %1619 = vmatpush1.bf16.msra.mxu0 %v1126
  %1620 = vmatprep.subr.bf16.mxu0 %v1129
  %1621 = vmatpush1.bf16.msra.mxu0 %v1128
  %1622 = vmatprep.subr.bf16.mxu0 %v1131
  %1623 = vmatpush1.bf16.msra.mxu0 %v1130
  %1624 = vmatprep.subr.bf16.mxu0 %v1133
  %1625 = vmatpush1.bf16.msra.mxu0 %v1132
  %1626 = vmatprep.subr.bf16.mxu0 %v1135
  %1627 = vmatpush1.bf16.msra.mxu0 %v1134
  %1628 = vmatprep.subr.bf16.mxu0 %v1137
  %1629 = vmatpush1.bf16.msra.mxu0 %v1136
  %1630 = vmatprep.subr.bf16.mxu0 %v1139
  %1631 = vmatpush1.bf16.msra.mxu0 %v1138
  %1632 = vmatprep.subr.bf16.mxu0 %v1141
  %1633 = vmatpush1.bf16.msra.mxu0 %v1140
  %1634 = vmatprep.subr.bf16.mxu0 %v1143
  %1635 = vmatpush1.bf16.msra.mxu0 %v1142
  %1636 = vmatprep.subr.bf16.mxu0 %v1145
  %1637 = vmatpush1.bf16.msra.mxu0 %v1144
  %1638 = vmatprep.subr.bf16.mxu0 %v1147
  %1639 = vmatpush1.bf16.msra.mxu0 %v1146
  %1640 = vmatprep.subr.bf16.mxu0 %v1149
  %1641 = vmatpush1.bf16.msra.mxu0 %v1148
  %1642 = vmatprep.subr.bf16.mxu0 %v1151
  %1643 = vmatpush1.bf16.msra.mxu0 %v1150
  %1644 = vmatprep.subr.bf16.mxu0 %v1153
  %1645 = vmatpush1.bf16.msra.mxu0 %v1152
  %1646 = vmatprep.mubr.bf16.mxu0 %v303
  %1647 = vmatmul.mubr.bf16.gmra.mrb[0].mxu0 %v302
  %v1648 = vpop.f32.mrb[0].mxu0
  %v1649 = vadd.f32 %v1606, %v1648
  %v1650 = vpop.f32.mrb[0].mxu0
  %v1651 = vadd.f32 %v1608, %v1650
  %v1652 = vpop.f32.mrb[0].mxu0
  %v1653 = vadd.f32 %v1610, %v1652
  %v1654 = vpop.f32.mrb[0].mxu0
  %v1655 = vadd.f32 %v1612, %v1654
  %1656 = vdwg.mxu0
  %1657 = vmatprep.subr.bf16.mxu0 %v1155
  %1658 = vmatpush1.bf16.msra.mxu0 %v1154
  %1659 = vmatprep.subr.bf16.mxu0 %v1157
  %1660 = vmatpush1.bf16.msra.mxu0 %v1156
  %1661 = vmatprep.subr.bf16.mxu0 %v1159
  %1662 = vmatpush1.bf16.msra.mxu0 %v1158
  %1663 = vmatprep.subr.bf16.mxu0 %v1161
  %1664 = vmatpush1.bf16.msra.mxu0 %v1160
  %1665 = vmatprep.subr.bf16.mxu0 %v1163
  %1666 = vmatpush1.bf16.msra.mxu0 %v1162
  %1667 = vmatprep.subr.bf16.mxu0 %v1165
  %1668 = vmatpush1.bf16.msra.mxu0 %v1164
  %1669 = vmatprep.subr.bf16.mxu0 %v1167
  %1670 = vmatpush1.bf16.msra.mxu0 %v1166
  %1671 = vmatprep.subr.bf16.mxu0 %v1169
  %1672 = vmatpush1.bf16.msra.mxu0 %v1168
  %1673 = vmatprep.subr.bf16.mxu0 %v1171
  %1674 = vmatpush1.bf16.msra.mxu0 %v1170
  %1675 = vmatprep.subr.bf16.mxu0 %v1173
  %1676 = vmatpush1.bf16.msra.mxu0 %v1172
  %1677 = vmatprep.subr.bf16.mxu0 %v1175
  %1678 = vmatpush1.bf16.msra.mxu0 %v1174
  %1679 = vmatprep.subr.bf16.mxu0 %v1177
  %1680 = vmatpush1.bf16.msra.mxu0 %v1176
  %1681 = vmatprep.subr.bf16.mxu0 %v1179
  %1682 = vmatpush1.bf16.msra.mxu0 %v1178
  %1683 = vmatprep.subr.bf16.mxu0 %v1181
  %1684 = vmatpush1.bf16.msra.mxu0 %v1180
  %1685 = vmatprep.subr.bf16.mxu0 %v1183
  %1686 = vmatpush1.bf16.msra.mxu0 %v1182
  %1687 = vmatprep.subr.bf16.mxu0 %v1185
  %1688 = vmatpush1.bf16.msra.mxu0 %v1184
  %1689 = vmatprep.mubr.bf16.mxu0 %v305
  %1690 = vmatmul.mubr.bf16.gmra.mrb[0].mxu0 %v304
  %v1691 = vpop.f32.mrb[0].mxu0
  %v1692 = vadd.f32 %v1649, %v1691
  %v1693 = vpop.f32.mrb[0].mxu0
  %v1694 = vadd.f32 %v1651, %v1693
  %v1695 = vpop.f32.mrb[0].mxu0
  %v1696 = vadd.f32 %v1653, %v1695
  %v1697 = vpop.f32.mrb[0].mxu0
  %v1698 = vadd.f32 %v1655, %v1697
  %1699 = vdwg.mxu0
  %1700 = vmatprep.subr.bf16.mxu0 %v1187
  %1701 = vmatpush1.bf16.msra.mxu0 %v1186
  %1702 = vmatprep.subr.bf16.mxu0 %v1189
  %1703 = vmatpush1.bf16.msra.mxu0 %v1188
  %1704 = vmatprep.subr.bf16.mxu0 %v1191
  %1705 = vmatpush1.bf16.msra.mxu0 %v1190
  %1706 = vmatprep.subr.bf16.mxu0 %v1193
  %1707 = vmatpush1.bf16.msra.mxu0 %v1192
  %1708 = vmatprep.subr.bf16.mxu0 %v1195
  %1709 = vmatpush1.bf16.msra.mxu0 %v1194
  %1710 = vmatprep.subr.bf16.mxu0 %v1197
  %1711 = vmatpush1.bf16.msra.mxu0 %v1196
  %1712 = vmatprep.subr.bf16.mxu0 %v1199
  %1713 = vmatpush1.bf16.msra.mxu0 %v1198
  %1714 = vmatprep.subr.bf16.mxu0 %v1201
  %1715 = vmatpush1.bf16.msra.mxu0 %v1200
  %1716 = vmatprep.subr.bf16.mxu0 %v1203
  %1717 = vmatpush1.bf16.msra.mxu0 %v1202
  %1718 = vmatprep.subr.bf16.mxu0 %v1205
  %1719 = vmatpush1.bf16.msra.mxu0 %v1204
  %1720 = vmatprep.subr.bf16.mxu0 %v1207
  %1721 = vmatpush1.bf16.msra.mxu0 %v1206
  %1722 = vmatprep.subr.bf16.mxu0 %v1209
  %1723 = vmatpush1.bf16.msra.mxu0 %v1208
  %1724 = vmatprep.subr.bf16.mxu0 %v1211
  %1725 = vmatpush1.bf16.msra.mxu0 %v1210
  %1726 = vmatprep.subr.bf16.mxu0 %v1213
  %1727 = vmatpush1.bf16.msra.mxu0 %v1212
  %1728 = vmatprep.subr.bf16.mxu0 %v1215
  %1729 = vmatpush1.bf16.msra.mxu0 %v1214
  %1730 = vmatprep.subr.bf16.mxu0 %v1217
  %1731 = vmatpush1.bf16.msra.mxu0 %v1216
  %1732 = vmatprep.mubr.bf16.mxu0 %v307
  %1733 = vmatmul.mubr.bf16.gmra.mrb[0].mxu0 %v306
  %v1734 = vpop.f32.mrb[0].mxu0
  %v1735 = vadd.f32 %v1692, %v1734
  %v1736 = vpop.f32.mrb[0].mxu0
  %v1737 = vadd.f32 %v1694, %v1736
  %v1738 = vpop.f32.mrb[0].mxu0
  %v1739 = vadd.f32 %v1696, %v1738
  %v1740 = vpop.f32.mrb[0].mxu0
  %v1741 = vadd.f32 %v1698, %v1740
  %1742 = vdwg.mxu0
  %1743 = vst [vmem:[%s2] sm:$0xff] %v1735
  %1744 = vst [vmem:[%s2 + $0x8] sm:$0xff] %v1737
  %1745 = vst [vmem:[%s2 + $0x10] sm:$0xff] %v1739
  %1746 = vst [vmem:[%s2 + $0x18] sm:$0xff] %v1741
  %v1747 = vadd.f32 %v1735, %v1739
  %v1748 = vrot.slane %v1747, 4
  %v1749 = vadd.f32 %v1747, %v1748
  %v1750 = vrot.slane %v1749, 2
  %v1751 = vadd.f32 %v1749, %v1750
  %v1752 = vrot.slane %v1751, 1
  %v1753 = vadd.f32 %v1751, %v1752
  %v1754 = vadd.f32 %v1737, %v1741
  %v1755 = vrot.slane %v1754, 4
  %v1756 = vadd.f32 %v1754, %v1755
  %v1757 = vrot.slane %v1756, 2
  %v1758 = vadd.f32 %v1756, %v1757
  %v1759 = vrot.slane %v1758, 1
  %v1760 = vadd.f32 %v1758, %v1759
  %v1763 = vcombine.low %v1753, %v1760
  %v1765 = vunpack.c.l.s4 1966171168
  %v1766 = vunpack.c.0.s8 %v1765
  %v1767 = vlaneseq
  %v1768 = vshrl.u32 %v1767, 7
  %v1769 = vsub.s32 %v1766, %v1768
  %v1770 = vrot.slane %v1763, %v1769
  %v1772 = vunpack.c.l.s4 1966171168
  %v1773 = vunpack.c.0.s8 %v1772
  %v1774 = vlaneseq
  %v1775 = vshrl.u32 %v1774, 7
  %v1776 = vsub.s32 %v1773, %v1775
  %v1777 = vrot.slane %v1770, %v1776
  %v1779 = vlaneseq
  %vm1780 = vcmp.ge.s32.totalorder %v1779, 0
  %vm1781 = vcmp.lt.s32.totalorder %v1779, 256
  %vm1782 = vmand %vm1780, %vm1781
  %1783 = vst.msk [vmem:[%s3] sm:$0x3] %vm1782, %v1777
  %v1784 = vmul.f32 %v1735, %v1735
  %v1785 = vmul.f32 %v1737, %v1737
  %v1786 = vmul.f32 %v1739, %v1739
  %v1787 = vmul.f32 %v1741, %v1741
  %v1788 = vadd.f32 %v1784, %v1786
  %v1789 = vrot.slane %v1788, 4
  %v1790 = vadd.f32 %v1788, %v1789
  %v1791 = vrot.slane %v1790, 2
  %v1792 = vadd.f32 %v1790, %v1791
  %v1793 = vrot.slane %v1792, 1
  %v1794 = vadd.f32 %v1792, %v1793
  %v1795 = vadd.f32 %v1785, %v1787
  %v1796 = vrot.slane %v1795, 4
  %v1797 = vadd.f32 %v1795, %v1796
  %v1798 = vrot.slane %v1797, 2
  %v1799 = vadd.f32 %v1797, %v1798
  %v1800 = vrot.slane %v1799, 1
  %v1801 = vadd.f32 %v1799, %v1800
  %v1804 = vcombine.low %v1794, %v1801
  %v1806 = vunpack.c.l.s4 1966171168
  %v1807 = vunpack.c.0.s8 %v1806
  %v1808 = vlaneseq
  %v1809 = vshrl.u32 %v1808, 7
  %v1810 = vsub.s32 %v1807, %v1809
  %v1811 = vrot.slane %v1804, %v1810
  %v1813 = vunpack.c.l.s4 1966171168
  %v1814 = vunpack.c.0.s8 %v1813
  %v1815 = vlaneseq
  %v1816 = vshrl.u32 %v1815, 7
  %v1817 = vsub.s32 %v1814, %v1816
  %v1818 = vrot.slane %v1811, %v1817
  %1820 = vst.msk [vmem:[%s4] sm:$0x3] %vm1782, %v1818
  // Predicated region
  $region10: #{inception_stem_forward.41} parent=0 // pred_check
    _
  $region11: #{inception_stem_forward.41} parent=0 // pred_check_branch
    %1822 = sbr.rel (0) target = $region13
  $region12: #{inception_stem_forward.41} parent=0 // pred_region
    _
  $region13: #{inception_stem_forward.41} parent=0 // pred_fallthru
    _
  // Predicated region
  $region14: #{inception_stem_forward.41} parent=0 // pred_check
    _
  $region15: #{inception_stem_forward.41} parent=0 // pred_check_branch
    %1824 = sbr.rel (0) target = $region17
  $region16: #{inception_stem_forward.41} parent=0 // pred_region
    _
  $region17: #{inception_stem_forward.41} parent=0 // pred_fallthru
    _
  // Predicated region
  $region18: #{inception_stem_forward.41} parent=0 // pred_check
    _
  $region19: #{inception_stem_forward.41} parent=0 // pred_check_branch
    %1826 = sbr.rel (0) target = $region21
  $region20: #{inception_stem_forward.41} parent=0 // pred_region
    _
  $region21: #{inception_stem_forward.41} parent=0 // pred_fallthru
    _
  // Predicated region
  $region22: #{inception_stem_forward.41} parent=0 // pred_check
    _
  $region23: #{inception_stem_forward.41} parent=0 // pred_check_branch
    %1828 = sbr.rel (0) target = $region25
  $region24: #{inception_stem_forward.41} parent=0 // pred_region
    _
  $region25: #{inception_stem_forward.41} parent=0 // pred_fallthru
    _
  // Predicated region
  $region26: #{inception_stem_forward.41} parent=0 // pred_check
    _
  $region27: #{inception_stem_forward.41} parent=0 // pred_check_branch
    %1830 = sbr.rel (0) target = $region29
  $region28: #{inception_stem_forward.41} parent=0 // pred_region
    _
  $region29: #{inception_stem_forward.41} parent=0 // pred_fallthru
    _
  // Predicated region
  $region30: #{inception_stem_forward.41} parent=0 // pred_check
    _
  $region31: #{inception_stem_forward.41} parent=0 // pred_check_branch
    %1832 = sbr.rel (0) target = $region33
  $region32: #{inception_stem_forward.41} parent=0 // pred_region
    _
  $region33: #{inception_stem_forward.41} parent=0 // pred_fallthru
    _

// kernel: inception_stem_forward.42
$region0: #{inception_stem_forward.42}
  #allocation0 [shape = 'u32[]', space=smem, size = 0x4, offset = 0x4, fixed_abs, tag = 'smem constant byte address 0x4 - core index']
  #allocation1 [shape = 'u32[144,128]{1,0:T(1,128)}', space=vmem, size = 0x12000, scoped, tag = 'internal scratch']
  %s0 = inlined_call_operand.vmem [shape: f32[16,256], index: 0, kind: input, shape index: {}]
  %s1 = inlined_call_operand.vmem [shape: f32[2,256], index: 1, kind: input, shape index: {}]
  %s2 = inlined_call_operand.vmem [shape: f32[2,256], index: 2, kind: input, shape index: {}]
  %s3 = inlined_call_operand.vmem [shape: f32[16,256], index: 3, kind: output, shape index: {}]
  %s4 = sld [smem:[#allocation0]]
  $region22: #{inception_stem_forward.42} parent=0
    _
  %s6 = ssub.s32 1, %s4
  %s7 = scalar_select 0, %s6, %s4
  // Predicated region
  $region2: #{inception_stem_forward.42} parent=0 // pred_check
    _
  $region3: #{inception_stem_forward.42} parent=0 // pred_check_branch
    %9 = sbr.rel (0) target = $region5
  $region4: #{inception_stem_forward.42} parent=0 // pred_region
    _
  $region5: #{inception_stem_forward.42} parent=0 // pred_fallthru
    _
  // Predicated region
  $region6: #{inception_stem_forward.42} parent=0 // pred_check
    _
  $region7: #{inception_stem_forward.42} parent=0 // pred_check_branch
    %11 = sbr.rel (0) target = $region9
  $region8: #{inception_stem_forward.42} parent=0 // pred_region
    _
  $region9: #{inception_stem_forward.42} parent=0 // pred_fallthru
    _
  // Predicated region
  $region10: #{inception_stem_forward.42} parent=0 // pred_check
    _
  $region11: #{inception_stem_forward.42} parent=0 // pred_check_branch
    %13 = sbr.rel (0) target = $region13
  $region12: #{inception_stem_forward.42} parent=0 // pred_region
    _
  $region13: #{inception_stem_forward.42} parent=0 // pred_fallthru
    _
  %v14 = vld [vmem:[%s1] ss:$2 sm:$0x3]
  %v15 = vmul.f32 %v14, 0.125
  %s16 = scalar_lea.vmem %s1, 1
  %v17 = vld [vmem:[%s16] ss:$2 sm:$0x3]
  %v18 = vmul.f32 %v17, 0.125
  %v19 = vmul.f32 %v15, %v15
  %v20 = vsub.f32 %v18, %v19
  %v21 = vmax.f32 %v20, 0.0
  %v22 = vld [vmem:[%s2] ss:$2 sm:$0x3]
  %v23 = vadd.f32 %v21, 0.001
  %v24 = vrsqrt.pop %v23
  %v25 = vmul.f32 %v22, %v24
  %s26 = scalar_lea.vmem %s2, 1
  %v27 = vld [vmem:[%s26] ss:$2 sm:$0x3]
  %v28 = vmul.f32 %v15, %v25
  %v29 = vsub.f32 %v27, %v28
  %v30 = vld [vmem:[%s0] sm:$0xff]
  %v31 = vld [vmem:[%s0 + $0x8] sm:$0xff]
  %v32 = vld [vmem:[%s0 + $0x10] sm:$0xff]
  %v33 = vld [vmem:[%s0 + $0x18] sm:$0xff]
  %v35 = vlaneseq
  %v36 = vshrl.u32 %v35, 7
  %v37 = vsub.s32 0, %v36
  %v38 = vrot.slane %v25, %v37
  %v39 = vlaneseq
  %v40 = vshrl.u32 %v39, 7
  %v41 = vsub.s32 1, %v40
  %v42 = vrot.slane %v25, %v41
  %v45 = vmul.f32 %v30, %v38
  %v46 = vmul.f32 %v31, %v42
  %v47 = vmul.f32 %v32, %v38
  %v48 = vmul.f32 %v33, %v42
  %v50 = vlaneseq
  %v51 = vshrl.u32 %v50, 7
  %v52 = vsub.s32 0, %v51
  %v53 = vrot.slane %v29, %v52
  %v54 = vlaneseq
  %v55 = vshrl.u32 %v54, 7
  %v56 = vsub.s32 1, %v55
  %v57 = vrot.slane %v29, %v56
  %v60 = vadd.f32 %v45, %v53
  %v61 = vadd.f32 %v46, %v57
  %v62 = vadd.f32 %v47, %v53
  %v63 = vadd.f32 %v48, %v57
  %v64 = vmax.f32 %v60, 0.0
  %v65 = vmax.f32 %v61, 0.0
  %v66 = vmax.f32 %v62, 0.0
  %v67 = vmax.f32 %v63, 0.0
  %68 = vst [vmem:[%s3] sm:$0xff] %v64
  %69 = vst [vmem:[%s3 + $0x8] sm:$0xff] %v65
  %70 = vst [vmem:[%s3 + $0x10] sm:$0xff] %v66
  %71 = vst [vmem:[%s3 + $0x18] sm:$0xff] %v67
  // Predicated region
  $region14: #{inception_stem_forward.42} parent=0 // pred_check
    _
  $region15: #{inception_stem_forward.42} parent=0 // pred_check_branch
    %73 = sbr.rel (0) target = $region17
  $region16: #{inception_stem_forward.42} parent=0 // pred_region
    _
  $region17: #{inception_stem_forward.42} parent=0 // pred_fallthru
    _
  // Predicated region
  $region18: #{inception_stem_forward.42} parent=0 // pred_check
    _
  $region19: #{inception_stem_forward.42} parent=0 // pred_check_branch
    %75 = sbr.rel (0) target = $region21
  $region20: #{inception_stem_forward.42} parent=0 // pred_region
    _
  $region21: #{inception_stem_forward.42} parent=0 // pred_fallthru
    _

// kernel: inception_stem_forward.43
$region0: #{inception_stem_forward.43}
  #allocation0 [shape = 'u32[]', space=smem, size = 0x4, offset = 0x4, fixed_abs, tag = 'smem constant byte address 0x4 - core index']
  #allocation1 [shape = 'u32[144,128]{1,0:T(1,128)}', space=vmem, size = 0x12000, scoped, tag = 'internal scratch']
  %s0 = inlined_call_operand.vmem [shape: f32[16,192], index: 0, kind: input, shape index: {}]
  %s1 = inlined_call_operand.vmem [shape: f32[16,192], index: 1, kind: input, shape index: {}]
  %s2 = inlined_call_operand.vmem [shape: f32[16,192], index: 2, kind: input, shape index: {}]
  %s3 = inlined_call_operand.vmem [shape: f32[16,192], index: 3, kind: input, shape index: {}]
  %s4 = inlined_call_operand.vmem [shape: f32[16,192], index: 4, kind: input, shape index: {}]
  %s5 = inlined_call_operand.vmem [shape: f32[16,192], index: 5, kind: input, shape index: {}]
  %s6 = inlined_call_operand.vmem [shape: f32[16,192], index: 6, kind: input, shape index: {}]
  %s7 = inlined_call_operand.vmem [shape: f32[16,192], index: 7, kind: input, shape index: {}]
  %s8 = inlined_call_operand.vmem [shape: f32[16,192], index: 8, kind: input, shape index: {}]
  %s9 = inlined_call_operand.vmem [shape: f32[16,192], index: 9, kind: output, shape index: {}]
  %s10 = sld [smem:[#allocation0]]
  $region46: #{inception_stem_forward.43} parent=0
    _
  %s12 = ssub.s32 1, %s10
  %s13 = scalar_select 0, %s12, %s10
  // Predicated region
  $region2: #{inception_stem_forward.43} parent=0 // pred_check
    _
  $region3: #{inception_stem_forward.43} parent=0 // pred_check_branch
    %15 = sbr.rel (0) target = $region5
  $region4: #{inception_stem_forward.43} parent=0 // pred_region
    _
  $region5: #{inception_stem_forward.43} parent=0 // pred_fallthru
    _
  // Predicated region
  $region6: #{inception_stem_forward.43} parent=0 // pred_check
    _
  $region7: #{inception_stem_forward.43} parent=0 // pred_check_branch
    %17 = sbr.rel (0) target = $region9
  $region8: #{inception_stem_forward.43} parent=0 // pred_region
    _
  $region9: #{inception_stem_forward.43} parent=0 // pred_fallthru
    _
  // Predicated region
  $region10: #{inception_stem_forward.43} parent=0 // pred_check
    _
  $region11: #{inception_stem_forward.43} parent=0 // pred_check_branch
    %19 = sbr.rel (0) target = $region13
  $region12: #{inception_stem_forward.43} parent=0 // pred_region
    _
  $region13: #{inception_stem_forward.43} parent=0 // pred_fallthru
    _
  // Predicated region
  $region14: #{inception_stem_forward.43} parent=0 // pred_check
    _
  $region15: #{inception_stem_forward.43} parent=0 // pred_check_branch
    %21 = sbr.rel (0) target = $region17
  $region16: #{inception_stem_forward.43} parent=0 // pred_region
    _
  $region17: #{inception_stem_forward.43} parent=0 // pred_fallthru
    _
  // Predicated region
  $region18: #{inception_stem_forward.43} parent=0 // pred_check
    _
  $region19: #{inception_stem_forward.43} parent=0 // pred_check_branch
    %23 = sbr.rel (0) target = $region21
  $region20: #{inception_stem_forward.43} parent=0 // pred_region
    _
  $region21: #{inception_stem_forward.43} parent=0 // pred_fallthru
    _
  // Predicated region
  $region22: #{inception_stem_forward.43} parent=0 // pred_check
    _
  $region23: #{inception_stem_forward.43} parent=0 // pred_check_branch
    %25 = sbr.rel (0) target = $region25
  $region24: #{inception_stem_forward.43} parent=0 // pred_region
    _
  $region25: #{inception_stem_forward.43} parent=0 // pred_fallthru
    _
  // Predicated region
  $region26: #{inception_stem_forward.43} parent=0 // pred_check
    _
  $region27: #{inception_stem_forward.43} parent=0 // pred_check_branch
    %27 = sbr.rel (0) target = $region29
  $region28: #{inception_stem_forward.43} parent=0 // pred_region
    _
  $region29: #{inception_stem_forward.43} parent=0 // pred_fallthru
    _
  // Predicated region
  $region30: #{inception_stem_forward.43} parent=0 // pred_check
    _
  $region31: #{inception_stem_forward.43} parent=0 // pred_check_branch
    %29 = sbr.rel (0) target = $region33
  $region32: #{inception_stem_forward.43} parent=0 // pred_region
    _
  $region33: #{inception_stem_forward.43} parent=0 // pred_fallthru
    _
  // Predicated region
  $region34: #{inception_stem_forward.43} parent=0 // pred_check
    _
  $region35: #{inception_stem_forward.43} parent=0 // pred_check_branch
    %31 = sbr.rel (0) target = $region37
  $region36: #{inception_stem_forward.43} parent=0 // pred_region
    _
  $region37: #{inception_stem_forward.43} parent=0 // pred_fallthru
    _
  %v32 = vld [vmem:[%s0] sm:$0xff]
  %v33 = vld [vmem:[%s0 + $0x8] sm:$0xff]
  %v34 = vld [vmem:[%s0 + $0x10] sm:$0xff]
  %v35 = vld [vmem:[%s0 + $0x18] sm:$0xff]
  %v36 = vld [vmem:[%s1] sm:$0xff]
  %v37 = vld [vmem:[%s1 + $0x8] sm:$0xff]
  %v38 = vld [vmem:[%s1 + $0x10] sm:$0xff]
  %v39 = vld [vmem:[%s1 + $0x18] sm:$0xff]
  %v40 = vmax.f32 %v32, %v36
  %v41 = vmax.f32 %v33, %v37
  %v42 = vmax.f32 %v34, %v38
  %v43 = vmax.f32 %v35, %v39
  %v44 = vld [vmem:[%s2] sm:$0xff]
  %v45 = vld [vmem:[%s2 + $0x8] sm:$0xff]
  %v46 = vld [vmem:[%s2 + $0x10] sm:$0xff]
  %v47 = vld [vmem:[%s2 + $0x18] sm:$0xff]
  %v48 = vmax.f32 %v40, %v44
  %v49 = vmax.f32 %v41, %v45
  %v50 = vmax.f32 %v42, %v46
  %v51 = vmax.f32 %v43, %v47
  %v52 = vld [vmem:[%s3] sm:$0xff]
  %v53 = vld [vmem:[%s3 + $0x8] sm:$0xff]
  %v54 = vld [vmem:[%s3 + $0x10] sm:$0xff]
  %v55 = vld [vmem:[%s3 + $0x18] sm:$0xff]
  %v56 = vmax.f32 %v48, %v52
  %v57 = vmax.f32 %v49, %v53
  %v58 = vmax.f32 %v50, %v54
  %v59 = vmax.f32 %v51, %v55
  %v60 = vld [vmem:[%s4] sm:$0xff]
  %v61 = vld [vmem:[%s4 + $0x8] sm:$0xff]
  %v62 = vld [vmem:[%s4 + $0x10] sm:$0xff]
  %v63 = vld [vmem:[%s4 + $0x18] sm:$0xff]
  %v64 = vmax.f32 %v56, %v60
  %v65 = vmax.f32 %v57, %v61
  %v66 = vmax.f32 %v58, %v62
  %v67 = vmax.f32 %v59, %v63
  %v68 = vld [vmem:[%s5] sm:$0xff]
  %v69 = vld [vmem:[%s5 + $0x8] sm:$0xff]
  %v70 = vld [vmem:[%s5 + $0x10] sm:$0xff]
  %v71 = vld [vmem:[%s5 + $0x18] sm:$0xff]
  %v72 = vmax.f32 %v64, %v68
  %v73 = vmax.f32 %v65, %v69
  %v74 = vmax.f32 %v66, %v70
  %v75 = vmax.f32 %v67, %v71
  %v76 = vld [vmem:[%s6] sm:$0xff]
  %v77 = vld [vmem:[%s6 + $0x8] sm:$0xff]
  %v78 = vld [vmem:[%s6 + $0x10] sm:$0xff]
  %v79 = vld [vmem:[%s6 + $0x18] sm:$0xff]
  %v80 = vmax.f32 %v72, %v76
  %v81 = vmax.f32 %v73, %v77
  %v82 = vmax.f32 %v74, %v78
  %v83 = vmax.f32 %v75, %v79
  %v84 = vld [vmem:[%s7] sm:$0xff]
  %v85 = vld [vmem:[%s7 + $0x8] sm:$0xff]
  %v86 = vld [vmem:[%s7 + $0x10] sm:$0xff]
  %v87 = vld [vmem:[%s7 + $0x18] sm:$0xff]
  %v88 = vmax.f32 %v80, %v84
  %v89 = vmax.f32 %v81, %v85
  %v90 = vmax.f32 %v82, %v86
  %v91 = vmax.f32 %v83, %v87
  %v92 = vld [vmem:[%s8] sm:$0xff]
  %v93 = vld [vmem:[%s8 + $0x8] sm:$0xff]
  %v94 = vld [vmem:[%s8 + $0x10] sm:$0xff]
  %v95 = vld [vmem:[%s8 + $0x18] sm:$0xff]
  %v96 = vmax.f32 %v88, %v92
  %v97 = vmax.f32 %v89, %v93
  %v98 = vmax.f32 %v90, %v94
  %v99 = vmax.f32 %v91, %v95
  %100 = vst [vmem:[%s9] sm:$0xff] %v96
  %vm101 = vcmask 523264
  %102 = vst.msk [vmem:[%s9 + $0x8] sm:$0xff] %vm101, %v97
  %103 = vst [vmem:[%s9 + $0x10] sm:$0xff] %v98
  %104 = vst.msk [vmem:[%s9 + $0x18] sm:$0xff] %vm101, %v99
  // Predicated region
  $region38: #{inception_stem_forward.43} parent=0 // pred_check
    _
  $region39: #{inception_stem_forward.43} parent=0 // pred_check_branch
    %106 = sbr.rel (0) target = $region41
  $region40: #{inception_stem_forward.43} parent=0 // pred_region
    _
  $region41: #{inception_stem_forward.43} parent=0 // pred_fallthru
    _
  // Predicated region
  $region42: #{inception_stem_forward.43} parent=0 // pred_check
    _
  $region43: #{inception_stem_forward.43} parent=0 // pred_check_branch
    %108 = sbr.rel (0) target = $region45
  $region44: #{inception_stem_forward.43} parent=0 // pred_region
    _
  $region45: #{inception_stem_forward.43} parent=0 // pred_fallthru
    _

</llo_original>
